<compile_context>
chip_gen: v5e
topology: v5e:2x2
jax: 0.10.0
libtpu: 0.0.40
codegen_flags: <defaults>
</compile_context>

<pallas_src>
import functools

import jax
import jax.numpy as jnp
from jax import lax
from jax.experimental import pallas as pl
from jax.experimental.pallas import tpu as pltpu

GAMMA = 0.1


def _round_up(x, m):
    return (x + m - 1) // m * m


# ---------------------------------------------------------------------------
# Fused kernel body, grid point (i, j):
#   arg    = x1_aug_i . x2_aug_j + rn1_i          (MXU + one broadcast add)
#   k_tile = exp(min(arg, 0))                     (VPU min + EUP exp)
#   out_i += k_tile @ alpha_j                     (MXU matvec, f32 accumulate)
#   at j == last:  out_i += b
# ---------------------------------------------------------------------------
def _fused_svm_kernel(x1_ref, x2_ref, rn1_ref, alpha_ref, b_ref, out_ref, *,
                      exp_in_bf16):
    j = pl.program_id(1)

    @pl.when(j == 0)
    def _():
        out_ref[...] = jnp.zeros_like(out_ref)

    # 2*gamma*<x1,x2> - gamma*||x2||^2 in one MXU contraction (augmented feature),
    # contracting the LAST dim of both operands (no in-kernel transpose).
    arg = lax.dot_general(
        x1_ref[...], x2_ref[...],
        dimension_numbers=(((1,), (1,)), ((), ())),
        preferred_element_type=jnp.float32)                 # (tm, tn)

    # + (-gamma*||x1||^2), then clamp: exp(-g*max(d2,0)) == exp(min(arg, 0)).
    arg = jnp.minimum(arg + rn1_ref[...], 0.0)

    if exp_in_bf16:
        # v6e/v7x EUP lever (~2x exp throughput); accumulation stays f32.
        k_tile = jnp.exp(arg.astype(jnp.bfloat16))
    else:
        k_tile = jnp.exp(arg)                               # (tm, tn)

    # Alpha contraction on the MXU (it is nearly idle: contraction dim is d+1).
    out_ref[...] += jnp.dot(k_tile, alpha_ref[...].astype(k_tile.dtype),
                            preferred_element_type=jnp.float32)

    @pl.when(j == pl.num_programs(1) - 1)
    def _():
        out_ref[...] += b_ref[0]


# ---------------------------------------------------------------------------
# Wrapper: out = exp(-GAMMA * cdist(x, x)^2) @ alpha + b   (K never built in HBM)
# ---------------------------------------------------------------------------
def svm_rbf_forward(x, alpha, b, *, tm=512, tn=1024, exp_in_bf16=False):
    n, d = x.shape
    x = x.astype(jnp.float32)
    alpha = alpha.reshape(-1).astype(jnp.float32)
    b_arr = jnp.asarray(b, jnp.float32).reshape(1)

    # Row tile: multiple of 8 (sublane).  Cap at ~n/2 so the "parallel" row axis
    # has >= 2 blocks whenever possible (v7x has 2 TensorCores).
    tm = min(tm, _round_up((n + 1) // 2, 8))
    # Column tile: multiple of 128 (lane), kept the larger of the two.
    tn = min(tn, _round_up(n, 128))

    n1p = _round_up(n, tm)
    n2p = _round_up(n, tn)
    d_aug = d + 1

    # Precomputed norms (O(N*D) wrapper work replaces O(N^2) in-kernel VPU work).
    sq = jnp.sum(x * x, axis=-1, keepdims=True)             # (n, 1)

    # Augmented operands: x1_aug.x2_aug = 2*gamma*<x1,x2> - gamma*||x2||^2.
    x1_aug = jnp.concatenate([x, jnp.ones((n, 1), jnp.float32)], axis=1)
    x1_aug = jnp.pad(x1_aug, ((0, n1p - n), (0, 0)))
    x2_aug = jnp.concatenate([(2.0 * GAMMA) * x, -GAMMA * sq], axis=1)
    x2_aug = jnp.pad(x2_aug, ((0, n2p - n), (0, 0)))

    rn1 = jnp.pad(-GAMMA * sq, ((0, n1p - n), (0, 0)))       # (n1p, 1)
    # Padded columns carry alpha == 0 -> contribute nothing to the matvec.
    alpha_col = jnp.pad(alpha.reshape(n, 1), ((0, n2p - n), (0, 0)))

    grid = (n1p // tm, n2p // tn)

    cost = pl.CostEstimate(
        flops=2 * n1p * n2p * d_aug + 2 * n1p * n2p,
        transcendentals=n1p * n2p,
        bytes_accessed=4 * (n1p * d_aug + grid[0] * n2p * d_aug
                            + n1p + n2p + n1p),
    )

    out = pl.pallas_call(
        functools.partial(_fused_svm_kernel, exp_in_bf16=exp_in_bf16),
        out_shape=jax.ShapeDtypeStruct((n1p, 1), jnp.float32),
        grid=grid,
        in_specs=[
            pl.BlockSpec((tm, d_aug), lambda i, j: (i, 0)),   # augmented row tile
            pl.BlockSpec((tn, d_aug), lambda i, j: (j, 0)),   # augmented col tile
            pl.BlockSpec((tm, 1), lambda i, j: (i, 0)),       # -gamma*||x1||^2
            pl.BlockSpec((tn, 1), lambda i, j: (j, 0)),       # alpha column
            pl.BlockSpec(memory_space=pltpu.MemorySpace.SMEM),  # b scalar
        ],
        # Output block index is (i, 0) for all j -> resident accumulator.
        out_specs=pl.BlockSpec((tm, 1), lambda i, j: (i, 0)),
        compiler_params=pltpu.CompilerParams(
            dimension_semantics=("parallel", "arbitrary"),
            vmem_limit_bytes=48 * 1024 * 1024),               # safe on v5e/v6e/v7x
        cost_estimate=cost,
    )(x1_aug, x2_aug, rn1, alpha_col, b_arr)

    return out[:n, 0]


if __name__ == "__main__":
    key = jax.random.PRNGKey(0)
    k_x, k_alpha = jax.random.split(key)

    # N samples, D features; default tiles give grid=(2, 1) with 512x1024 tiles.
    N, D = 1024, 32
    X = jax.random.normal(k_x, (N, D), dtype=jnp.float32)

    # Module parameters: alpha ~ randn(N), b = zeros(1).
    alpha = jax.random.normal(k_alpha, (N,), dtype=jnp.float32)
    b = jnp.zeros((1,), dtype=jnp.float32)

    # Fused Pallas forward (exact f32 path; set exp_in_bf16=True on v6e/v7x after
    # verifying tolerance for your data).
    out = svm_rbf_forward(X, alpha, b)
    out = jax.block_until_ready(out)

    # Pure-JAX reference at full precision.
    sq = jnp.sum(X * X, axis=1)
    cross = jnp.dot(X, X.T, precision=jax.lax.Precision.HIGHEST)
    sq_dist_ref = jnp.maximum(sq[:, None] + sq[None, :] - 2.0 * cross, 0.0)
    K_ref = jnp.exp(-GAMMA * sq_dist_ref)
    out_ref = jnp.dot(K_ref, alpha, precision=jax.lax.Precision.HIGHEST) + b[0]

    assert out.shape == (N,)
    assert jnp.allclose(out, out_ref, atol=1e-3, rtol=1e-3)
    print("KERNEL_OK")
</pallas_src>

<mosaic_0001>
module attributes {stable_mosaic.version = 11 : i64} {
  func.func @_fused_svm_kernel(%arg0: i32, %arg1: i32, %arg2: memref<512x33xf32, #tpu.memory_space<vmem>>, %arg3: memref<1024x33xf32, #tpu.memory_space<vmem>>, %arg4: memref<512x1xf32, #tpu.memory_space<vmem>>, %arg5: memref<1024x1xf32, #tpu.memory_space<vmem>>, %arg6: memref<1xf32, #tpu.memory_space<smem>>, %arg7: memref<512x1xf32, #tpu.memory_space<vmem>>) attributes {dimension_semantics = [#tpu.dimension_semantics<parallel>, #tpu.dimension_semantics<arbitrary>], iteration_bounds = array<i64: 2, 1>, scalar_prefetch = 0 : i64, scratch_operands = 0 : i64, tpu.core_type = #tpu.core_type<tc>, window_params = [{transform_indices = @transform_0, window_bounds = array<i64: 512, 33>}, {transform_indices = @transform_1, window_bounds = array<i64: 1024, 33>}, {transform_indices = @transform_2, window_bounds = array<i64: 512, 1>}, {transform_indices = @transform_3, window_bounds = array<i64: 1024, 1>}, {transform_indices = @transform_4, window_bounds = array<i64: 1>}, {transform_indices = @transform_5, window_bounds = array<i64: 512, 1>}]} {
    %c0_i32 = arith.constant 0 : i32
    %0 = arith.cmpi eq, %arg1, %c0_i32 : i32
    %1 = arith.extui %0 : i1 to i32
    %c0_i32_0 = arith.constant 0 : i32
    %2 = arith.cmpi ne, %1, %c0_i32_0 : i32
    scf.if %2 {
      %cst_16 = arith.constant 0.000000e+00 : f32
      %20 = vector.broadcast %cst_16 : f32 to vector<512x1xf32>
      %c0_17 = arith.constant 0 : index
      %c0_18 = arith.constant 0 : index
      %21 = vector.load %arg7[%c0_17, %c0_18] : memref<512x1xf32, #tpu.memory_space<vmem>>, vector<512x1xf32>
      tpu.vector_store %arg7[%c0_17, %c0_18], %20 {strides = array<i32>} : memref<512x1xf32, #tpu.memory_space<vmem>>, vector<512x1xf32>,
    } else {
    }
    %c0 = arith.constant 0 : index
    %c0_1 = arith.constant 0 : index
    %3 = vector.load %arg2[%c0, %c0_1] : memref<512x33xf32, #tpu.memory_space<vmem>>, vector<512x33xf32>
    %c0_2 = arith.constant 0 : index
    %c0_3 = arith.constant 0 : index
    %4 = vector.load %arg3[%c0_2, %c0_3] : memref<1024x33xf32, #tpu.memory_space<vmem>>, vector<1024x33xf32>
    %cst = arith.constant dense<0.000000e+00> : vector<512x1024xf32>
    %5 = tpu.matmul %3, %4, %cst {dimension_numbers = #tpu.dot_dimension_numbers<[1], [1], [0], [0], [0, 0, 1, 0], [], []>} : vector<512x33xf32>, vector<1024x33xf32>, vector<512x1024xf32> -> vector<512x1024xf32>
    %c0_4 = arith.constant 0 : index
    %c0_5 = arith.constant 0 : index
    %6 = vector.load %arg4[%c0_4, %c0_5] : memref<512x1xf32, #tpu.memory_space<vmem>>, vector<512x1xf32>
    %7 = vector.broadcast %6 : vector<512x1xf32> to vector<512x1024xf32>
    %8 = arith.addf %5, %7 : vector<512x1024xf32>
    %cst_6 = arith.constant 0.000000e+00 : f32
    %9 = vector.broadcast %cst_6 : f32 to vector<512x1024xf32>
    %10 = arith.minimumf %8, %9 : vector<512x1024xf32>
    %11 = math.exp %10 : vector<512x1024xf32>
    %c0_7 = arith.constant 0 : index
    %c0_8 = arith.constant 0 : index
    %12 = vector.load %arg7[%c0_7, %c0_8] : memref<512x1xf32, #tpu.memory_space<vmem>>, vector<512x1xf32>
    %c0_9 = arith.constant 0 : index
    %c0_10 = arith.constant 0 : index
    %13 = vector.load %arg5[%c0_9, %c0_10] : memref<1024x1xf32, #tpu.memory_space<vmem>>, vector<1024x1xf32>
    %cst_11 = arith.constant dense<0.000000e+00> : vector<512x1xf32>
    %14 = tpu.matmul %11, %13, %cst_11 {dimension_numbers = #tpu.dot_dimension_numbers<[1], [0], [0], [1], [0, 0, 1, 1], [], []>} : vector<512x1024xf32>, vector<1024x1xf32>, vector<512x1xf32> -> vector<512x1xf32>
    %15 = arith.addf %12, %14 : vector<512x1xf32>
    %c0_12 = arith.constant 0 : index
    %c0_13 = arith.constant 0 : index
    %16 = vector.load %arg7[%c0_12, %c0_13] : memref<512x1xf32, #tpu.memory_space<vmem>>, vector<512x1xf32>
    tpu.vector_store %arg7[%c0_12, %c0_13], %15 {strides = array<i32>} : memref<512x1xf32, #tpu.memory_space<vmem>>, vector<512x1xf32>,
    %c0_i32_14 = arith.constant 0 : i32
    %17 = arith.cmpi eq, %arg1, %c0_i32_14 : i32
    %18 = arith.extui %17 : i1 to i32
    %c0_i32_15 = arith.constant 0 : i32
    %19 = arith.cmpi ne, %18, %c0_i32_15 : i32
    scf.if %19 {
      %c0_16 = arith.constant 0 : index
      %c0_17 = arith.constant 0 : index
      %20 = vector.load %arg7[%c0_16, %c0_17] : memref<512x1xf32, #tpu.memory_space<vmem>>, vector<512x1xf32>
      %c0_18 = arith.constant 0 : index
      %21 = memref.load %arg6[%c0_18] : memref<1xf32, #tpu.memory_space<smem>>
      %22 = vector.broadcast %21 : f32 to vector<512x1xf32>
      %23 = arith.addf %20, %22 : vector<512x1xf32>
      %c0_19 = arith.constant 0 : index
      %c0_20 = arith.constant 0 : index
      %24 = vector.load %arg7[%c0_19, %c0_20] : memref<512x1xf32, #tpu.memory_space<vmem>>, vector<512x1xf32>
      tpu.vector_store %arg7[%c0_19, %c0_20], %23 {strides = array<i32>} : memref<512x1xf32, #tpu.memory_space<vmem>>, vector<512x1xf32>,
    } else {
    }
    return
  }
  func.func @transform_0(%arg0: i32, %arg1: i32) -> (i32, i32) {
    %c0_i32 = arith.constant 0 : i32
    %c0_i32_0 = arith.constant 0 : i32
    return %arg0, %c0_i32 : i32, i32
  }
  func.func @transform_1(%arg0: i32, %arg1: i32) -> (i32, i32) {
    %c0_i32 = arith.constant 0 : i32
    %c0_i32_0 = arith.constant 0 : i32
    return %arg1, %c0_i32 : i32, i32
  }
  func.func @transform_2(%arg0: i32, %arg1: i32) -> (i32, i32) {
    %c0_i32 = arith.constant 0 : i32
    %c0_i32_0 = arith.constant 0 : i32
    return %arg0, %c0_i32 : i32, i32
  }
  func.func @transform_3(%arg0: i32, %arg1: i32) -> (i32, i32) {
    %c0_i32 = arith.constant 0 : i32
    %c0_i32_0 = arith.constant 0 : i32
    return %arg1, %c0_i32 : i32, i32
  }
  func.func @transform_4(%arg0: i32, %arg1: i32) -> i32 {
    %c0_i32 = arith.constant 0 : i32
    %c0_i32_0 = arith.constant 0 : i32
    return %c0_i32 : i32
  }
  func.func @transform_5(%arg0: i32, %arg1: i32) -> (i32, i32) {
    %c0_i32 = arith.constant 0 : i32
    %c0_i32_0 = arith.constant 0 : i32
    return %arg0, %c0_i32 : i32, i32
  }
}

</mosaic_0001>

<llo_original>
// kernel: tpu_custom_call.1
$region0: #{tpu_custom_call.1}
  #allocation0 [shape = 'u32[]', space=smem, size = 0x4, offset = 0x4, fixed_abs, tag = 'smem constant byte address 0x4 - core index']
  #allocation1 [shape = 'u32[72,128]{1,0:T(1,128)}', space=vmem, size = 0x9000, scoped, tag = 'internal scratch']
  #allocation2 [shape = 'f32[1]{0:T(128)S(6)}', space=smem, size = 0x200, scoped, tag = 'scoped memory for tpu_custom_call.1']
  %s0 = inlined_call_operand.vmem [shape: f32[1024,33], index: 0, kind: input, shape index: {}]
  %s1 = inlined_call_operand.vmem [shape: f32[1024,33], index: 1, kind: input, shape index: {}]
  %s2 = inlined_call_operand.vmem [shape: f32[1024,1], index: 2, kind: input, shape index: {}]
  %s3 = inlined_call_operand.vmem [shape: f32[1024,1], index: 3, kind: input, shape index: {}]
  %s4 = inlined_call_operand.<no memory space> [shape: f32[1], index: 4, kind: input, shape index: {}]
  %s5 = inlined_call_operand.vmem [shape: f32[1024,1], index: 5, kind: output, shape index: {}]
  %s6 = sld [smem:[#allocation0]]
  $region61: #{tpu_custom_call.1} parent=0
    _
  %s8 = ssub.s32 1, %s6
  %s9 = scalar_select 0, %s8, %s6
  %10 = sst [smem:[#allocation2]] %s4
  loop: start=0, step=1, limit=4
  $region2: #{tpu_custom_call.1} parent=0 // loop_pre_header
    _
  $region3: #{tpu_custom_call.1} parent=0 // loop_header
    %s12 = sphi 0, %s16
    %p13 = scmp.ge.s32.totalorder %s12, 4
    %s19 = sphi 0, %s31
    %s20 = sphi 0, %s27
    %s21 = sphi 0, %s19
    %s22 = sphi 0, %s20
    %s23 = sphi 0, %s21
    %s24 = sphi 0, %s22
    %s34 = sphi 0, %s36
    %s37 = sphi 0, %s34
    %s38 = sphi 0, %s37
    %s54 = sphi 0, %s38
    %s60 = sphi 0, %s62
    %s63 = sphi 0, %s60
    %s64 = sphi 0, %s63
    %s80 = sphi 0, %s64
    %s86 = sphi 0, %s88
    %s89 = sphi 0, %s86
    %s90 = sphi 0, %s89
    %s106 = sphi 0, %s90
    %s112 = sphi 0, %s114
    %s115 = sphi 0, %s112
    %s116 = sphi 0, %s115
    %s132 = sphi 0, %s116
    %s136 = sphi 0, %s136
    %s138 = sphi 0, %s136
    %s139 = sphi 0, %s138
    %s153 = sphi 0, %s139
    %s159 = sphi 0, %s161
    %s162 = sphi 0, %s159
    %s163 = sphi 0, %s162
    %s179 = sphi 0, %s163
  $region4: #{tpu_custom_call.1} parent=0 // loop_header_branch
    %15 = sbr.rel (%p13) target = $region8
  $region5: #{tpu_custom_call.1} parent=0 // loop_body
    %s17 = ssub.s32 %s12, 1
    %s18 = ssub.s32 %s12, 2
    %s25 = sadd.s32 1, %s20
    %p26 = scmp.ge.s32.totalorder %s25, 1
    %s27 = scalar_select %p26, 0, %s25
    %s28 = sadd.s32 1, %s19
    %s29 = scalar_select %p26, %s28, %s19
    %p30 = scmp.ge.s32.totalorder %s29, 2
    %s31 = scalar_select %p30, 0, %s29
    %s32 = ssub.s32 %s19, %s31
    %p33 = scmp.eq.s32.totalorder %s32, 0
    %s35 = sadd.s32 %s34, 1
    %s36 = scalar_select %p33, %s34, %s35
    %p39 = pneg %p33
    %p40 = scmp.eq.s32.totalorder %s12, 1
    %p41 = por %p39, %p40
    %p42 = scmp.ne.s32.totalorder %s34, %s37
    %p43 = scmp.eq.s32.totalorder %s12, 0
    %p44 = por %p42, %p43
    %p45 = scmp.ne.s32.totalorder %s34, %s37
    %p46 = scmp.eq.s32.totalorder %s17, 1
    %p47 = por %p45, %p46
    %p48 = scmp.ne.s32.totalorder %s37, %s38
    %p49 = scmp.eq.s32.totalorder %s17, 0
    %p50 = por %p48, %p49
    %p51 = scmp.ne.s32.totalorder %s37, %s38
    %p52 = scmp.eq.s32.totalorder %s18, 1
    %p53 = por %p51, %p52
    %p55 = scmp.ne.s32.totalorder %s38, %s54
    %p56 = scmp.eq.s32.totalorder %s18, 0
    %p57 = por %p55, %p56
    %s58 = ssub.s32 %s20, %s27
    %p59 = scmp.eq.s32.totalorder %s58, 0
    %s61 = sadd.s32 %s60, 1
    %s62 = scalar_select %p59, %s60, %s61
    %p65 = pneg %p59
    %p66 = scmp.eq.s32.totalorder %s12, 1
    %p67 = por %p65, %p66
    %p68 = scmp.ne.s32.totalorder %s60, %s63
    %p69 = scmp.eq.s32.totalorder %s12, 0
    %p70 = por %p68, %p69
    %p71 = scmp.ne.s32.totalorder %s60, %s63
    %p72 = scmp.eq.s32.totalorder %s17, 1
    %p73 = por %p71, %p72
    %p74 = scmp.ne.s32.totalorder %s63, %s64
    %p75 = scmp.eq.s32.totalorder %s17, 0
    %p76 = por %p74, %p75
    %p77 = scmp.ne.s32.totalorder %s63, %s64
    %p78 = scmp.eq.s32.totalorder %s18, 1
    %p79 = por %p77, %p78
    %p81 = scmp.ne.s32.totalorder %s64, %s80
    %p82 = scmp.eq.s32.totalorder %s18, 0
    %p83 = por %p81, %p82
    %s84 = ssub.s32 %s19, %s31
    %p85 = scmp.eq.s32.totalorder %s84, 0
    %s87 = sadd.s32 %s86, 1
    %s88 = scalar_select %p85, %s86, %s87
    %p91 = pneg %p85
    %p92 = scmp.eq.s32.totalorder %s12, 1
    %p93 = por %p91, %p92
    %p94 = scmp.ne.s32.totalorder %s86, %s89
    %p95 = scmp.eq.s32.totalorder %s12, 0
    %p96 = por %p94, %p95
    %p97 = scmp.ne.s32.totalorder %s86, %s89
    %p98 = scmp.eq.s32.totalorder %s17, 1
    %p99 = por %p97, %p98
    %p100 = scmp.ne.s32.totalorder %s89, %s90
    %p101 = scmp.eq.s32.totalorder %s17, 0
    %p102 = por %p100, %p101
    %p103 = scmp.ne.s32.totalorder %s89, %s90
    %p104 = scmp.eq.s32.totalorder %s18, 1
    %p105 = por %p103, %p104
    %p107 = scmp.ne.s32.totalorder %s90, %s106
    %p108 = scmp.eq.s32.totalorder %s18, 0
    %p109 = por %p107, %p108
    %s110 = ssub.s32 %s20, %s27
    %p111 = scmp.eq.s32.totalorder %s110, 0
    %s113 = sadd.s32 %s112, 1
    %s114 = scalar_select %p111, %s112, %s113
    %p117 = pneg %p111
    %p118 = scmp.eq.s32.totalorder %s12, 1
    %p119 = por %p117, %p118
    %p120 = scmp.ne.s32.totalorder %s112, %s115
    %p121 = scmp.eq.s32.totalorder %s12, 0
    %p122 = por %p120, %p121
    %p123 = scmp.ne.s32.totalorder %s112, %s115
    %p124 = scmp.eq.s32.totalorder %s17, 1
    %p125 = por %p123, %p124
    %p126 = scmp.ne.s32.totalorder %s115, %s116
    %p127 = scmp.eq.s32.totalorder %s17, 0
    %p128 = por %p126, %p127
    %p129 = scmp.ne.s32.totalorder %s115, %s116
    %p130 = scmp.eq.s32.totalorder %s18, 1
    %p131 = por %p129, %p130
    %p133 = scmp.ne.s32.totalorder %s116, %s132
    %p134 = scmp.eq.s32.totalorder %s18, 0
    %p135 = por %p133, %p134
    %s137 = sadd.s32 %s136, 1
    %p140 = scmp.eq.s32.totalorder %s12, 1
    %p141 = scmp.ne.s32.totalorder %s136, %s138
    %p142 = scmp.eq.s32.totalorder %s12, 0
    %p143 = por %p141, %p142
    %p144 = scmp.ne.s32.totalorder %s136, %s138
    %p145 = scmp.eq.s32.totalorder %s17, 1
    %p146 = por %p144, %p145
    %p147 = scmp.ne.s32.totalorder %s138, %s139
    %p148 = scmp.eq.s32.totalorder %s17, 0
    %p149 = por %p147, %p148
    %p150 = scmp.ne.s32.totalorder %s138, %s139
    %p151 = scmp.eq.s32.totalorder %s18, 1
    %p152 = por %p150, %p151
    %p154 = scmp.ne.s32.totalorder %s139, %s153
    %p155 = scmp.eq.s32.totalorder %s18, 0
    %p156 = por %p154, %p155
    %s157 = ssub.s32 %s19, %s31
    %p158 = scmp.eq.s32.totalorder %s157, 0
    %s160 = sadd.s32 %s159, 1
    %s161 = scalar_select %p158, %s159, %s160
    %p164 = pneg %p158
    %p165 = scmp.eq.s32.totalorder %s12, 1
    %p166 = por %p164, %p165
    %p167 = scmp.ne.s32.totalorder %s159, %s162
    %p168 = scmp.eq.s32.totalorder %s12, 0
    %p169 = por %p167, %p168
    %p170 = scmp.ne.s32.totalorder %s159, %s162
    %p171 = scmp.eq.s32.totalorder %s17, 1
    %p172 = por %p170, %p171
    %p173 = scmp.ne.s32.totalorder %s162, %s163
    %p174 = scmp.eq.s32.totalorder %s17, 0
    %p175 = por %p173, %p174
    %p176 = scmp.ne.s32.totalorder %s162, %s163
    %p177 = scmp.eq.s32.totalorder %s18, 1
    %p178 = por %p176, %p177
    %p180 = scmp.ne.s32.totalorder %s163, %s179
    %p181 = scmp.eq.s32.totalorder %s18, 0
    %p182 = por %p180, %p181
    %p183 = scmp.le.s32.totalorder 1, %s12
    %p184 = scmp.lt.s32.totalorder %s12, 3
    %p185 = pnand %p183, %p184
    %p186 = pneg %p185
    // Predicated region
    $region9: #{tpu_custom_call.1} parent=5 // pred_check
      _
    $region10: #{tpu_custom_call.1} parent=5 // pred_check_branch
      %188 = sbr.rel (%p185) target = $region12
    $region11: #{tpu_custom_call.1} parent=5 // pred_region
      %s189 = ssub.s32 %s12, 1
      // Predicated region
      $region13: #{tpu_custom_call.1} parent=11 // pred_check
        %p190 = pneg %p76
      $region14: #{tpu_custom_call.1} parent=11 // pred_check_branch
        %192 = sbr.rel (%p190) target = $region16
      $region15: #{tpu_custom_call.1} parent=11 // pred_region
        %s193 = smul.u32 128, %s22
        %p194 = scmp.lt.s32.totalorder %s193, 127
        %s195 = scalar_select %p194, %s193, 127
        %s196 = smul.addr %s195, 8
        %s197 = scalar_lea.vmem %s1, %s196
        %s198 = smul.u32 128, %s22
      $region16: #{tpu_custom_call.1} parent=11 // pred_fallthru
        _
      // Predicated region
      $region17: #{tpu_custom_call.1} parent=11 // pred_check
        %p199 = pneg %p128
      $region18: #{tpu_custom_call.1} parent=11 // pred_check_branch
        %201 = sbr.rel (%p199) target = $region20
      $region19: #{tpu_custom_call.1} parent=11 // pred_region
        %s202 = smul.u32 128, %s22
        %p203 = scmp.lt.s32.totalorder %s202, 127
        %s204 = scalar_select %p203, %s202, 127
        %s205 = smul.addr %s204, 8
        %s206 = scalar_lea.vmem %s3, %s205
        %s207 = smul.u32 128, %s22
      $region20: #{tpu_custom_call.1} parent=11 // pred_fallthru
        _
      // Predicated region
      $region21: #{tpu_custom_call.1} parent=11 // pred_check
        %p208 = pneg %p149
      $region22: #{tpu_custom_call.1} parent=11 // pred_check_branch
        %210 = sbr.rel (%p208) target = $region24
      $region23: #{tpu_custom_call.1} parent=11 // pred_region
        _
      $region24: #{tpu_custom_call.1} parent=11 // pred_fallthru
        _
    $region12: #{tpu_custom_call.1} parent=5 // pred_fallthru
      _
    %p211 = scmp.lt.s32.totalorder %s12, 2
    // Predicated region
    $region25: #{tpu_custom_call.1} parent=5 // pred_check
      %p212 = pneg %p211
    $region26: #{tpu_custom_call.1} parent=5 // pred_check_branch
      %214 = sbr.rel (%p212) target = $region28
    $region27: #{tpu_custom_call.1} parent=5 // pred_region
      // Predicated region
      $region29: #{tpu_custom_call.1} parent=27 // pred_check
        %p215 = pneg %p44
      $region30: #{tpu_custom_call.1} parent=27 // pred_check_branch
        %217 = sbr.rel (%p215) target = $region32
      $region31: #{tpu_custom_call.1} parent=27 // pred_region
        %s218 = smul.u32 64, %s19
        %p219 = scmp.lt.s32.totalorder %s218, 127
        %s220 = scalar_select %p219, %s218, 127
        %s221 = smul.addr %s220, 8
        %s222 = scalar_lea.vmem %s0, %s221
        %s223 = smul.u32 64, %s19
      $region32: #{tpu_custom_call.1} parent=27 // pred_fallthru
        _
      // Predicated region
      $region33: #{tpu_custom_call.1} parent=27 // pred_check
        %p224 = pneg %p96
      $region34: #{tpu_custom_call.1} parent=27 // pred_check_branch
        %226 = sbr.rel (%p224) target = $region36
      $region35: #{tpu_custom_call.1} parent=27 // pred_region
        %s227 = smul.u32 64, %s19
        %p228 = scmp.lt.s32.totalorder %s227, 127
        %s229 = scalar_select %p228, %s227, 127
        %s230 = smul.addr %s229, 8
        %s231 = scalar_lea.vmem %s2, %s230
        %s232 = smul.u32 64, %s19
      $region36: #{tpu_custom_call.1} parent=27 // pred_fallthru
        _
    $region28: #{tpu_custom_call.1} parent=5 // pred_fallthru
      _
    %p233 = scmp.le.s32.totalorder 1, %s12
    %p234 = scmp.lt.s32.totalorder %s12, 3
    %p235 = pnand %p233, %p234
    %p236 = pneg %p235
    // Predicated region
    $region37: #{tpu_custom_call.1} parent=5 // pred_check
      _
    $region38: #{tpu_custom_call.1} parent=5 // pred_check_branch
      %238 = sbr.rel (%p235) target = $region40
    $region39: #{tpu_custom_call.1} parent=5 // pred_region
      %s239 = ssub.s32 %s12, 1
      %s240 = smul.u32 64, %s21
      %p241 = scmp.lt.s32.totalorder %s240, 127
      %s242 = scalar_select %p241, %s240, 127
      %s243 = smul.addr %s242, 8
      %s244 = scalar_lea.vmem %s0, %s243
      %p245 = pneg %p50
      %p246 = pneg %p47
      %s247 = smul.u32 128, %s22
      %p248 = scmp.lt.s32.totalorder %s247, 127
      %s249 = scalar_select %p248, %s247, 127
      %s250 = smul.addr %s249, 8
      %s251 = scalar_lea.vmem %s1, %s250
      %p252 = pneg %p76
      %p253 = pneg %p73
      %s254 = smul.u32 64, %s21
      %p255 = scmp.lt.s32.totalorder %s254, 127
      %s256 = scalar_select %p255, %s254, 127
      %s257 = smul.addr %s256, 8
      %s258 = scalar_lea.vmem %s2, %s257
      %p259 = pneg %p102
      %p260 = pneg %p99
      %s261 = smul.u32 128, %s22
      %p262 = scmp.lt.s32.totalorder %s261, 127
      %s263 = scalar_select %p262, %s261, 127
      %s264 = smul.addr %s263, 8
      %s265 = scalar_lea.vmem %s3, %s264
      %p266 = pneg %p128
      %p267 = pneg %p125
      %p268 = pneg %p149
      %p269 = pneg %p146
      %p270 = pneg %p175
      %p271 = pneg %p172
      %s272 = smul.u32 64, %s21
      %p273 = scmp.lt.s32.totalorder %s272, 127
      %s274 = scalar_select %p273, %s272, 127
      %s275 = smul.addr %s274, 8
      %s276 = scalar_lea.vmem %s5, %s275
      %s277 = smul.u32 64, %s21
      %p278 = scmp.lt.s32.totalorder %s277, 127
      %s279 = scalar_select %p278, %s277, 127
      %s280 = smul.addr %s279, 8
      %s281 = scalar_lea.vmem %s0, %s280
      %s282 = smul.u32 64, %s21
      %s283 = smul.u32 128, %s22
      %p284 = scmp.lt.s32.totalorder %s283, 127
      %s285 = scalar_select %p284, %s283, 127
      %s286 = smul.addr %s285, 8
      %s287 = scalar_lea.vmem %s1, %s286
      %s288 = smul.u32 128, %s22
      %s289 = smul.u32 64, %s21
      %p290 = scmp.lt.s32.totalorder %s289, 127
      %s291 = scalar_select %p290, %s289, 127
      %s292 = smul.addr %s291, 8
      %s293 = scalar_lea.vmem %s2, %s292
      %s294 = smul.u32 64, %s21
      %s295 = smul.u32 128, %s22
      %p296 = scmp.lt.s32.totalorder %s295, 127
      %s297 = scalar_select %p296, %s295, 127
      %s298 = smul.addr %s297, 8
      %s299 = scalar_lea.vmem %s3, %s298
      %s300 = smul.u32 128, %s22
      %s301 = smul.u32 64, %s21
      %p302 = scmp.lt.s32.totalorder %s301, 127
      %s303 = scalar_select %p302, %s301, 127
      %s304 = smul.addr %s303, 8
      %s305 = scalar_lea.vmem %s5, %s304
      %s306 = smul.u32 64, %s21
      %p307 = scmp.eq.s32.totalorder %s22, 0
      // Predicated region
      $region41: #{tpu_custom_call.1} parent=39 // pred_check
        %p308 = pneg %p307
      $region42: #{tpu_custom_call.1} parent=39 // pred_check_branch
        %310 = sbr.rel (%p308) target = $region44
      $region43: #{tpu_custom_call.1} parent=39 // pred_region
        %vm311 = vcmask 7168
        %312 = vst.msk [vmem:[%s305] sm:$0xff] %vm311, 0.0
        %313 = vst.msk [vmem:[%s305 + $0x8] sm:$0xff] %vm311, 0.0
        %314 = vst.msk [vmem:[%s305 + $0x10] sm:$0xff] %vm311, 0.0
        %315 = vst.msk [vmem:[%s305 + $0x18] sm:$0xff] %vm311, 0.0
        %316 = vst.msk [vmem:[%s305 + $0x20] sm:$0xff] %vm311, 0.0
        %317 = vst.msk [vmem:[%s305 + $0x28] sm:$0xff] %vm311, 0.0
        %318 = vst.msk [vmem:[%s305 + $0x30] sm:$0xff] %vm311, 0.0
        %319 = vst.msk [vmem:[%s305 + $0x38] sm:$0xff] %vm311, 0.0
        %320 = vst.msk [vmem:[%s305 + $0x40] sm:$0xff] %vm311, 0.0
        %321 = vst.msk [vmem:[%s305 + $0x48] sm:$0xff] %vm311, 0.0
        %322 = vst.msk [vmem:[%s305 + $0x50] sm:$0xff] %vm311, 0.0
        %323 = vst.msk [vmem:[%s305 + $0x58] sm:$0xff] %vm311, 0.0
        %324 = vst.msk [vmem:[%s305 + $0x60] sm:$0xff] %vm311, 0.0
        %325 = vst.msk [vmem:[%s305 + $0x68] sm:$0xff] %vm311, 0.0
        %326 = vst.msk [vmem:[%s305 + $0x70] sm:$0xff] %vm311, 0.0
        %327 = vst.msk [vmem:[%s305 + $0x78] sm:$0xff] %vm311, 0.0
        %328 = vst.msk [vmem:[%s305 + $0x80] sm:$0xff] %vm311, 0.0
        %329 = vst.msk [vmem:[%s305 + $0x88] sm:$0xff] %vm311, 0.0
        %330 = vst.msk [vmem:[%s305 + $0x90] sm:$0xff] %vm311, 0.0
        %331 = vst.msk [vmem:[%s305 + $0x98] sm:$0xff] %vm311, 0.0
        %332 = vst.msk [vmem:[%s305 + $0xa0] sm:$0xff] %vm311, 0.0
        %333 = vst.msk [vmem:[%s305 + $0xa8] sm:$0xff] %vm311, 0.0
        %334 = vst.msk [vmem:[%s305 + $0xb0] sm:$0xff] %vm311, 0.0
        %335 = vst.msk [vmem:[%s305 + $0xb8] sm:$0xff] %vm311, 0.0
        %336 = vst.msk [vmem:[%s305 + $0xc0] sm:$0xff] %vm311, 0.0
        %337 = vst.msk [vmem:[%s305 + $0xc8] sm:$0xff] %vm311, 0.0
        %338 = vst.msk [vmem:[%s305 + $0xd0] sm:$0xff] %vm311, 0.0
        %339 = vst.msk [vmem:[%s305 + $0xd8] sm:$0xff] %vm311, 0.0
        %340 = vst.msk [vmem:[%s305 + $0xe0] sm:$0xff] %vm311, 0.0
        %341 = vst.msk [vmem:[%s305 + $0xe8] sm:$0xff] %vm311, 0.0
        %342 = vst.msk [vmem:[%s305 + $0xf0] sm:$0xff] %vm311, 0.0
        %343 = vst.msk [vmem:[%s305 + $0xf8] sm:$0xff] %vm311, 0.0
        %344 = vst.msk [vmem:[%s305 + $0x100] sm:$0xff] %vm311, 0.0
        %345 = vst.msk [vmem:[%s305 + $0x108] sm:$0xff] %vm311, 0.0
        %346 = vst.msk [vmem:[%s305 + $0x110] sm:$0xff] %vm311, 0.0
        %347 = vst.msk [vmem:[%s305 + $0x118] sm:$0xff] %vm311, 0.0
        %348 = vst.msk [vmem:[%s305 + $0x120] sm:$0xff] %vm311, 0.0
        %349 = vst.msk [vmem:[%s305 + $0x128] sm:$0xff] %vm311, 0.0
        %350 = vst.msk [vmem:[%s305 + $0x130] sm:$0xff] %vm311, 0.0
        %351 = vst.msk [vmem:[%s305 + $0x138] sm:$0xff] %vm311, 0.0
        %352 = vst.msk [vmem:[%s305 + $0x140] sm:$0xff] %vm311, 0.0
        %353 = vst.msk [vmem:[%s305 + $0x148] sm:$0xff] %vm311, 0.0
        %354 = vst.msk [vmem:[%s305 + $0x150] sm:$0xff] %vm311, 0.0
        %355 = vst.msk [vmem:[%s305 + $0x158] sm:$0xff] %vm311, 0.0
        %356 = vst.msk [vmem:[%s305 + $0x160] sm:$0xff] %vm311, 0.0
        %357 = vst.msk [vmem:[%s305 + $0x168] sm:$0xff] %vm311, 0.0
        %358 = vst.msk [vmem:[%s305 + $0x170] sm:$0xff] %vm311, 0.0
        %359 = vst.msk [vmem:[%s305 + $0x178] sm:$0xff] %vm311, 0.0
        %360 = vst.msk [vmem:[%s305 + $0x180] sm:$0xff] %vm311, 0.0
        %361 = vst.msk [vmem:[%s305 + $0x188] sm:$0xff] %vm311, 0.0
        %362 = vst.msk [vmem:[%s305 + $0x190] sm:$0xff] %vm311, 0.0
        %363 = vst.msk [vmem:[%s305 + $0x198] sm:$0xff] %vm311, 0.0
        %364 = vst.msk [vmem:[%s305 + $0x1a0] sm:$0xff] %vm311, 0.0
        %365 = vst.msk [vmem:[%s305 + $0x1a8] sm:$0xff] %vm311, 0.0
        %366 = vst.msk [vmem:[%s305 + $0x1b0] sm:$0xff] %vm311, 0.0
        %367 = vst.msk [vmem:[%s305 + $0x1b8] sm:$0xff] %vm311, 0.0
        %368 = vst.msk [vmem:[%s305 + $0x1c0] sm:$0xff] %vm311, 0.0
        %369 = vst.msk [vmem:[%s305 + $0x1c8] sm:$0xff] %vm311, 0.0
        %370 = vst.msk [vmem:[%s305 + $0x1d0] sm:$0xff] %vm311, 0.0
        %371 = vst.msk [vmem:[%s305 + $0x1d8] sm:$0xff] %vm311, 0.0
        %372 = vst.msk [vmem:[%s305 + $0x1e0] sm:$0xff] %vm311, 0.0
        %373 = vst.msk [vmem:[%s305 + $0x1e8] sm:$0xff] %vm311, 0.0
        %374 = vst.msk [vmem:[%s305 + $0x1f0] sm:$0xff] %vm311, 0.0
        %375 = vst.msk [vmem:[%s305 + $0x1f8] sm:$0xff] %vm311, 0.0
      $region44: #{tpu_custom_call.1} parent=39 // pred_fallthru
        _
      %v376 = vld [vmem:[%s281] sm:$0xff]
      %v377 = vld [vmem:[%s281 + $0x8] sm:$0xff]
      %v378 = vld [vmem:[%s281 + $0x10] sm:$0xff]
      %v379 = vld [vmem:[%s281 + $0x18] sm:$0xff]
      %v380 = vld [vmem:[%s281 + $0x20] sm:$0xff]
      %v381 = vld [vmem:[%s281 + $0x28] sm:$0xff]
      %v382 = vld [vmem:[%s281 + $0x30] sm:$0xff]
      %v383 = vld [vmem:[%s281 + $0x38] sm:$0xff]
      %v384 = vld [vmem:[%s281 + $0x40] sm:$0xff]
      %v385 = vld [vmem:[%s281 + $0x48] sm:$0xff]
      %v386 = vld [vmem:[%s281 + $0x50] sm:$0xff]
      %v387 = vld [vmem:[%s281 + $0x58] sm:$0xff]
      %v388 = vld [vmem:[%s281 + $0x60] sm:$0xff]
      %v389 = vld [vmem:[%s281 + $0x68] sm:$0xff]
      %v390 = vld [vmem:[%s281 + $0x70] sm:$0xff]
      %v391 = vld [vmem:[%s281 + $0x78] sm:$0xff]
      %v392 = vld [vmem:[%s281 + $0x80] sm:$0xff]
      %v393 = vld [vmem:[%s281 + $0x88] sm:$0xff]
      %v394 = vld [vmem:[%s281 + $0x90] sm:$0xff]
      %v395 = vld [vmem:[%s281 + $0x98] sm:$0xff]
      %v396 = vld [vmem:[%s281 + $0xa0] sm:$0xff]
      %v397 = vld [vmem:[%s281 + $0xa8] sm:$0xff]
      %v398 = vld [vmem:[%s281 + $0xb0] sm:$0xff]
      %v399 = vld [vmem:[%s281 + $0xb8] sm:$0xff]
      %v400 = vld [vmem:[%s281 + $0xc0] sm:$0xff]
      %v401 = vld [vmem:[%s281 + $0xc8] sm:$0xff]
      %v402 = vld [vmem:[%s281 + $0xd0] sm:$0xff]
      %v403 = vld [vmem:[%s281 + $0xd8] sm:$0xff]
      %v404 = vld [vmem:[%s281 + $0xe0] sm:$0xff]
      %v405 = vld [vmem:[%s281 + $0xe8] sm:$0xff]
      %v406 = vld [vmem:[%s281 + $0xf0] sm:$0xff]
      %v407 = vld [vmem:[%s281 + $0xf8] sm:$0xff]
      %v408 = vld [vmem:[%s281 + $0x100] sm:$0xff]
      %v409 = vld [vmem:[%s281 + $0x108] sm:$0xff]
      %v410 = vld [vmem:[%s281 + $0x110] sm:$0xff]
      %v411 = vld [vmem:[%s281 + $0x118] sm:$0xff]
      %v412 = vld [vmem:[%s281 + $0x120] sm:$0xff]
      %v413 = vld [vmem:[%s281 + $0x128] sm:$0xff]
      %v414 = vld [vmem:[%s281 + $0x130] sm:$0xff]
      %v415 = vld [vmem:[%s281 + $0x138] sm:$0xff]
      %v416 = vld [vmem:[%s281 + $0x140] sm:$0xff]
      %v417 = vld [vmem:[%s281 + $0x148] sm:$0xff]
      %v418 = vld [vmem:[%s281 + $0x150] sm:$0xff]
      %v419 = vld [vmem:[%s281 + $0x158] sm:$0xff]
      %v420 = vld [vmem:[%s281 + $0x160] sm:$0xff]
      %v421 = vld [vmem:[%s281 + $0x168] sm:$0xff]
      %v422 = vld [vmem:[%s281 + $0x170] sm:$0xff]
      %v423 = vld [vmem:[%s281 + $0x178] sm:$0xff]
      %v424 = vld [vmem:[%s281 + $0x180] sm:$0xff]
      %v425 = vld [vmem:[%s281 + $0x188] sm:$0xff]
      %v426 = vld [vmem:[%s281 + $0x190] sm:$0xff]
      %v427 = vld [vmem:[%s281 + $0x198] sm:$0xff]
      %v428 = vld [vmem:[%s281 + $0x1a0] sm:$0xff]
      %v429 = vld [vmem:[%s281 + $0x1a8] sm:$0xff]
      %v430 = vld [vmem:[%s281 + $0x1b0] sm:$0xff]
      %v431 = vld [vmem:[%s281 + $0x1b8] sm:$0xff]
      %v432 = vld [vmem:[%s281 + $0x1c0] sm:$0xff]
      %v433 = vld [vmem:[%s281 + $0x1c8] sm:$0xff]
      %v434 = vld [vmem:[%s281 + $0x1d0] sm:$0xff]
      %v435 = vld [vmem:[%s281 + $0x1d8] sm:$0xff]
      %v436 = vld [vmem:[%s281 + $0x1e0] sm:$0xff]
      %v437 = vld [vmem:[%s281 + $0x1e8] sm:$0xff]
      %v438 = vld [vmem:[%s281 + $0x1f0] sm:$0xff]
      %v439 = vld [vmem:[%s281 + $0x1f8] sm:$0xff]
      %v440 = vld [vmem:[%s287] sm:$0xff]
      %v441 = vld [vmem:[%s287 + $0x8] sm:$0xff]
      %v442 = vld [vmem:[%s287 + $0x10] sm:$0xff]
      %v443 = vld [vmem:[%s287 + $0x18] sm:$0xff]
      %v444 = vld [vmem:[%s287 + $0x20] sm:$0xff]
      %v445 = vld [vmem:[%s287 + $0x28] sm:$0xff]
      %v446 = vld [vmem:[%s287 + $0x30] sm:$0xff]
      %v447 = vld [vmem:[%s287 + $0x38] sm:$0xff]
      %v448 = vld [vmem:[%s287 + $0x40] sm:$0xff]
      %v449 = vld [vmem:[%s287 + $0x48] sm:$0xff]
      %v450 = vld [vmem:[%s287 + $0x50] sm:$0xff]
      %v451 = vld [vmem:[%s287 + $0x58] sm:$0xff]
      %v452 = vld [vmem:[%s287 + $0x60] sm:$0xff]
      %v453 = vld [vmem:[%s287 + $0x68] sm:$0xff]
      %v454 = vld [vmem:[%s287 + $0x70] sm:$0xff]
      %v455 = vld [vmem:[%s287 + $0x78] sm:$0xff]
      %v456 = vld [vmem:[%s287 + $0x80] sm:$0xff]
      %v457 = vld [vmem:[%s287 + $0x88] sm:$0xff]
      %v458 = vld [vmem:[%s287 + $0x90] sm:$0xff]
      %v459 = vld [vmem:[%s287 + $0x98] sm:$0xff]
      %v460 = vld [vmem:[%s287 + $0xa0] sm:$0xff]
      %v461 = vld [vmem:[%s287 + $0xa8] sm:$0xff]
      %v462 = vld [vmem:[%s287 + $0xb0] sm:$0xff]
      %v463 = vld [vmem:[%s287 + $0xb8] sm:$0xff]
      %v464 = vld [vmem:[%s287 + $0xc0] sm:$0xff]
      %v465 = vld [vmem:[%s287 + $0xc8] sm:$0xff]
      %v466 = vld [vmem:[%s287 + $0xd0] sm:$0xff]
      %v467 = vld [vmem:[%s287 + $0xd8] sm:$0xff]
      %v468 = vld [vmem:[%s287 + $0xe0] sm:$0xff]
      %v469 = vld [vmem:[%s287 + $0xe8] sm:$0xff]
      %v470 = vld [vmem:[%s287 + $0xf0] sm:$0xff]
      %v471 = vld [vmem:[%s287 + $0xf8] sm:$0xff]
      %v472 = vld [vmem:[%s287 + $0x100] sm:$0xff]
      %v473 = vld [vmem:[%s287 + $0x108] sm:$0xff]
      %v474 = vld [vmem:[%s287 + $0x110] sm:$0xff]
      %v475 = vld [vmem:[%s287 + $0x118] sm:$0xff]
      %v476 = vld [vmem:[%s287 + $0x120] sm:$0xff]
      %v477 = vld [vmem:[%s287 + $0x128] sm:$0xff]
      %v478 = vld [vmem:[%s287 + $0x130] sm:$0xff]
      %v479 = vld [vmem:[%s287 + $0x138] sm:$0xff]
      %v480 = vld [vmem:[%s287 + $0x140] sm:$0xff]
      %v481 = vld [vmem:[%s287 + $0x148] sm:$0xff]
      %v482 = vld [vmem:[%s287 + $0x150] sm:$0xff]
      %v483 = vld [vmem:[%s287 + $0x158] sm:$0xff]
      %v484 = vld [vmem:[%s287 + $0x160] sm:$0xff]
      %v485 = vld [vmem:[%s287 + $0x168] sm:$0xff]
      %v486 = vld [vmem:[%s287 + $0x170] sm:$0xff]
      %v487 = vld [vmem:[%s287 + $0x178] sm:$0xff]
      %v488 = vld [vmem:[%s287 + $0x180] sm:$0xff]
      %v489 = vld [vmem:[%s287 + $0x188] sm:$0xff]
      %v490 = vld [vmem:[%s287 + $0x190] sm:$0xff]
      %v491 = vld [vmem:[%s287 + $0x198] sm:$0xff]
      %v492 = vld [vmem:[%s287 + $0x1a0] sm:$0xff]
      %v493 = vld [vmem:[%s287 + $0x1a8] sm:$0xff]
      %v494 = vld [vmem:[%s287 + $0x1b0] sm:$0xff]
      %v495 = vld [vmem:[%s287 + $0x1b8] sm:$0xff]
      %v496 = vld [vmem:[%s287 + $0x1c0] sm:$0xff]
      %v497 = vld [vmem:[%s287 + $0x1c8] sm:$0xff]
      %v498 = vld [vmem:[%s287 + $0x1d0] sm:$0xff]
      %v499 = vld [vmem:[%s287 + $0x1d8] sm:$0xff]
      %v500 = vld [vmem:[%s287 + $0x1e0] sm:$0xff]
      %v501 = vld [vmem:[%s287 + $0x1e8] sm:$0xff]
      %v502 = vld [vmem:[%s287 + $0x1f0] sm:$0xff]
      %v503 = vld [vmem:[%s287 + $0x1f8] sm:$0xff]
      %v504 = vld [vmem:[%s287 + $0x200] sm:$0xff]
      %v505 = vld [vmem:[%s287 + $0x208] sm:$0xff]
      %v506 = vld [vmem:[%s287 + $0x210] sm:$0xff]
      %v507 = vld [vmem:[%s287 + $0x218] sm:$0xff]
      %v508 = vld [vmem:[%s287 + $0x220] sm:$0xff]
      %v509 = vld [vmem:[%s287 + $0x228] sm:$0xff]
      %v510 = vld [vmem:[%s287 + $0x230] sm:$0xff]
      %v511 = vld [vmem:[%s287 + $0x238] sm:$0xff]
      %v512 = vld [vmem:[%s287 + $0x240] sm:$0xff]
      %v513 = vld [vmem:[%s287 + $0x248] sm:$0xff]
      %v514 = vld [vmem:[%s287 + $0x250] sm:$0xff]
      %v515 = vld [vmem:[%s287 + $0x258] sm:$0xff]
      %v516 = vld [vmem:[%s287 + $0x260] sm:$0xff]
      %v517 = vld [vmem:[%s287 + $0x268] sm:$0xff]
      %v518 = vld [vmem:[%s287 + $0x270] sm:$0xff]
      %v519 = vld [vmem:[%s287 + $0x278] sm:$0xff]
      %v520 = vld [vmem:[%s287 + $0x280] sm:$0xff]
      %v521 = vld [vmem:[%s287 + $0x288] sm:$0xff]
      %v522 = vld [vmem:[%s287 + $0x290] sm:$0xff]
      %v523 = vld [vmem:[%s287 + $0x298] sm:$0xff]
      %v524 = vld [vmem:[%s287 + $0x2a0] sm:$0xff]
      %v525 = vld [vmem:[%s287 + $0x2a8] sm:$0xff]
      %v526 = vld [vmem:[%s287 + $0x2b0] sm:$0xff]
      %v527 = vld [vmem:[%s287 + $0x2b8] sm:$0xff]
      %v528 = vld [vmem:[%s287 + $0x2c0] sm:$0xff]
      %v529 = vld [vmem:[%s287 + $0x2c8] sm:$0xff]
      %v530 = vld [vmem:[%s287 + $0x2d0] sm:$0xff]
      %v531 = vld [vmem:[%s287 + $0x2d8] sm:$0xff]
      %v532 = vld [vmem:[%s287 + $0x2e0] sm:$0xff]
      %v533 = vld [vmem:[%s287 + $0x2e8] sm:$0xff]
      %v534 = vld [vmem:[%s287 + $0x2f0] sm:$0xff]
      %v535 = vld [vmem:[%s287 + $0x2f8] sm:$0xff]
      %v536 = vld [vmem:[%s287 + $0x300] sm:$0xff]
      %v537 = vld [vmem:[%s287 + $0x308] sm:$0xff]
      %v538 = vld [vmem:[%s287 + $0x310] sm:$0xff]
      %v539 = vld [vmem:[%s287 + $0x318] sm:$0xff]
      %v540 = vld [vmem:[%s287 + $0x320] sm:$0xff]
      %v541 = vld [vmem:[%s287 + $0x328] sm:$0xff]
      %v542 = vld [vmem:[%s287 + $0x330] sm:$0xff]
      %v543 = vld [vmem:[%s287 + $0x338] sm:$0xff]
      %v544 = vld [vmem:[%s287 + $0x340] sm:$0xff]
      %v545 = vld [vmem:[%s287 + $0x348] sm:$0xff]
      %v546 = vld [vmem:[%s287 + $0x350] sm:$0xff]
      %v547 = vld [vmem:[%s287 + $0x358] sm:$0xff]
      %v548 = vld [vmem:[%s287 + $0x360] sm:$0xff]
      %v549 = vld [vmem:[%s287 + $0x368] sm:$0xff]
      %v550 = vld [vmem:[%s287 + $0x370] sm:$0xff]
      %v551 = vld [vmem:[%s287 + $0x378] sm:$0xff]
      %v552 = vld [vmem:[%s287 + $0x380] sm:$0xff]
      %v553 = vld [vmem:[%s287 + $0x388] sm:$0xff]
      %v554 = vld [vmem:[%s287 + $0x390] sm:$0xff]
      %v555 = vld [vmem:[%s287 + $0x398] sm:$0xff]
      %v556 = vld [vmem:[%s287 + $0x3a0] sm:$0xff]
      %v557 = vld [vmem:[%s287 + $0x3a8] sm:$0xff]
      %v558 = vld [vmem:[%s287 + $0x3b0] sm:$0xff]
      %v559 = vld [vmem:[%s287 + $0x3b8] sm:$0xff]
      %v560 = vld [vmem:[%s287 + $0x3c0] sm:$0xff]
      %v561 = vld [vmem:[%s287 + $0x3c8] sm:$0xff]
      %v562 = vld [vmem:[%s287 + $0x3d0] sm:$0xff]
      %v563 = vld [vmem:[%s287 + $0x3d8] sm:$0xff]
      %v564 = vld [vmem:[%s287 + $0x3e0] sm:$0xff]
      %v565 = vld [vmem:[%s287 + $0x3e8] sm:$0xff]
      %v566 = vld [vmem:[%s287 + $0x3f0] sm:$0xff]
      %v567 = vld [vmem:[%s287 + $0x3f8] sm:$0xff]
      %v568 = vld [vmem:[%s293] sm:$0xff]
      %v569 = vld [vmem:[%s293 + $0x8] sm:$0xff]
      %v570 = vld [vmem:[%s293 + $0x10] sm:$0xff]
      %v571 = vld [vmem:[%s293 + $0x18] sm:$0xff]
      %v572 = vld [vmem:[%s293 + $0x20] sm:$0xff]
      %v573 = vld [vmem:[%s293 + $0x28] sm:$0xff]
      %v574 = vld [vmem:[%s293 + $0x30] sm:$0xff]
      %v575 = vld [vmem:[%s293 + $0x38] sm:$0xff]
      %v576 = vld [vmem:[%s293 + $0x40] sm:$0xff]
      %v577 = vld [vmem:[%s293 + $0x48] sm:$0xff]
      %v578 = vld [vmem:[%s293 + $0x50] sm:$0xff]
      %v579 = vld [vmem:[%s293 + $0x58] sm:$0xff]
      %v580 = vld [vmem:[%s293 + $0x60] sm:$0xff]
      %v581 = vld [vmem:[%s293 + $0x68] sm:$0xff]
      %v582 = vld [vmem:[%s293 + $0x70] sm:$0xff]
      %v583 = vld [vmem:[%s293 + $0x78] sm:$0xff]
      %v584 = vld [vmem:[%s293 + $0x80] sm:$0xff]
      %v585 = vld [vmem:[%s293 + $0x88] sm:$0xff]
      %v586 = vld [vmem:[%s293 + $0x90] sm:$0xff]
      %v587 = vld [vmem:[%s293 + $0x98] sm:$0xff]
      %v588 = vld [vmem:[%s293 + $0xa0] sm:$0xff]
      %v589 = vld [vmem:[%s293 + $0xa8] sm:$0xff]
      %v590 = vld [vmem:[%s293 + $0xb0] sm:$0xff]
      %v591 = vld [vmem:[%s293 + $0xb8] sm:$0xff]
      %v592 = vld [vmem:[%s293 + $0xc0] sm:$0xff]
      %v593 = vld [vmem:[%s293 + $0xc8] sm:$0xff]
      %v594 = vld [vmem:[%s293 + $0xd0] sm:$0xff]
      %v595 = vld [vmem:[%s293 + $0xd8] sm:$0xff]
      %v596 = vld [vmem:[%s293 + $0xe0] sm:$0xff]
      %v597 = vld [vmem:[%s293 + $0xe8] sm:$0xff]
      %v598 = vld [vmem:[%s293 + $0xf0] sm:$0xff]
      %v599 = vld [vmem:[%s293 + $0xf8] sm:$0xff]
      %v600 = vld [vmem:[%s293 + $0x100] sm:$0xff]
      %v601 = vld [vmem:[%s293 + $0x108] sm:$0xff]
      %v602 = vld [vmem:[%s293 + $0x110] sm:$0xff]
      %v603 = vld [vmem:[%s293 + $0x118] sm:$0xff]
      %v604 = vld [vmem:[%s293 + $0x120] sm:$0xff]
      %v605 = vld [vmem:[%s293 + $0x128] sm:$0xff]
      %v606 = vld [vmem:[%s293 + $0x130] sm:$0xff]
      %v607 = vld [vmem:[%s293 + $0x138] sm:$0xff]
      %v608 = vld [vmem:[%s293 + $0x140] sm:$0xff]
      %v609 = vld [vmem:[%s293 + $0x148] sm:$0xff]
      %v610 = vld [vmem:[%s293 + $0x150] sm:$0xff]
      %v611 = vld [vmem:[%s293 + $0x158] sm:$0xff]
      %v612 = vld [vmem:[%s293 + $0x160] sm:$0xff]
      %v613 = vld [vmem:[%s293 + $0x168] sm:$0xff]
      %v614 = vld [vmem:[%s293 + $0x170] sm:$0xff]
      %v615 = vld [vmem:[%s293 + $0x178] sm:$0xff]
      %v616 = vld [vmem:[%s293 + $0x180] sm:$0xff]
      %v617 = vld [vmem:[%s293 + $0x188] sm:$0xff]
      %v618 = vld [vmem:[%s293 + $0x190] sm:$0xff]
      %v619 = vld [vmem:[%s293 + $0x198] sm:$0xff]
      %v620 = vld [vmem:[%s293 + $0x1a0] sm:$0xff]
      %v621 = vld [vmem:[%s293 + $0x1a8] sm:$0xff]
      %v622 = vld [vmem:[%s293 + $0x1b0] sm:$0xff]
      %v623 = vld [vmem:[%s293 + $0x1b8] sm:$0xff]
      %v624 = vld [vmem:[%s293 + $0x1c0] sm:$0xff]
      %v625 = vld [vmem:[%s293 + $0x1c8] sm:$0xff]
      %v626 = vld [vmem:[%s293 + $0x1d0] sm:$0xff]
      %v627 = vld [vmem:[%s293 + $0x1d8] sm:$0xff]
      %v628 = vld [vmem:[%s293 + $0x1e0] sm:$0xff]
      %v629 = vld [vmem:[%s293 + $0x1e8] sm:$0xff]
      %v630 = vld [vmem:[%s293 + $0x1f0] sm:$0xff]
      %v631 = vld [vmem:[%s293 + $0x1f8] sm:$0xff]
      %633 = vset.pattern.permute.xlu0 0
      %634 = vperm.xlu0 %633, %v568
      %v635 = vpop.permute.xlu0 %634
      %638 = vset.pattern.permute.xlu0 0
      %639 = vperm.xlu0 %638, %v569
      %v640 = vpop.permute.xlu0 %639
      %643 = vset.pattern.permute.xlu0 0
      %644 = vperm.xlu0 %643, %v570
      %v645 = vpop.permute.xlu0 %644
      %648 = vset.pattern.permute.xlu0 0
      %649 = vperm.xlu0 %648, %v571
      %v650 = vpop.permute.xlu0 %649
      %653 = vset.pattern.permute.xlu0 0
      %654 = vperm.xlu0 %653, %v572
      %v655 = vpop.permute.xlu0 %654
      %658 = vset.pattern.permute.xlu0 0
      %659 = vperm.xlu0 %658, %v573
      %v660 = vpop.permute.xlu0 %659
      %663 = vset.pattern.permute.xlu0 0
      %664 = vperm.xlu0 %663, %v574
      %v665 = vpop.permute.xlu0 %664
      %668 = vset.pattern.permute.xlu0 0
      %669 = vperm.xlu0 %668, %v575
      %v670 = vpop.permute.xlu0 %669
      %673 = vset.pattern.permute.xlu0 0
      %674 = vperm.xlu0 %673, %v576
      %v675 = vpop.permute.xlu0 %674
      %678 = vset.pattern.permute.xlu0 0
      %679 = vperm.xlu0 %678, %v577
      %v680 = vpop.permute.xlu0 %679
      %683 = vset.pattern.permute.xlu0 0
      %684 = vperm.xlu0 %683, %v578
      %v685 = vpop.permute.xlu0 %684
      %688 = vset.pattern.permute.xlu0 0
      %689 = vperm.xlu0 %688, %v579
      %v690 = vpop.permute.xlu0 %689
      %693 = vset.pattern.permute.xlu0 0
      %694 = vperm.xlu0 %693, %v580
      %v695 = vpop.permute.xlu0 %694
      %698 = vset.pattern.permute.xlu0 0
      %699 = vperm.xlu0 %698, %v581
      %v700 = vpop.permute.xlu0 %699
      %703 = vset.pattern.permute.xlu0 0
      %704 = vperm.xlu0 %703, %v582
      %v705 = vpop.permute.xlu0 %704
      %708 = vset.pattern.permute.xlu0 0
      %709 = vperm.xlu0 %708, %v583
      %v710 = vpop.permute.xlu0 %709
      %713 = vset.pattern.permute.xlu0 0
      %714 = vperm.xlu0 %713, %v584
      %v715 = vpop.permute.xlu0 %714
      %718 = vset.pattern.permute.xlu0 0
      %719 = vperm.xlu0 %718, %v585
      %v720 = vpop.permute.xlu0 %719
      %723 = vset.pattern.permute.xlu0 0
      %724 = vperm.xlu0 %723, %v586
      %v725 = vpop.permute.xlu0 %724
      %728 = vset.pattern.permute.xlu0 0
      %729 = vperm.xlu0 %728, %v587
      %v730 = vpop.permute.xlu0 %729
      %733 = vset.pattern.permute.xlu0 0
      %734 = vperm.xlu0 %733, %v588
      %v735 = vpop.permute.xlu0 %734
      %738 = vset.pattern.permute.xlu0 0
      %739 = vperm.xlu0 %738, %v589
      %v740 = vpop.permute.xlu0 %739
      %743 = vset.pattern.permute.xlu0 0
      %744 = vperm.xlu0 %743, %v590
      %v745 = vpop.permute.xlu0 %744
      %748 = vset.pattern.permute.xlu0 0
      %749 = vperm.xlu0 %748, %v591
      %v750 = vpop.permute.xlu0 %749
      %753 = vset.pattern.permute.xlu0 0
      %754 = vperm.xlu0 %753, %v592
      %v755 = vpop.permute.xlu0 %754
      %758 = vset.pattern.permute.xlu0 0
      %759 = vperm.xlu0 %758, %v593
      %v760 = vpop.permute.xlu0 %759
      %763 = vset.pattern.permute.xlu0 0
      %764 = vperm.xlu0 %763, %v594
      %v765 = vpop.permute.xlu0 %764
      %768 = vset.pattern.permute.xlu0 0
      %769 = vperm.xlu0 %768, %v595
      %v770 = vpop.permute.xlu0 %769
      %773 = vset.pattern.permute.xlu0 0
      %774 = vperm.xlu0 %773, %v596
      %v775 = vpop.permute.xlu0 %774
      %778 = vset.pattern.permute.xlu0 0
      %779 = vperm.xlu0 %778, %v597
      %v780 = vpop.permute.xlu0 %779
      %783 = vset.pattern.permute.xlu0 0
      %784 = vperm.xlu0 %783, %v598
      %v785 = vpop.permute.xlu0 %784
      %788 = vset.pattern.permute.xlu0 0
      %789 = vperm.xlu0 %788, %v599
      %v790 = vpop.permute.xlu0 %789
      %793 = vset.pattern.permute.xlu0 0
      %794 = vperm.xlu0 %793, %v600
      %v795 = vpop.permute.xlu0 %794
      %798 = vset.pattern.permute.xlu0 0
      %799 = vperm.xlu0 %798, %v601
      %v800 = vpop.permute.xlu0 %799
      %803 = vset.pattern.permute.xlu0 0
      %804 = vperm.xlu0 %803, %v602
      %v805 = vpop.permute.xlu0 %804
      %808 = vset.pattern.permute.xlu0 0
      %809 = vperm.xlu0 %808, %v603
      %v810 = vpop.permute.xlu0 %809
      %813 = vset.pattern.permute.xlu0 0
      %814 = vperm.xlu0 %813, %v604
      %v815 = vpop.permute.xlu0 %814
      %818 = vset.pattern.permute.xlu0 0
      %819 = vperm.xlu0 %818, %v605
      %v820 = vpop.permute.xlu0 %819
      %823 = vset.pattern.permute.xlu0 0
      %824 = vperm.xlu0 %823, %v606
      %v825 = vpop.permute.xlu0 %824
      %828 = vset.pattern.permute.xlu0 0
      %829 = vperm.xlu0 %828, %v607
      %v830 = vpop.permute.xlu0 %829
      %833 = vset.pattern.permute.xlu0 0
      %834 = vperm.xlu0 %833, %v608
      %v835 = vpop.permute.xlu0 %834
      %838 = vset.pattern.permute.xlu0 0
      %839 = vperm.xlu0 %838, %v609
      %v840 = vpop.permute.xlu0 %839
      %843 = vset.pattern.permute.xlu0 0
      %844 = vperm.xlu0 %843, %v610
      %v845 = vpop.permute.xlu0 %844
      %848 = vset.pattern.permute.xlu0 0
      %849 = vperm.xlu0 %848, %v611
      %v850 = vpop.permute.xlu0 %849
      %853 = vset.pattern.permute.xlu0 0
      %854 = vperm.xlu0 %853, %v612
      %v855 = vpop.permute.xlu0 %854
      %858 = vset.pattern.permute.xlu0 0
      %859 = vperm.xlu0 %858, %v613
      %v860 = vpop.permute.xlu0 %859
      %863 = vset.pattern.permute.xlu0 0
      %864 = vperm.xlu0 %863, %v614
      %v865 = vpop.permute.xlu0 %864
      %868 = vset.pattern.permute.xlu0 0
      %869 = vperm.xlu0 %868, %v615
      %v870 = vpop.permute.xlu0 %869
      %873 = vset.pattern.permute.xlu0 0
      %874 = vperm.xlu0 %873, %v616
      %v875 = vpop.permute.xlu0 %874
      %878 = vset.pattern.permute.xlu0 0
      %879 = vperm.xlu0 %878, %v617
      %v880 = vpop.permute.xlu0 %879
      %883 = vset.pattern.permute.xlu0 0
      %884 = vperm.xlu0 %883, %v618
      %v885 = vpop.permute.xlu0 %884
      %888 = vset.pattern.permute.xlu0 0
      %889 = vperm.xlu0 %888, %v619
      %v890 = vpop.permute.xlu0 %889
      %893 = vset.pattern.permute.xlu0 0
      %894 = vperm.xlu0 %893, %v620
      %v895 = vpop.permute.xlu0 %894
      %898 = vset.pattern.permute.xlu0 0
      %899 = vperm.xlu0 %898, %v621
      %v900 = vpop.permute.xlu0 %899
      %903 = vset.pattern.permute.xlu0 0
      %904 = vperm.xlu0 %903, %v622
      %v905 = vpop.permute.xlu0 %904
      %908 = vset.pattern.permute.xlu0 0
      %909 = vperm.xlu0 %908, %v623
      %v910 = vpop.permute.xlu0 %909
      %913 = vset.pattern.permute.xlu0 0
      %914 = vperm.xlu0 %913, %v624
      %v915 = vpop.permute.xlu0 %914
      %918 = vset.pattern.permute.xlu0 0
      %919 = vperm.xlu0 %918, %v625
      %v920 = vpop.permute.xlu0 %919
      %923 = vset.pattern.permute.xlu0 0
      %924 = vperm.xlu0 %923, %v626
      %v925 = vpop.permute.xlu0 %924
      %928 = vset.pattern.permute.xlu0 0
      %929 = vperm.xlu0 %928, %v627
      %v930 = vpop.permute.xlu0 %929
      %933 = vset.pattern.permute.xlu0 0
      %934 = vperm.xlu0 %933, %v628
      %v935 = vpop.permute.xlu0 %934
      %938 = vset.pattern.permute.xlu0 0
      %939 = vperm.xlu0 %938, %v629
      %v940 = vpop.permute.xlu0 %939
      %943 = vset.pattern.permute.xlu0 0
      %944 = vperm.xlu0 %943, %v630
      %v945 = vpop.permute.xlu0 %944
      %948 = vset.pattern.permute.xlu0 0
      %949 = vperm.xlu0 %948, %v631
      %v950 = vpop.permute.xlu0 %949
      %vm952 = vcmask 269312
      %v954 = vsel %vm952, %v376, 0
      %v957 = vsel %vm952, %v377, 0
      %v960 = vsel %vm952, %v378, 0
      %v963 = vsel %vm952, %v379, 0
      %v966 = vsel %vm952, %v380, 0
      %v969 = vsel %vm952, %v381, 0
      %v972 = vsel %vm952, %v382, 0
      %v975 = vsel %vm952, %v383, 0
      %v978 = vsel %vm952, %v384, 0
      %v981 = vsel %vm952, %v385, 0
      %v984 = vsel %vm952, %v386, 0
      %v987 = vsel %vm952, %v387, 0
      %v990 = vsel %vm952, %v388, 0
      %v993 = vsel %vm952, %v389, 0
      %v996 = vsel %vm952, %v390, 0
      %v999 = vsel %vm952, %v391, 0
      %v1002 = vsel %vm952, %v392, 0
      %v1005 = vsel %vm952, %v393, 0
      %v1008 = vsel %vm952, %v394, 0
      %v1011 = vsel %vm952, %v395, 0
      %v1014 = vsel %vm952, %v396, 0
      %v1017 = vsel %vm952, %v397, 0
      %v1020 = vsel %vm952, %v398, 0
      %v1023 = vsel %vm952, %v399, 0
      %v1026 = vsel %vm952, %v400, 0
      %v1029 = vsel %vm952, %v401, 0
      %v1032 = vsel %vm952, %v402, 0
      %v1035 = vsel %vm952, %v403, 0
      %v1038 = vsel %vm952, %v404, 0
      %v1041 = vsel %vm952, %v405, 0
      %v1044 = vsel %vm952, %v406, 0
      %v1047 = vsel %vm952, %v407, 0
      %v1050 = vsel %vm952, %v408, 0
      %v1053 = vsel %vm952, %v409, 0
      %v1056 = vsel %vm952, %v410, 0
      %v1059 = vsel %vm952, %v411, 0
      %v1062 = vsel %vm952, %v412, 0
      %v1065 = vsel %vm952, %v413, 0
      %v1068 = vsel %vm952, %v414, 0
      %v1071 = vsel %vm952, %v415, 0
      %v1074 = vsel %vm952, %v416, 0
      %v1077 = vsel %vm952, %v417, 0
      %v1080 = vsel %vm952, %v418, 0
      %v1083 = vsel %vm952, %v419, 0
      %v1086 = vsel %vm952, %v420, 0
      %v1089 = vsel %vm952, %v421, 0
      %v1092 = vsel %vm952, %v422, 0
      %v1095 = vsel %vm952, %v423, 0
      %v1098 = vsel %vm952, %v424, 0
      %v1101 = vsel %vm952, %v425, 0
      %v1104 = vsel %vm952, %v426, 0
      %v1107 = vsel %vm952, %v427, 0
      %v1110 = vsel %vm952, %v428, 0
      %v1113 = vsel %vm952, %v429, 0
      %v1116 = vsel %vm952, %v430, 0
      %v1119 = vsel %vm952, %v431, 0
      %v1122 = vsel %vm952, %v432, 0
      %v1125 = vsel %vm952, %v433, 0
      %v1128 = vsel %vm952, %v434, 0
      %v1131 = vsel %vm952, %v435, 0
      %v1134 = vsel %vm952, %v436, 0
      %v1137 = vsel %vm952, %v437, 0
      %v1140 = vsel %vm952, %v438, 0
      %v1143 = vsel %vm952, %v439, 0
      %v1146 = vsel %vm952, %v440, 0
      %v1149 = vsel %vm952, %v441, 0
      %v1152 = vsel %vm952, %v442, 0
      %v1155 = vsel %vm952, %v443, 0
      %v1158 = vsel %vm952, %v444, 0
      %v1161 = vsel %vm952, %v445, 0
      %v1164 = vsel %vm952, %v446, 0
      %v1167 = vsel %vm952, %v447, 0
      %v1170 = vsel %vm952, %v448, 0
      %v1173 = vsel %vm952, %v449, 0
      %v1176 = vsel %vm952, %v450, 0
      %v1179 = vsel %vm952, %v451, 0
      %v1182 = vsel %vm952, %v452, 0
      %v1185 = vsel %vm952, %v453, 0
      %v1188 = vsel %vm952, %v454, 0
      %v1191 = vsel %vm952, %v455, 0
      %v1194 = vsel %vm952, %v456, 0
      %v1197 = vsel %vm952, %v457, 0
      %v1200 = vsel %vm952, %v458, 0
      %v1203 = vsel %vm952, %v459, 0
      %v1206 = vsel %vm952, %v460, 0
      %v1209 = vsel %vm952, %v461, 0
      %v1212 = vsel %vm952, %v462, 0
      %v1215 = vsel %vm952, %v463, 0
      %v1218 = vsel %vm952, %v464, 0
      %v1221 = vsel %vm952, %v465, 0
      %v1224 = vsel %vm952, %v466, 0
      %v1227 = vsel %vm952, %v467, 0
      %v1230 = vsel %vm952, %v468, 0
      %v1233 = vsel %vm952, %v469, 0
      %v1236 = vsel %vm952, %v470, 0
      %v1239 = vsel %vm952, %v471, 0
      %v1242 = vsel %vm952, %v472, 0
      %v1245 = vsel %vm952, %v473, 0
      %v1248 = vsel %vm952, %v474, 0
      %v1251 = vsel %vm952, %v475, 0
      %v1254 = vsel %vm952, %v476, 0
      %v1257 = vsel %vm952, %v477, 0
      %v1260 = vsel %vm952, %v478, 0
      %v1263 = vsel %vm952, %v479, 0
      %v1266 = vsel %vm952, %v480, 0
      %v1269 = vsel %vm952, %v481, 0
      %v1272 = vsel %vm952, %v482, 0
      %v1275 = vsel %vm952, %v483, 0
      %v1278 = vsel %vm952, %v484, 0
      %v1281 = vsel %vm952, %v485, 0
      %v1284 = vsel %vm952, %v486, 0
      %v1287 = vsel %vm952, %v487, 0
      %v1290 = vsel %vm952, %v488, 0
      %v1293 = vsel %vm952, %v489, 0
      %v1296 = vsel %vm952, %v490, 0
      %v1299 = vsel %vm952, %v491, 0
      %v1302 = vsel %vm952, %v492, 0
      %v1305 = vsel %vm952, %v493, 0
      %v1308 = vsel %vm952, %v494, 0
      %v1311 = vsel %vm952, %v495, 0
      %v1314 = vsel %vm952, %v496, 0
      %v1317 = vsel %vm952, %v497, 0
      %v1320 = vsel %vm952, %v498, 0
      %v1323 = vsel %vm952, %v499, 0
      %v1326 = vsel %vm952, %v500, 0
      %v1329 = vsel %vm952, %v501, 0
      %v1332 = vsel %vm952, %v502, 0
      %v1335 = vsel %vm952, %v503, 0
      %v1338 = vsel %vm952, %v504, 0
      %v1341 = vsel %vm952, %v505, 0
      %v1344 = vsel %vm952, %v506, 0
      %v1347 = vsel %vm952, %v507, 0
      %v1350 = vsel %vm952, %v508, 0
      %v1353 = vsel %vm952, %v509, 0
      %v1356 = vsel %vm952, %v510, 0
      %v1359 = vsel %vm952, %v511, 0
      %v1362 = vsel %vm952, %v512, 0
      %v1365 = vsel %vm952, %v513, 0
      %v1368 = vsel %vm952, %v514, 0
      %v1371 = vsel %vm952, %v515, 0
      %v1374 = vsel %vm952, %v516, 0
      %v1377 = vsel %vm952, %v517, 0
      %v1380 = vsel %vm952, %v518, 0
      %v1383 = vsel %vm952, %v519, 0
      %v1386 = vsel %vm952, %v520, 0
      %v1389 = vsel %vm952, %v521, 0
      %v1392 = vsel %vm952, %v522, 0
      %v1395 = vsel %vm952, %v523, 0
      %v1398 = vsel %vm952, %v524, 0
      %v1401 = vsel %vm952, %v525, 0
      %v1404 = vsel %vm952, %v526, 0
      %v1407 = vsel %vm952, %v527, 0
      %v1410 = vsel %vm952, %v528, 0
      %v1413 = vsel %vm952, %v529, 0
      %v1416 = vsel %vm952, %v530, 0
      %v1419 = vsel %vm952, %v531, 0
      %v1422 = vsel %vm952, %v532, 0
      %v1425 = vsel %vm952, %v533, 0
      %v1428 = vsel %vm952, %v534, 0
      %v1431 = vsel %vm952, %v535, 0
      %v1434 = vsel %vm952, %v536, 0
      %v1437 = vsel %vm952, %v537, 0
      %v1440 = vsel %vm952, %v538, 0
      %v1443 = vsel %vm952, %v539, 0
      %v1446 = vsel %vm952, %v540, 0
      %v1449 = vsel %vm952, %v541, 0
      %v1452 = vsel %vm952, %v542, 0
      %v1455 = vsel %vm952, %v543, 0
      %v1458 = vsel %vm952, %v544, 0
      %v1461 = vsel %vm952, %v545, 0
      %v1464 = vsel %vm952, %v546, 0
      %v1467 = vsel %vm952, %v547, 0
      %v1470 = vsel %vm952, %v548, 0
      %v1473 = vsel %vm952, %v549, 0
      %v1476 = vsel %vm952, %v550, 0
      %v1479 = vsel %vm952, %v551, 0
      %v1482 = vsel %vm952, %v552, 0
      %v1485 = vsel %vm952, %v553, 0
      %v1488 = vsel %vm952, %v554, 0
      %v1491 = vsel %vm952, %v555, 0
      %v1494 = vsel %vm952, %v556, 0
      %v1497 = vsel %vm952, %v557, 0
      %v1500 = vsel %vm952, %v558, 0
      %v1503 = vsel %vm952, %v559, 0
      %v1506 = vsel %vm952, %v560, 0
      %v1509 = vsel %vm952, %v561, 0
      %v1512 = vsel %vm952, %v562, 0
      %v1515 = vsel %vm952, %v563, 0
      %v1518 = vsel %vm952, %v564, 0
      %v1521 = vsel %vm952, %v565, 0
      %v1524 = vsel %vm952, %v566, 0
      %v1527 = vsel %vm952, %v567, 0
      %1529 = vmatpush.xpose.msra.mxu0 %v1191
      %1530 = vmatpush.xpose.msra.mxu0 %v1188
      %1531 = vmatpush.xpose.msra.mxu0 %v1185
      %1532 = vmatpush.xpose.msra.mxu0 %v1182
      %1533 = vmatpush.xpose.msra.mxu0 %v1179
      %1534 = vmatpush.xpose.msra.mxu0 %v1176
      %1535 = vmatpush.xpose.msra.mxu0 %v1173
      %1536 = vmatpush.xpose.msra.mxu0 %v1170
      %1537 = vmatpush.xpose.msra.mxu0 %v1167
      %1538 = vmatpush.xpose.msra.mxu0 %v1164
      %1539 = vmatpush.xpose.msra.mxu0 %v1161
      %1540 = vmatpush.xpose.msra.mxu0 %v1158
      %1541 = vmatpush.xpose.msra.mxu0 %v1155
      %1542 = vmatpush.xpose.msra.mxu0 %v1152
      %1543 = vmatpush.xpose.msra.mxu0 %v1149
      %1544 = vmatpush.xpose.msra.mxu0 %v1146
      %1545 = vmatmul.f32.gmra.mxu0 %v954
      %v1546 = vpop.f32.mrf.mxu0
      %v1547 = vadd.f32 %v635, %v1546
      %1548 = vmatmul.f32.gmra.mxu0 %v957
      %v1549 = vpop.f32.mrf.mxu0
      %v1550 = vadd.f32 %v640, %v1549
      %1551 = vmatmul.f32.gmra.mxu0 %v960
      %v1552 = vpop.f32.mrf.mxu0
      %v1553 = vadd.f32 %v645, %v1552
      %1554 = vmatmul.f32.gmra.mxu0 %v963
      %v1555 = vpop.f32.mrf.mxu0
      %v1556 = vadd.f32 %v650, %v1555
      %1557 = vmatmul.f32.gmra.mxu0 %v966
      %v1558 = vpop.f32.mrf.mxu0
      %v1559 = vadd.f32 %v655, %v1558
      %1560 = vmatmul.f32.gmra.mxu0 %v969
      %v1561 = vpop.f32.mrf.mxu0
      %v1562 = vadd.f32 %v660, %v1561
      %1563 = vmatmul.f32.gmra.mxu0 %v972
      %v1564 = vpop.f32.mrf.mxu0
      %v1565 = vadd.f32 %v665, %v1564
      %1566 = vmatmul.f32.gmra.mxu0 %v975
      %v1567 = vpop.f32.mrf.mxu0
      %v1568 = vadd.f32 %v670, %v1567
      %1569 = vmatmul.f32.gmra.mxu0 %v978
      %v1570 = vpop.f32.mrf.mxu0
      %v1571 = vadd.f32 %v675, %v1570
      %1572 = vmatmul.f32.gmra.mxu0 %v981
      %v1573 = vpop.f32.mrf.mxu0
      %v1574 = vadd.f32 %v680, %v1573
      %1575 = vmatmul.f32.gmra.mxu0 %v984
      %v1576 = vpop.f32.mrf.mxu0
      %v1577 = vadd.f32 %v685, %v1576
      %1578 = vmatmul.f32.gmra.mxu0 %v987
      %v1579 = vpop.f32.mrf.mxu0
      %v1580 = vadd.f32 %v690, %v1579
      %1581 = vmatmul.f32.gmra.mxu0 %v990
      %v1582 = vpop.f32.mrf.mxu0
      %v1583 = vadd.f32 %v695, %v1582
      %1584 = vmatmul.f32.gmra.mxu0 %v993
      %v1585 = vpop.f32.mrf.mxu0
      %v1586 = vadd.f32 %v700, %v1585
      %1587 = vmatmul.f32.gmra.mxu0 %v996
      %v1588 = vpop.f32.mrf.mxu0
      %v1589 = vadd.f32 %v705, %v1588
      %1590 = vmatmul.f32.gmra.mxu0 %v999
      %v1591 = vpop.f32.mrf.mxu0
      %v1592 = vadd.f32 %v710, %v1591
      %1593 = vmatmul.f32.gmra.mxu0 %v1002
      %v1594 = vpop.f32.mrf.mxu0
      %v1595 = vadd.f32 %v715, %v1594
      %1596 = vmatmul.f32.gmra.mxu0 %v1005
      %v1597 = vpop.f32.mrf.mxu0
      %v1598 = vadd.f32 %v720, %v1597
      %1599 = vmatmul.f32.gmra.mxu0 %v1008
      %v1600 = vpop.f32.mrf.mxu0
      %v1601 = vadd.f32 %v725, %v1600
      %1602 = vmatmul.f32.gmra.mxu0 %v1011
      %v1603 = vpop.f32.mrf.mxu0
      %v1604 = vadd.f32 %v730, %v1603
      %1605 = vmatmul.f32.gmra.mxu0 %v1014
      %v1606 = vpop.f32.mrf.mxu0
      %v1607 = vadd.f32 %v735, %v1606
      %1608 = vmatmul.f32.gmra.mxu0 %v1017
      %v1609 = vpop.f32.mrf.mxu0
      %v1610 = vadd.f32 %v740, %v1609
      %1611 = vmatmul.f32.gmra.mxu0 %v1020
      %v1612 = vpop.f32.mrf.mxu0
      %v1613 = vadd.f32 %v745, %v1612
      %1614 = vmatmul.f32.gmra.mxu0 %v1023
      %v1615 = vpop.f32.mrf.mxu0
      %v1616 = vadd.f32 %v750, %v1615
      %1617 = vmatmul.f32.gmra.mxu0 %v1026
      %v1618 = vpop.f32.mrf.mxu0
      %v1619 = vadd.f32 %v755, %v1618
      %1620 = vmatmul.f32.gmra.mxu0 %v1029
      %v1621 = vpop.f32.mrf.mxu0
      %v1622 = vadd.f32 %v760, %v1621
      %1623 = vmatmul.f32.gmra.mxu0 %v1032
      %v1624 = vpop.f32.mrf.mxu0
      %v1625 = vadd.f32 %v765, %v1624
      %1626 = vmatmul.f32.gmra.mxu0 %v1035
      %v1627 = vpop.f32.mrf.mxu0
      %v1628 = vadd.f32 %v770, %v1627
      %1629 = vmatmul.f32.gmra.mxu0 %v1038
      %v1630 = vpop.f32.mrf.mxu0
      %v1631 = vadd.f32 %v775, %v1630
      %1632 = vmatmul.f32.gmra.mxu0 %v1041
      %v1633 = vpop.f32.mrf.mxu0
      %v1634 = vadd.f32 %v780, %v1633
      %1635 = vmatmul.f32.gmra.mxu0 %v1044
      %v1636 = vpop.f32.mrf.mxu0
      %v1637 = vadd.f32 %v785, %v1636
      %1638 = vmatmul.f32.gmra.mxu0 %v1047
      %v1639 = vpop.f32.mrf.mxu0
      %v1640 = vadd.f32 %v790, %v1639
      %1641 = vmatmul.f32.gmra.mxu0 %v1050
      %v1642 = vpop.f32.mrf.mxu0
      %v1643 = vadd.f32 %v795, %v1642
      %1644 = vmatmul.f32.gmra.mxu0 %v1053
      %v1645 = vpop.f32.mrf.mxu0
      %v1646 = vadd.f32 %v800, %v1645
      %1647 = vmatmul.f32.gmra.mxu0 %v1056
      %v1648 = vpop.f32.mrf.mxu0
      %v1649 = vadd.f32 %v805, %v1648
      %1650 = vmatmul.f32.gmra.mxu0 %v1059
      %v1651 = vpop.f32.mrf.mxu0
      %v1652 = vadd.f32 %v810, %v1651
      %1653 = vmatmul.f32.gmra.mxu0 %v1062
      %v1654 = vpop.f32.mrf.mxu0
      %v1655 = vadd.f32 %v815, %v1654
      %1656 = vmatmul.f32.gmra.mxu0 %v1065
      %v1657 = vpop.f32.mrf.mxu0
      %v1658 = vadd.f32 %v820, %v1657
      %1659 = vmatmul.f32.gmra.mxu0 %v1068
      %v1660 = vpop.f32.mrf.mxu0
      %v1661 = vadd.f32 %v825, %v1660
      %1662 = vmatmul.f32.gmra.mxu0 %v1071
      %v1663 = vpop.f32.mrf.mxu0
      %v1664 = vadd.f32 %v830, %v1663
      %1665 = vmatmul.f32.gmra.mxu0 %v1074
      %v1666 = vpop.f32.mrf.mxu0
      %v1667 = vadd.f32 %v835, %v1666
      %1668 = vmatmul.f32.gmra.mxu0 %v1077
      %v1669 = vpop.f32.mrf.mxu0
      %v1670 = vadd.f32 %v840, %v1669
      %1671 = vmatmul.f32.gmra.mxu0 %v1080
      %v1672 = vpop.f32.mrf.mxu0
      %v1673 = vadd.f32 %v845, %v1672
      %1674 = vmatmul.f32.gmra.mxu0 %v1083
      %v1675 = vpop.f32.mrf.mxu0
      %v1676 = vadd.f32 %v850, %v1675
      %1677 = vmatmul.f32.gmra.mxu0 %v1086
      %v1678 = vpop.f32.mrf.mxu0
      %v1679 = vadd.f32 %v855, %v1678
      %1680 = vmatmul.f32.gmra.mxu0 %v1089
      %v1681 = vpop.f32.mrf.mxu0
      %v1682 = vadd.f32 %v860, %v1681
      %1683 = vmatmul.f32.gmra.mxu0 %v1092
      %v1684 = vpop.f32.mrf.mxu0
      %v1685 = vadd.f32 %v865, %v1684
      %1686 = vmatmul.f32.gmra.mxu0 %v1095
      %v1687 = vpop.f32.mrf.mxu0
      %v1688 = vadd.f32 %v870, %v1687
      %1689 = vmatmul.f32.gmra.mxu0 %v1098
      %v1690 = vpop.f32.mrf.mxu0
      %v1691 = vadd.f32 %v875, %v1690
      %1692 = vmatmul.f32.gmra.mxu0 %v1101
      %v1693 = vpop.f32.mrf.mxu0
      %v1694 = vadd.f32 %v880, %v1693
      %1695 = vmatmul.f32.gmra.mxu0 %v1104
      %v1696 = vpop.f32.mrf.mxu0
      %v1697 = vadd.f32 %v885, %v1696
      %1698 = vmatmul.f32.gmra.mxu0 %v1107
      %v1699 = vpop.f32.mrf.mxu0
      %v1700 = vadd.f32 %v890, %v1699
      %1701 = vmatmul.f32.gmra.mxu0 %v1110
      %v1702 = vpop.f32.mrf.mxu0
      %v1703 = vadd.f32 %v895, %v1702
      %1704 = vmatmul.f32.gmra.mxu0 %v1113
      %v1705 = vpop.f32.mrf.mxu0
      %v1706 = vadd.f32 %v900, %v1705
      %1707 = vmatmul.f32.gmra.mxu0 %v1116
      %v1708 = vpop.f32.mrf.mxu0
      %v1709 = vadd.f32 %v905, %v1708
      %1710 = vmatmul.f32.gmra.mxu0 %v1119
      %v1711 = vpop.f32.mrf.mxu0
      %v1712 = vadd.f32 %v910, %v1711
      %1713 = vmatmul.f32.gmra.mxu0 %v1122
      %v1714 = vpop.f32.mrf.mxu0
      %v1715 = vadd.f32 %v915, %v1714
      %1716 = vmatmul.f32.gmra.mxu0 %v1125
      %v1717 = vpop.f32.mrf.mxu0
      %v1718 = vadd.f32 %v920, %v1717
      %1719 = vmatmul.f32.gmra.mxu0 %v1128
      %v1720 = vpop.f32.mrf.mxu0
      %v1721 = vadd.f32 %v925, %v1720
      %1722 = vmatmul.f32.gmra.mxu0 %v1131
      %v1723 = vpop.f32.mrf.mxu0
      %v1724 = vadd.f32 %v930, %v1723
      %1725 = vmatmul.f32.gmra.mxu0 %v1134
      %v1726 = vpop.f32.mrf.mxu0
      %v1727 = vadd.f32 %v935, %v1726
      %1728 = vmatmul.f32.gmra.mxu0 %v1137
      %v1729 = vpop.f32.mrf.mxu0
      %v1730 = vadd.f32 %v940, %v1729
      %1731 = vmatmul.f32.gmra.mxu0 %v1140
      %v1732 = vpop.f32.mrf.mxu0
      %v1733 = vadd.f32 %v945, %v1732
      %1734 = vmatmul.f32.gmra.mxu0 %v1143
      %v1735 = vpop.f32.mrf.mxu0
      %v1736 = vadd.f32 %v950, %v1735
      %1737 = vdwg.mxu0
      %1738 = vmatpush.xpose.msra.mxu0 %v1239
      %1739 = vmatpush.xpose.msra.mxu0 %v1236
      %1740 = vmatpush.xpose.msra.mxu0 %v1233
      %1741 = vmatpush.xpose.msra.mxu0 %v1230
      %1742 = vmatpush.xpose.msra.mxu0 %v1227
      %1743 = vmatpush.xpose.msra.mxu0 %v1224
      %1744 = vmatpush.xpose.msra.mxu0 %v1221
      %1745 = vmatpush.xpose.msra.mxu0 %v1218
      %1746 = vmatpush.xpose.msra.mxu0 %v1215
      %1747 = vmatpush.xpose.msra.mxu0 %v1212
      %1748 = vmatpush.xpose.msra.mxu0 %v1209
      %1749 = vmatpush.xpose.msra.mxu0 %v1206
      %1750 = vmatpush.xpose.msra.mxu0 %v1203
      %1751 = vmatpush.xpose.msra.mxu0 %v1200
      %1752 = vmatpush.xpose.msra.mxu0 %v1197
      %1753 = vmatpush.xpose.msra.mxu0 %v1194
      %1754 = vmatmul.f32.gmra.mxu0 %v954
      %v1755 = vpop.f32.mrf.mxu0
      %v1756 = vadd.f32 %v635, %v1755
      %1757 = vmatmul.f32.gmra.mxu0 %v957
      %v1758 = vpop.f32.mrf.mxu0
      %v1759 = vadd.f32 %v640, %v1758
      %1760 = vmatmul.f32.gmra.mxu0 %v960
      %v1761 = vpop.f32.mrf.mxu0
      %v1762 = vadd.f32 %v645, %v1761
      %1763 = vmatmul.f32.gmra.mxu0 %v963
      %v1764 = vpop.f32.mrf.mxu0
      %v1765 = vadd.f32 %v650, %v1764
      %1766 = vmatmul.f32.gmra.mxu0 %v966
      %v1767 = vpop.f32.mrf.mxu0
      %v1768 = vadd.f32 %v655, %v1767
      %1769 = vmatmul.f32.gmra.mxu0 %v969
      %v1770 = vpop.f32.mrf.mxu0
      %v1771 = vadd.f32 %v660, %v1770
      %1772 = vmatmul.f32.gmra.mxu0 %v972
      %v1773 = vpop.f32.mrf.mxu0
      %v1774 = vadd.f32 %v665, %v1773
      %1775 = vmatmul.f32.gmra.mxu0 %v975
      %v1776 = vpop.f32.mrf.mxu0
      %v1777 = vadd.f32 %v670, %v1776
      %1778 = vmatmul.f32.gmra.mxu0 %v978
      %v1779 = vpop.f32.mrf.mxu0
      %v1780 = vadd.f32 %v675, %v1779
      %1781 = vmatmul.f32.gmra.mxu0 %v981
      %v1782 = vpop.f32.mrf.mxu0
      %v1783 = vadd.f32 %v680, %v1782
      %1784 = vmatmul.f32.gmra.mxu0 %v984
      %v1785 = vpop.f32.mrf.mxu0
      %v1786 = vadd.f32 %v685, %v1785
      %1787 = vmatmul.f32.gmra.mxu0 %v987
      %v1788 = vpop.f32.mrf.mxu0
      %v1789 = vadd.f32 %v690, %v1788
      %1790 = vmatmul.f32.gmra.mxu0 %v990
      %v1791 = vpop.f32.mrf.mxu0
      %v1792 = vadd.f32 %v695, %v1791
      %1793 = vmatmul.f32.gmra.mxu0 %v993
      %v1794 = vpop.f32.mrf.mxu0
      %v1795 = vadd.f32 %v700, %v1794
      %1796 = vmatmul.f32.gmra.mxu0 %v996
      %v1797 = vpop.f32.mrf.mxu0
      %v1798 = vadd.f32 %v705, %v1797
      %1799 = vmatmul.f32.gmra.mxu0 %v999
      %v1800 = vpop.f32.mrf.mxu0
      %v1801 = vadd.f32 %v710, %v1800
      %1802 = vmatmul.f32.gmra.mxu0 %v1002
      %v1803 = vpop.f32.mrf.mxu0
      %v1804 = vadd.f32 %v715, %v1803
      %1805 = vmatmul.f32.gmra.mxu0 %v1005
      %v1806 = vpop.f32.mrf.mxu0
      %v1807 = vadd.f32 %v720, %v1806
      %1808 = vmatmul.f32.gmra.mxu0 %v1008
      %v1809 = vpop.f32.mrf.mxu0
      %v1810 = vadd.f32 %v725, %v1809
      %1811 = vmatmul.f32.gmra.mxu0 %v1011
      %v1812 = vpop.f32.mrf.mxu0
      %v1813 = vadd.f32 %v730, %v1812
      %1814 = vmatmul.f32.gmra.mxu0 %v1014
      %v1815 = vpop.f32.mrf.mxu0
      %v1816 = vadd.f32 %v735, %v1815
      %1817 = vmatmul.f32.gmra.mxu0 %v1017
      %v1818 = vpop.f32.mrf.mxu0
      %v1819 = vadd.f32 %v740, %v1818
      %1820 = vmatmul.f32.gmra.mxu0 %v1020
      %v1821 = vpop.f32.mrf.mxu0
      %v1822 = vadd.f32 %v745, %v1821
      %1823 = vmatmul.f32.gmra.mxu0 %v1023
      %v1824 = vpop.f32.mrf.mxu0
      %v1825 = vadd.f32 %v750, %v1824
      %1826 = vmatmul.f32.gmra.mxu0 %v1026
      %v1827 = vpop.f32.mrf.mxu0
      %v1828 = vadd.f32 %v755, %v1827
      %1829 = vmatmul.f32.gmra.mxu0 %v1029
      %v1830 = vpop.f32.mrf.mxu0
      %v1831 = vadd.f32 %v760, %v1830
      %1832 = vmatmul.f32.gmra.mxu0 %v1032
      %v1833 = vpop.f32.mrf.mxu0
      %v1834 = vadd.f32 %v765, %v1833
      %1835 = vmatmul.f32.gmra.mxu0 %v1035
      %v1836 = vpop.f32.mrf.mxu0
      %v1837 = vadd.f32 %v770, %v1836
      %1838 = vmatmul.f32.gmra.mxu0 %v1038
      %v1839 = vpop.f32.mrf.mxu0
      %v1840 = vadd.f32 %v775, %v1839
      %1841 = vmatmul.f32.gmra.mxu0 %v1041
      %v1842 = vpop.f32.mrf.mxu0
      %v1843 = vadd.f32 %v780, %v1842
      %1844 = vmatmul.f32.gmra.mxu0 %v1044
      %v1845 = vpop.f32.mrf.mxu0
      %v1846 = vadd.f32 %v785, %v1845
      %1847 = vmatmul.f32.gmra.mxu0 %v1047
      %v1848 = vpop.f32.mrf.mxu0
      %v1849 = vadd.f32 %v790, %v1848
      %1850 = vmatmul.f32.gmra.mxu0 %v1050
      %v1851 = vpop.f32.mrf.mxu0
      %v1852 = vadd.f32 %v795, %v1851
      %1853 = vmatmul.f32.gmra.mxu0 %v1053
      %v1854 = vpop.f32.mrf.mxu0
      %v1855 = vadd.f32 %v800, %v1854
      %1856 = vmatmul.f32.gmra.mxu0 %v1056
      %v1857 = vpop.f32.mrf.mxu0
      %v1858 = vadd.f32 %v805, %v1857
      %1859 = vmatmul.f32.gmra.mxu0 %v1059
      %v1860 = vpop.f32.mrf.mxu0
      %v1861 = vadd.f32 %v810, %v1860
      %1862 = vmatmul.f32.gmra.mxu0 %v1062
      %v1863 = vpop.f32.mrf.mxu0
      %v1864 = vadd.f32 %v815, %v1863
      %1865 = vmatmul.f32.gmra.mxu0 %v1065
      %v1866 = vpop.f32.mrf.mxu0
      %v1867 = vadd.f32 %v820, %v1866
      %1868 = vmatmul.f32.gmra.mxu0 %v1068
      %v1869 = vpop.f32.mrf.mxu0
      %v1870 = vadd.f32 %v825, %v1869
      %1871 = vmatmul.f32.gmra.mxu0 %v1071
      %v1872 = vpop.f32.mrf.mxu0
      %v1873 = vadd.f32 %v830, %v1872
      %1874 = vmatmul.f32.gmra.mxu0 %v1074
      %v1875 = vpop.f32.mrf.mxu0
      %v1876 = vadd.f32 %v835, %v1875
      %1877 = vmatmul.f32.gmra.mxu0 %v1077
      %v1878 = vpop.f32.mrf.mxu0
      %v1879 = vadd.f32 %v840, %v1878
      %1880 = vmatmul.f32.gmra.mxu0 %v1080
      %v1881 = vpop.f32.mrf.mxu0
      %v1882 = vadd.f32 %v845, %v1881
      %1883 = vmatmul.f32.gmra.mxu0 %v1083
      %v1884 = vpop.f32.mrf.mxu0
      %v1885 = vadd.f32 %v850, %v1884
      %1886 = vmatmul.f32.gmra.mxu0 %v1086
      %v1887 = vpop.f32.mrf.mxu0
      %v1888 = vadd.f32 %v855, %v1887
      %1889 = vmatmul.f32.gmra.mxu0 %v1089
      %v1890 = vpop.f32.mrf.mxu0
      %v1891 = vadd.f32 %v860, %v1890
      %1892 = vmatmul.f32.gmra.mxu0 %v1092
      %v1893 = vpop.f32.mrf.mxu0
      %v1894 = vadd.f32 %v865, %v1893
      %1895 = vmatmul.f32.gmra.mxu0 %v1095
      %v1896 = vpop.f32.mrf.mxu0
      %v1897 = vadd.f32 %v870, %v1896
      %1898 = vmatmul.f32.gmra.mxu0 %v1098
      %v1899 = vpop.f32.mrf.mxu0
      %v1900 = vadd.f32 %v875, %v1899
      %1901 = vmatmul.f32.gmra.mxu0 %v1101
      %v1902 = vpop.f32.mrf.mxu0
      %v1903 = vadd.f32 %v880, %v1902
      %1904 = vmatmul.f32.gmra.mxu0 %v1104
      %v1905 = vpop.f32.mrf.mxu0
      %v1906 = vadd.f32 %v885, %v1905
      %1907 = vmatmul.f32.gmra.mxu0 %v1107
      %v1908 = vpop.f32.mrf.mxu0
      %v1909 = vadd.f32 %v890, %v1908
      %1910 = vmatmul.f32.gmra.mxu0 %v1110
      %v1911 = vpop.f32.mrf.mxu0
      %v1912 = vadd.f32 %v895, %v1911
      %1913 = vmatmul.f32.gmra.mxu0 %v1113
      %v1914 = vpop.f32.mrf.mxu0
      %v1915 = vadd.f32 %v900, %v1914
      %1916 = vmatmul.f32.gmra.mxu0 %v1116
      %v1917 = vpop.f32.mrf.mxu0
      %v1918 = vadd.f32 %v905, %v1917
      %1919 = vmatmul.f32.gmra.mxu0 %v1119
      %v1920 = vpop.f32.mrf.mxu0
      %v1921 = vadd.f32 %v910, %v1920
      %1922 = vmatmul.f32.gmra.mxu0 %v1122
      %v1923 = vpop.f32.mrf.mxu0
      %v1924 = vadd.f32 %v915, %v1923
      %1925 = vmatmul.f32.gmra.mxu0 %v1125
      %v1926 = vpop.f32.mrf.mxu0
      %v1927 = vadd.f32 %v920, %v1926
      %1928 = vmatmul.f32.gmra.mxu0 %v1128
      %v1929 = vpop.f32.mrf.mxu0
      %v1930 = vadd.f32 %v925, %v1929
      %1931 = vmatmul.f32.gmra.mxu0 %v1131
      %v1932 = vpop.f32.mrf.mxu0
      %v1933 = vadd.f32 %v930, %v1932
      %1934 = vmatmul.f32.gmra.mxu0 %v1134
      %v1935 = vpop.f32.mrf.mxu0
      %v1936 = vadd.f32 %v935, %v1935
      %1937 = vmatmul.f32.gmra.mxu0 %v1137
      %v1938 = vpop.f32.mrf.mxu0
      %v1939 = vadd.f32 %v940, %v1938
      %1940 = vmatmul.f32.gmra.mxu0 %v1140
      %v1941 = vpop.f32.mrf.mxu0
      %v1942 = vadd.f32 %v945, %v1941
      %1943 = vmatmul.f32.gmra.mxu0 %v1143
      %v1944 = vpop.f32.mrf.mxu0
      %v1945 = vadd.f32 %v950, %v1944
      %1946 = vdwg.mxu0
      %1947 = vmatpush.xpose.msra.mxu0 %v1287
      %1948 = vmatpush.xpose.msra.mxu0 %v1284
      %1949 = vmatpush.xpose.msra.mxu0 %v1281
      %1950 = vmatpush.xpose.msra.mxu0 %v1278
      %1951 = vmatpush.xpose.msra.mxu0 %v1275
      %1952 = vmatpush.xpose.msra.mxu0 %v1272
      %1953 = vmatpush.xpose.msra.mxu0 %v1269
      %1954 = vmatpush.xpose.msra.mxu0 %v1266
      %1955 = vmatpush.xpose.msra.mxu0 %v1263
      %1956 = vmatpush.xpose.msra.mxu0 %v1260
      %1957 = vmatpush.xpose.msra.mxu0 %v1257
      %1958 = vmatpush.xpose.msra.mxu0 %v1254
      %1959 = vmatpush.xpose.msra.mxu0 %v1251
      %1960 = vmatpush.xpose.msra.mxu0 %v1248
      %1961 = vmatpush.xpose.msra.mxu0 %v1245
      %1962 = vmatpush.xpose.msra.mxu0 %v1242
      %1963 = vmatmul.f32.gmra.mxu0 %v954
      %v1964 = vpop.f32.mrf.mxu0
      %v1965 = vadd.f32 %v635, %v1964
      %1966 = vmatmul.f32.gmra.mxu0 %v957
      %v1967 = vpop.f32.mrf.mxu0
      %v1968 = vadd.f32 %v640, %v1967
      %1969 = vmatmul.f32.gmra.mxu0 %v960
      %v1970 = vpop.f32.mrf.mxu0
      %v1971 = vadd.f32 %v645, %v1970
      %1972 = vmatmul.f32.gmra.mxu0 %v963
      %v1973 = vpop.f32.mrf.mxu0
      %v1974 = vadd.f32 %v650, %v1973
      %1975 = vmatmul.f32.gmra.mxu0 %v966
      %v1976 = vpop.f32.mrf.mxu0
      %v1977 = vadd.f32 %v655, %v1976
      %1978 = vmatmul.f32.gmra.mxu0 %v969
      %v1979 = vpop.f32.mrf.mxu0
      %v1980 = vadd.f32 %v660, %v1979
      %1981 = vmatmul.f32.gmra.mxu0 %v972
      %v1982 = vpop.f32.mrf.mxu0
      %v1983 = vadd.f32 %v665, %v1982
      %1984 = vmatmul.f32.gmra.mxu0 %v975
      %v1985 = vpop.f32.mrf.mxu0
      %v1986 = vadd.f32 %v670, %v1985
      %1987 = vmatmul.f32.gmra.mxu0 %v978
      %v1988 = vpop.f32.mrf.mxu0
      %v1989 = vadd.f32 %v675, %v1988
      %1990 = vmatmul.f32.gmra.mxu0 %v981
      %v1991 = vpop.f32.mrf.mxu0
      %v1992 = vadd.f32 %v680, %v1991
      %1993 = vmatmul.f32.gmra.mxu0 %v984
      %v1994 = vpop.f32.mrf.mxu0
      %v1995 = vadd.f32 %v685, %v1994
      %1996 = vmatmul.f32.gmra.mxu0 %v987
      %v1997 = vpop.f32.mrf.mxu0
      %v1998 = vadd.f32 %v690, %v1997
      %1999 = vmatmul.f32.gmra.mxu0 %v990
      %v2000 = vpop.f32.mrf.mxu0
      %v2001 = vadd.f32 %v695, %v2000
      %2002 = vmatmul.f32.gmra.mxu0 %v993
      %v2003 = vpop.f32.mrf.mxu0
      %v2004 = vadd.f32 %v700, %v2003
      %2005 = vmatmul.f32.gmra.mxu0 %v996
      %v2006 = vpop.f32.mrf.mxu0
      %v2007 = vadd.f32 %v705, %v2006
      %2008 = vmatmul.f32.gmra.mxu0 %v999
      %v2009 = vpop.f32.mrf.mxu0
      %v2010 = vadd.f32 %v710, %v2009
      %2011 = vmatmul.f32.gmra.mxu0 %v1002
      %v2012 = vpop.f32.mrf.mxu0
      %v2013 = vadd.f32 %v715, %v2012
      %2014 = vmatmul.f32.gmra.mxu0 %v1005
      %v2015 = vpop.f32.mrf.mxu0
      %v2016 = vadd.f32 %v720, %v2015
      %2017 = vmatmul.f32.gmra.mxu0 %v1008
      %v2018 = vpop.f32.mrf.mxu0
      %v2019 = vadd.f32 %v725, %v2018
      %2020 = vmatmul.f32.gmra.mxu0 %v1011
      %v2021 = vpop.f32.mrf.mxu0
      %v2022 = vadd.f32 %v730, %v2021
      %2023 = vmatmul.f32.gmra.mxu0 %v1014
      %v2024 = vpop.f32.mrf.mxu0
      %v2025 = vadd.f32 %v735, %v2024
      %2026 = vmatmul.f32.gmra.mxu0 %v1017
      %v2027 = vpop.f32.mrf.mxu0
      %v2028 = vadd.f32 %v740, %v2027
      %2029 = vmatmul.f32.gmra.mxu0 %v1020
      %v2030 = vpop.f32.mrf.mxu0
      %v2031 = vadd.f32 %v745, %v2030
      %2032 = vmatmul.f32.gmra.mxu0 %v1023
      %v2033 = vpop.f32.mrf.mxu0
      %v2034 = vadd.f32 %v750, %v2033
      %2035 = vmatmul.f32.gmra.mxu0 %v1026
      %v2036 = vpop.f32.mrf.mxu0
      %v2037 = vadd.f32 %v755, %v2036
      %2038 = vmatmul.f32.gmra.mxu0 %v1029
      %v2039 = vpop.f32.mrf.mxu0
      %v2040 = vadd.f32 %v760, %v2039
      %2041 = vmatmul.f32.gmra.mxu0 %v1032
      %v2042 = vpop.f32.mrf.mxu0
      %v2043 = vadd.f32 %v765, %v2042
      %2044 = vmatmul.f32.gmra.mxu0 %v1035
      %v2045 = vpop.f32.mrf.mxu0
      %v2046 = vadd.f32 %v770, %v2045
      %2047 = vmatmul.f32.gmra.mxu0 %v1038
      %v2048 = vpop.f32.mrf.mxu0
      %v2049 = vadd.f32 %v775, %v2048
      %2050 = vmatmul.f32.gmra.mxu0 %v1041
      %v2051 = vpop.f32.mrf.mxu0
      %v2052 = vadd.f32 %v780, %v2051
      %2053 = vmatmul.f32.gmra.mxu0 %v1044
      %v2054 = vpop.f32.mrf.mxu0
      %v2055 = vadd.f32 %v785, %v2054
      %2056 = vmatmul.f32.gmra.mxu0 %v1047
      %v2057 = vpop.f32.mrf.mxu0
      %v2058 = vadd.f32 %v790, %v2057
      %2059 = vmatmul.f32.gmra.mxu0 %v1050
      %v2060 = vpop.f32.mrf.mxu0
      %v2061 = vadd.f32 %v795, %v2060
      %2062 = vmatmul.f32.gmra.mxu0 %v1053
      %v2063 = vpop.f32.mrf.mxu0
      %v2064 = vadd.f32 %v800, %v2063
      %2065 = vmatmul.f32.gmra.mxu0 %v1056
      %v2066 = vpop.f32.mrf.mxu0
      %v2067 = vadd.f32 %v805, %v2066
      %2068 = vmatmul.f32.gmra.mxu0 %v1059
      %v2069 = vpop.f32.mrf.mxu0
      %v2070 = vadd.f32 %v810, %v2069
      %2071 = vmatmul.f32.gmra.mxu0 %v1062
      %v2072 = vpop.f32.mrf.mxu0
      %v2073 = vadd.f32 %v815, %v2072
      %2074 = vmatmul.f32.gmra.mxu0 %v1065
      %v2075 = vpop.f32.mrf.mxu0
      %v2076 = vadd.f32 %v820, %v2075
      %2077 = vmatmul.f32.gmra.mxu0 %v1068
      %v2078 = vpop.f32.mrf.mxu0
      %v2079 = vadd.f32 %v825, %v2078
      %2080 = vmatmul.f32.gmra.mxu0 %v1071
      %v2081 = vpop.f32.mrf.mxu0
      %v2082 = vadd.f32 %v830, %v2081
      %2083 = vmatmul.f32.gmra.mxu0 %v1074
      %v2084 = vpop.f32.mrf.mxu0
      %v2085 = vadd.f32 %v835, %v2084
      %2086 = vmatmul.f32.gmra.mxu0 %v1077
      %v2087 = vpop.f32.mrf.mxu0
      %v2088 = vadd.f32 %v840, %v2087
      %2089 = vmatmul.f32.gmra.mxu0 %v1080
      %v2090 = vpop.f32.mrf.mxu0
      %v2091 = vadd.f32 %v845, %v2090
      %2092 = vmatmul.f32.gmra.mxu0 %v1083
      %v2093 = vpop.f32.mrf.mxu0
      %v2094 = vadd.f32 %v850, %v2093
      %2095 = vmatmul.f32.gmra.mxu0 %v1086
      %v2096 = vpop.f32.mrf.mxu0
      %v2097 = vadd.f32 %v855, %v2096
      %2098 = vmatmul.f32.gmra.mxu0 %v1089
      %v2099 = vpop.f32.mrf.mxu0
      %v2100 = vadd.f32 %v860, %v2099
      %2101 = vmatmul.f32.gmra.mxu0 %v1092
      %v2102 = vpop.f32.mrf.mxu0
      %v2103 = vadd.f32 %v865, %v2102
      %2104 = vmatmul.f32.gmra.mxu0 %v1095
      %v2105 = vpop.f32.mrf.mxu0
      %v2106 = vadd.f32 %v870, %v2105
      %2107 = vmatmul.f32.gmra.mxu0 %v1098
      %v2108 = vpop.f32.mrf.mxu0
      %v2109 = vadd.f32 %v875, %v2108
      %2110 = vmatmul.f32.gmra.mxu0 %v1101
      %v2111 = vpop.f32.mrf.mxu0
      %v2112 = vadd.f32 %v880, %v2111
      %2113 = vmatmul.f32.gmra.mxu0 %v1104
      %v2114 = vpop.f32.mrf.mxu0
      %v2115 = vadd.f32 %v885, %v2114
      %2116 = vmatmul.f32.gmra.mxu0 %v1107
      %v2117 = vpop.f32.mrf.mxu0
      %v2118 = vadd.f32 %v890, %v2117
      %2119 = vmatmul.f32.gmra.mxu0 %v1110
      %v2120 = vpop.f32.mrf.mxu0
      %v2121 = vadd.f32 %v895, %v2120
      %2122 = vmatmul.f32.gmra.mxu0 %v1113
      %v2123 = vpop.f32.mrf.mxu0
      %v2124 = vadd.f32 %v900, %v2123
      %2125 = vmatmul.f32.gmra.mxu0 %v1116
      %v2126 = vpop.f32.mrf.mxu0
      %v2127 = vadd.f32 %v905, %v2126
      %2128 = vmatmul.f32.gmra.mxu0 %v1119
      %v2129 = vpop.f32.mrf.mxu0
      %v2130 = vadd.f32 %v910, %v2129
      %2131 = vmatmul.f32.gmra.mxu0 %v1122
      %v2132 = vpop.f32.mrf.mxu0
      %v2133 = vadd.f32 %v915, %v2132
      %2134 = vmatmul.f32.gmra.mxu0 %v1125
      %v2135 = vpop.f32.mrf.mxu0
      %v2136 = vadd.f32 %v920, %v2135
      %2137 = vmatmul.f32.gmra.mxu0 %v1128
      %v2138 = vpop.f32.mrf.mxu0
      %v2139 = vadd.f32 %v925, %v2138
      %2140 = vmatmul.f32.gmra.mxu0 %v1131
      %v2141 = vpop.f32.mrf.mxu0
      %v2142 = vadd.f32 %v930, %v2141
      %2143 = vmatmul.f32.gmra.mxu0 %v1134
      %v2144 = vpop.f32.mrf.mxu0
      %v2145 = vadd.f32 %v935, %v2144
      %2146 = vmatmul.f32.gmra.mxu0 %v1137
      %v2147 = vpop.f32.mrf.mxu0
      %v2148 = vadd.f32 %v940, %v2147
      %2149 = vmatmul.f32.gmra.mxu0 %v1140
      %v2150 = vpop.f32.mrf.mxu0
      %v2151 = vadd.f32 %v945, %v2150
      %2152 = vmatmul.f32.gmra.mxu0 %v1143
      %v2153 = vpop.f32.mrf.mxu0
      %v2154 = vadd.f32 %v950, %v2153
      %2155 = vdwg.mxu0
      %2156 = vmatpush.xpose.msra.mxu0 %v1335
      %2157 = vmatpush.xpose.msra.mxu0 %v1332
      %2158 = vmatpush.xpose.msra.mxu0 %v1329
      %2159 = vmatpush.xpose.msra.mxu0 %v1326
      %2160 = vmatpush.xpose.msra.mxu0 %v1323
      %2161 = vmatpush.xpose.msra.mxu0 %v1320
      %2162 = vmatpush.xpose.msra.mxu0 %v1317
      %2163 = vmatpush.xpose.msra.mxu0 %v1314
      %2164 = vmatpush.xpose.msra.mxu0 %v1311
      %2165 = vmatpush.xpose.msra.mxu0 %v1308
      %2166 = vmatpush.xpose.msra.mxu0 %v1305
      %2167 = vmatpush.xpose.msra.mxu0 %v1302
      %2168 = vmatpush.xpose.msra.mxu0 %v1299
      %2169 = vmatpush.xpose.msra.mxu0 %v1296
      %2170 = vmatpush.xpose.msra.mxu0 %v1293
      %2171 = vmatpush.xpose.msra.mxu0 %v1290
      %2172 = vmatmul.f32.gmra.mxu0 %v954
      %v2173 = vpop.f32.mrf.mxu0
      %v2174 = vadd.f32 %v635, %v2173
      %2175 = vmatmul.f32.gmra.mxu0 %v957
      %v2176 = vpop.f32.mrf.mxu0
      %v2177 = vadd.f32 %v640, %v2176
      %2178 = vmatmul.f32.gmra.mxu0 %v960
      %v2179 = vpop.f32.mrf.mxu0
      %v2180 = vadd.f32 %v645, %v2179
      %2181 = vmatmul.f32.gmra.mxu0 %v963
      %v2182 = vpop.f32.mrf.mxu0
      %v2183 = vadd.f32 %v650, %v2182
      %2184 = vmatmul.f32.gmra.mxu0 %v966
      %v2185 = vpop.f32.mrf.mxu0
      %v2186 = vadd.f32 %v655, %v2185
      %2187 = vmatmul.f32.gmra.mxu0 %v969
      %v2188 = vpop.f32.mrf.mxu0
      %v2189 = vadd.f32 %v660, %v2188
      %2190 = vmatmul.f32.gmra.mxu0 %v972
      %v2191 = vpop.f32.mrf.mxu0
      %v2192 = vadd.f32 %v665, %v2191
      %2193 = vmatmul.f32.gmra.mxu0 %v975
      %v2194 = vpop.f32.mrf.mxu0
      %v2195 = vadd.f32 %v670, %v2194
      %2196 = vmatmul.f32.gmra.mxu0 %v978
      %v2197 = vpop.f32.mrf.mxu0
      %v2198 = vadd.f32 %v675, %v2197
      %2199 = vmatmul.f32.gmra.mxu0 %v981
      %v2200 = vpop.f32.mrf.mxu0
      %v2201 = vadd.f32 %v680, %v2200
      %2202 = vmatmul.f32.gmra.mxu0 %v984
      %v2203 = vpop.f32.mrf.mxu0
      %v2204 = vadd.f32 %v685, %v2203
      %2205 = vmatmul.f32.gmra.mxu0 %v987
      %v2206 = vpop.f32.mrf.mxu0
      %v2207 = vadd.f32 %v690, %v2206
      %2208 = vmatmul.f32.gmra.mxu0 %v990
      %v2209 = vpop.f32.mrf.mxu0
      %v2210 = vadd.f32 %v695, %v2209
      %2211 = vmatmul.f32.gmra.mxu0 %v993
      %v2212 = vpop.f32.mrf.mxu0
      %v2213 = vadd.f32 %v700, %v2212
      %2214 = vmatmul.f32.gmra.mxu0 %v996
      %v2215 = vpop.f32.mrf.mxu0
      %v2216 = vadd.f32 %v705, %v2215
      %2217 = vmatmul.f32.gmra.mxu0 %v999
      %v2218 = vpop.f32.mrf.mxu0
      %v2219 = vadd.f32 %v710, %v2218
      %2220 = vmatmul.f32.gmra.mxu0 %v1002
      %v2221 = vpop.f32.mrf.mxu0
      %v2222 = vadd.f32 %v715, %v2221
      %2223 = vmatmul.f32.gmra.mxu0 %v1005
      %v2224 = vpop.f32.mrf.mxu0
      %v2225 = vadd.f32 %v720, %v2224
      %2226 = vmatmul.f32.gmra.mxu0 %v1008
      %v2227 = vpop.f32.mrf.mxu0
      %v2228 = vadd.f32 %v725, %v2227
      %2229 = vmatmul.f32.gmra.mxu0 %v1011
      %v2230 = vpop.f32.mrf.mxu0
      %v2231 = vadd.f32 %v730, %v2230
      %2232 = vmatmul.f32.gmra.mxu0 %v1014
      %v2233 = vpop.f32.mrf.mxu0
      %v2234 = vadd.f32 %v735, %v2233
      %2235 = vmatmul.f32.gmra.mxu0 %v1017
      %v2236 = vpop.f32.mrf.mxu0
      %v2237 = vadd.f32 %v740, %v2236
      %2238 = vmatmul.f32.gmra.mxu0 %v1020
      %v2239 = vpop.f32.mrf.mxu0
      %v2240 = vadd.f32 %v745, %v2239
      %2241 = vmatmul.f32.gmra.mxu0 %v1023
      %v2242 = vpop.f32.mrf.mxu0
      %v2243 = vadd.f32 %v750, %v2242
      %2244 = vmatmul.f32.gmra.mxu0 %v1026
      %v2245 = vpop.f32.mrf.mxu0
      %v2246 = vadd.f32 %v755, %v2245
      %2247 = vmatmul.f32.gmra.mxu0 %v1029
      %v2248 = vpop.f32.mrf.mxu0
      %v2249 = vadd.f32 %v760, %v2248
      %2250 = vmatmul.f32.gmra.mxu0 %v1032
      %v2251 = vpop.f32.mrf.mxu0
      %v2252 = vadd.f32 %v765, %v2251
      %2253 = vmatmul.f32.gmra.mxu0 %v1035
      %v2254 = vpop.f32.mrf.mxu0
      %v2255 = vadd.f32 %v770, %v2254
      %2256 = vmatmul.f32.gmra.mxu0 %v1038
      %v2257 = vpop.f32.mrf.mxu0
      %v2258 = vadd.f32 %v775, %v2257
      %2259 = vmatmul.f32.gmra.mxu0 %v1041
      %v2260 = vpop.f32.mrf.mxu0
      %v2261 = vadd.f32 %v780, %v2260
      %2262 = vmatmul.f32.gmra.mxu0 %v1044
      %v2263 = vpop.f32.mrf.mxu0
      %v2264 = vadd.f32 %v785, %v2263
      %2265 = vmatmul.f32.gmra.mxu0 %v1047
      %v2266 = vpop.f32.mrf.mxu0
      %v2267 = vadd.f32 %v790, %v2266
      %2268 = vmatmul.f32.gmra.mxu0 %v1050
      %v2269 = vpop.f32.mrf.mxu0
      %v2270 = vadd.f32 %v795, %v2269
      %2271 = vmatmul.f32.gmra.mxu0 %v1053
      %v2272 = vpop.f32.mrf.mxu0
      %v2273 = vadd.f32 %v800, %v2272
      %2274 = vmatmul.f32.gmra.mxu0 %v1056
      %v2275 = vpop.f32.mrf.mxu0
      %v2276 = vadd.f32 %v805, %v2275
      %2277 = vmatmul.f32.gmra.mxu0 %v1059
      %v2278 = vpop.f32.mrf.mxu0
      %v2279 = vadd.f32 %v810, %v2278
      %2280 = vmatmul.f32.gmra.mxu0 %v1062
      %v2281 = vpop.f32.mrf.mxu0
      %v2282 = vadd.f32 %v815, %v2281
      %2283 = vmatmul.f32.gmra.mxu0 %v1065
      %v2284 = vpop.f32.mrf.mxu0
      %v2285 = vadd.f32 %v820, %v2284
      %2286 = vmatmul.f32.gmra.mxu0 %v1068
      %v2287 = vpop.f32.mrf.mxu0
      %v2288 = vadd.f32 %v825, %v2287
      %2289 = vmatmul.f32.gmra.mxu0 %v1071
      %v2290 = vpop.f32.mrf.mxu0
      %v2291 = vadd.f32 %v830, %v2290
      %2292 = vmatmul.f32.gmra.mxu0 %v1074
      %v2293 = vpop.f32.mrf.mxu0
      %v2294 = vadd.f32 %v835, %v2293
      %2295 = vmatmul.f32.gmra.mxu0 %v1077
      %v2296 = vpop.f32.mrf.mxu0
      %v2297 = vadd.f32 %v840, %v2296
      %2298 = vmatmul.f32.gmra.mxu0 %v1080
      %v2299 = vpop.f32.mrf.mxu0
      %v2300 = vadd.f32 %v845, %v2299
      %2301 = vmatmul.f32.gmra.mxu0 %v1083
      %v2302 = vpop.f32.mrf.mxu0
      %v2303 = vadd.f32 %v850, %v2302
      %2304 = vmatmul.f32.gmra.mxu0 %v1086
      %v2305 = vpop.f32.mrf.mxu0
      %v2306 = vadd.f32 %v855, %v2305
      %2307 = vmatmul.f32.gmra.mxu0 %v1089
      %v2308 = vpop.f32.mrf.mxu0
      %v2309 = vadd.f32 %v860, %v2308
      %2310 = vmatmul.f32.gmra.mxu0 %v1092
      %v2311 = vpop.f32.mrf.mxu0
      %v2312 = vadd.f32 %v865, %v2311
      %2313 = vmatmul.f32.gmra.mxu0 %v1095
      %v2314 = vpop.f32.mrf.mxu0
      %v2315 = vadd.f32 %v870, %v2314
      %2316 = vmatmul.f32.gmra.mxu0 %v1098
      %v2317 = vpop.f32.mrf.mxu0
      %v2318 = vadd.f32 %v875, %v2317
      %2319 = vmatmul.f32.gmra.mxu0 %v1101
      %v2320 = vpop.f32.mrf.mxu0
      %v2321 = vadd.f32 %v880, %v2320
      %2322 = vmatmul.f32.gmra.mxu0 %v1104
      %v2323 = vpop.f32.mrf.mxu0
      %v2324 = vadd.f32 %v885, %v2323
      %2325 = vmatmul.f32.gmra.mxu0 %v1107
      %v2326 = vpop.f32.mrf.mxu0
      %v2327 = vadd.f32 %v890, %v2326
      %2328 = vmatmul.f32.gmra.mxu0 %v1110
      %v2329 = vpop.f32.mrf.mxu0
      %v2330 = vadd.f32 %v895, %v2329
      %2331 = vmatmul.f32.gmra.mxu0 %v1113
      %v2332 = vpop.f32.mrf.mxu0
      %v2333 = vadd.f32 %v900, %v2332
      %2334 = vmatmul.f32.gmra.mxu0 %v1116
      %v2335 = vpop.f32.mrf.mxu0
      %v2336 = vadd.f32 %v905, %v2335
      %2337 = vmatmul.f32.gmra.mxu0 %v1119
      %v2338 = vpop.f32.mrf.mxu0
      %v2339 = vadd.f32 %v910, %v2338
      %2340 = vmatmul.f32.gmra.mxu0 %v1122
      %v2341 = vpop.f32.mrf.mxu0
      %v2342 = vadd.f32 %v915, %v2341
      %2343 = vmatmul.f32.gmra.mxu0 %v1125
      %v2344 = vpop.f32.mrf.mxu0
      %v2345 = vadd.f32 %v920, %v2344
      %2346 = vmatmul.f32.gmra.mxu0 %v1128
      %v2347 = vpop.f32.mrf.mxu0
      %v2348 = vadd.f32 %v925, %v2347
      %2349 = vmatmul.f32.gmra.mxu0 %v1131
      %v2350 = vpop.f32.mrf.mxu0
      %v2351 = vadd.f32 %v930, %v2350
      %2352 = vmatmul.f32.gmra.mxu0 %v1134
      %v2353 = vpop.f32.mrf.mxu0
      %v2354 = vadd.f32 %v935, %v2353
      %2355 = vmatmul.f32.gmra.mxu0 %v1137
      %v2356 = vpop.f32.mrf.mxu0
      %v2357 = vadd.f32 %v940, %v2356
      %2358 = vmatmul.f32.gmra.mxu0 %v1140
      %v2359 = vpop.f32.mrf.mxu0
      %v2360 = vadd.f32 %v945, %v2359
      %2361 = vmatmul.f32.gmra.mxu0 %v1143
      %v2362 = vpop.f32.mrf.mxu0
      %v2363 = vadd.f32 %v950, %v2362
      %2364 = vdwg.mxu0
      %2365 = vmatpush.xpose.msra.mxu0 %v1383
      %2366 = vmatpush.xpose.msra.mxu0 %v1380
      %2367 = vmatpush.xpose.msra.mxu0 %v1377
      %2368 = vmatpush.xpose.msra.mxu0 %v1374
      %2369 = vmatpush.xpose.msra.mxu0 %v1371
      %2370 = vmatpush.xpose.msra.mxu0 %v1368
      %2371 = vmatpush.xpose.msra.mxu0 %v1365
      %2372 = vmatpush.xpose.msra.mxu0 %v1362
      %2373 = vmatpush.xpose.msra.mxu0 %v1359
      %2374 = vmatpush.xpose.msra.mxu0 %v1356
      %2375 = vmatpush.xpose.msra.mxu0 %v1353
      %2376 = vmatpush.xpose.msra.mxu0 %v1350
      %2377 = vmatpush.xpose.msra.mxu0 %v1347
      %2378 = vmatpush.xpose.msra.mxu0 %v1344
      %2379 = vmatpush.xpose.msra.mxu0 %v1341
      %2380 = vmatpush.xpose.msra.mxu0 %v1338
      %2381 = vmatmul.f32.gmra.mxu0 %v954
      %v2382 = vpop.f32.mrf.mxu0
      %v2383 = vadd.f32 %v635, %v2382
      %2384 = vmatmul.f32.gmra.mxu0 %v957
      %v2385 = vpop.f32.mrf.mxu0
      %v2386 = vadd.f32 %v640, %v2385
      %2387 = vmatmul.f32.gmra.mxu0 %v960
      %v2388 = vpop.f32.mrf.mxu0
      %v2389 = vadd.f32 %v645, %v2388
      %2390 = vmatmul.f32.gmra.mxu0 %v963
      %v2391 = vpop.f32.mrf.mxu0
      %v2392 = vadd.f32 %v650, %v2391
      %2393 = vmatmul.f32.gmra.mxu0 %v966
      %v2394 = vpop.f32.mrf.mxu0
      %v2395 = vadd.f32 %v655, %v2394
      %2396 = vmatmul.f32.gmra.mxu0 %v969
      %v2397 = vpop.f32.mrf.mxu0
      %v2398 = vadd.f32 %v660, %v2397
      %2399 = vmatmul.f32.gmra.mxu0 %v972
      %v2400 = vpop.f32.mrf.mxu0
      %v2401 = vadd.f32 %v665, %v2400
      %2402 = vmatmul.f32.gmra.mxu0 %v975
      %v2403 = vpop.f32.mrf.mxu0
      %v2404 = vadd.f32 %v670, %v2403
      %2405 = vmatmul.f32.gmra.mxu0 %v978
      %v2406 = vpop.f32.mrf.mxu0
      %v2407 = vadd.f32 %v675, %v2406
      %2408 = vmatmul.f32.gmra.mxu0 %v981
      %v2409 = vpop.f32.mrf.mxu0
      %v2410 = vadd.f32 %v680, %v2409
      %2411 = vmatmul.f32.gmra.mxu0 %v984
      %v2412 = vpop.f32.mrf.mxu0
      %v2413 = vadd.f32 %v685, %v2412
      %2414 = vmatmul.f32.gmra.mxu0 %v987
      %v2415 = vpop.f32.mrf.mxu0
      %v2416 = vadd.f32 %v690, %v2415
      %2417 = vmatmul.f32.gmra.mxu0 %v990
      %v2418 = vpop.f32.mrf.mxu0
      %v2419 = vadd.f32 %v695, %v2418
      %2420 = vmatmul.f32.gmra.mxu0 %v993
      %v2421 = vpop.f32.mrf.mxu0
      %v2422 = vadd.f32 %v700, %v2421
      %2423 = vmatmul.f32.gmra.mxu0 %v996
      %v2424 = vpop.f32.mrf.mxu0
      %v2425 = vadd.f32 %v705, %v2424
      %2426 = vmatmul.f32.gmra.mxu0 %v999
      %v2427 = vpop.f32.mrf.mxu0
      %v2428 = vadd.f32 %v710, %v2427
      %2429 = vmatmul.f32.gmra.mxu0 %v1002
      %v2430 = vpop.f32.mrf.mxu0
      %v2431 = vadd.f32 %v715, %v2430
      %2432 = vmatmul.f32.gmra.mxu0 %v1005
      %v2433 = vpop.f32.mrf.mxu0
      %v2434 = vadd.f32 %v720, %v2433
      %2435 = vmatmul.f32.gmra.mxu0 %v1008
      %v2436 = vpop.f32.mrf.mxu0
      %v2437 = vadd.f32 %v725, %v2436
      %2438 = vmatmul.f32.gmra.mxu0 %v1011
      %v2439 = vpop.f32.mrf.mxu0
      %v2440 = vadd.f32 %v730, %v2439
      %2441 = vmatmul.f32.gmra.mxu0 %v1014
      %v2442 = vpop.f32.mrf.mxu0
      %v2443 = vadd.f32 %v735, %v2442
      %2444 = vmatmul.f32.gmra.mxu0 %v1017
      %v2445 = vpop.f32.mrf.mxu0
      %v2446 = vadd.f32 %v740, %v2445
      %2447 = vmatmul.f32.gmra.mxu0 %v1020
      %v2448 = vpop.f32.mrf.mxu0
      %v2449 = vadd.f32 %v745, %v2448
      %2450 = vmatmul.f32.gmra.mxu0 %v1023
      %v2451 = vpop.f32.mrf.mxu0
      %v2452 = vadd.f32 %v750, %v2451
      %2453 = vmatmul.f32.gmra.mxu0 %v1026
      %v2454 = vpop.f32.mrf.mxu0
      %v2455 = vadd.f32 %v755, %v2454
      %2456 = vmatmul.f32.gmra.mxu0 %v1029
      %v2457 = vpop.f32.mrf.mxu0
      %v2458 = vadd.f32 %v760, %v2457
      %2459 = vmatmul.f32.gmra.mxu0 %v1032
      %v2460 = vpop.f32.mrf.mxu0
      %v2461 = vadd.f32 %v765, %v2460
      %2462 = vmatmul.f32.gmra.mxu0 %v1035
      %v2463 = vpop.f32.mrf.mxu0
      %v2464 = vadd.f32 %v770, %v2463
      %2465 = vmatmul.f32.gmra.mxu0 %v1038
      %v2466 = vpop.f32.mrf.mxu0
      %v2467 = vadd.f32 %v775, %v2466
      %2468 = vmatmul.f32.gmra.mxu0 %v1041
      %v2469 = vpop.f32.mrf.mxu0
      %v2470 = vadd.f32 %v780, %v2469
      %2471 = vmatmul.f32.gmra.mxu0 %v1044
      %v2472 = vpop.f32.mrf.mxu0
      %v2473 = vadd.f32 %v785, %v2472
      %2474 = vmatmul.f32.gmra.mxu0 %v1047
      %v2475 = vpop.f32.mrf.mxu0
      %v2476 = vadd.f32 %v790, %v2475
      %2477 = vmatmul.f32.gmra.mxu0 %v1050
      %v2478 = vpop.f32.mrf.mxu0
      %v2479 = vadd.f32 %v795, %v2478
      %2480 = vmatmul.f32.gmra.mxu0 %v1053
      %v2481 = vpop.f32.mrf.mxu0
      %v2482 = vadd.f32 %v800, %v2481
      %2483 = vmatmul.f32.gmra.mxu0 %v1056
      %v2484 = vpop.f32.mrf.mxu0
      %v2485 = vadd.f32 %v805, %v2484
      %2486 = vmatmul.f32.gmra.mxu0 %v1059
      %v2487 = vpop.f32.mrf.mxu0
      %v2488 = vadd.f32 %v810, %v2487
      %2489 = vmatmul.f32.gmra.mxu0 %v1062
      %v2490 = vpop.f32.mrf.mxu0
      %v2491 = vadd.f32 %v815, %v2490
      %2492 = vmatmul.f32.gmra.mxu0 %v1065
      %v2493 = vpop.f32.mrf.mxu0
      %v2494 = vadd.f32 %v820, %v2493
      %2495 = vmatmul.f32.gmra.mxu0 %v1068
      %v2496 = vpop.f32.mrf.mxu0
      %v2497 = vadd.f32 %v825, %v2496
      %2498 = vmatmul.f32.gmra.mxu0 %v1071
      %v2499 = vpop.f32.mrf.mxu0
      %v2500 = vadd.f32 %v830, %v2499
      %2501 = vmatmul.f32.gmra.mxu0 %v1074
      %v2502 = vpop.f32.mrf.mxu0
      %v2503 = vadd.f32 %v835, %v2502
      %2504 = vmatmul.f32.gmra.mxu0 %v1077
      %v2505 = vpop.f32.mrf.mxu0
      %v2506 = vadd.f32 %v840, %v2505
      %2507 = vmatmul.f32.gmra.mxu0 %v1080
      %v2508 = vpop.f32.mrf.mxu0
      %v2509 = vadd.f32 %v845, %v2508
      %2510 = vmatmul.f32.gmra.mxu0 %v1083
      %v2511 = vpop.f32.mrf.mxu0
      %v2512 = vadd.f32 %v850, %v2511
      %2513 = vmatmul.f32.gmra.mxu0 %v1086
      %v2514 = vpop.f32.mrf.mxu0
      %v2515 = vadd.f32 %v855, %v2514
      %2516 = vmatmul.f32.gmra.mxu0 %v1089
      %v2517 = vpop.f32.mrf.mxu0
      %v2518 = vadd.f32 %v860, %v2517
      %2519 = vmatmul.f32.gmra.mxu0 %v1092
      %v2520 = vpop.f32.mrf.mxu0
      %v2521 = vadd.f32 %v865, %v2520
      %2522 = vmatmul.f32.gmra.mxu0 %v1095
      %v2523 = vpop.f32.mrf.mxu0
      %v2524 = vadd.f32 %v870, %v2523
      %2525 = vmatmul.f32.gmra.mxu0 %v1098
      %v2526 = vpop.f32.mrf.mxu0
      %v2527 = vadd.f32 %v875, %v2526
      %2528 = vmatmul.f32.gmra.mxu0 %v1101
      %v2529 = vpop.f32.mrf.mxu0
      %v2530 = vadd.f32 %v880, %v2529
      %2531 = vmatmul.f32.gmra.mxu0 %v1104
      %v2532 = vpop.f32.mrf.mxu0
      %v2533 = vadd.f32 %v885, %v2532
      %2534 = vmatmul.f32.gmra.mxu0 %v1107
      %v2535 = vpop.f32.mrf.mxu0
      %v2536 = vadd.f32 %v890, %v2535
      %2537 = vmatmul.f32.gmra.mxu0 %v1110
      %v2538 = vpop.f32.mrf.mxu0
      %v2539 = vadd.f32 %v895, %v2538
      %2540 = vmatmul.f32.gmra.mxu0 %v1113
      %v2541 = vpop.f32.mrf.mxu0
      %v2542 = vadd.f32 %v900, %v2541
      %2543 = vmatmul.f32.gmra.mxu0 %v1116
      %v2544 = vpop.f32.mrf.mxu0
      %v2545 = vadd.f32 %v905, %v2544
      %2546 = vmatmul.f32.gmra.mxu0 %v1119
      %v2547 = vpop.f32.mrf.mxu0
      %v2548 = vadd.f32 %v910, %v2547
      %2549 = vmatmul.f32.gmra.mxu0 %v1122
      %v2550 = vpop.f32.mrf.mxu0
      %v2551 = vadd.f32 %v915, %v2550
      %2552 = vmatmul.f32.gmra.mxu0 %v1125
      %v2553 = vpop.f32.mrf.mxu0
      %v2554 = vadd.f32 %v920, %v2553
      %2555 = vmatmul.f32.gmra.mxu0 %v1128
      %v2556 = vpop.f32.mrf.mxu0
      %v2557 = vadd.f32 %v925, %v2556
      %2558 = vmatmul.f32.gmra.mxu0 %v1131
      %v2559 = vpop.f32.mrf.mxu0
      %v2560 = vadd.f32 %v930, %v2559
      %2561 = vmatmul.f32.gmra.mxu0 %v1134
      %v2562 = vpop.f32.mrf.mxu0
      %v2563 = vadd.f32 %v935, %v2562
      %2564 = vmatmul.f32.gmra.mxu0 %v1137
      %v2565 = vpop.f32.mrf.mxu0
      %v2566 = vadd.f32 %v940, %v2565
      %2567 = vmatmul.f32.gmra.mxu0 %v1140
      %v2568 = vpop.f32.mrf.mxu0
      %v2569 = vadd.f32 %v945, %v2568
      %2570 = vmatmul.f32.gmra.mxu0 %v1143
      %v2571 = vpop.f32.mrf.mxu0
      %v2572 = vadd.f32 %v950, %v2571
      %2573 = vdwg.mxu0
      %2574 = vmatpush.xpose.msra.mxu0 %v1431
      %2575 = vmatpush.xpose.msra.mxu0 %v1428
      %2576 = vmatpush.xpose.msra.mxu0 %v1425
      %2577 = vmatpush.xpose.msra.mxu0 %v1422
      %2578 = vmatpush.xpose.msra.mxu0 %v1419
      %2579 = vmatpush.xpose.msra.mxu0 %v1416
      %2580 = vmatpush.xpose.msra.mxu0 %v1413
      %2581 = vmatpush.xpose.msra.mxu0 %v1410
      %2582 = vmatpush.xpose.msra.mxu0 %v1407
      %2583 = vmatpush.xpose.msra.mxu0 %v1404
      %2584 = vmatpush.xpose.msra.mxu0 %v1401
      %2585 = vmatpush.xpose.msra.mxu0 %v1398
      %2586 = vmatpush.xpose.msra.mxu0 %v1395
      %2587 = vmatpush.xpose.msra.mxu0 %v1392
      %2588 = vmatpush.xpose.msra.mxu0 %v1389
      %2589 = vmatpush.xpose.msra.mxu0 %v1386
      %2590 = vmatmul.f32.gmra.mxu0 %v954
      %v2591 = vpop.f32.mrf.mxu0
      %v2592 = vadd.f32 %v635, %v2591
      %2593 = vmatmul.f32.gmra.mxu0 %v957
      %v2594 = vpop.f32.mrf.mxu0
      %v2595 = vadd.f32 %v640, %v2594
      %2596 = vmatmul.f32.gmra.mxu0 %v960
      %v2597 = vpop.f32.mrf.mxu0
      %v2598 = vadd.f32 %v645, %v2597
      %2599 = vmatmul.f32.gmra.mxu0 %v963
      %v2600 = vpop.f32.mrf.mxu0
      %v2601 = vadd.f32 %v650, %v2600
      %2602 = vmatmul.f32.gmra.mxu0 %v966
      %v2603 = vpop.f32.mrf.mxu0
      %v2604 = vadd.f32 %v655, %v2603
      %2605 = vmatmul.f32.gmra.mxu0 %v969
      %v2606 = vpop.f32.mrf.mxu0
      %v2607 = vadd.f32 %v660, %v2606
      %2608 = vmatmul.f32.gmra.mxu0 %v972
      %v2609 = vpop.f32.mrf.mxu0
      %v2610 = vadd.f32 %v665, %v2609
      %2611 = vmatmul.f32.gmra.mxu0 %v975
      %v2612 = vpop.f32.mrf.mxu0
      %v2613 = vadd.f32 %v670, %v2612
      %2614 = vmatmul.f32.gmra.mxu0 %v978
      %v2615 = vpop.f32.mrf.mxu0
      %v2616 = vadd.f32 %v675, %v2615
      %2617 = vmatmul.f32.gmra.mxu0 %v981
      %v2618 = vpop.f32.mrf.mxu0
      %v2619 = vadd.f32 %v680, %v2618
      %2620 = vmatmul.f32.gmra.mxu0 %v984
      %v2621 = vpop.f32.mrf.mxu0
      %v2622 = vadd.f32 %v685, %v2621
      %2623 = vmatmul.f32.gmra.mxu0 %v987
      %v2624 = vpop.f32.mrf.mxu0
      %v2625 = vadd.f32 %v690, %v2624
      %2626 = vmatmul.f32.gmra.mxu0 %v990
      %v2627 = vpop.f32.mrf.mxu0
      %v2628 = vadd.f32 %v695, %v2627
      %2629 = vmatmul.f32.gmra.mxu0 %v993
      %v2630 = vpop.f32.mrf.mxu0
      %v2631 = vadd.f32 %v700, %v2630
      %2632 = vmatmul.f32.gmra.mxu0 %v996
      %v2633 = vpop.f32.mrf.mxu0
      %v2634 = vadd.f32 %v705, %v2633
      %2635 = vmatmul.f32.gmra.mxu0 %v999
      %v2636 = vpop.f32.mrf.mxu0
      %v2637 = vadd.f32 %v710, %v2636
      %2638 = vmatmul.f32.gmra.mxu0 %v1002
      %v2639 = vpop.f32.mrf.mxu0
      %v2640 = vadd.f32 %v715, %v2639
      %2641 = vmatmul.f32.gmra.mxu0 %v1005
      %v2642 = vpop.f32.mrf.mxu0
      %v2643 = vadd.f32 %v720, %v2642
      %2644 = vmatmul.f32.gmra.mxu0 %v1008
      %v2645 = vpop.f32.mrf.mxu0
      %v2646 = vadd.f32 %v725, %v2645
      %2647 = vmatmul.f32.gmra.mxu0 %v1011
      %v2648 = vpop.f32.mrf.mxu0
      %v2649 = vadd.f32 %v730, %v2648
      %2650 = vmatmul.f32.gmra.mxu0 %v1014
      %v2651 = vpop.f32.mrf.mxu0
      %v2652 = vadd.f32 %v735, %v2651
      %2653 = vmatmul.f32.gmra.mxu0 %v1017
      %v2654 = vpop.f32.mrf.mxu0
      %v2655 = vadd.f32 %v740, %v2654
      %2656 = vmatmul.f32.gmra.mxu0 %v1020
      %v2657 = vpop.f32.mrf.mxu0
      %v2658 = vadd.f32 %v745, %v2657
      %2659 = vmatmul.f32.gmra.mxu0 %v1023
      %v2660 = vpop.f32.mrf.mxu0
      %v2661 = vadd.f32 %v750, %v2660
      %2662 = vmatmul.f32.gmra.mxu0 %v1026
      %v2663 = vpop.f32.mrf.mxu0
      %v2664 = vadd.f32 %v755, %v2663
      %2665 = vmatmul.f32.gmra.mxu0 %v1029
      %v2666 = vpop.f32.mrf.mxu0
      %v2667 = vadd.f32 %v760, %v2666
      %2668 = vmatmul.f32.gmra.mxu0 %v1032
      %v2669 = vpop.f32.mrf.mxu0
      %v2670 = vadd.f32 %v765, %v2669
      %2671 = vmatmul.f32.gmra.mxu0 %v1035
      %v2672 = vpop.f32.mrf.mxu0
      %v2673 = vadd.f32 %v770, %v2672
      %2674 = vmatmul.f32.gmra.mxu0 %v1038
      %v2675 = vpop.f32.mrf.mxu0
      %v2676 = vadd.f32 %v775, %v2675
      %2677 = vmatmul.f32.gmra.mxu0 %v1041
      %v2678 = vpop.f32.mrf.mxu0
      %v2679 = vadd.f32 %v780, %v2678
      %2680 = vmatmul.f32.gmra.mxu0 %v1044
      %v2681 = vpop.f32.mrf.mxu0
      %v2682 = vadd.f32 %v785, %v2681
      %2683 = vmatmul.f32.gmra.mxu0 %v1047
      %v2684 = vpop.f32.mrf.mxu0
      %v2685 = vadd.f32 %v790, %v2684
      %2686 = vmatmul.f32.gmra.mxu0 %v1050
      %v2687 = vpop.f32.mrf.mxu0
      %v2688 = vadd.f32 %v795, %v2687
      %2689 = vmatmul.f32.gmra.mxu0 %v1053
      %v2690 = vpop.f32.mrf.mxu0
      %v2691 = vadd.f32 %v800, %v2690
      %2692 = vmatmul.f32.gmra.mxu0 %v1056
      %v2693 = vpop.f32.mrf.mxu0
      %v2694 = vadd.f32 %v805, %v2693
      %2695 = vmatmul.f32.gmra.mxu0 %v1059
      %v2696 = vpop.f32.mrf.mxu0
      %v2697 = vadd.f32 %v810, %v2696
      %2698 = vmatmul.f32.gmra.mxu0 %v1062
      %v2699 = vpop.f32.mrf.mxu0
      %v2700 = vadd.f32 %v815, %v2699
      %2701 = vmatmul.f32.gmra.mxu0 %v1065
      %v2702 = vpop.f32.mrf.mxu0
      %v2703 = vadd.f32 %v820, %v2702
      %2704 = vmatmul.f32.gmra.mxu0 %v1068
      %v2705 = vpop.f32.mrf.mxu0
      %v2706 = vadd.f32 %v825, %v2705
      %2707 = vmatmul.f32.gmra.mxu0 %v1071
      %v2708 = vpop.f32.mrf.mxu0
      %v2709 = vadd.f32 %v830, %v2708
      %2710 = vmatmul.f32.gmra.mxu0 %v1074
      %v2711 = vpop.f32.mrf.mxu0
      %v2712 = vadd.f32 %v835, %v2711
      %2713 = vmatmul.f32.gmra.mxu0 %v1077
      %v2714 = vpop.f32.mrf.mxu0
      %v2715 = vadd.f32 %v840, %v2714
      %2716 = vmatmul.f32.gmra.mxu0 %v1080
      %v2717 = vpop.f32.mrf.mxu0
      %v2718 = vadd.f32 %v845, %v2717
      %2719 = vmatmul.f32.gmra.mxu0 %v1083
      %v2720 = vpop.f32.mrf.mxu0
      %v2721 = vadd.f32 %v850, %v2720
      %2722 = vmatmul.f32.gmra.mxu0 %v1086
      %v2723 = vpop.f32.mrf.mxu0
      %v2724 = vadd.f32 %v855, %v2723
      %2725 = vmatmul.f32.gmra.mxu0 %v1089
      %v2726 = vpop.f32.mrf.mxu0
      %v2727 = vadd.f32 %v860, %v2726
      %2728 = vmatmul.f32.gmra.mxu0 %v1092
      %v2729 = vpop.f32.mrf.mxu0
      %v2730 = vadd.f32 %v865, %v2729
      %2731 = vmatmul.f32.gmra.mxu0 %v1095
      %v2732 = vpop.f32.mrf.mxu0
      %v2733 = vadd.f32 %v870, %v2732
      %2734 = vmatmul.f32.gmra.mxu0 %v1098
      %v2735 = vpop.f32.mrf.mxu0
      %v2736 = vadd.f32 %v875, %v2735
      %2737 = vmatmul.f32.gmra.mxu0 %v1101
      %v2738 = vpop.f32.mrf.mxu0
      %v2739 = vadd.f32 %v880, %v2738
      %2740 = vmatmul.f32.gmra.mxu0 %v1104
      %v2741 = vpop.f32.mrf.mxu0
      %v2742 = vadd.f32 %v885, %v2741
      %2743 = vmatmul.f32.gmra.mxu0 %v1107
      %v2744 = vpop.f32.mrf.mxu0
      %v2745 = vadd.f32 %v890, %v2744
      %2746 = vmatmul.f32.gmra.mxu0 %v1110
      %v2747 = vpop.f32.mrf.mxu0
      %v2748 = vadd.f32 %v895, %v2747
      %2749 = vmatmul.f32.gmra.mxu0 %v1113
      %v2750 = vpop.f32.mrf.mxu0
      %v2751 = vadd.f32 %v900, %v2750
      %2752 = vmatmul.f32.gmra.mxu0 %v1116
      %v2753 = vpop.f32.mrf.mxu0
      %v2754 = vadd.f32 %v905, %v2753
      %2755 = vmatmul.f32.gmra.mxu0 %v1119
      %v2756 = vpop.f32.mrf.mxu0
      %v2757 = vadd.f32 %v910, %v2756
      %2758 = vmatmul.f32.gmra.mxu0 %v1122
      %v2759 = vpop.f32.mrf.mxu0
      %v2760 = vadd.f32 %v915, %v2759
      %2761 = vmatmul.f32.gmra.mxu0 %v1125
      %v2762 = vpop.f32.mrf.mxu0
      %v2763 = vadd.f32 %v920, %v2762
      %2764 = vmatmul.f32.gmra.mxu0 %v1128
      %v2765 = vpop.f32.mrf.mxu0
      %v2766 = vadd.f32 %v925, %v2765
      %2767 = vmatmul.f32.gmra.mxu0 %v1131
      %v2768 = vpop.f32.mrf.mxu0
      %v2769 = vadd.f32 %v930, %v2768
      %2770 = vmatmul.f32.gmra.mxu0 %v1134
      %v2771 = vpop.f32.mrf.mxu0
      %v2772 = vadd.f32 %v935, %v2771
      %2773 = vmatmul.f32.gmra.mxu0 %v1137
      %v2774 = vpop.f32.mrf.mxu0
      %v2775 = vadd.f32 %v940, %v2774
      %2776 = vmatmul.f32.gmra.mxu0 %v1140
      %v2777 = vpop.f32.mrf.mxu0
      %v2778 = vadd.f32 %v945, %v2777
      %2779 = vmatmul.f32.gmra.mxu0 %v1143
      %v2780 = vpop.f32.mrf.mxu0
      %v2781 = vadd.f32 %v950, %v2780
      %2782 = vdwg.mxu0
      %2783 = vmatpush.xpose.msra.mxu0 %v1479
      %2784 = vmatpush.xpose.msra.mxu0 %v1476
      %2785 = vmatpush.xpose.msra.mxu0 %v1473
      %2786 = vmatpush.xpose.msra.mxu0 %v1470
      %2787 = vmatpush.xpose.msra.mxu0 %v1467
      %2788 = vmatpush.xpose.msra.mxu0 %v1464
      %2789 = vmatpush.xpose.msra.mxu0 %v1461
      %2790 = vmatpush.xpose.msra.mxu0 %v1458
      %2791 = vmatpush.xpose.msra.mxu0 %v1455
      %2792 = vmatpush.xpose.msra.mxu0 %v1452
      %2793 = vmatpush.xpose.msra.mxu0 %v1449
      %2794 = vmatpush.xpose.msra.mxu0 %v1446
      %2795 = vmatpush.xpose.msra.mxu0 %v1443
      %2796 = vmatpush.xpose.msra.mxu0 %v1440
      %2797 = vmatpush.xpose.msra.mxu0 %v1437
      %2798 = vmatpush.xpose.msra.mxu0 %v1434
      %2799 = vmatmul.f32.gmra.mxu0 %v954
      %v2800 = vpop.f32.mrf.mxu0
      %v2801 = vadd.f32 %v635, %v2800
      %2802 = vmatmul.f32.gmra.mxu0 %v957
      %v2803 = vpop.f32.mrf.mxu0
      %v2804 = vadd.f32 %v640, %v2803
      %2805 = vmatmul.f32.gmra.mxu0 %v960
      %v2806 = vpop.f32.mrf.mxu0
      %v2807 = vadd.f32 %v645, %v2806
      %2808 = vmatmul.f32.gmra.mxu0 %v963
      %v2809 = vpop.f32.mrf.mxu0
      %v2810 = vadd.f32 %v650, %v2809
      %2811 = vmatmul.f32.gmra.mxu0 %v966
      %v2812 = vpop.f32.mrf.mxu0
      %v2813 = vadd.f32 %v655, %v2812
      %2814 = vmatmul.f32.gmra.mxu0 %v969
      %v2815 = vpop.f32.mrf.mxu0
      %v2816 = vadd.f32 %v660, %v2815
      %2817 = vmatmul.f32.gmra.mxu0 %v972
      %v2818 = vpop.f32.mrf.mxu0
      %v2819 = vadd.f32 %v665, %v2818
      %2820 = vmatmul.f32.gmra.mxu0 %v975
      %v2821 = vpop.f32.mrf.mxu0
      %v2822 = vadd.f32 %v670, %v2821
      %2823 = vmatmul.f32.gmra.mxu0 %v978
      %v2824 = vpop.f32.mrf.mxu0
      %v2825 = vadd.f32 %v675, %v2824
      %2826 = vmatmul.f32.gmra.mxu0 %v981
      %v2827 = vpop.f32.mrf.mxu0
      %v2828 = vadd.f32 %v680, %v2827
      %2829 = vmatmul.f32.gmra.mxu0 %v984
      %v2830 = vpop.f32.mrf.mxu0
      %v2831 = vadd.f32 %v685, %v2830
      %2832 = vmatmul.f32.gmra.mxu0 %v987
      %v2833 = vpop.f32.mrf.mxu0
      %v2834 = vadd.f32 %v690, %v2833
      %2835 = vmatmul.f32.gmra.mxu0 %v990
      %v2836 = vpop.f32.mrf.mxu0
      %v2837 = vadd.f32 %v695, %v2836
      %2838 = vmatmul.f32.gmra.mxu0 %v993
      %v2839 = vpop.f32.mrf.mxu0
      %v2840 = vadd.f32 %v700, %v2839
      %2841 = vmatmul.f32.gmra.mxu0 %v996
      %v2842 = vpop.f32.mrf.mxu0
      %v2843 = vadd.f32 %v705, %v2842
      %2844 = vmatmul.f32.gmra.mxu0 %v999
      %v2845 = vpop.f32.mrf.mxu0
      %v2846 = vadd.f32 %v710, %v2845
      %2847 = vmatmul.f32.gmra.mxu0 %v1002
      %v2848 = vpop.f32.mrf.mxu0
      %v2849 = vadd.f32 %v715, %v2848
      %2850 = vmatmul.f32.gmra.mxu0 %v1005
      %v2851 = vpop.f32.mrf.mxu0
      %v2852 = vadd.f32 %v720, %v2851
      %2853 = vmatmul.f32.gmra.mxu0 %v1008
      %v2854 = vpop.f32.mrf.mxu0
      %v2855 = vadd.f32 %v725, %v2854
      %2856 = vmatmul.f32.gmra.mxu0 %v1011
      %v2857 = vpop.f32.mrf.mxu0
      %v2858 = vadd.f32 %v730, %v2857
      %2859 = vmatmul.f32.gmra.mxu0 %v1014
      %v2860 = vpop.f32.mrf.mxu0
      %v2861 = vadd.f32 %v735, %v2860
      %2862 = vmatmul.f32.gmra.mxu0 %v1017
      %v2863 = vpop.f32.mrf.mxu0
      %v2864 = vadd.f32 %v740, %v2863
      %2865 = vmatmul.f32.gmra.mxu0 %v1020
      %v2866 = vpop.f32.mrf.mxu0
      %v2867 = vadd.f32 %v745, %v2866
      %2868 = vmatmul.f32.gmra.mxu0 %v1023
      %v2869 = vpop.f32.mrf.mxu0
      %v2870 = vadd.f32 %v750, %v2869
      %2871 = vmatmul.f32.gmra.mxu0 %v1026
      %v2872 = vpop.f32.mrf.mxu0
      %v2873 = vadd.f32 %v755, %v2872
      %2874 = vmatmul.f32.gmra.mxu0 %v1029
      %v2875 = vpop.f32.mrf.mxu0
      %v2876 = vadd.f32 %v760, %v2875
      %2877 = vmatmul.f32.gmra.mxu0 %v1032
      %v2878 = vpop.f32.mrf.mxu0
      %v2879 = vadd.f32 %v765, %v2878
      %2880 = vmatmul.f32.gmra.mxu0 %v1035
      %v2881 = vpop.f32.mrf.mxu0
      %v2882 = vadd.f32 %v770, %v2881
      %2883 = vmatmul.f32.gmra.mxu0 %v1038
      %v2884 = vpop.f32.mrf.mxu0
      %v2885 = vadd.f32 %v775, %v2884
      %2886 = vmatmul.f32.gmra.mxu0 %v1041
      %v2887 = vpop.f32.mrf.mxu0
      %v2888 = vadd.f32 %v780, %v2887
      %2889 = vmatmul.f32.gmra.mxu0 %v1044
      %v2890 = vpop.f32.mrf.mxu0
      %v2891 = vadd.f32 %v785, %v2890
      %2892 = vmatmul.f32.gmra.mxu0 %v1047
      %v2893 = vpop.f32.mrf.mxu0
      %v2894 = vadd.f32 %v790, %v2893
      %2895 = vmatmul.f32.gmra.mxu0 %v1050
      %v2896 = vpop.f32.mrf.mxu0
      %v2897 = vadd.f32 %v795, %v2896
      %2898 = vmatmul.f32.gmra.mxu0 %v1053
      %v2899 = vpop.f32.mrf.mxu0
      %v2900 = vadd.f32 %v800, %v2899
      %2901 = vmatmul.f32.gmra.mxu0 %v1056
      %v2902 = vpop.f32.mrf.mxu0
      %v2903 = vadd.f32 %v805, %v2902
      %2904 = vmatmul.f32.gmra.mxu0 %v1059
      %v2905 = vpop.f32.mrf.mxu0
      %v2906 = vadd.f32 %v810, %v2905
      %2907 = vmatmul.f32.gmra.mxu0 %v1062
      %v2908 = vpop.f32.mrf.mxu0
      %v2909 = vadd.f32 %v815, %v2908
      %2910 = vmatmul.f32.gmra.mxu0 %v1065
      %v2911 = vpop.f32.mrf.mxu0
      %v2912 = vadd.f32 %v820, %v2911
      %2913 = vmatmul.f32.gmra.mxu0 %v1068
      %v2914 = vpop.f32.mrf.mxu0
      %v2915 = vadd.f32 %v825, %v2914
      %2916 = vmatmul.f32.gmra.mxu0 %v1071
      %v2917 = vpop.f32.mrf.mxu0
      %v2918 = vadd.f32 %v830, %v2917
      %2919 = vmatmul.f32.gmra.mxu0 %v1074
      %v2920 = vpop.f32.mrf.mxu0
      %v2921 = vadd.f32 %v835, %v2920
      %2922 = vmatmul.f32.gmra.mxu0 %v1077
      %v2923 = vpop.f32.mrf.mxu0
      %v2924 = vadd.f32 %v840, %v2923
      %2925 = vmatmul.f32.gmra.mxu0 %v1080
      %v2926 = vpop.f32.mrf.mxu0
      %v2927 = vadd.f32 %v845, %v2926
      %2928 = vmatmul.f32.gmra.mxu0 %v1083
      %v2929 = vpop.f32.mrf.mxu0
      %v2930 = vadd.f32 %v850, %v2929
      %2931 = vmatmul.f32.gmra.mxu0 %v1086
      %v2932 = vpop.f32.mrf.mxu0
      %v2933 = vadd.f32 %v855, %v2932
      %2934 = vmatmul.f32.gmra.mxu0 %v1089
      %v2935 = vpop.f32.mrf.mxu0
      %v2936 = vadd.f32 %v860, %v2935
      %2937 = vmatmul.f32.gmra.mxu0 %v1092
      %v2938 = vpop.f32.mrf.mxu0
      %v2939 = vadd.f32 %v865, %v2938
      %2940 = vmatmul.f32.gmra.mxu0 %v1095
      %v2941 = vpop.f32.mrf.mxu0
      %v2942 = vadd.f32 %v870, %v2941
      %2943 = vmatmul.f32.gmra.mxu0 %v1098
      %v2944 = vpop.f32.mrf.mxu0
      %v2945 = vadd.f32 %v875, %v2944
      %2946 = vmatmul.f32.gmra.mxu0 %v1101
      %v2947 = vpop.f32.mrf.mxu0
      %v2948 = vadd.f32 %v880, %v2947
      %2949 = vmatmul.f32.gmra.mxu0 %v1104
      %v2950 = vpop.f32.mrf.mxu0
      %v2951 = vadd.f32 %v885, %v2950
      %2952 = vmatmul.f32.gmra.mxu0 %v1107
      %v2953 = vpop.f32.mrf.mxu0
      %v2954 = vadd.f32 %v890, %v2953
      %2955 = vmatmul.f32.gmra.mxu0 %v1110
      %v2956 = vpop.f32.mrf.mxu0
      %v2957 = vadd.f32 %v895, %v2956
      %2958 = vmatmul.f32.gmra.mxu0 %v1113
      %v2959 = vpop.f32.mrf.mxu0
      %v2960 = vadd.f32 %v900, %v2959
      %2961 = vmatmul.f32.gmra.mxu0 %v1116
      %v2962 = vpop.f32.mrf.mxu0
      %v2963 = vadd.f32 %v905, %v2962
      %2964 = vmatmul.f32.gmra.mxu0 %v1119
      %v2965 = vpop.f32.mrf.mxu0
      %v2966 = vadd.f32 %v910, %v2965
      %2967 = vmatmul.f32.gmra.mxu0 %v1122
      %v2968 = vpop.f32.mrf.mxu0
      %v2969 = vadd.f32 %v915, %v2968
      %2970 = vmatmul.f32.gmra.mxu0 %v1125
      %v2971 = vpop.f32.mrf.mxu0
      %v2972 = vadd.f32 %v920, %v2971
      %2973 = vmatmul.f32.gmra.mxu0 %v1128
      %v2974 = vpop.f32.mrf.mxu0
      %v2975 = vadd.f32 %v925, %v2974
      %2976 = vmatmul.f32.gmra.mxu0 %v1131
      %v2977 = vpop.f32.mrf.mxu0
      %v2978 = vadd.f32 %v930, %v2977
      %2979 = vmatmul.f32.gmra.mxu0 %v1134
      %v2980 = vpop.f32.mrf.mxu0
      %v2981 = vadd.f32 %v935, %v2980
      %2982 = vmatmul.f32.gmra.mxu0 %v1137
      %v2983 = vpop.f32.mrf.mxu0
      %v2984 = vadd.f32 %v940, %v2983
      %2985 = vmatmul.f32.gmra.mxu0 %v1140
      %v2986 = vpop.f32.mrf.mxu0
      %v2987 = vadd.f32 %v945, %v2986
      %2988 = vmatmul.f32.gmra.mxu0 %v1143
      %v2989 = vpop.f32.mrf.mxu0
      %v2990 = vadd.f32 %v950, %v2989
      %2991 = vdwg.mxu0
      %2992 = vmatpush.xpose.msra.mxu0 %v1527
      %2993 = vmatpush.xpose.msra.mxu0 %v1524
      %2994 = vmatpush.xpose.msra.mxu0 %v1521
      %2995 = vmatpush.xpose.msra.mxu0 %v1518
      %2996 = vmatpush.xpose.msra.mxu0 %v1515
      %2997 = vmatpush.xpose.msra.mxu0 %v1512
      %2998 = vmatpush.xpose.msra.mxu0 %v1509
      %2999 = vmatpush.xpose.msra.mxu0 %v1506
      %3000 = vmatpush.xpose.msra.mxu0 %v1503
      %3001 = vmatpush.xpose.msra.mxu0 %v1500
      %3002 = vmatpush.xpose.msra.mxu0 %v1497
      %3003 = vmatpush.xpose.msra.mxu0 %v1494
      %3004 = vmatpush.xpose.msra.mxu0 %v1491
      %3005 = vmatpush.xpose.msra.mxu0 %v1488
      %3006 = vmatpush.xpose.msra.mxu0 %v1485
      %3007 = vmatpush.xpose.msra.mxu0 %v1482
      %3008 = vmatmul.f32.gmra.mxu0 %v954
      %v3009 = vpop.f32.mrf.mxu0
      %v3010 = vadd.f32 %v635, %v3009
      %3011 = vmatmul.f32.gmra.mxu0 %v957
      %v3012 = vpop.f32.mrf.mxu0
      %v3013 = vadd.f32 %v640, %v3012
      %3014 = vmatmul.f32.gmra.mxu0 %v960
      %v3015 = vpop.f32.mrf.mxu0
      %v3016 = vadd.f32 %v645, %v3015
      %3017 = vmatmul.f32.gmra.mxu0 %v963
      %v3018 = vpop.f32.mrf.mxu0
      %v3019 = vadd.f32 %v650, %v3018
      %3020 = vmatmul.f32.gmra.mxu0 %v966
      %v3021 = vpop.f32.mrf.mxu0
      %v3022 = vadd.f32 %v655, %v3021
      %3023 = vmatmul.f32.gmra.mxu0 %v969
      %v3024 = vpop.f32.mrf.mxu0
      %v3025 = vadd.f32 %v660, %v3024
      %3026 = vmatmul.f32.gmra.mxu0 %v972
      %v3027 = vpop.f32.mrf.mxu0
      %v3028 = vadd.f32 %v665, %v3027
      %3029 = vmatmul.f32.gmra.mxu0 %v975
      %v3030 = vpop.f32.mrf.mxu0
      %v3031 = vadd.f32 %v670, %v3030
      %3032 = vmatmul.f32.gmra.mxu0 %v978
      %v3033 = vpop.f32.mrf.mxu0
      %v3034 = vadd.f32 %v675, %v3033
      %3035 = vmatmul.f32.gmra.mxu0 %v981
      %v3036 = vpop.f32.mrf.mxu0
      %v3037 = vadd.f32 %v680, %v3036
      %3038 = vmatmul.f32.gmra.mxu0 %v984
      %v3039 = vpop.f32.mrf.mxu0
      %v3040 = vadd.f32 %v685, %v3039
      %3041 = vmatmul.f32.gmra.mxu0 %v987
      %v3042 = vpop.f32.mrf.mxu0
      %v3043 = vadd.f32 %v690, %v3042
      %3044 = vmatmul.f32.gmra.mxu0 %v990
      %v3045 = vpop.f32.mrf.mxu0
      %v3046 = vadd.f32 %v695, %v3045
      %3047 = vmatmul.f32.gmra.mxu0 %v993
      %v3048 = vpop.f32.mrf.mxu0
      %v3049 = vadd.f32 %v700, %v3048
      %3050 = vmatmul.f32.gmra.mxu0 %v996
      %v3051 = vpop.f32.mrf.mxu0
      %v3052 = vadd.f32 %v705, %v3051
      %3053 = vmatmul.f32.gmra.mxu0 %v999
      %v3054 = vpop.f32.mrf.mxu0
      %v3055 = vadd.f32 %v710, %v3054
      %3056 = vmatmul.f32.gmra.mxu0 %v1002
      %v3057 = vpop.f32.mrf.mxu0
      %v3058 = vadd.f32 %v715, %v3057
      %3059 = vmatmul.f32.gmra.mxu0 %v1005
      %v3060 = vpop.f32.mrf.mxu0
      %v3061 = vadd.f32 %v720, %v3060
      %3062 = vmatmul.f32.gmra.mxu0 %v1008
      %v3063 = vpop.f32.mrf.mxu0
      %v3064 = vadd.f32 %v725, %v3063
      %3065 = vmatmul.f32.gmra.mxu0 %v1011
      %v3066 = vpop.f32.mrf.mxu0
      %v3067 = vadd.f32 %v730, %v3066
      %3068 = vmatmul.f32.gmra.mxu0 %v1014
      %v3069 = vpop.f32.mrf.mxu0
      %v3070 = vadd.f32 %v735, %v3069
      %3071 = vmatmul.f32.gmra.mxu0 %v1017
      %v3072 = vpop.f32.mrf.mxu0
      %v3073 = vadd.f32 %v740, %v3072
      %3074 = vmatmul.f32.gmra.mxu0 %v1020
      %v3075 = vpop.f32.mrf.mxu0
      %v3076 = vadd.f32 %v745, %v3075
      %3077 = vmatmul.f32.gmra.mxu0 %v1023
      %v3078 = vpop.f32.mrf.mxu0
      %v3079 = vadd.f32 %v750, %v3078
      %3080 = vmatmul.f32.gmra.mxu0 %v1026
      %v3081 = vpop.f32.mrf.mxu0
      %v3082 = vadd.f32 %v755, %v3081
      %3083 = vmatmul.f32.gmra.mxu0 %v1029
      %v3084 = vpop.f32.mrf.mxu0
      %v3085 = vadd.f32 %v760, %v3084
      %3086 = vmatmul.f32.gmra.mxu0 %v1032
      %v3087 = vpop.f32.mrf.mxu0
      %v3088 = vadd.f32 %v765, %v3087
      %3089 = vmatmul.f32.gmra.mxu0 %v1035
      %v3090 = vpop.f32.mrf.mxu0
      %v3091 = vadd.f32 %v770, %v3090
      %3092 = vmatmul.f32.gmra.mxu0 %v1038
      %v3093 = vpop.f32.mrf.mxu0
      %v3094 = vadd.f32 %v775, %v3093
      %3095 = vmatmul.f32.gmra.mxu0 %v1041
      %v3096 = vpop.f32.mrf.mxu0
      %v3097 = vadd.f32 %v780, %v3096
      %3098 = vmatmul.f32.gmra.mxu0 %v1044
      %v3099 = vpop.f32.mrf.mxu0
      %v3100 = vadd.f32 %v785, %v3099
      %3101 = vmatmul.f32.gmra.mxu0 %v1047
      %v3102 = vpop.f32.mrf.mxu0
      %v3103 = vadd.f32 %v790, %v3102
      %3104 = vmatmul.f32.gmra.mxu0 %v1050
      %v3105 = vpop.f32.mrf.mxu0
      %v3106 = vadd.f32 %v795, %v3105
      %3107 = vmatmul.f32.gmra.mxu0 %v1053
      %v3108 = vpop.f32.mrf.mxu0
      %v3109 = vadd.f32 %v800, %v3108
      %3110 = vmatmul.f32.gmra.mxu0 %v1056
      %v3111 = vpop.f32.mrf.mxu0
      %v3112 = vadd.f32 %v805, %v3111
      %3113 = vmatmul.f32.gmra.mxu0 %v1059
      %v3114 = vpop.f32.mrf.mxu0
      %v3115 = vadd.f32 %v810, %v3114
      %3116 = vmatmul.f32.gmra.mxu0 %v1062
      %v3117 = vpop.f32.mrf.mxu0
      %v3118 = vadd.f32 %v815, %v3117
      %3119 = vmatmul.f32.gmra.mxu0 %v1065
      %v3120 = vpop.f32.mrf.mxu0
      %v3121 = vadd.f32 %v820, %v3120
      %3122 = vmatmul.f32.gmra.mxu0 %v1068
      %v3123 = vpop.f32.mrf.mxu0
      %v3124 = vadd.f32 %v825, %v3123
      %3125 = vmatmul.f32.gmra.mxu0 %v1071
      %v3126 = vpop.f32.mrf.mxu0
      %v3127 = vadd.f32 %v830, %v3126
      %3128 = vmatmul.f32.gmra.mxu0 %v1074
      %v3129 = vpop.f32.mrf.mxu0
      %v3130 = vadd.f32 %v835, %v3129
      %3131 = vmatmul.f32.gmra.mxu0 %v1077
      %v3132 = vpop.f32.mrf.mxu0
      %v3133 = vadd.f32 %v840, %v3132
      %3134 = vmatmul.f32.gmra.mxu0 %v1080
      %v3135 = vpop.f32.mrf.mxu0
      %v3136 = vadd.f32 %v845, %v3135
      %3137 = vmatmul.f32.gmra.mxu0 %v1083
      %v3138 = vpop.f32.mrf.mxu0
      %v3139 = vadd.f32 %v850, %v3138
      %3140 = vmatmul.f32.gmra.mxu0 %v1086
      %v3141 = vpop.f32.mrf.mxu0
      %v3142 = vadd.f32 %v855, %v3141
      %3143 = vmatmul.f32.gmra.mxu0 %v1089
      %v3144 = vpop.f32.mrf.mxu0
      %v3145 = vadd.f32 %v860, %v3144
      %3146 = vmatmul.f32.gmra.mxu0 %v1092
      %v3147 = vpop.f32.mrf.mxu0
      %v3148 = vadd.f32 %v865, %v3147
      %3149 = vmatmul.f32.gmra.mxu0 %v1095
      %v3150 = vpop.f32.mrf.mxu0
      %v3151 = vadd.f32 %v870, %v3150
      %3152 = vmatmul.f32.gmra.mxu0 %v1098
      %v3153 = vpop.f32.mrf.mxu0
      %v3154 = vadd.f32 %v875, %v3153
      %3155 = vmatmul.f32.gmra.mxu0 %v1101
      %v3156 = vpop.f32.mrf.mxu0
      %v3157 = vadd.f32 %v880, %v3156
      %3158 = vmatmul.f32.gmra.mxu0 %v1104
      %v3159 = vpop.f32.mrf.mxu0
      %v3160 = vadd.f32 %v885, %v3159
      %3161 = vmatmul.f32.gmra.mxu0 %v1107
      %v3162 = vpop.f32.mrf.mxu0
      %v3163 = vadd.f32 %v890, %v3162
      %3164 = vmatmul.f32.gmra.mxu0 %v1110
      %v3165 = vpop.f32.mrf.mxu0
      %v3166 = vadd.f32 %v895, %v3165
      %3167 = vmatmul.f32.gmra.mxu0 %v1113
      %v3168 = vpop.f32.mrf.mxu0
      %v3169 = vadd.f32 %v900, %v3168
      %3170 = vmatmul.f32.gmra.mxu0 %v1116
      %v3171 = vpop.f32.mrf.mxu0
      %v3172 = vadd.f32 %v905, %v3171
      %3173 = vmatmul.f32.gmra.mxu0 %v1119
      %v3174 = vpop.f32.mrf.mxu0
      %v3175 = vadd.f32 %v910, %v3174
      %3176 = vmatmul.f32.gmra.mxu0 %v1122
      %v3177 = vpop.f32.mrf.mxu0
      %v3178 = vadd.f32 %v915, %v3177
      %3179 = vmatmul.f32.gmra.mxu0 %v1125
      %v3180 = vpop.f32.mrf.mxu0
      %v3181 = vadd.f32 %v920, %v3180
      %3182 = vmatmul.f32.gmra.mxu0 %v1128
      %v3183 = vpop.f32.mrf.mxu0
      %v3184 = vadd.f32 %v925, %v3183
      %3185 = vmatmul.f32.gmra.mxu0 %v1131
      %v3186 = vpop.f32.mrf.mxu0
      %v3187 = vadd.f32 %v930, %v3186
      %3188 = vmatmul.f32.gmra.mxu0 %v1134
      %v3189 = vpop.f32.mrf.mxu0
      %v3190 = vadd.f32 %v935, %v3189
      %3191 = vmatmul.f32.gmra.mxu0 %v1137
      %v3192 = vpop.f32.mrf.mxu0
      %v3193 = vadd.f32 %v940, %v3192
      %3194 = vmatmul.f32.gmra.mxu0 %v1140
      %v3195 = vpop.f32.mrf.mxu0
      %v3196 = vadd.f32 %v945, %v3195
      %3197 = vmatmul.f32.gmra.mxu0 %v1143
      %v3198 = vpop.f32.mrf.mxu0
      %v3199 = vadd.f32 %v950, %v3198
      %3200 = vdwg.mxu0
      %v3201 = vmin.f32 %v1547, 0.0
      %v3202 = vmin.f32 %v1756, 0.0
      %v3203 = vmin.f32 %v1965, 0.0
      %v3204 = vmin.f32 %v2174, 0.0
      %v3205 = vmin.f32 %v2383, 0.0
      %v3206 = vmin.f32 %v2592, 0.0
      %v3207 = vmin.f32 %v2801, 0.0
      %v3208 = vmin.f32 %v3010, 0.0
      %v3209 = vmin.f32 %v1550, 0.0
      %v3210 = vmin.f32 %v1759, 0.0
      %v3211 = vmin.f32 %v1968, 0.0
      %v3212 = vmin.f32 %v2177, 0.0
      %v3213 = vmin.f32 %v2386, 0.0
      %v3214 = vmin.f32 %v2595, 0.0
      %v3215 = vmin.f32 %v2804, 0.0
      %v3216 = vmin.f32 %v3013, 0.0
      %v3217 = vmin.f32 %v1553, 0.0
      %v3218 = vmin.f32 %v1762, 0.0
      %v3219 = vmin.f32 %v1971, 0.0
      %v3220 = vmin.f32 %v2180, 0.0
      %v3221 = vmin.f32 %v2389, 0.0
      %v3222 = vmin.f32 %v2598, 0.0
      %v3223 = vmin.f32 %v2807, 0.0
      %v3224 = vmin.f32 %v3016, 0.0
      %v3225 = vmin.f32 %v1556, 0.0
      %v3226 = vmin.f32 %v1765, 0.0
      %v3227 = vmin.f32 %v1974, 0.0
      %v3228 = vmin.f32 %v2183, 0.0
      %v3229 = vmin.f32 %v2392, 0.0
      %v3230 = vmin.f32 %v2601, 0.0
      %v3231 = vmin.f32 %v2810, 0.0
      %v3232 = vmin.f32 %v3019, 0.0
      %v3233 = vmin.f32 %v1559, 0.0
      %v3234 = vmin.f32 %v1768, 0.0
      %v3235 = vmin.f32 %v1977, 0.0
      %v3236 = vmin.f32 %v2186, 0.0
      %v3237 = vmin.f32 %v2395, 0.0
      %v3238 = vmin.f32 %v2604, 0.0
      %v3239 = vmin.f32 %v2813, 0.0
      %v3240 = vmin.f32 %v3022, 0.0
      %v3241 = vmin.f32 %v1562, 0.0
      %v3242 = vmin.f32 %v1771, 0.0
      %v3243 = vmin.f32 %v1980, 0.0
      %v3244 = vmin.f32 %v2189, 0.0
      %v3245 = vmin.f32 %v2398, 0.0
      %v3246 = vmin.f32 %v2607, 0.0
      %v3247 = vmin.f32 %v2816, 0.0
      %v3248 = vmin.f32 %v3025, 0.0
      %v3249 = vmin.f32 %v1565, 0.0
      %v3250 = vmin.f32 %v1774, 0.0
      %v3251 = vmin.f32 %v1983, 0.0
      %v3252 = vmin.f32 %v2192, 0.0
      %v3253 = vmin.f32 %v2401, 0.0
      %v3254 = vmin.f32 %v2610, 0.0
      %v3255 = vmin.f32 %v2819, 0.0
      %v3256 = vmin.f32 %v3028, 0.0
      %v3257 = vmin.f32 %v1568, 0.0
      %v3258 = vmin.f32 %v1777, 0.0
      %v3259 = vmin.f32 %v1986, 0.0
      %v3260 = vmin.f32 %v2195, 0.0
      %v3261 = vmin.f32 %v2404, 0.0
      %v3262 = vmin.f32 %v2613, 0.0
      %v3263 = vmin.f32 %v2822, 0.0
      %v3264 = vmin.f32 %v3031, 0.0
      %v3265 = vmin.f32 %v1571, 0.0
      %v3266 = vmin.f32 %v1780, 0.0
      %v3267 = vmin.f32 %v1989, 0.0
      %v3268 = vmin.f32 %v2198, 0.0
      %v3269 = vmin.f32 %v2407, 0.0
      %v3270 = vmin.f32 %v2616, 0.0
      %v3271 = vmin.f32 %v2825, 0.0
      %v3272 = vmin.f32 %v3034, 0.0
      %v3273 = vmin.f32 %v1574, 0.0
      %v3274 = vmin.f32 %v1783, 0.0
      %v3275 = vmin.f32 %v1992, 0.0
      %v3276 = vmin.f32 %v2201, 0.0
      %v3277 = vmin.f32 %v2410, 0.0
      %v3278 = vmin.f32 %v2619, 0.0
      %v3279 = vmin.f32 %v2828, 0.0
      %v3280 = vmin.f32 %v3037, 0.0
      %v3281 = vmin.f32 %v1577, 0.0
      %v3282 = vmin.f32 %v1786, 0.0
      %v3283 = vmin.f32 %v1995, 0.0
      %v3284 = vmin.f32 %v2204, 0.0
      %v3285 = vmin.f32 %v2413, 0.0
      %v3286 = vmin.f32 %v2622, 0.0
      %v3287 = vmin.f32 %v2831, 0.0
      %v3288 = vmin.f32 %v3040, 0.0
      %v3289 = vmin.f32 %v1580, 0.0
      %v3290 = vmin.f32 %v1789, 0.0
      %v3291 = vmin.f32 %v1998, 0.0
      %v3292 = vmin.f32 %v2207, 0.0
      %v3293 = vmin.f32 %v2416, 0.0
      %v3294 = vmin.f32 %v2625, 0.0
      %v3295 = vmin.f32 %v2834, 0.0
      %v3296 = vmin.f32 %v3043, 0.0
      %v3297 = vmin.f32 %v1583, 0.0
      %v3298 = vmin.f32 %v1792, 0.0
      %v3299 = vmin.f32 %v2001, 0.0
      %v3300 = vmin.f32 %v2210, 0.0
      %v3301 = vmin.f32 %v2419, 0.0
      %v3302 = vmin.f32 %v2628, 0.0
      %v3303 = vmin.f32 %v2837, 0.0
      %v3304 = vmin.f32 %v3046, 0.0
      %v3305 = vmin.f32 %v1586, 0.0
      %v3306 = vmin.f32 %v1795, 0.0
      %v3307 = vmin.f32 %v2004, 0.0
      %v3308 = vmin.f32 %v2213, 0.0
      %v3309 = vmin.f32 %v2422, 0.0
      %v3310 = vmin.f32 %v2631, 0.0
      %v3311 = vmin.f32 %v2840, 0.0
      %v3312 = vmin.f32 %v3049, 0.0
      %v3313 = vmin.f32 %v1589, 0.0
      %v3314 = vmin.f32 %v1798, 0.0
      %v3315 = vmin.f32 %v2007, 0.0
      %v3316 = vmin.f32 %v2216, 0.0
      %v3317 = vmin.f32 %v2425, 0.0
      %v3318 = vmin.f32 %v2634, 0.0
      %v3319 = vmin.f32 %v2843, 0.0
      %v3320 = vmin.f32 %v3052, 0.0
      %v3321 = vmin.f32 %v1592, 0.0
      %v3322 = vmin.f32 %v1801, 0.0
      %v3323 = vmin.f32 %v2010, 0.0
      %v3324 = vmin.f32 %v2219, 0.0
      %v3325 = vmin.f32 %v2428, 0.0
      %v3326 = vmin.f32 %v2637, 0.0
      %v3327 = vmin.f32 %v2846, 0.0
      %v3328 = vmin.f32 %v3055, 0.0
      %v3329 = vmin.f32 %v1595, 0.0
      %v3330 = vmin.f32 %v1804, 0.0
      %v3331 = vmin.f32 %v2013, 0.0
      %v3332 = vmin.f32 %v2222, 0.0
      %v3333 = vmin.f32 %v2431, 0.0
      %v3334 = vmin.f32 %v2640, 0.0
      %v3335 = vmin.f32 %v2849, 0.0
      %v3336 = vmin.f32 %v3058, 0.0
      %v3337 = vmin.f32 %v1598, 0.0
      %v3338 = vmin.f32 %v1807, 0.0
      %v3339 = vmin.f32 %v2016, 0.0
      %v3340 = vmin.f32 %v2225, 0.0
      %v3341 = vmin.f32 %v2434, 0.0
      %v3342 = vmin.f32 %v2643, 0.0
      %v3343 = vmin.f32 %v2852, 0.0
      %v3344 = vmin.f32 %v3061, 0.0
      %v3345 = vmin.f32 %v1601, 0.0
      %v3346 = vmin.f32 %v1810, 0.0
      %v3347 = vmin.f32 %v2019, 0.0
      %v3348 = vmin.f32 %v2228, 0.0
      %v3349 = vmin.f32 %v2437, 0.0
      %v3350 = vmin.f32 %v2646, 0.0
      %v3351 = vmin.f32 %v2855, 0.0
      %v3352 = vmin.f32 %v3064, 0.0
      %v3353 = vmin.f32 %v1604, 0.0
      %v3354 = vmin.f32 %v1813, 0.0
      %v3355 = vmin.f32 %v2022, 0.0
      %v3356 = vmin.f32 %v2231, 0.0
      %v3357 = vmin.f32 %v2440, 0.0
      %v3358 = vmin.f32 %v2649, 0.0
      %v3359 = vmin.f32 %v2858, 0.0
      %v3360 = vmin.f32 %v3067, 0.0
      %v3361 = vmin.f32 %v1607, 0.0
      %v3362 = vmin.f32 %v1816, 0.0
      %v3363 = vmin.f32 %v2025, 0.0
      %v3364 = vmin.f32 %v2234, 0.0
      %v3365 = vmin.f32 %v2443, 0.0
      %v3366 = vmin.f32 %v2652, 0.0
      %v3367 = vmin.f32 %v2861, 0.0
      %v3368 = vmin.f32 %v3070, 0.0
      %v3369 = vmin.f32 %v1610, 0.0
      %v3370 = vmin.f32 %v1819, 0.0
      %v3371 = vmin.f32 %v2028, 0.0
      %v3372 = vmin.f32 %v2237, 0.0
      %v3373 = vmin.f32 %v2446, 0.0
      %v3374 = vmin.f32 %v2655, 0.0
      %v3375 = vmin.f32 %v2864, 0.0
      %v3376 = vmin.f32 %v3073, 0.0
      %v3377 = vmin.f32 %v1613, 0.0
      %v3378 = vmin.f32 %v1822, 0.0
      %v3379 = vmin.f32 %v2031, 0.0
      %v3380 = vmin.f32 %v2240, 0.0
      %v3381 = vmin.f32 %v2449, 0.0
      %v3382 = vmin.f32 %v2658, 0.0
      %v3383 = vmin.f32 %v2867, 0.0
      %v3384 = vmin.f32 %v3076, 0.0
      %v3385 = vmin.f32 %v1616, 0.0
      %v3386 = vmin.f32 %v1825, 0.0
      %v3387 = vmin.f32 %v2034, 0.0
      %v3388 = vmin.f32 %v2243, 0.0
      %v3389 = vmin.f32 %v2452, 0.0
      %v3390 = vmin.f32 %v2661, 0.0
      %v3391 = vmin.f32 %v2870, 0.0
      %v3392 = vmin.f32 %v3079, 0.0
      %v3393 = vmin.f32 %v1619, 0.0
      %v3394 = vmin.f32 %v1828, 0.0
      %v3395 = vmin.f32 %v2037, 0.0
      %v3396 = vmin.f32 %v2246, 0.0
      %v3397 = vmin.f32 %v2455, 0.0
      %v3398 = vmin.f32 %v2664, 0.0
      %v3399 = vmin.f32 %v2873, 0.0
      %v3400 = vmin.f32 %v3082, 0.0
      %v3401 = vmin.f32 %v1622, 0.0
      %v3402 = vmin.f32 %v1831, 0.0
      %v3403 = vmin.f32 %v2040, 0.0
      %v3404 = vmin.f32 %v2249, 0.0
      %v3405 = vmin.f32 %v2458, 0.0
      %v3406 = vmin.f32 %v2667, 0.0
      %v3407 = vmin.f32 %v2876, 0.0
      %v3408 = vmin.f32 %v3085, 0.0
      %v3409 = vmin.f32 %v1625, 0.0
      %v3410 = vmin.f32 %v1834, 0.0
      %v3411 = vmin.f32 %v2043, 0.0
      %v3412 = vmin.f32 %v2252, 0.0
      %v3413 = vmin.f32 %v2461, 0.0
      %v3414 = vmin.f32 %v2670, 0.0
      %v3415 = vmin.f32 %v2879, 0.0
      %v3416 = vmin.f32 %v3088, 0.0
      %v3417 = vmin.f32 %v1628, 0.0
      %v3418 = vmin.f32 %v1837, 0.0
      %v3419 = vmin.f32 %v2046, 0.0
      %v3420 = vmin.f32 %v2255, 0.0
      %v3421 = vmin.f32 %v2464, 0.0
      %v3422 = vmin.f32 %v2673, 0.0
      %v3423 = vmin.f32 %v2882, 0.0
      %v3424 = vmin.f32 %v3091, 0.0
      %v3425 = vmin.f32 %v1631, 0.0
      %v3426 = vmin.f32 %v1840, 0.0
      %v3427 = vmin.f32 %v2049, 0.0
      %v3428 = vmin.f32 %v2258, 0.0
      %v3429 = vmin.f32 %v2467, 0.0
      %v3430 = vmin.f32 %v2676, 0.0
      %v3431 = vmin.f32 %v2885, 0.0
      %v3432 = vmin.f32 %v3094, 0.0
      %v3433 = vmin.f32 %v1634, 0.0
      %v3434 = vmin.f32 %v1843, 0.0
      %v3435 = vmin.f32 %v2052, 0.0
      %v3436 = vmin.f32 %v2261, 0.0
      %v3437 = vmin.f32 %v2470, 0.0
      %v3438 = vmin.f32 %v2679, 0.0
      %v3439 = vmin.f32 %v2888, 0.0
      %v3440 = vmin.f32 %v3097, 0.0
      %v3441 = vmin.f32 %v1637, 0.0
      %v3442 = vmin.f32 %v1846, 0.0
      %v3443 = vmin.f32 %v2055, 0.0
      %v3444 = vmin.f32 %v2264, 0.0
      %v3445 = vmin.f32 %v2473, 0.0
      %v3446 = vmin.f32 %v2682, 0.0
      %v3447 = vmin.f32 %v2891, 0.0
      %v3448 = vmin.f32 %v3100, 0.0
      %v3449 = vmin.f32 %v1640, 0.0
      %v3450 = vmin.f32 %v1849, 0.0
      %v3451 = vmin.f32 %v2058, 0.0
      %v3452 = vmin.f32 %v2267, 0.0
      %v3453 = vmin.f32 %v2476, 0.0
      %v3454 = vmin.f32 %v2685, 0.0
      %v3455 = vmin.f32 %v2894, 0.0
      %v3456 = vmin.f32 %v3103, 0.0
      %v3457 = vmin.f32 %v1643, 0.0
      %v3458 = vmin.f32 %v1852, 0.0
      %v3459 = vmin.f32 %v2061, 0.0
      %v3460 = vmin.f32 %v2270, 0.0
      %v3461 = vmin.f32 %v2479, 0.0
      %v3462 = vmin.f32 %v2688, 0.0
      %v3463 = vmin.f32 %v2897, 0.0
      %v3464 = vmin.f32 %v3106, 0.0
      %v3465 = vmin.f32 %v1646, 0.0
      %v3466 = vmin.f32 %v1855, 0.0
      %v3467 = vmin.f32 %v2064, 0.0
      %v3468 = vmin.f32 %v2273, 0.0
      %v3469 = vmin.f32 %v2482, 0.0
      %v3470 = vmin.f32 %v2691, 0.0
      %v3471 = vmin.f32 %v2900, 0.0
      %v3472 = vmin.f32 %v3109, 0.0
      %v3473 = vmin.f32 %v1649, 0.0
      %v3474 = vmin.f32 %v1858, 0.0
      %v3475 = vmin.f32 %v2067, 0.0
      %v3476 = vmin.f32 %v2276, 0.0
      %v3477 = vmin.f32 %v2485, 0.0
      %v3478 = vmin.f32 %v2694, 0.0
      %v3479 = vmin.f32 %v2903, 0.0
      %v3480 = vmin.f32 %v3112, 0.0
      %v3481 = vmin.f32 %v1652, 0.0
      %v3482 = vmin.f32 %v1861, 0.0
      %v3483 = vmin.f32 %v2070, 0.0
      %v3484 = vmin.f32 %v2279, 0.0
      %v3485 = vmin.f32 %v2488, 0.0
      %v3486 = vmin.f32 %v2697, 0.0
      %v3487 = vmin.f32 %v2906, 0.0
      %v3488 = vmin.f32 %v3115, 0.0
      %v3489 = vmin.f32 %v1655, 0.0
      %v3490 = vmin.f32 %v1864, 0.0
      %v3491 = vmin.f32 %v2073, 0.0
      %v3492 = vmin.f32 %v2282, 0.0
      %v3493 = vmin.f32 %v2491, 0.0
      %v3494 = vmin.f32 %v2700, 0.0
      %v3495 = vmin.f32 %v2909, 0.0
      %v3496 = vmin.f32 %v3118, 0.0
      %v3497 = vmin.f32 %v1658, 0.0
      %v3498 = vmin.f32 %v1867, 0.0
      %v3499 = vmin.f32 %v2076, 0.0
      %v3500 = vmin.f32 %v2285, 0.0
      %v3501 = vmin.f32 %v2494, 0.0
      %v3502 = vmin.f32 %v2703, 0.0
      %v3503 = vmin.f32 %v2912, 0.0
      %v3504 = vmin.f32 %v3121, 0.0
      %v3505 = vmin.f32 %v1661, 0.0
      %v3506 = vmin.f32 %v1870, 0.0
      %v3507 = vmin.f32 %v2079, 0.0
      %v3508 = vmin.f32 %v2288, 0.0
      %v3509 = vmin.f32 %v2497, 0.0
      %v3510 = vmin.f32 %v2706, 0.0
      %v3511 = vmin.f32 %v2915, 0.0
      %v3512 = vmin.f32 %v3124, 0.0
      %v3513 = vmin.f32 %v1664, 0.0
      %v3514 = vmin.f32 %v1873, 0.0
      %v3515 = vmin.f32 %v2082, 0.0
      %v3516 = vmin.f32 %v2291, 0.0
      %v3517 = vmin.f32 %v2500, 0.0
      %v3518 = vmin.f32 %v2709, 0.0
      %v3519 = vmin.f32 %v2918, 0.0
      %v3520 = vmin.f32 %v3127, 0.0
      %v3521 = vmin.f32 %v1667, 0.0
      %v3522 = vmin.f32 %v1876, 0.0
      %v3523 = vmin.f32 %v2085, 0.0
      %v3524 = vmin.f32 %v2294, 0.0
      %v3525 = vmin.f32 %v2503, 0.0
      %v3526 = vmin.f32 %v2712, 0.0
      %v3527 = vmin.f32 %v2921, 0.0
      %v3528 = vmin.f32 %v3130, 0.0
      %v3529 = vmin.f32 %v1670, 0.0
      %v3530 = vmin.f32 %v1879, 0.0
      %v3531 = vmin.f32 %v2088, 0.0
      %v3532 = vmin.f32 %v2297, 0.0
      %v3533 = vmin.f32 %v2506, 0.0
      %v3534 = vmin.f32 %v2715, 0.0
      %v3535 = vmin.f32 %v2924, 0.0
      %v3536 = vmin.f32 %v3133, 0.0
      %v3537 = vmin.f32 %v1673, 0.0
      %v3538 = vmin.f32 %v1882, 0.0
      %v3539 = vmin.f32 %v2091, 0.0
      %v3540 = vmin.f32 %v2300, 0.0
      %v3541 = vmin.f32 %v2509, 0.0
      %v3542 = vmin.f32 %v2718, 0.0
      %v3543 = vmin.f32 %v2927, 0.0
      %v3544 = vmin.f32 %v3136, 0.0
      %v3545 = vmin.f32 %v1676, 0.0
      %v3546 = vmin.f32 %v1885, 0.0
      %v3547 = vmin.f32 %v2094, 0.0
      %v3548 = vmin.f32 %v2303, 0.0
      %v3549 = vmin.f32 %v2512, 0.0
      %v3550 = vmin.f32 %v2721, 0.0
      %v3551 = vmin.f32 %v2930, 0.0
      %v3552 = vmin.f32 %v3139, 0.0
      %v3553 = vmin.f32 %v1679, 0.0
      %v3554 = vmin.f32 %v1888, 0.0
      %v3555 = vmin.f32 %v2097, 0.0
      %v3556 = vmin.f32 %v2306, 0.0
      %v3557 = vmin.f32 %v2515, 0.0
      %v3558 = vmin.f32 %v2724, 0.0
      %v3559 = vmin.f32 %v2933, 0.0
      %v3560 = vmin.f32 %v3142, 0.0
      %v3561 = vmin.f32 %v1682, 0.0
      %v3562 = vmin.f32 %v1891, 0.0
      %v3563 = vmin.f32 %v2100, 0.0
      %v3564 = vmin.f32 %v2309, 0.0
      %v3565 = vmin.f32 %v2518, 0.0
      %v3566 = vmin.f32 %v2727, 0.0
      %v3567 = vmin.f32 %v2936, 0.0
      %v3568 = vmin.f32 %v3145, 0.0
      %v3569 = vmin.f32 %v1685, 0.0
      %v3570 = vmin.f32 %v1894, 0.0
      %v3571 = vmin.f32 %v2103, 0.0
      %v3572 = vmin.f32 %v2312, 0.0
      %v3573 = vmin.f32 %v2521, 0.0
      %v3574 = vmin.f32 %v2730, 0.0
      %v3575 = vmin.f32 %v2939, 0.0
      %v3576 = vmin.f32 %v3148, 0.0
      %v3577 = vmin.f32 %v1688, 0.0
      %v3578 = vmin.f32 %v1897, 0.0
      %v3579 = vmin.f32 %v2106, 0.0
      %v3580 = vmin.f32 %v2315, 0.0
      %v3581 = vmin.f32 %v2524, 0.0
      %v3582 = vmin.f32 %v2733, 0.0
      %v3583 = vmin.f32 %v2942, 0.0
      %v3584 = vmin.f32 %v3151, 0.0
      %v3585 = vmin.f32 %v1691, 0.0
      %v3586 = vmin.f32 %v1900, 0.0
      %v3587 = vmin.f32 %v2109, 0.0
      %v3588 = vmin.f32 %v2318, 0.0
      %v3589 = vmin.f32 %v2527, 0.0
      %v3590 = vmin.f32 %v2736, 0.0
      %v3591 = vmin.f32 %v2945, 0.0
      %v3592 = vmin.f32 %v3154, 0.0
      %v3593 = vmin.f32 %v1694, 0.0
      %v3594 = vmin.f32 %v1903, 0.0
      %v3595 = vmin.f32 %v2112, 0.0
      %v3596 = vmin.f32 %v2321, 0.0
      %v3597 = vmin.f32 %v2530, 0.0
      %v3598 = vmin.f32 %v2739, 0.0
      %v3599 = vmin.f32 %v2948, 0.0
      %v3600 = vmin.f32 %v3157, 0.0
      %v3601 = vmin.f32 %v1697, 0.0
      %v3602 = vmin.f32 %v1906, 0.0
      %v3603 = vmin.f32 %v2115, 0.0
      %v3604 = vmin.f32 %v2324, 0.0
      %v3605 = vmin.f32 %v2533, 0.0
      %v3606 = vmin.f32 %v2742, 0.0
      %v3607 = vmin.f32 %v2951, 0.0
      %v3608 = vmin.f32 %v3160, 0.0
      %v3609 = vmin.f32 %v1700, 0.0
      %v3610 = vmin.f32 %v1909, 0.0
      %v3611 = vmin.f32 %v2118, 0.0
      %v3612 = vmin.f32 %v2327, 0.0
      %v3613 = vmin.f32 %v2536, 0.0
      %v3614 = vmin.f32 %v2745, 0.0
      %v3615 = vmin.f32 %v2954, 0.0
      %v3616 = vmin.f32 %v3163, 0.0
      %v3617 = vmin.f32 %v1703, 0.0
      %v3618 = vmin.f32 %v1912, 0.0
      %v3619 = vmin.f32 %v2121, 0.0
      %v3620 = vmin.f32 %v2330, 0.0
      %v3621 = vmin.f32 %v2539, 0.0
      %v3622 = vmin.f32 %v2748, 0.0
      %v3623 = vmin.f32 %v2957, 0.0
      %v3624 = vmin.f32 %v3166, 0.0
      %v3625 = vmin.f32 %v1706, 0.0
      %v3626 = vmin.f32 %v1915, 0.0
      %v3627 = vmin.f32 %v2124, 0.0
      %v3628 = vmin.f32 %v2333, 0.0
      %v3629 = vmin.f32 %v2542, 0.0
      %v3630 = vmin.f32 %v2751, 0.0
      %v3631 = vmin.f32 %v2960, 0.0
      %v3632 = vmin.f32 %v3169, 0.0
      %v3633 = vmin.f32 %v1709, 0.0
      %v3634 = vmin.f32 %v1918, 0.0
      %v3635 = vmin.f32 %v2127, 0.0
      %v3636 = vmin.f32 %v2336, 0.0
      %v3637 = vmin.f32 %v2545, 0.0
      %v3638 = vmin.f32 %v2754, 0.0
      %v3639 = vmin.f32 %v2963, 0.0
      %v3640 = vmin.f32 %v3172, 0.0
      %v3641 = vmin.f32 %v1712, 0.0
      %v3642 = vmin.f32 %v1921, 0.0
      %v3643 = vmin.f32 %v2130, 0.0
      %v3644 = vmin.f32 %v2339, 0.0
      %v3645 = vmin.f32 %v2548, 0.0
      %v3646 = vmin.f32 %v2757, 0.0
      %v3647 = vmin.f32 %v2966, 0.0
      %v3648 = vmin.f32 %v3175, 0.0
      %v3649 = vmin.f32 %v1715, 0.0
      %v3650 = vmin.f32 %v1924, 0.0
      %v3651 = vmin.f32 %v2133, 0.0
      %v3652 = vmin.f32 %v2342, 0.0
      %v3653 = vmin.f32 %v2551, 0.0
      %v3654 = vmin.f32 %v2760, 0.0
      %v3655 = vmin.f32 %v2969, 0.0
      %v3656 = vmin.f32 %v3178, 0.0
      %v3657 = vmin.f32 %v1718, 0.0
      %v3658 = vmin.f32 %v1927, 0.0
      %v3659 = vmin.f32 %v2136, 0.0
      %v3660 = vmin.f32 %v2345, 0.0
      %v3661 = vmin.f32 %v2554, 0.0
      %v3662 = vmin.f32 %v2763, 0.0
      %v3663 = vmin.f32 %v2972, 0.0
      %v3664 = vmin.f32 %v3181, 0.0
      %v3665 = vmin.f32 %v1721, 0.0
      %v3666 = vmin.f32 %v1930, 0.0
      %v3667 = vmin.f32 %v2139, 0.0
      %v3668 = vmin.f32 %v2348, 0.0
      %v3669 = vmin.f32 %v2557, 0.0
      %v3670 = vmin.f32 %v2766, 0.0
      %v3671 = vmin.f32 %v2975, 0.0
      %v3672 = vmin.f32 %v3184, 0.0
      %v3673 = vmin.f32 %v1724, 0.0
      %v3674 = vmin.f32 %v1933, 0.0
      %v3675 = vmin.f32 %v2142, 0.0
      %v3676 = vmin.f32 %v2351, 0.0
      %v3677 = vmin.f32 %v2560, 0.0
      %v3678 = vmin.f32 %v2769, 0.0
      %v3679 = vmin.f32 %v2978, 0.0
      %v3680 = vmin.f32 %v3187, 0.0
      %v3681 = vmin.f32 %v1727, 0.0
      %v3682 = vmin.f32 %v1936, 0.0
      %v3683 = vmin.f32 %v2145, 0.0
      %v3684 = vmin.f32 %v2354, 0.0
      %v3685 = vmin.f32 %v2563, 0.0
      %v3686 = vmin.f32 %v2772, 0.0
      %v3687 = vmin.f32 %v2981, 0.0
      %v3688 = vmin.f32 %v3190, 0.0
      %v3689 = vmin.f32 %v1730, 0.0
      %v3690 = vmin.f32 %v1939, 0.0
      %v3691 = vmin.f32 %v2148, 0.0
      %v3692 = vmin.f32 %v2357, 0.0
      %v3693 = vmin.f32 %v2566, 0.0
      %v3694 = vmin.f32 %v2775, 0.0
      %v3695 = vmin.f32 %v2984, 0.0
      %v3696 = vmin.f32 %v3193, 0.0
      %v3697 = vmin.f32 %v1733, 0.0
      %v3698 = vmin.f32 %v1942, 0.0
      %v3699 = vmin.f32 %v2151, 0.0
      %v3700 = vmin.f32 %v2360, 0.0
      %v3701 = vmin.f32 %v2569, 0.0
      %v3702 = vmin.f32 %v2778, 0.0
      %v3703 = vmin.f32 %v2987, 0.0
      %v3704 = vmin.f32 %v3196, 0.0
      %v3705 = vmin.f32 %v1736, 0.0
      %v3706 = vmin.f32 %v1945, 0.0
      %v3707 = vmin.f32 %v2154, 0.0
      %v3708 = vmin.f32 %v2363, 0.0
      %v3709 = vmin.f32 %v2572, 0.0
      %v3710 = vmin.f32 %v2781, 0.0
      %v3711 = vmin.f32 %v2990, 0.0
      %v3712 = vmin.f32 %v3199, 0.0
      %v3713 = vmul.f32 %v3201, 1.442695
      %v3714 = vpow.pop %v3713
      %v3715 = vmul.f32 %v3202, 1.442695
      %v3716 = vpow.pop %v3715
      %v3717 = vmul.f32 %v3203, 1.442695
      %v3718 = vpow.pop %v3717
      %v3719 = vmul.f32 %v3204, 1.442695
      %v3720 = vpow.pop %v3719
      %v3721 = vmul.f32 %v3205, 1.442695
      %v3722 = vpow.pop %v3721
      %v3723 = vmul.f32 %v3206, 1.442695
      %v3724 = vpow.pop %v3723
      %v3725 = vmul.f32 %v3207, 1.442695
      %v3726 = vpow.pop %v3725
      %v3727 = vmul.f32 %v3208, 1.442695
      %v3728 = vpow.pop %v3727
      %v3729 = vmul.f32 %v3209, 1.442695
      %v3730 = vpow.pop %v3729
      %v3731 = vmul.f32 %v3210, 1.442695
      %v3732 = vpow.pop %v3731
      %v3733 = vmul.f32 %v3211, 1.442695
      %v3734 = vpow.pop %v3733
      %v3735 = vmul.f32 %v3212, 1.442695
      %v3736 = vpow.pop %v3735
      %v3737 = vmul.f32 %v3213, 1.442695
      %v3738 = vpow.pop %v3737
      %v3739 = vmul.f32 %v3214, 1.442695
      %v3740 = vpow.pop %v3739
      %v3741 = vmul.f32 %v3215, 1.442695
      %v3742 = vpow.pop %v3741
      %v3743 = vmul.f32 %v3216, 1.442695
      %v3744 = vpow.pop %v3743
      %v3745 = vmul.f32 %v3217, 1.442695
      %v3746 = vpow.pop %v3745
      %v3747 = vmul.f32 %v3218, 1.442695
      %v3748 = vpow.pop %v3747
      %v3749 = vmul.f32 %v3219, 1.442695
      %v3750 = vpow.pop %v3749
      %v3751 = vmul.f32 %v3220, 1.442695
      %v3752 = vpow.pop %v3751
      %v3753 = vmul.f32 %v3221, 1.442695
      %v3754 = vpow.pop %v3753
      %v3755 = vmul.f32 %v3222, 1.442695
      %v3756 = vpow.pop %v3755
      %v3757 = vmul.f32 %v3223, 1.442695
      %v3758 = vpow.pop %v3757
      %v3759 = vmul.f32 %v3224, 1.442695
      %v3760 = vpow.pop %v3759
      %v3761 = vmul.f32 %v3225, 1.442695
      %v3762 = vpow.pop %v3761
      %v3763 = vmul.f32 %v3226, 1.442695
      %v3764 = vpow.pop %v3763
      %v3765 = vmul.f32 %v3227, 1.442695
      %v3766 = vpow.pop %v3765
      %v3767 = vmul.f32 %v3228, 1.442695
      %v3768 = vpow.pop %v3767
      %v3769 = vmul.f32 %v3229, 1.442695
      %v3770 = vpow.pop %v3769
      %v3771 = vmul.f32 %v3230, 1.442695
      %v3772 = vpow.pop %v3771
      %v3773 = vmul.f32 %v3231, 1.442695
      %v3774 = vpow.pop %v3773
      %v3775 = vmul.f32 %v3232, 1.442695
      %v3776 = vpow.pop %v3775
      %v3777 = vmul.f32 %v3233, 1.442695
      %v3778 = vpow.pop %v3777
      %v3779 = vmul.f32 %v3234, 1.442695
      %v3780 = vpow.pop %v3779
      %v3781 = vmul.f32 %v3235, 1.442695
      %v3782 = vpow.pop %v3781
      %v3783 = vmul.f32 %v3236, 1.442695
      %v3784 = vpow.pop %v3783
      %v3785 = vmul.f32 %v3237, 1.442695
      %v3786 = vpow.pop %v3785
      %v3787 = vmul.f32 %v3238, 1.442695
      %v3788 = vpow.pop %v3787
      %v3789 = vmul.f32 %v3239, 1.442695
      %v3790 = vpow.pop %v3789
      %v3791 = vmul.f32 %v3240, 1.442695
      %v3792 = vpow.pop %v3791
      %v3793 = vmul.f32 %v3241, 1.442695
      %v3794 = vpow.pop %v3793
      %v3795 = vmul.f32 %v3242, 1.442695
      %v3796 = vpow.pop %v3795
      %v3797 = vmul.f32 %v3243, 1.442695
      %v3798 = vpow.pop %v3797
      %v3799 = vmul.f32 %v3244, 1.442695
      %v3800 = vpow.pop %v3799
      %v3801 = vmul.f32 %v3245, 1.442695
      %v3802 = vpow.pop %v3801
      %v3803 = vmul.f32 %v3246, 1.442695
      %v3804 = vpow.pop %v3803
      %v3805 = vmul.f32 %v3247, 1.442695
      %v3806 = vpow.pop %v3805
      %v3807 = vmul.f32 %v3248, 1.442695
      %v3808 = vpow.pop %v3807
      %v3809 = vmul.f32 %v3249, 1.442695
      %v3810 = vpow.pop %v3809
      %v3811 = vmul.f32 %v3250, 1.442695
      %v3812 = vpow.pop %v3811
      %v3813 = vmul.f32 %v3251, 1.442695
      %v3814 = vpow.pop %v3813
      %v3815 = vmul.f32 %v3252, 1.442695
      %v3816 = vpow.pop %v3815
      %v3817 = vmul.f32 %v3253, 1.442695
      %v3818 = vpow.pop %v3817
      %v3819 = vmul.f32 %v3254, 1.442695
      %v3820 = vpow.pop %v3819
      %v3821 = vmul.f32 %v3255, 1.442695
      %v3822 = vpow.pop %v3821
      %v3823 = vmul.f32 %v3256, 1.442695
      %v3824 = vpow.pop %v3823
      %v3825 = vmul.f32 %v3257, 1.442695
      %v3826 = vpow.pop %v3825
      %v3827 = vmul.f32 %v3258, 1.442695
      %v3828 = vpow.pop %v3827
      %v3829 = vmul.f32 %v3259, 1.442695
      %v3830 = vpow.pop %v3829
      %v3831 = vmul.f32 %v3260, 1.442695
      %v3832 = vpow.pop %v3831
      %v3833 = vmul.f32 %v3261, 1.442695
      %v3834 = vpow.pop %v3833
      %v3835 = vmul.f32 %v3262, 1.442695
      %v3836 = vpow.pop %v3835
      %v3837 = vmul.f32 %v3263, 1.442695
      %v3838 = vpow.pop %v3837
      %v3839 = vmul.f32 %v3264, 1.442695
      %v3840 = vpow.pop %v3839
      %v3841 = vmul.f32 %v3265, 1.442695
      %v3842 = vpow.pop %v3841
      %v3843 = vmul.f32 %v3266, 1.442695
      %v3844 = vpow.pop %v3843
      %v3845 = vmul.f32 %v3267, 1.442695
      %v3846 = vpow.pop %v3845
      %v3847 = vmul.f32 %v3268, 1.442695
      %v3848 = vpow.pop %v3847
      %v3849 = vmul.f32 %v3269, 1.442695
      %v3850 = vpow.pop %v3849
      %v3851 = vmul.f32 %v3270, 1.442695
      %v3852 = vpow.pop %v3851
      %v3853 = vmul.f32 %v3271, 1.442695
      %v3854 = vpow.pop %v3853
      %v3855 = vmul.f32 %v3272, 1.442695
      %v3856 = vpow.pop %v3855
      %v3857 = vmul.f32 %v3273, 1.442695
      %v3858 = vpow.pop %v3857
      %v3859 = vmul.f32 %v3274, 1.442695
      %v3860 = vpow.pop %v3859
      %v3861 = vmul.f32 %v3275, 1.442695
      %v3862 = vpow.pop %v3861
      %v3863 = vmul.f32 %v3276, 1.442695
      %v3864 = vpow.pop %v3863
      %v3865 = vmul.f32 %v3277, 1.442695
      %v3866 = vpow.pop %v3865
      %v3867 = vmul.f32 %v3278, 1.442695
      %v3868 = vpow.pop %v3867
      %v3869 = vmul.f32 %v3279, 1.442695
      %v3870 = vpow.pop %v3869
      %v3871 = vmul.f32 %v3280, 1.442695
      %v3872 = vpow.pop %v3871
      %v3873 = vmul.f32 %v3281, 1.442695
      %v3874 = vpow.pop %v3873
      %v3875 = vmul.f32 %v3282, 1.442695
      %v3876 = vpow.pop %v3875
      %v3877 = vmul.f32 %v3283, 1.442695
      %v3878 = vpow.pop %v3877
      %v3879 = vmul.f32 %v3284, 1.442695
      %v3880 = vpow.pop %v3879
      %v3881 = vmul.f32 %v3285, 1.442695
      %v3882 = vpow.pop %v3881
      %v3883 = vmul.f32 %v3286, 1.442695
      %v3884 = vpow.pop %v3883
      %v3885 = vmul.f32 %v3287, 1.442695
      %v3886 = vpow.pop %v3885
      %v3887 = vmul.f32 %v3288, 1.442695
      %v3888 = vpow.pop %v3887
      %v3889 = vmul.f32 %v3289, 1.442695
      %v3890 = vpow.pop %v3889
      %v3891 = vmul.f32 %v3290, 1.442695
      %v3892 = vpow.pop %v3891
      %v3893 = vmul.f32 %v3291, 1.442695
      %v3894 = vpow.pop %v3893
      %v3895 = vmul.f32 %v3292, 1.442695
      %v3896 = vpow.pop %v3895
      %v3897 = vmul.f32 %v3293, 1.442695
      %v3898 = vpow.pop %v3897
      %v3899 = vmul.f32 %v3294, 1.442695
      %v3900 = vpow.pop %v3899
      %v3901 = vmul.f32 %v3295, 1.442695
      %v3902 = vpow.pop %v3901
      %v3903 = vmul.f32 %v3296, 1.442695
      %v3904 = vpow.pop %v3903
      %v3905 = vmul.f32 %v3297, 1.442695
      %v3906 = vpow.pop %v3905
      %v3907 = vmul.f32 %v3298, 1.442695
      %v3908 = vpow.pop %v3907
      %v3909 = vmul.f32 %v3299, 1.442695
      %v3910 = vpow.pop %v3909
      %v3911 = vmul.f32 %v3300, 1.442695
      %v3912 = vpow.pop %v3911
      %v3913 = vmul.f32 %v3301, 1.442695
      %v3914 = vpow.pop %v3913
      %v3915 = vmul.f32 %v3302, 1.442695
      %v3916 = vpow.pop %v3915
      %v3917 = vmul.f32 %v3303, 1.442695
      %v3918 = vpow.pop %v3917
      %v3919 = vmul.f32 %v3304, 1.442695
      %v3920 = vpow.pop %v3919
      %v3921 = vmul.f32 %v3305, 1.442695
      %v3922 = vpow.pop %v3921
      %v3923 = vmul.f32 %v3306, 1.442695
      %v3924 = vpow.pop %v3923
      %v3925 = vmul.f32 %v3307, 1.442695
      %v3926 = vpow.pop %v3925
      %v3927 = vmul.f32 %v3308, 1.442695
      %v3928 = vpow.pop %v3927
      %v3929 = vmul.f32 %v3309, 1.442695
      %v3930 = vpow.pop %v3929
      %v3931 = vmul.f32 %v3310, 1.442695
      %v3932 = vpow.pop %v3931
      %v3933 = vmul.f32 %v3311, 1.442695
      %v3934 = vpow.pop %v3933
      %v3935 = vmul.f32 %v3312, 1.442695
      %v3936 = vpow.pop %v3935
      %v3937 = vmul.f32 %v3313, 1.442695
      %v3938 = vpow.pop %v3937
      %v3939 = vmul.f32 %v3314, 1.442695
      %v3940 = vpow.pop %v3939
      %v3941 = vmul.f32 %v3315, 1.442695
      %v3942 = vpow.pop %v3941
      %v3943 = vmul.f32 %v3316, 1.442695
      %v3944 = vpow.pop %v3943
      %v3945 = vmul.f32 %v3317, 1.442695
      %v3946 = vpow.pop %v3945
      %v3947 = vmul.f32 %v3318, 1.442695
      %v3948 = vpow.pop %v3947
      %v3949 = vmul.f32 %v3319, 1.442695
      %v3950 = vpow.pop %v3949
      %v3951 = vmul.f32 %v3320, 1.442695
      %v3952 = vpow.pop %v3951
      %v3953 = vmul.f32 %v3321, 1.442695
      %v3954 = vpow.pop %v3953
      %v3955 = vmul.f32 %v3322, 1.442695
      %v3956 = vpow.pop %v3955
      %v3957 = vmul.f32 %v3323, 1.442695
      %v3958 = vpow.pop %v3957
      %v3959 = vmul.f32 %v3324, 1.442695
      %v3960 = vpow.pop %v3959
      %v3961 = vmul.f32 %v3325, 1.442695
      %v3962 = vpow.pop %v3961
      %v3963 = vmul.f32 %v3326, 1.442695
      %v3964 = vpow.pop %v3963
      %v3965 = vmul.f32 %v3327, 1.442695
      %v3966 = vpow.pop %v3965
      %v3967 = vmul.f32 %v3328, 1.442695
      %v3968 = vpow.pop %v3967
      %v3969 = vmul.f32 %v3329, 1.442695
      %v3970 = vpow.pop %v3969
      %v3971 = vmul.f32 %v3330, 1.442695
      %v3972 = vpow.pop %v3971
      %v3973 = vmul.f32 %v3331, 1.442695
      %v3974 = vpow.pop %v3973
      %v3975 = vmul.f32 %v3332, 1.442695
      %v3976 = vpow.pop %v3975
      %v3977 = vmul.f32 %v3333, 1.442695
      %v3978 = vpow.pop %v3977
      %v3979 = vmul.f32 %v3334, 1.442695
      %v3980 = vpow.pop %v3979
      %v3981 = vmul.f32 %v3335, 1.442695
      %v3982 = vpow.pop %v3981
      %v3983 = vmul.f32 %v3336, 1.442695
      %v3984 = vpow.pop %v3983
      %v3985 = vmul.f32 %v3337, 1.442695
      %v3986 = vpow.pop %v3985
      %v3987 = vmul.f32 %v3338, 1.442695
      %v3988 = vpow.pop %v3987
      %v3989 = vmul.f32 %v3339, 1.442695
      %v3990 = vpow.pop %v3989
      %v3991 = vmul.f32 %v3340, 1.442695
      %v3992 = vpow.pop %v3991
      %v3993 = vmul.f32 %v3341, 1.442695
      %v3994 = vpow.pop %v3993
      %v3995 = vmul.f32 %v3342, 1.442695
      %v3996 = vpow.pop %v3995
      %v3997 = vmul.f32 %v3343, 1.442695
      %v3998 = vpow.pop %v3997
      %v3999 = vmul.f32 %v3344, 1.442695
      %v4000 = vpow.pop %v3999
      %v4001 = vmul.f32 %v3345, 1.442695
      %v4002 = vpow.pop %v4001
      %v4003 = vmul.f32 %v3346, 1.442695
      %v4004 = vpow.pop %v4003
      %v4005 = vmul.f32 %v3347, 1.442695
      %v4006 = vpow.pop %v4005
      %v4007 = vmul.f32 %v3348, 1.442695
      %v4008 = vpow.pop %v4007
      %v4009 = vmul.f32 %v3349, 1.442695
      %v4010 = vpow.pop %v4009
      %v4011 = vmul.f32 %v3350, 1.442695
      %v4012 = vpow.pop %v4011
      %v4013 = vmul.f32 %v3351, 1.442695
      %v4014 = vpow.pop %v4013
      %v4015 = vmul.f32 %v3352, 1.442695
      %v4016 = vpow.pop %v4015
      %v4017 = vmul.f32 %v3353, 1.442695
      %v4018 = vpow.pop %v4017
      %v4019 = vmul.f32 %v3354, 1.442695
      %v4020 = vpow.pop %v4019
      %v4021 = vmul.f32 %v3355, 1.442695
      %v4022 = vpow.pop %v4021
      %v4023 = vmul.f32 %v3356, 1.442695
      %v4024 = vpow.pop %v4023
      %v4025 = vmul.f32 %v3357, 1.442695
      %v4026 = vpow.pop %v4025
      %v4027 = vmul.f32 %v3358, 1.442695
      %v4028 = vpow.pop %v4027
      %v4029 = vmul.f32 %v3359, 1.442695
      %v4030 = vpow.pop %v4029
      %v4031 = vmul.f32 %v3360, 1.442695
      %v4032 = vpow.pop %v4031
      %v4033 = vmul.f32 %v3361, 1.442695
      %v4034 = vpow.pop %v4033
      %v4035 = vmul.f32 %v3362, 1.442695
      %v4036 = vpow.pop %v4035
      %v4037 = vmul.f32 %v3363, 1.442695
      %v4038 = vpow.pop %v4037
      %v4039 = vmul.f32 %v3364, 1.442695
      %v4040 = vpow.pop %v4039
      %v4041 = vmul.f32 %v3365, 1.442695
      %v4042 = vpow.pop %v4041
      %v4043 = vmul.f32 %v3366, 1.442695
      %v4044 = vpow.pop %v4043
      %v4045 = vmul.f32 %v3367, 1.442695
      %v4046 = vpow.pop %v4045
      %v4047 = vmul.f32 %v3368, 1.442695
      %v4048 = vpow.pop %v4047
      %v4049 = vmul.f32 %v3369, 1.442695
      %v4050 = vpow.pop %v4049
      %v4051 = vmul.f32 %v3370, 1.442695
      %v4052 = vpow.pop %v4051
      %v4053 = vmul.f32 %v3371, 1.442695
      %v4054 = vpow.pop %v4053
      %v4055 = vmul.f32 %v3372, 1.442695
      %v4056 = vpow.pop %v4055
      %v4057 = vmul.f32 %v3373, 1.442695
      %v4058 = vpow.pop %v4057
      %v4059 = vmul.f32 %v3374, 1.442695
      %v4060 = vpow.pop %v4059
      %v4061 = vmul.f32 %v3375, 1.442695
      %v4062 = vpow.pop %v4061
      %v4063 = vmul.f32 %v3376, 1.442695
      %v4064 = vpow.pop %v4063
      %v4065 = vmul.f32 %v3377, 1.442695
      %v4066 = vpow.pop %v4065
      %v4067 = vmul.f32 %v3378, 1.442695
      %v4068 = vpow.pop %v4067
      %v4069 = vmul.f32 %v3379, 1.442695
      %v4070 = vpow.pop %v4069
      %v4071 = vmul.f32 %v3380, 1.442695
      %v4072 = vpow.pop %v4071
      %v4073 = vmul.f32 %v3381, 1.442695
      %v4074 = vpow.pop %v4073
      %v4075 = vmul.f32 %v3382, 1.442695
      %v4076 = vpow.pop %v4075
      %v4077 = vmul.f32 %v3383, 1.442695
      %v4078 = vpow.pop %v4077
      %v4079 = vmul.f32 %v3384, 1.442695
      %v4080 = vpow.pop %v4079
      %v4081 = vmul.f32 %v3385, 1.442695
      %v4082 = vpow.pop %v4081
      %v4083 = vmul.f32 %v3386, 1.442695
      %v4084 = vpow.pop %v4083
      %v4085 = vmul.f32 %v3387, 1.442695
      %v4086 = vpow.pop %v4085
      %v4087 = vmul.f32 %v3388, 1.442695
      %v4088 = vpow.pop %v4087
      %v4089 = vmul.f32 %v3389, 1.442695
      %v4090 = vpow.pop %v4089
      %v4091 = vmul.f32 %v3390, 1.442695
      %v4092 = vpow.pop %v4091
      %v4093 = vmul.f32 %v3391, 1.442695
      %v4094 = vpow.pop %v4093
      %v4095 = vmul.f32 %v3392, 1.442695
      %v4096 = vpow.pop %v4095
      %v4097 = vmul.f32 %v3393, 1.442695
      %v4098 = vpow.pop %v4097
      %v4099 = vmul.f32 %v3394, 1.442695
      %v4100 = vpow.pop %v4099
      %v4101 = vmul.f32 %v3395, 1.442695
      %v4102 = vpow.pop %v4101
      %v4103 = vmul.f32 %v3396, 1.442695
      %v4104 = vpow.pop %v4103
      %v4105 = vmul.f32 %v3397, 1.442695
      %v4106 = vpow.pop %v4105
      %v4107 = vmul.f32 %v3398, 1.442695
      %v4108 = vpow.pop %v4107
      %v4109 = vmul.f32 %v3399, 1.442695
      %v4110 = vpow.pop %v4109
      %v4111 = vmul.f32 %v3400, 1.442695
      %v4112 = vpow.pop %v4111
      %v4113 = vmul.f32 %v3401, 1.442695
      %v4114 = vpow.pop %v4113
      %v4115 = vmul.f32 %v3402, 1.442695
      %v4116 = vpow.pop %v4115
      %v4117 = vmul.f32 %v3403, 1.442695
      %v4118 = vpow.pop %v4117
      %v4119 = vmul.f32 %v3404, 1.442695
      %v4120 = vpow.pop %v4119
      %v4121 = vmul.f32 %v3405, 1.442695
      %v4122 = vpow.pop %v4121
      %v4123 = vmul.f32 %v3406, 1.442695
      %v4124 = vpow.pop %v4123
      %v4125 = vmul.f32 %v3407, 1.442695
      %v4126 = vpow.pop %v4125
      %v4127 = vmul.f32 %v3408, 1.442695
      %v4128 = vpow.pop %v4127
      %v4129 = vmul.f32 %v3409, 1.442695
      %v4130 = vpow.pop %v4129
      %v4131 = vmul.f32 %v3410, 1.442695
      %v4132 = vpow.pop %v4131
      %v4133 = vmul.f32 %v3411, 1.442695
      %v4134 = vpow.pop %v4133
      %v4135 = vmul.f32 %v3412, 1.442695
      %v4136 = vpow.pop %v4135
      %v4137 = vmul.f32 %v3413, 1.442695
      %v4138 = vpow.pop %v4137
      %v4139 = vmul.f32 %v3414, 1.442695
      %v4140 = vpow.pop %v4139
      %v4141 = vmul.f32 %v3415, 1.442695
      %v4142 = vpow.pop %v4141
      %v4143 = vmul.f32 %v3416, 1.442695
      %v4144 = vpow.pop %v4143
      %v4145 = vmul.f32 %v3417, 1.442695
      %v4146 = vpow.pop %v4145
      %v4147 = vmul.f32 %v3418, 1.442695
      %v4148 = vpow.pop %v4147
      %v4149 = vmul.f32 %v3419, 1.442695
      %v4150 = vpow.pop %v4149
      %v4151 = vmul.f32 %v3420, 1.442695
      %v4152 = vpow.pop %v4151
      %v4153 = vmul.f32 %v3421, 1.442695
      %v4154 = vpow.pop %v4153
      %v4155 = vmul.f32 %v3422, 1.442695
      %v4156 = vpow.pop %v4155
      %v4157 = vmul.f32 %v3423, 1.442695
      %v4158 = vpow.pop %v4157
      %v4159 = vmul.f32 %v3424, 1.442695
      %v4160 = vpow.pop %v4159
      %v4161 = vmul.f32 %v3425, 1.442695
      %v4162 = vpow.pop %v4161
      %v4163 = vmul.f32 %v3426, 1.442695
      %v4164 = vpow.pop %v4163
      %v4165 = vmul.f32 %v3427, 1.442695
      %v4166 = vpow.pop %v4165
      %v4167 = vmul.f32 %v3428, 1.442695
      %v4168 = vpow.pop %v4167
      %v4169 = vmul.f32 %v3429, 1.442695
      %v4170 = vpow.pop %v4169
      %v4171 = vmul.f32 %v3430, 1.442695
      %v4172 = vpow.pop %v4171
      %v4173 = vmul.f32 %v3431, 1.442695
      %v4174 = vpow.pop %v4173
      %v4175 = vmul.f32 %v3432, 1.442695
      %v4176 = vpow.pop %v4175
      %v4177 = vmul.f32 %v3433, 1.442695
      %v4178 = vpow.pop %v4177
      %v4179 = vmul.f32 %v3434, 1.442695
      %v4180 = vpow.pop %v4179
      %v4181 = vmul.f32 %v3435, 1.442695
      %v4182 = vpow.pop %v4181
      %v4183 = vmul.f32 %v3436, 1.442695
      %v4184 = vpow.pop %v4183
      %v4185 = vmul.f32 %v3437, 1.442695
      %v4186 = vpow.pop %v4185
      %v4187 = vmul.f32 %v3438, 1.442695
      %v4188 = vpow.pop %v4187
      %v4189 = vmul.f32 %v3439, 1.442695
      %v4190 = vpow.pop %v4189
      %v4191 = vmul.f32 %v3440, 1.442695
      %v4192 = vpow.pop %v4191
      %v4193 = vmul.f32 %v3441, 1.442695
      %v4194 = vpow.pop %v4193
      %v4195 = vmul.f32 %v3442, 1.442695
      %v4196 = vpow.pop %v4195
      %v4197 = vmul.f32 %v3443, 1.442695
      %v4198 = vpow.pop %v4197
      %v4199 = vmul.f32 %v3444, 1.442695
      %v4200 = vpow.pop %v4199
      %v4201 = vmul.f32 %v3445, 1.442695
      %v4202 = vpow.pop %v4201
      %v4203 = vmul.f32 %v3446, 1.442695
      %v4204 = vpow.pop %v4203
      %v4205 = vmul.f32 %v3447, 1.442695
      %v4206 = vpow.pop %v4205
      %v4207 = vmul.f32 %v3448, 1.442695
      %v4208 = vpow.pop %v4207
      %v4209 = vmul.f32 %v3449, 1.442695
      %v4210 = vpow.pop %v4209
      %v4211 = vmul.f32 %v3450, 1.442695
      %v4212 = vpow.pop %v4211
      %v4213 = vmul.f32 %v3451, 1.442695
      %v4214 = vpow.pop %v4213
      %v4215 = vmul.f32 %v3452, 1.442695
      %v4216 = vpow.pop %v4215
      %v4217 = vmul.f32 %v3453, 1.442695
      %v4218 = vpow.pop %v4217
      %v4219 = vmul.f32 %v3454, 1.442695
      %v4220 = vpow.pop %v4219
      %v4221 = vmul.f32 %v3455, 1.442695
      %v4222 = vpow.pop %v4221
      %v4223 = vmul.f32 %v3456, 1.442695
      %v4224 = vpow.pop %v4223
      %v4225 = vmul.f32 %v3457, 1.442695
      %v4226 = vpow.pop %v4225
      %v4227 = vmul.f32 %v3458, 1.442695
      %v4228 = vpow.pop %v4227
      %v4229 = vmul.f32 %v3459, 1.442695
      %v4230 = vpow.pop %v4229
      %v4231 = vmul.f32 %v3460, 1.442695
      %v4232 = vpow.pop %v4231
      %v4233 = vmul.f32 %v3461, 1.442695
      %v4234 = vpow.pop %v4233
      %v4235 = vmul.f32 %v3462, 1.442695
      %v4236 = vpow.pop %v4235
      %v4237 = vmul.f32 %v3463, 1.442695
      %v4238 = vpow.pop %v4237
      %v4239 = vmul.f32 %v3464, 1.442695
      %v4240 = vpow.pop %v4239
      %v4241 = vmul.f32 %v3465, 1.442695
      %v4242 = vpow.pop %v4241
      %v4243 = vmul.f32 %v3466, 1.442695
      %v4244 = vpow.pop %v4243
      %v4245 = vmul.f32 %v3467, 1.442695
      %v4246 = vpow.pop %v4245
      %v4247 = vmul.f32 %v3468, 1.442695
      %v4248 = vpow.pop %v4247
      %v4249 = vmul.f32 %v3469, 1.442695
      %v4250 = vpow.pop %v4249
      %v4251 = vmul.f32 %v3470, 1.442695
      %v4252 = vpow.pop %v4251
      %v4253 = vmul.f32 %v3471, 1.442695
      %v4254 = vpow.pop %v4253
      %v4255 = vmul.f32 %v3472, 1.442695
      %v4256 = vpow.pop %v4255
      %v4257 = vmul.f32 %v3473, 1.442695
      %v4258 = vpow.pop %v4257
      %v4259 = vmul.f32 %v3474, 1.442695
      %v4260 = vpow.pop %v4259
      %v4261 = vmul.f32 %v3475, 1.442695
      %v4262 = vpow.pop %v4261
      %v4263 = vmul.f32 %v3476, 1.442695
      %v4264 = vpow.pop %v4263
      %v4265 = vmul.f32 %v3477, 1.442695
      %v4266 = vpow.pop %v4265
      %v4267 = vmul.f32 %v3478, 1.442695
      %v4268 = vpow.pop %v4267
      %v4269 = vmul.f32 %v3479, 1.442695
      %v4270 = vpow.pop %v4269
      %v4271 = vmul.f32 %v3480, 1.442695
      %v4272 = vpow.pop %v4271
      %v4273 = vmul.f32 %v3481, 1.442695
      %v4274 = vpow.pop %v4273
      %v4275 = vmul.f32 %v3482, 1.442695
      %v4276 = vpow.pop %v4275
      %v4277 = vmul.f32 %v3483, 1.442695
      %v4278 = vpow.pop %v4277
      %v4279 = vmul.f32 %v3484, 1.442695
      %v4280 = vpow.pop %v4279
      %v4281 = vmul.f32 %v3485, 1.442695
      %v4282 = vpow.pop %v4281
      %v4283 = vmul.f32 %v3486, 1.442695
      %v4284 = vpow.pop %v4283
      %v4285 = vmul.f32 %v3487, 1.442695
      %v4286 = vpow.pop %v4285
      %v4287 = vmul.f32 %v3488, 1.442695
      %v4288 = vpow.pop %v4287
      %v4289 = vmul.f32 %v3489, 1.442695
      %v4290 = vpow.pop %v4289
      %v4291 = vmul.f32 %v3490, 1.442695
      %v4292 = vpow.pop %v4291
      %v4293 = vmul.f32 %v3491, 1.442695
      %v4294 = vpow.pop %v4293
      %v4295 = vmul.f32 %v3492, 1.442695
      %v4296 = vpow.pop %v4295
      %v4297 = vmul.f32 %v3493, 1.442695
      %v4298 = vpow.pop %v4297
      %v4299 = vmul.f32 %v3494, 1.442695
      %v4300 = vpow.pop %v4299
      %v4301 = vmul.f32 %v3495, 1.442695
      %v4302 = vpow.pop %v4301
      %v4303 = vmul.f32 %v3496, 1.442695
      %v4304 = vpow.pop %v4303
      %v4305 = vmul.f32 %v3497, 1.442695
      %v4306 = vpow.pop %v4305
      %v4307 = vmul.f32 %v3498, 1.442695
      %v4308 = vpow.pop %v4307
      %v4309 = vmul.f32 %v3499, 1.442695
      %v4310 = vpow.pop %v4309
      %v4311 = vmul.f32 %v3500, 1.442695
      %v4312 = vpow.pop %v4311
      %v4313 = vmul.f32 %v3501, 1.442695
      %v4314 = vpow.pop %v4313
      %v4315 = vmul.f32 %v3502, 1.442695
      %v4316 = vpow.pop %v4315
      %v4317 = vmul.f32 %v3503, 1.442695
      %v4318 = vpow.pop %v4317
      %v4319 = vmul.f32 %v3504, 1.442695
      %v4320 = vpow.pop %v4319
      %v4321 = vmul.f32 %v3505, 1.442695
      %v4322 = vpow.pop %v4321
      %v4323 = vmul.f32 %v3506, 1.442695
      %v4324 = vpow.pop %v4323
      %v4325 = vmul.f32 %v3507, 1.442695
      %v4326 = vpow.pop %v4325
      %v4327 = vmul.f32 %v3508, 1.442695
      %v4328 = vpow.pop %v4327
      %v4329 = vmul.f32 %v3509, 1.442695
      %v4330 = vpow.pop %v4329
      %v4331 = vmul.f32 %v3510, 1.442695
      %v4332 = vpow.pop %v4331
      %v4333 = vmul.f32 %v3511, 1.442695
      %v4334 = vpow.pop %v4333
      %v4335 = vmul.f32 %v3512, 1.442695
      %v4336 = vpow.pop %v4335
      %v4337 = vmul.f32 %v3513, 1.442695
      %v4338 = vpow.pop %v4337
      %v4339 = vmul.f32 %v3514, 1.442695
      %v4340 = vpow.pop %v4339
      %v4341 = vmul.f32 %v3515, 1.442695
      %v4342 = vpow.pop %v4341
      %v4343 = vmul.f32 %v3516, 1.442695
      %v4344 = vpow.pop %v4343
      %v4345 = vmul.f32 %v3517, 1.442695
      %v4346 = vpow.pop %v4345
      %v4347 = vmul.f32 %v3518, 1.442695
      %v4348 = vpow.pop %v4347
      %v4349 = vmul.f32 %v3519, 1.442695
      %v4350 = vpow.pop %v4349
      %v4351 = vmul.f32 %v3520, 1.442695
      %v4352 = vpow.pop %v4351
      %v4353 = vmul.f32 %v3521, 1.442695
      %v4354 = vpow.pop %v4353
      %v4355 = vmul.f32 %v3522, 1.442695
      %v4356 = vpow.pop %v4355
      %v4357 = vmul.f32 %v3523, 1.442695
      %v4358 = vpow.pop %v4357
      %v4359 = vmul.f32 %v3524, 1.442695
      %v4360 = vpow.pop %v4359
      %v4361 = vmul.f32 %v3525, 1.442695
      %v4362 = vpow.pop %v4361
      %v4363 = vmul.f32 %v3526, 1.442695
      %v4364 = vpow.pop %v4363
      %v4365 = vmul.f32 %v3527, 1.442695
      %v4366 = vpow.pop %v4365
      %v4367 = vmul.f32 %v3528, 1.442695
      %v4368 = vpow.pop %v4367
      %v4369 = vmul.f32 %v3529, 1.442695
      %v4370 = vpow.pop %v4369
      %v4371 = vmul.f32 %v3530, 1.442695
      %v4372 = vpow.pop %v4371
      %v4373 = vmul.f32 %v3531, 1.442695
      %v4374 = vpow.pop %v4373
      %v4375 = vmul.f32 %v3532, 1.442695
      %v4376 = vpow.pop %v4375
      %v4377 = vmul.f32 %v3533, 1.442695
      %v4378 = vpow.pop %v4377
      %v4379 = vmul.f32 %v3534, 1.442695
      %v4380 = vpow.pop %v4379
      %v4381 = vmul.f32 %v3535, 1.442695
      %v4382 = vpow.pop %v4381
      %v4383 = vmul.f32 %v3536, 1.442695
      %v4384 = vpow.pop %v4383
      %v4385 = vmul.f32 %v3537, 1.442695
      %v4386 = vpow.pop %v4385
      %v4387 = vmul.f32 %v3538, 1.442695
      %v4388 = vpow.pop %v4387
      %v4389 = vmul.f32 %v3539, 1.442695
      %v4390 = vpow.pop %v4389
      %v4391 = vmul.f32 %v3540, 1.442695
      %v4392 = vpow.pop %v4391
      %v4393 = vmul.f32 %v3541, 1.442695
      %v4394 = vpow.pop %v4393
      %v4395 = vmul.f32 %v3542, 1.442695
      %v4396 = vpow.pop %v4395
      %v4397 = vmul.f32 %v3543, 1.442695
      %v4398 = vpow.pop %v4397
      %v4399 = vmul.f32 %v3544, 1.442695
      %v4400 = vpow.pop %v4399
      %v4401 = vmul.f32 %v3545, 1.442695
      %v4402 = vpow.pop %v4401
      %v4403 = vmul.f32 %v3546, 1.442695
      %v4404 = vpow.pop %v4403
      %v4405 = vmul.f32 %v3547, 1.442695
      %v4406 = vpow.pop %v4405
      %v4407 = vmul.f32 %v3548, 1.442695
      %v4408 = vpow.pop %v4407
      %v4409 = vmul.f32 %v3549, 1.442695
      %v4410 = vpow.pop %v4409
      %v4411 = vmul.f32 %v3550, 1.442695
      %v4412 = vpow.pop %v4411
      %v4413 = vmul.f32 %v3551, 1.442695
      %v4414 = vpow.pop %v4413
      %v4415 = vmul.f32 %v3552, 1.442695
      %v4416 = vpow.pop %v4415
      %v4417 = vmul.f32 %v3553, 1.442695
      %v4418 = vpow.pop %v4417
      %v4419 = vmul.f32 %v3554, 1.442695
      %v4420 = vpow.pop %v4419
      %v4421 = vmul.f32 %v3555, 1.442695
      %v4422 = vpow.pop %v4421
      %v4423 = vmul.f32 %v3556, 1.442695
      %v4424 = vpow.pop %v4423
      %v4425 = vmul.f32 %v3557, 1.442695
      %v4426 = vpow.pop %v4425
      %v4427 = vmul.f32 %v3558, 1.442695
      %v4428 = vpow.pop %v4427
      %v4429 = vmul.f32 %v3559, 1.442695
      %v4430 = vpow.pop %v4429
      %v4431 = vmul.f32 %v3560, 1.442695
      %v4432 = vpow.pop %v4431
      %v4433 = vmul.f32 %v3561, 1.442695
      %v4434 = vpow.pop %v4433
      %v4435 = vmul.f32 %v3562, 1.442695
      %v4436 = vpow.pop %v4435
      %v4437 = vmul.f32 %v3563, 1.442695
      %v4438 = vpow.pop %v4437
      %v4439 = vmul.f32 %v3564, 1.442695
      %v4440 = vpow.pop %v4439
      %v4441 = vmul.f32 %v3565, 1.442695
      %v4442 = vpow.pop %v4441
      %v4443 = vmul.f32 %v3566, 1.442695
      %v4444 = vpow.pop %v4443
      %v4445 = vmul.f32 %v3567, 1.442695
      %v4446 = vpow.pop %v4445
      %v4447 = vmul.f32 %v3568, 1.442695
      %v4448 = vpow.pop %v4447
      %v4449 = vmul.f32 %v3569, 1.442695
      %v4450 = vpow.pop %v4449
      %v4451 = vmul.f32 %v3570, 1.442695
      %v4452 = vpow.pop %v4451
      %v4453 = vmul.f32 %v3571, 1.442695
      %v4454 = vpow.pop %v4453
      %v4455 = vmul.f32 %v3572, 1.442695
      %v4456 = vpow.pop %v4455
      %v4457 = vmul.f32 %v3573, 1.442695
      %v4458 = vpow.pop %v4457
      %v4459 = vmul.f32 %v3574, 1.442695
      %v4460 = vpow.pop %v4459
      %v4461 = vmul.f32 %v3575, 1.442695
      %v4462 = vpow.pop %v4461
      %v4463 = vmul.f32 %v3576, 1.442695
      %v4464 = vpow.pop %v4463
      %v4465 = vmul.f32 %v3577, 1.442695
      %v4466 = vpow.pop %v4465
      %v4467 = vmul.f32 %v3578, 1.442695
      %v4468 = vpow.pop %v4467
      %v4469 = vmul.f32 %v3579, 1.442695
      %v4470 = vpow.pop %v4469
      %v4471 = vmul.f32 %v3580, 1.442695
      %v4472 = vpow.pop %v4471
      %v4473 = vmul.f32 %v3581, 1.442695
      %v4474 = vpow.pop %v4473
      %v4475 = vmul.f32 %v3582, 1.442695
      %v4476 = vpow.pop %v4475
      %v4477 = vmul.f32 %v3583, 1.442695
      %v4478 = vpow.pop %v4477
      %v4479 = vmul.f32 %v3584, 1.442695
      %v4480 = vpow.pop %v4479
      %v4481 = vmul.f32 %v3585, 1.442695
      %v4482 = vpow.pop %v4481
      %v4483 = vmul.f32 %v3586, 1.442695
      %v4484 = vpow.pop %v4483
      %v4485 = vmul.f32 %v3587, 1.442695
      %v4486 = vpow.pop %v4485
      %v4487 = vmul.f32 %v3588, 1.442695
      %v4488 = vpow.pop %v4487
      %v4489 = vmul.f32 %v3589, 1.442695
      %v4490 = vpow.pop %v4489
      %v4491 = vmul.f32 %v3590, 1.442695
      %v4492 = vpow.pop %v4491
      %v4493 = vmul.f32 %v3591, 1.442695
      %v4494 = vpow.pop %v4493
      %v4495 = vmul.f32 %v3592, 1.442695
      %v4496 = vpow.pop %v4495
      %v4497 = vmul.f32 %v3593, 1.442695
      %v4498 = vpow.pop %v4497
      %v4499 = vmul.f32 %v3594, 1.442695
      %v4500 = vpow.pop %v4499
      %v4501 = vmul.f32 %v3595, 1.442695
      %v4502 = vpow.pop %v4501
      %v4503 = vmul.f32 %v3596, 1.442695
      %v4504 = vpow.pop %v4503
      %v4505 = vmul.f32 %v3597, 1.442695
      %v4506 = vpow.pop %v4505
      %v4507 = vmul.f32 %v3598, 1.442695
      %v4508 = vpow.pop %v4507
      %v4509 = vmul.f32 %v3599, 1.442695
      %v4510 = vpow.pop %v4509
      %v4511 = vmul.f32 %v3600, 1.442695
      %v4512 = vpow.pop %v4511
      %v4513 = vmul.f32 %v3601, 1.442695
      %v4514 = vpow.pop %v4513
      %v4515 = vmul.f32 %v3602, 1.442695
      %v4516 = vpow.pop %v4515
      %v4517 = vmul.f32 %v3603, 1.442695
      %v4518 = vpow.pop %v4517
      %v4519 = vmul.f32 %v3604, 1.442695
      %v4520 = vpow.pop %v4519
      %v4521 = vmul.f32 %v3605, 1.442695
      %v4522 = vpow.pop %v4521
      %v4523 = vmul.f32 %v3606, 1.442695
      %v4524 = vpow.pop %v4523
      %v4525 = vmul.f32 %v3607, 1.442695
      %v4526 = vpow.pop %v4525
      %v4527 = vmul.f32 %v3608, 1.442695
      %v4528 = vpow.pop %v4527
      %v4529 = vmul.f32 %v3609, 1.442695
      %v4530 = vpow.pop %v4529
      %v4531 = vmul.f32 %v3610, 1.442695
      %v4532 = vpow.pop %v4531
      %v4533 = vmul.f32 %v3611, 1.442695
      %v4534 = vpow.pop %v4533
      %v4535 = vmul.f32 %v3612, 1.442695
      %v4536 = vpow.pop %v4535
      %v4537 = vmul.f32 %v3613, 1.442695
      %v4538 = vpow.pop %v4537
      %v4539 = vmul.f32 %v3614, 1.442695
      %v4540 = vpow.pop %v4539
      %v4541 = vmul.f32 %v3615, 1.442695
      %v4542 = vpow.pop %v4541
      %v4543 = vmul.f32 %v3616, 1.442695
      %v4544 = vpow.pop %v4543
      %v4545 = vmul.f32 %v3617, 1.442695
      %v4546 = vpow.pop %v4545
      %v4547 = vmul.f32 %v3618, 1.442695
      %v4548 = vpow.pop %v4547
      %v4549 = vmul.f32 %v3619, 1.442695
      %v4550 = vpow.pop %v4549
      %v4551 = vmul.f32 %v3620, 1.442695
      %v4552 = vpow.pop %v4551
      %v4553 = vmul.f32 %v3621, 1.442695
      %v4554 = vpow.pop %v4553
      %v4555 = vmul.f32 %v3622, 1.442695
      %v4556 = vpow.pop %v4555
      %v4557 = vmul.f32 %v3623, 1.442695
      %v4558 = vpow.pop %v4557
      %v4559 = vmul.f32 %v3624, 1.442695
      %v4560 = vpow.pop %v4559
      %v4561 = vmul.f32 %v3625, 1.442695
      %v4562 = vpow.pop %v4561
      %v4563 = vmul.f32 %v3626, 1.442695
      %v4564 = vpow.pop %v4563
      %v4565 = vmul.f32 %v3627, 1.442695
      %v4566 = vpow.pop %v4565
      %v4567 = vmul.f32 %v3628, 1.442695
      %v4568 = vpow.pop %v4567
      %v4569 = vmul.f32 %v3629, 1.442695
      %v4570 = vpow.pop %v4569
      %v4571 = vmul.f32 %v3630, 1.442695
      %v4572 = vpow.pop %v4571
      %v4573 = vmul.f32 %v3631, 1.442695
      %v4574 = vpow.pop %v4573
      %v4575 = vmul.f32 %v3632, 1.442695
      %v4576 = vpow.pop %v4575
      %v4577 = vmul.f32 %v3633, 1.442695
      %v4578 = vpow.pop %v4577
      %v4579 = vmul.f32 %v3634, 1.442695
      %v4580 = vpow.pop %v4579
      %v4581 = vmul.f32 %v3635, 1.442695
      %v4582 = vpow.pop %v4581
      %v4583 = vmul.f32 %v3636, 1.442695
      %v4584 = vpow.pop %v4583
      %v4585 = vmul.f32 %v3637, 1.442695
      %v4586 = vpow.pop %v4585
      %v4587 = vmul.f32 %v3638, 1.442695
      %v4588 = vpow.pop %v4587
      %v4589 = vmul.f32 %v3639, 1.442695
      %v4590 = vpow.pop %v4589
      %v4591 = vmul.f32 %v3640, 1.442695
      %v4592 = vpow.pop %v4591
      %v4593 = vmul.f32 %v3641, 1.442695
      %v4594 = vpow.pop %v4593
      %v4595 = vmul.f32 %v3642, 1.442695
      %v4596 = vpow.pop %v4595
      %v4597 = vmul.f32 %v3643, 1.442695
      %v4598 = vpow.pop %v4597
      %v4599 = vmul.f32 %v3644, 1.442695
      %v4600 = vpow.pop %v4599
      %v4601 = vmul.f32 %v3645, 1.442695
      %v4602 = vpow.pop %v4601
      %v4603 = vmul.f32 %v3646, 1.442695
      %v4604 = vpow.pop %v4603
      %v4605 = vmul.f32 %v3647, 1.442695
      %v4606 = vpow.pop %v4605
      %v4607 = vmul.f32 %v3648, 1.442695
      %v4608 = vpow.pop %v4607
      %v4609 = vmul.f32 %v3649, 1.442695
      %v4610 = vpow.pop %v4609
      %v4611 = vmul.f32 %v3650, 1.442695
      %v4612 = vpow.pop %v4611
      %v4613 = vmul.f32 %v3651, 1.442695
      %v4614 = vpow.pop %v4613
      %v4615 = vmul.f32 %v3652, 1.442695
      %v4616 = vpow.pop %v4615
      %v4617 = vmul.f32 %v3653, 1.442695
      %v4618 = vpow.pop %v4617
      %v4619 = vmul.f32 %v3654, 1.442695
      %v4620 = vpow.pop %v4619
      %v4621 = vmul.f32 %v3655, 1.442695
      %v4622 = vpow.pop %v4621
      %v4623 = vmul.f32 %v3656, 1.442695
      %v4624 = vpow.pop %v4623
      %v4625 = vmul.f32 %v3657, 1.442695
      %v4626 = vpow.pop %v4625
      %v4627 = vmul.f32 %v3658, 1.442695
      %v4628 = vpow.pop %v4627
      %v4629 = vmul.f32 %v3659, 1.442695
      %v4630 = vpow.pop %v4629
      %v4631 = vmul.f32 %v3660, 1.442695
      %v4632 = vpow.pop %v4631
      %v4633 = vmul.f32 %v3661, 1.442695
      %v4634 = vpow.pop %v4633
      %v4635 = vmul.f32 %v3662, 1.442695
      %v4636 = vpow.pop %v4635
      %v4637 = vmul.f32 %v3663, 1.442695
      %v4638 = vpow.pop %v4637
      %v4639 = vmul.f32 %v3664, 1.442695
      %v4640 = vpow.pop %v4639
      %v4641 = vmul.f32 %v3665, 1.442695
      %v4642 = vpow.pop %v4641
      %v4643 = vmul.f32 %v3666, 1.442695
      %v4644 = vpow.pop %v4643
      %v4645 = vmul.f32 %v3667, 1.442695
      %v4646 = vpow.pop %v4645
      %v4647 = vmul.f32 %v3668, 1.442695
      %v4648 = vpow.pop %v4647
      %v4649 = vmul.f32 %v3669, 1.442695
      %v4650 = vpow.pop %v4649
      %v4651 = vmul.f32 %v3670, 1.442695
      %v4652 = vpow.pop %v4651
      %v4653 = vmul.f32 %v3671, 1.442695
      %v4654 = vpow.pop %v4653
      %v4655 = vmul.f32 %v3672, 1.442695
      %v4656 = vpow.pop %v4655
      %v4657 = vmul.f32 %v3673, 1.442695
      %v4658 = vpow.pop %v4657
      %v4659 = vmul.f32 %v3674, 1.442695
      %v4660 = vpow.pop %v4659
      %v4661 = vmul.f32 %v3675, 1.442695
      %v4662 = vpow.pop %v4661
      %v4663 = vmul.f32 %v3676, 1.442695
      %v4664 = vpow.pop %v4663
      %v4665 = vmul.f32 %v3677, 1.442695
      %v4666 = vpow.pop %v4665
      %v4667 = vmul.f32 %v3678, 1.442695
      %v4668 = vpow.pop %v4667
      %v4669 = vmul.f32 %v3679, 1.442695
      %v4670 = vpow.pop %v4669
      %v4671 = vmul.f32 %v3680, 1.442695
      %v4672 = vpow.pop %v4671
      %v4673 = vmul.f32 %v3681, 1.442695
      %v4674 = vpow.pop %v4673
      %v4675 = vmul.f32 %v3682, 1.442695
      %v4676 = vpow.pop %v4675
      %v4677 = vmul.f32 %v3683, 1.442695
      %v4678 = vpow.pop %v4677
      %v4679 = vmul.f32 %v3684, 1.442695
      %v4680 = vpow.pop %v4679
      %v4681 = vmul.f32 %v3685, 1.442695
      %v4682 = vpow.pop %v4681
      %v4683 = vmul.f32 %v3686, 1.442695
      %v4684 = vpow.pop %v4683
      %v4685 = vmul.f32 %v3687, 1.442695
      %v4686 = vpow.pop %v4685
      %v4687 = vmul.f32 %v3688, 1.442695
      %v4688 = vpow.pop %v4687
      %v4689 = vmul.f32 %v3689, 1.442695
      %v4690 = vpow.pop %v4689
      %v4691 = vmul.f32 %v3690, 1.442695
      %v4692 = vpow.pop %v4691
      %v4693 = vmul.f32 %v3691, 1.442695
      %v4694 = vpow.pop %v4693
      %v4695 = vmul.f32 %v3692, 1.442695
      %v4696 = vpow.pop %v4695
      %v4697 = vmul.f32 %v3693, 1.442695
      %v4698 = vpow.pop %v4697
      %v4699 = vmul.f32 %v3694, 1.442695
      %v4700 = vpow.pop %v4699
      %v4701 = vmul.f32 %v3695, 1.442695
      %v4702 = vpow.pop %v4701
      %v4703 = vmul.f32 %v3696, 1.442695
      %v4704 = vpow.pop %v4703
      %v4705 = vmul.f32 %v3697, 1.442695
      %v4706 = vpow.pop %v4705
      %v4707 = vmul.f32 %v3698, 1.442695
      %v4708 = vpow.pop %v4707
      %v4709 = vmul.f32 %v3699, 1.442695
      %v4710 = vpow.pop %v4709
      %v4711 = vmul.f32 %v3700, 1.442695
      %v4712 = vpow.pop %v4711
      %v4713 = vmul.f32 %v3701, 1.442695
      %v4714 = vpow.pop %v4713
      %v4715 = vmul.f32 %v3702, 1.442695
      %v4716 = vpow.pop %v4715
      %v4717 = vmul.f32 %v3703, 1.442695
      %v4718 = vpow.pop %v4717
      %v4719 = vmul.f32 %v3704, 1.442695
      %v4720 = vpow.pop %v4719
      %v4721 = vmul.f32 %v3705, 1.442695
      %v4722 = vpow.pop %v4721
      %v4723 = vmul.f32 %v3706, 1.442695
      %v4724 = vpow.pop %v4723
      %v4725 = vmul.f32 %v3707, 1.442695
      %v4726 = vpow.pop %v4725
      %v4727 = vmul.f32 %v3708, 1.442695
      %v4728 = vpow.pop %v4727
      %v4729 = vmul.f32 %v3709, 1.442695
      %v4730 = vpow.pop %v4729
      %v4731 = vmul.f32 %v3710, 1.442695
      %v4732 = vpow.pop %v4731
      %v4733 = vmul.f32 %v3711, 1.442695
      %v4734 = vpow.pop %v4733
      %v4735 = vmul.f32 %v3712, 1.442695
      %v4736 = vpow.pop %v4735
      %v4737 = vld [vmem:[%s305] sm:$0xff]
      %v4738 = vld [vmem:[%s305 + $0x8] sm:$0xff]
      %v4739 = vld [vmem:[%s305 + $0x10] sm:$0xff]
      %v4740 = vld [vmem:[%s305 + $0x18] sm:$0xff]
      %v4741 = vld [vmem:[%s305 + $0x20] sm:$0xff]
      %v4742 = vld [vmem:[%s305 + $0x28] sm:$0xff]
      %v4743 = vld [vmem:[%s305 + $0x30] sm:$0xff]
      %v4744 = vld [vmem:[%s305 + $0x38] sm:$0xff]
      %v4745 = vld [vmem:[%s305 + $0x40] sm:$0xff]
      %v4746 = vld [vmem:[%s305 + $0x48] sm:$0xff]
      %v4747 = vld [vmem:[%s305 + $0x50] sm:$0xff]
      %v4748 = vld [vmem:[%s305 + $0x58] sm:$0xff]
      %v4749 = vld [vmem:[%s305 + $0x60] sm:$0xff]
      %v4750 = vld [vmem:[%s305 + $0x68] sm:$0xff]
      %v4751 = vld [vmem:[%s305 + $0x70] sm:$0xff]
      %v4752 = vld [vmem:[%s305 + $0x78] sm:$0xff]
      %v4753 = vld [vmem:[%s305 + $0x80] sm:$0xff]
      %v4754 = vld [vmem:[%s305 + $0x88] sm:$0xff]
      %v4755 = vld [vmem:[%s305 + $0x90] sm:$0xff]
      %v4756 = vld [vmem:[%s305 + $0x98] sm:$0xff]
      %v4757 = vld [vmem:[%s305 + $0xa0] sm:$0xff]
      %v4758 = vld [vmem:[%s305 + $0xa8] sm:$0xff]
      %v4759 = vld [vmem:[%s305 + $0xb0] sm:$0xff]
      %v4760 = vld [vmem:[%s305 + $0xb8] sm:$0xff]
      %v4761 = vld [vmem:[%s305 + $0xc0] sm:$0xff]
      %v4762 = vld [vmem:[%s305 + $0xc8] sm:$0xff]
      %v4763 = vld [vmem:[%s305 + $0xd0] sm:$0xff]
      %v4764 = vld [vmem:[%s305 + $0xd8] sm:$0xff]
      %v4765 = vld [vmem:[%s305 + $0xe0] sm:$0xff]
      %v4766 = vld [vmem:[%s305 + $0xe8] sm:$0xff]
      %v4767 = vld [vmem:[%s305 + $0xf0] sm:$0xff]
      %v4768 = vld [vmem:[%s305 + $0xf8] sm:$0xff]
      %v4769 = vld [vmem:[%s305 + $0x100] sm:$0xff]
      %v4770 = vld [vmem:[%s305 + $0x108] sm:$0xff]
      %v4771 = vld [vmem:[%s305 + $0x110] sm:$0xff]
      %v4772 = vld [vmem:[%s305 + $0x118] sm:$0xff]
      %v4773 = vld [vmem:[%s305 + $0x120] sm:$0xff]
      %v4774 = vld [vmem:[%s305 + $0x128] sm:$0xff]
      %v4775 = vld [vmem:[%s305 + $0x130] sm:$0xff]
      %v4776 = vld [vmem:[%s305 + $0x138] sm:$0xff]
      %v4777 = vld [vmem:[%s305 + $0x140] sm:$0xff]
      %v4778 = vld [vmem:[%s305 + $0x148] sm:$0xff]
      %v4779 = vld [vmem:[%s305 + $0x150] sm:$0xff]
      %v4780 = vld [vmem:[%s305 + $0x158] sm:$0xff]
      %v4781 = vld [vmem:[%s305 + $0x160] sm:$0xff]
      %v4782 = vld [vmem:[%s305 + $0x168] sm:$0xff]
      %v4783 = vld [vmem:[%s305 + $0x170] sm:$0xff]
      %v4784 = vld [vmem:[%s305 + $0x178] sm:$0xff]
      %v4785 = vld [vmem:[%s305 + $0x180] sm:$0xff]
      %v4786 = vld [vmem:[%s305 + $0x188] sm:$0xff]
      %v4787 = vld [vmem:[%s305 + $0x190] sm:$0xff]
      %v4788 = vld [vmem:[%s305 + $0x198] sm:$0xff]
      %v4789 = vld [vmem:[%s305 + $0x1a0] sm:$0xff]
      %v4790 = vld [vmem:[%s305 + $0x1a8] sm:$0xff]
      %v4791 = vld [vmem:[%s305 + $0x1b0] sm:$0xff]
      %v4792 = vld [vmem:[%s305 + $0x1b8] sm:$0xff]
      %v4793 = vld [vmem:[%s305 + $0x1c0] sm:$0xff]
      %v4794 = vld [vmem:[%s305 + $0x1c8] sm:$0xff]
      %v4795 = vld [vmem:[%s305 + $0x1d0] sm:$0xff]
      %v4796 = vld [vmem:[%s305 + $0x1d8] sm:$0xff]
      %v4797 = vld [vmem:[%s305 + $0x1e0] sm:$0xff]
      %v4798 = vld [vmem:[%s305 + $0x1e8] sm:$0xff]
      %v4799 = vld [vmem:[%s305 + $0x1f0] sm:$0xff]
      %v4800 = vld [vmem:[%s305 + $0x1f8] sm:$0xff]
      %v4801 = vld [vmem:[%s299] sm:$0xff]
      %v4802 = vld [vmem:[%s299 + $0x8] sm:$0xff]
      %v4803 = vld [vmem:[%s299 + $0x10] sm:$0xff]
      %v4804 = vld [vmem:[%s299 + $0x18] sm:$0xff]
      %v4805 = vld [vmem:[%s299 + $0x20] sm:$0xff]
      %v4806 = vld [vmem:[%s299 + $0x28] sm:$0xff]
      %v4807 = vld [vmem:[%s299 + $0x30] sm:$0xff]
      %v4808 = vld [vmem:[%s299 + $0x38] sm:$0xff]
      %v4809 = vld [vmem:[%s299 + $0x40] sm:$0xff]
      %v4810 = vld [vmem:[%s299 + $0x48] sm:$0xff]
      %v4811 = vld [vmem:[%s299 + $0x50] sm:$0xff]
      %v4812 = vld [vmem:[%s299 + $0x58] sm:$0xff]
      %v4813 = vld [vmem:[%s299 + $0x60] sm:$0xff]
      %v4814 = vld [vmem:[%s299 + $0x68] sm:$0xff]
      %v4815 = vld [vmem:[%s299 + $0x70] sm:$0xff]
      %v4816 = vld [vmem:[%s299 + $0x78] sm:$0xff]
      %v4817 = vld [vmem:[%s299 + $0x80] sm:$0xff]
      %v4818 = vld [vmem:[%s299 + $0x88] sm:$0xff]
      %v4819 = vld [vmem:[%s299 + $0x90] sm:$0xff]
      %v4820 = vld [vmem:[%s299 + $0x98] sm:$0xff]
      %v4821 = vld [vmem:[%s299 + $0xa0] sm:$0xff]
      %v4822 = vld [vmem:[%s299 + $0xa8] sm:$0xff]
      %v4823 = vld [vmem:[%s299 + $0xb0] sm:$0xff]
      %v4824 = vld [vmem:[%s299 + $0xb8] sm:$0xff]
      %v4825 = vld [vmem:[%s299 + $0xc0] sm:$0xff]
      %v4826 = vld [vmem:[%s299 + $0xc8] sm:$0xff]
      %v4827 = vld [vmem:[%s299 + $0xd0] sm:$0xff]
      %v4828 = vld [vmem:[%s299 + $0xd8] sm:$0xff]
      %v4829 = vld [vmem:[%s299 + $0xe0] sm:$0xff]
      %v4830 = vld [vmem:[%s299 + $0xe8] sm:$0xff]
      %v4831 = vld [vmem:[%s299 + $0xf0] sm:$0xff]
      %v4832 = vld [vmem:[%s299 + $0xf8] sm:$0xff]
      %v4833 = vld [vmem:[%s299 + $0x100] sm:$0xff]
      %v4834 = vld [vmem:[%s299 + $0x108] sm:$0xff]
      %v4835 = vld [vmem:[%s299 + $0x110] sm:$0xff]
      %v4836 = vld [vmem:[%s299 + $0x118] sm:$0xff]
      %v4837 = vld [vmem:[%s299 + $0x120] sm:$0xff]
      %v4838 = vld [vmem:[%s299 + $0x128] sm:$0xff]
      %v4839 = vld [vmem:[%s299 + $0x130] sm:$0xff]
      %v4840 = vld [vmem:[%s299 + $0x138] sm:$0xff]
      %v4841 = vld [vmem:[%s299 + $0x140] sm:$0xff]
      %v4842 = vld [vmem:[%s299 + $0x148] sm:$0xff]
      %v4843 = vld [vmem:[%s299 + $0x150] sm:$0xff]
      %v4844 = vld [vmem:[%s299 + $0x158] sm:$0xff]
      %v4845 = vld [vmem:[%s299 + $0x160] sm:$0xff]
      %v4846 = vld [vmem:[%s299 + $0x168] sm:$0xff]
      %v4847 = vld [vmem:[%s299 + $0x170] sm:$0xff]
      %v4848 = vld [vmem:[%s299 + $0x178] sm:$0xff]
      %v4849 = vld [vmem:[%s299 + $0x180] sm:$0xff]
      %v4850 = vld [vmem:[%s299 + $0x188] sm:$0xff]
      %v4851 = vld [vmem:[%s299 + $0x190] sm:$0xff]
      %v4852 = vld [vmem:[%s299 + $0x198] sm:$0xff]
      %v4853 = vld [vmem:[%s299 + $0x1a0] sm:$0xff]
      %v4854 = vld [vmem:[%s299 + $0x1a8] sm:$0xff]
      %v4855 = vld [vmem:[%s299 + $0x1b0] sm:$0xff]
      %v4856 = vld [vmem:[%s299 + $0x1b8] sm:$0xff]
      %v4857 = vld [vmem:[%s299 + $0x1c0] sm:$0xff]
      %v4858 = vld [vmem:[%s299 + $0x1c8] sm:$0xff]
      %v4859 = vld [vmem:[%s299 + $0x1d0] sm:$0xff]
      %v4860 = vld [vmem:[%s299 + $0x1d8] sm:$0xff]
      %v4861 = vld [vmem:[%s299 + $0x1e0] sm:$0xff]
      %v4862 = vld [vmem:[%s299 + $0x1e8] sm:$0xff]
      %v4863 = vld [vmem:[%s299 + $0x1f0] sm:$0xff]
      %v4864 = vld [vmem:[%s299 + $0x1f8] sm:$0xff]
      %v4865 = vld [vmem:[%s299 + $0x200] sm:$0xff]
      %v4866 = vld [vmem:[%s299 + $0x208] sm:$0xff]
      %v4867 = vld [vmem:[%s299 + $0x210] sm:$0xff]
      %v4868 = vld [vmem:[%s299 + $0x218] sm:$0xff]
      %v4869 = vld [vmem:[%s299 + $0x220] sm:$0xff]
      %v4870 = vld [vmem:[%s299 + $0x228] sm:$0xff]
      %v4871 = vld [vmem:[%s299 + $0x230] sm:$0xff]
      %v4872 = vld [vmem:[%s299 + $0x238] sm:$0xff]
      %v4873 = vld [vmem:[%s299 + $0x240] sm:$0xff]
      %v4874 = vld [vmem:[%s299 + $0x248] sm:$0xff]
      %v4875 = vld [vmem:[%s299 + $0x250] sm:$0xff]
      %v4876 = vld [vmem:[%s299 + $0x258] sm:$0xff]
      %v4877 = vld [vmem:[%s299 + $0x260] sm:$0xff]
      %v4878 = vld [vmem:[%s299 + $0x268] sm:$0xff]
      %v4879 = vld [vmem:[%s299 + $0x270] sm:$0xff]
      %v4880 = vld [vmem:[%s299 + $0x278] sm:$0xff]
      %v4881 = vld [vmem:[%s299 + $0x280] sm:$0xff]
      %v4882 = vld [vmem:[%s299 + $0x288] sm:$0xff]
      %v4883 = vld [vmem:[%s299 + $0x290] sm:$0xff]
      %v4884 = vld [vmem:[%s299 + $0x298] sm:$0xff]
      %v4885 = vld [vmem:[%s299 + $0x2a0] sm:$0xff]
      %v4886 = vld [vmem:[%s299 + $0x2a8] sm:$0xff]
      %v4887 = vld [vmem:[%s299 + $0x2b0] sm:$0xff]
      %v4888 = vld [vmem:[%s299 + $0x2b8] sm:$0xff]
      %v4889 = vld [vmem:[%s299 + $0x2c0] sm:$0xff]
      %v4890 = vld [vmem:[%s299 + $0x2c8] sm:$0xff]
      %v4891 = vld [vmem:[%s299 + $0x2d0] sm:$0xff]
      %v4892 = vld [vmem:[%s299 + $0x2d8] sm:$0xff]
      %v4893 = vld [vmem:[%s299 + $0x2e0] sm:$0xff]
      %v4894 = vld [vmem:[%s299 + $0x2e8] sm:$0xff]
      %v4895 = vld [vmem:[%s299 + $0x2f0] sm:$0xff]
      %v4896 = vld [vmem:[%s299 + $0x2f8] sm:$0xff]
      %v4897 = vld [vmem:[%s299 + $0x300] sm:$0xff]
      %v4898 = vld [vmem:[%s299 + $0x308] sm:$0xff]
      %v4899 = vld [vmem:[%s299 + $0x310] sm:$0xff]
      %v4900 = vld [vmem:[%s299 + $0x318] sm:$0xff]
      %v4901 = vld [vmem:[%s299 + $0x320] sm:$0xff]
      %v4902 = vld [vmem:[%s299 + $0x328] sm:$0xff]
      %v4903 = vld [vmem:[%s299 + $0x330] sm:$0xff]
      %v4904 = vld [vmem:[%s299 + $0x338] sm:$0xff]
      %v4905 = vld [vmem:[%s299 + $0x340] sm:$0xff]
      %v4906 = vld [vmem:[%s299 + $0x348] sm:$0xff]
      %v4907 = vld [vmem:[%s299 + $0x350] sm:$0xff]
      %v4908 = vld [vmem:[%s299 + $0x358] sm:$0xff]
      %v4909 = vld [vmem:[%s299 + $0x360] sm:$0xff]
      %v4910 = vld [vmem:[%s299 + $0x368] sm:$0xff]
      %v4911 = vld [vmem:[%s299 + $0x370] sm:$0xff]
      %v4912 = vld [vmem:[%s299 + $0x378] sm:$0xff]
      %v4913 = vld [vmem:[%s299 + $0x380] sm:$0xff]
      %v4914 = vld [vmem:[%s299 + $0x388] sm:$0xff]
      %v4915 = vld [vmem:[%s299 + $0x390] sm:$0xff]
      %v4916 = vld [vmem:[%s299 + $0x398] sm:$0xff]
      %v4917 = vld [vmem:[%s299 + $0x3a0] sm:$0xff]
      %v4918 = vld [vmem:[%s299 + $0x3a8] sm:$0xff]
      %v4919 = vld [vmem:[%s299 + $0x3b0] sm:$0xff]
      %v4920 = vld [vmem:[%s299 + $0x3b8] sm:$0xff]
      %v4921 = vld [vmem:[%s299 + $0x3c0] sm:$0xff]
      %v4922 = vld [vmem:[%s299 + $0x3c8] sm:$0xff]
      %v4923 = vld [vmem:[%s299 + $0x3d0] sm:$0xff]
      %v4924 = vld [vmem:[%s299 + $0x3d8] sm:$0xff]
      %v4925 = vld [vmem:[%s299 + $0x3e0] sm:$0xff]
      %v4926 = vld [vmem:[%s299 + $0x3e8] sm:$0xff]
      %v4927 = vld [vmem:[%s299 + $0x3f0] sm:$0xff]
      %v4928 = vld [vmem:[%s299 + $0x3f8] sm:$0xff]
      %4929 = vmatpush.msra.mxu0 %v4816
      %4930 = vmatpush.msra.mxu0 %v4815
      %4931 = vmatpush.msra.mxu0 %v4814
      %4932 = vmatpush.msra.mxu0 %v4813
      %4933 = vmatpush.msra.mxu0 %v4812
      %4934 = vmatpush.msra.mxu0 %v4811
      %4935 = vmatpush.msra.mxu0 %v4810
      %4936 = vmatpush.msra.mxu0 %v4809
      %4937 = vmatpush.msra.mxu0 %v4808
      %4938 = vmatpush.msra.mxu0 %v4807
      %4939 = vmatpush.msra.mxu0 %v4806
      %4940 = vmatpush.msra.mxu0 %v4805
      %4941 = vmatpush.msra.mxu0 %v4804
      %4942 = vmatpush.msra.mxu0 %v4803
      %4943 = vmatpush.msra.mxu0 %v4802
      %4944 = vmatpush.msra.mxu0 %v4801
      %4945 = vmatmul.f32.gmra.mxu0 %v3714
      %v4946 = vpop.f32.mrf.mxu0
      %v4947 = vadd.f32 0.0, %v4946
      %4948 = vmatmul.f32.gmra.mxu0 %v3730
      %v4949 = vpop.f32.mrf.mxu0
      %v4950 = vadd.f32 0.0, %v4949
      %4951 = vmatmul.f32.gmra.mxu0 %v3746
      %v4952 = vpop.f32.mrf.mxu0
      %v4953 = vadd.f32 0.0, %v4952
      %4954 = vmatmul.f32.gmra.mxu0 %v3762
      %v4955 = vpop.f32.mrf.mxu0
      %v4956 = vadd.f32 0.0, %v4955
      %4957 = vmatmul.f32.gmra.mxu0 %v3778
      %v4958 = vpop.f32.mrf.mxu0
      %v4959 = vadd.f32 0.0, %v4958
      %4960 = vmatmul.f32.gmra.mxu0 %v3794
      %v4961 = vpop.f32.mrf.mxu0
      %v4962 = vadd.f32 0.0, %v4961
      %4963 = vmatmul.f32.gmra.mxu0 %v3810
      %v4964 = vpop.f32.mrf.mxu0
      %v4965 = vadd.f32 0.0, %v4964
      %4966 = vmatmul.f32.gmra.mxu0 %v3826
      %v4967 = vpop.f32.mrf.mxu0
      %v4968 = vadd.f32 0.0, %v4967
      %4969 = vmatmul.f32.gmra.mxu0 %v3842
      %v4970 = vpop.f32.mrf.mxu0
      %v4971 = vadd.f32 0.0, %v4970
      %4972 = vmatmul.f32.gmra.mxu0 %v3858
      %v4973 = vpop.f32.mrf.mxu0
      %v4974 = vadd.f32 0.0, %v4973
      %4975 = vmatmul.f32.gmra.mxu0 %v3874
      %v4976 = vpop.f32.mrf.mxu0
      %v4977 = vadd.f32 0.0, %v4976
      %4978 = vmatmul.f32.gmra.mxu0 %v3890
      %v4979 = vpop.f32.mrf.mxu0
      %v4980 = vadd.f32 0.0, %v4979
      %4981 = vmatmul.f32.gmra.mxu0 %v3906
      %v4982 = vpop.f32.mrf.mxu0
      %v4983 = vadd.f32 0.0, %v4982
      %4984 = vmatmul.f32.gmra.mxu0 %v3922
      %v4985 = vpop.f32.mrf.mxu0
      %v4986 = vadd.f32 0.0, %v4985
      %4987 = vmatmul.f32.gmra.mxu0 %v3938
      %v4988 = vpop.f32.mrf.mxu0
      %v4989 = vadd.f32 0.0, %v4988
      %4990 = vmatmul.f32.gmra.mxu0 %v3954
      %v4991 = vpop.f32.mrf.mxu0
      %v4992 = vadd.f32 0.0, %v4991
      %4993 = vmatmul.f32.gmra.mxu0 %v3970
      %v4994 = vpop.f32.mrf.mxu0
      %v4995 = vadd.f32 0.0, %v4994
      %4996 = vmatmul.f32.gmra.mxu0 %v3986
      %v4997 = vpop.f32.mrf.mxu0
      %v4998 = vadd.f32 0.0, %v4997
      %4999 = vmatmul.f32.gmra.mxu0 %v4002
      %v5000 = vpop.f32.mrf.mxu0
      %v5001 = vadd.f32 0.0, %v5000
      %5002 = vmatmul.f32.gmra.mxu0 %v4018
      %v5003 = vpop.f32.mrf.mxu0
      %v5004 = vadd.f32 0.0, %v5003
      %5005 = vmatmul.f32.gmra.mxu0 %v4034
      %v5006 = vpop.f32.mrf.mxu0
      %v5007 = vadd.f32 0.0, %v5006
      %5008 = vmatmul.f32.gmra.mxu0 %v4050
      %v5009 = vpop.f32.mrf.mxu0
      %v5010 = vadd.f32 0.0, %v5009
      %5011 = vmatmul.f32.gmra.mxu0 %v4066
      %v5012 = vpop.f32.mrf.mxu0
      %v5013 = vadd.f32 0.0, %v5012
      %5014 = vmatmul.f32.gmra.mxu0 %v4082
      %v5015 = vpop.f32.mrf.mxu0
      %v5016 = vadd.f32 0.0, %v5015
      %5017 = vmatmul.f32.gmra.mxu0 %v4098
      %v5018 = vpop.f32.mrf.mxu0
      %v5019 = vadd.f32 0.0, %v5018
      %5020 = vmatmul.f32.gmra.mxu0 %v4114
      %v5021 = vpop.f32.mrf.mxu0
      %v5022 = vadd.f32 0.0, %v5021
      %5023 = vmatmul.f32.gmra.mxu0 %v4130
      %v5024 = vpop.f32.mrf.mxu0
      %v5025 = vadd.f32 0.0, %v5024
      %5026 = vmatmul.f32.gmra.mxu0 %v4146
      %v5027 = vpop.f32.mrf.mxu0
      %v5028 = vadd.f32 0.0, %v5027
      %5029 = vmatmul.f32.gmra.mxu0 %v4162
      %v5030 = vpop.f32.mrf.mxu0
      %v5031 = vadd.f32 0.0, %v5030
      %5032 = vmatmul.f32.gmra.mxu0 %v4178
      %v5033 = vpop.f32.mrf.mxu0
      %v5034 = vadd.f32 0.0, %v5033
      %5035 = vmatmul.f32.gmra.mxu0 %v4194
      %v5036 = vpop.f32.mrf.mxu0
      %v5037 = vadd.f32 0.0, %v5036
      %5038 = vmatmul.f32.gmra.mxu0 %v4210
      %v5039 = vpop.f32.mrf.mxu0
      %v5040 = vadd.f32 0.0, %v5039
      %5041 = vmatmul.f32.gmra.mxu0 %v4226
      %v5042 = vpop.f32.mrf.mxu0
      %v5043 = vadd.f32 0.0, %v5042
      %5044 = vmatmul.f32.gmra.mxu0 %v4242
      %v5045 = vpop.f32.mrf.mxu0
      %v5046 = vadd.f32 0.0, %v5045
      %5047 = vmatmul.f32.gmra.mxu0 %v4258
      %v5048 = vpop.f32.mrf.mxu0
      %v5049 = vadd.f32 0.0, %v5048
      %5050 = vmatmul.f32.gmra.mxu0 %v4274
      %v5051 = vpop.f32.mrf.mxu0
      %v5052 = vadd.f32 0.0, %v5051
      %5053 = vmatmul.f32.gmra.mxu0 %v4290
      %v5054 = vpop.f32.mrf.mxu0
      %v5055 = vadd.f32 0.0, %v5054
      %5056 = vmatmul.f32.gmra.mxu0 %v4306
      %v5057 = vpop.f32.mrf.mxu0
      %v5058 = vadd.f32 0.0, %v5057
      %5059 = vmatmul.f32.gmra.mxu0 %v4322
      %v5060 = vpop.f32.mrf.mxu0
      %v5061 = vadd.f32 0.0, %v5060
      %5062 = vmatmul.f32.gmra.mxu0 %v4338
      %v5063 = vpop.f32.mrf.mxu0
      %v5064 = vadd.f32 0.0, %v5063
      %5065 = vmatmul.f32.gmra.mxu0 %v4354
      %v5066 = vpop.f32.mrf.mxu0
      %v5067 = vadd.f32 0.0, %v5066
      %5068 = vmatmul.f32.gmra.mxu0 %v4370
      %v5069 = vpop.f32.mrf.mxu0
      %v5070 = vadd.f32 0.0, %v5069
      %5071 = vmatmul.f32.gmra.mxu0 %v4386
      %v5072 = vpop.f32.mrf.mxu0
      %v5073 = vadd.f32 0.0, %v5072
      %5074 = vmatmul.f32.gmra.mxu0 %v4402
      %v5075 = vpop.f32.mrf.mxu0
      %v5076 = vadd.f32 0.0, %v5075
      %5077 = vmatmul.f32.gmra.mxu0 %v4418
      %v5078 = vpop.f32.mrf.mxu0
      %v5079 = vadd.f32 0.0, %v5078
      %5080 = vmatmul.f32.gmra.mxu0 %v4434
      %v5081 = vpop.f32.mrf.mxu0
      %v5082 = vadd.f32 0.0, %v5081
      %5083 = vmatmul.f32.gmra.mxu0 %v4450
      %v5084 = vpop.f32.mrf.mxu0
      %v5085 = vadd.f32 0.0, %v5084
      %5086 = vmatmul.f32.gmra.mxu0 %v4466
      %v5087 = vpop.f32.mrf.mxu0
      %v5088 = vadd.f32 0.0, %v5087
      %5089 = vmatmul.f32.gmra.mxu0 %v4482
      %v5090 = vpop.f32.mrf.mxu0
      %v5091 = vadd.f32 0.0, %v5090
      %5092 = vmatmul.f32.gmra.mxu0 %v4498
      %v5093 = vpop.f32.mrf.mxu0
      %v5094 = vadd.f32 0.0, %v5093
      %5095 = vmatmul.f32.gmra.mxu0 %v4514
      %v5096 = vpop.f32.mrf.mxu0
      %v5097 = vadd.f32 0.0, %v5096
      %5098 = vmatmul.f32.gmra.mxu0 %v4530
      %v5099 = vpop.f32.mrf.mxu0
      %v5100 = vadd.f32 0.0, %v5099
      %5101 = vmatmul.f32.gmra.mxu0 %v4546
      %v5102 = vpop.f32.mrf.mxu0
      %v5103 = vadd.f32 0.0, %v5102
      %5104 = vmatmul.f32.gmra.mxu0 %v4562
      %v5105 = vpop.f32.mrf.mxu0
      %v5106 = vadd.f32 0.0, %v5105
      %5107 = vmatmul.f32.gmra.mxu0 %v4578
      %v5108 = vpop.f32.mrf.mxu0
      %v5109 = vadd.f32 0.0, %v5108
      %5110 = vmatmul.f32.gmra.mxu0 %v4594
      %v5111 = vpop.f32.mrf.mxu0
      %v5112 = vadd.f32 0.0, %v5111
      %5113 = vmatmul.f32.gmra.mxu0 %v4610
      %v5114 = vpop.f32.mrf.mxu0
      %v5115 = vadd.f32 0.0, %v5114
      %5116 = vmatmul.f32.gmra.mxu0 %v4626
      %v5117 = vpop.f32.mrf.mxu0
      %v5118 = vadd.f32 0.0, %v5117
      %5119 = vmatmul.f32.gmra.mxu0 %v4642
      %v5120 = vpop.f32.mrf.mxu0
      %v5121 = vadd.f32 0.0, %v5120
      %5122 = vmatmul.f32.gmra.mxu0 %v4658
      %v5123 = vpop.f32.mrf.mxu0
      %v5124 = vadd.f32 0.0, %v5123
      %5125 = vmatmul.f32.gmra.mxu0 %v4674
      %v5126 = vpop.f32.mrf.mxu0
      %v5127 = vadd.f32 0.0, %v5126
      %5128 = vmatmul.f32.gmra.mxu0 %v4690
      %v5129 = vpop.f32.mrf.mxu0
      %v5130 = vadd.f32 0.0, %v5129
      %5131 = vmatmul.f32.gmra.mxu0 %v4706
      %v5132 = vpop.f32.mrf.mxu0
      %v5133 = vadd.f32 0.0, %v5132
      %5134 = vmatmul.f32.gmra.mxu0 %v4722
      %v5135 = vpop.f32.mrf.mxu0
      %v5136 = vadd.f32 0.0, %v5135
      %5137 = vdwg.mxu0
      %5138 = vmatpush.msra.mxu0 %v4832
      %5139 = vmatpush.msra.mxu0 %v4831
      %5140 = vmatpush.msra.mxu0 %v4830
      %5141 = vmatpush.msra.mxu0 %v4829
      %5142 = vmatpush.msra.mxu0 %v4828
      %5143 = vmatpush.msra.mxu0 %v4827
      %5144 = vmatpush.msra.mxu0 %v4826
      %5145 = vmatpush.msra.mxu0 %v4825
      %5146 = vmatpush.msra.mxu0 %v4824
      %5147 = vmatpush.msra.mxu0 %v4823
      %5148 = vmatpush.msra.mxu0 %v4822
      %5149 = vmatpush.msra.mxu0 %v4821
      %5150 = vmatpush.msra.mxu0 %v4820
      %5151 = vmatpush.msra.mxu0 %v4819
      %5152 = vmatpush.msra.mxu0 %v4818
      %5153 = vmatpush.msra.mxu0 %v4817
      %5154 = vmatmul.f32.gmra.mxu0 %v3716
      %v5155 = vpop.f32.mrf.mxu0
      %v5156 = vadd.f32 %v4947, %v5155
      %5157 = vmatmul.f32.gmra.mxu0 %v3732
      %v5158 = vpop.f32.mrf.mxu0
      %v5159 = vadd.f32 %v4950, %v5158
      %5160 = vmatmul.f32.gmra.mxu0 %v3748
      %v5161 = vpop.f32.mrf.mxu0
      %v5162 = vadd.f32 %v4953, %v5161
      %5163 = vmatmul.f32.gmra.mxu0 %v3764
      %v5164 = vpop.f32.mrf.mxu0
      %v5165 = vadd.f32 %v4956, %v5164
      %5166 = vmatmul.f32.gmra.mxu0 %v3780
      %v5167 = vpop.f32.mrf.mxu0
      %v5168 = vadd.f32 %v4959, %v5167
      %5169 = vmatmul.f32.gmra.mxu0 %v3796
      %v5170 = vpop.f32.mrf.mxu0
      %v5171 = vadd.f32 %v4962, %v5170
      %5172 = vmatmul.f32.gmra.mxu0 %v3812
      %v5173 = vpop.f32.mrf.mxu0
      %v5174 = vadd.f32 %v4965, %v5173
      %5175 = vmatmul.f32.gmra.mxu0 %v3828
      %v5176 = vpop.f32.mrf.mxu0
      %v5177 = vadd.f32 %v4968, %v5176
      %5178 = vmatmul.f32.gmra.mxu0 %v3844
      %v5179 = vpop.f32.mrf.mxu0
      %v5180 = vadd.f32 %v4971, %v5179
      %5181 = vmatmul.f32.gmra.mxu0 %v3860
      %v5182 = vpop.f32.mrf.mxu0
      %v5183 = vadd.f32 %v4974, %v5182
      %5184 = vmatmul.f32.gmra.mxu0 %v3876
      %v5185 = vpop.f32.mrf.mxu0
      %v5186 = vadd.f32 %v4977, %v5185
      %5187 = vmatmul.f32.gmra.mxu0 %v3892
      %v5188 = vpop.f32.mrf.mxu0
      %v5189 = vadd.f32 %v4980, %v5188
      %5190 = vmatmul.f32.gmra.mxu0 %v3908
      %v5191 = vpop.f32.mrf.mxu0
      %v5192 = vadd.f32 %v4983, %v5191
      %5193 = vmatmul.f32.gmra.mxu0 %v3924
      %v5194 = vpop.f32.mrf.mxu0
      %v5195 = vadd.f32 %v4986, %v5194
      %5196 = vmatmul.f32.gmra.mxu0 %v3940
      %v5197 = vpop.f32.mrf.mxu0
      %v5198 = vadd.f32 %v4989, %v5197
      %5199 = vmatmul.f32.gmra.mxu0 %v3956
      %v5200 = vpop.f32.mrf.mxu0
      %v5201 = vadd.f32 %v4992, %v5200
      %5202 = vmatmul.f32.gmra.mxu0 %v3972
      %v5203 = vpop.f32.mrf.mxu0
      %v5204 = vadd.f32 %v4995, %v5203
      %5205 = vmatmul.f32.gmra.mxu0 %v3988
      %v5206 = vpop.f32.mrf.mxu0
      %v5207 = vadd.f32 %v4998, %v5206
      %5208 = vmatmul.f32.gmra.mxu0 %v4004
      %v5209 = vpop.f32.mrf.mxu0
      %v5210 = vadd.f32 %v5001, %v5209
      %5211 = vmatmul.f32.gmra.mxu0 %v4020
      %v5212 = vpop.f32.mrf.mxu0
      %v5213 = vadd.f32 %v5004, %v5212
      %5214 = vmatmul.f32.gmra.mxu0 %v4036
      %v5215 = vpop.f32.mrf.mxu0
      %v5216 = vadd.f32 %v5007, %v5215
      %5217 = vmatmul.f32.gmra.mxu0 %v4052
      %v5218 = vpop.f32.mrf.mxu0
      %v5219 = vadd.f32 %v5010, %v5218
      %5220 = vmatmul.f32.gmra.mxu0 %v4068
      %v5221 = vpop.f32.mrf.mxu0
      %v5222 = vadd.f32 %v5013, %v5221
      %5223 = vmatmul.f32.gmra.mxu0 %v4084
      %v5224 = vpop.f32.mrf.mxu0
      %v5225 = vadd.f32 %v5016, %v5224
      %5226 = vmatmul.f32.gmra.mxu0 %v4100
      %v5227 = vpop.f32.mrf.mxu0
      %v5228 = vadd.f32 %v5019, %v5227
      %5229 = vmatmul.f32.gmra.mxu0 %v4116
      %v5230 = vpop.f32.mrf.mxu0
      %v5231 = vadd.f32 %v5022, %v5230
      %5232 = vmatmul.f32.gmra.mxu0 %v4132
      %v5233 = vpop.f32.mrf.mxu0
      %v5234 = vadd.f32 %v5025, %v5233
      %5235 = vmatmul.f32.gmra.mxu0 %v4148
      %v5236 = vpop.f32.mrf.mxu0
      %v5237 = vadd.f32 %v5028, %v5236
      %5238 = vmatmul.f32.gmra.mxu0 %v4164
      %v5239 = vpop.f32.mrf.mxu0
      %v5240 = vadd.f32 %v5031, %v5239
      %5241 = vmatmul.f32.gmra.mxu0 %v4180
      %v5242 = vpop.f32.mrf.mxu0
      %v5243 = vadd.f32 %v5034, %v5242
      %5244 = vmatmul.f32.gmra.mxu0 %v4196
      %v5245 = vpop.f32.mrf.mxu0
      %v5246 = vadd.f32 %v5037, %v5245
      %5247 = vmatmul.f32.gmra.mxu0 %v4212
      %v5248 = vpop.f32.mrf.mxu0
      %v5249 = vadd.f32 %v5040, %v5248
      %5250 = vmatmul.f32.gmra.mxu0 %v4228
      %v5251 = vpop.f32.mrf.mxu0
      %v5252 = vadd.f32 %v5043, %v5251
      %5253 = vmatmul.f32.gmra.mxu0 %v4244
      %v5254 = vpop.f32.mrf.mxu0
      %v5255 = vadd.f32 %v5046, %v5254
      %5256 = vmatmul.f32.gmra.mxu0 %v4260
      %v5257 = vpop.f32.mrf.mxu0
      %v5258 = vadd.f32 %v5049, %v5257
      %5259 = vmatmul.f32.gmra.mxu0 %v4276
      %v5260 = vpop.f32.mrf.mxu0
      %v5261 = vadd.f32 %v5052, %v5260
      %5262 = vmatmul.f32.gmra.mxu0 %v4292
      %v5263 = vpop.f32.mrf.mxu0
      %v5264 = vadd.f32 %v5055, %v5263
      %5265 = vmatmul.f32.gmra.mxu0 %v4308
      %v5266 = vpop.f32.mrf.mxu0
      %v5267 = vadd.f32 %v5058, %v5266
      %5268 = vmatmul.f32.gmra.mxu0 %v4324
      %v5269 = vpop.f32.mrf.mxu0
      %v5270 = vadd.f32 %v5061, %v5269
      %5271 = vmatmul.f32.gmra.mxu0 %v4340
      %v5272 = vpop.f32.mrf.mxu0
      %v5273 = vadd.f32 %v5064, %v5272
      %5274 = vmatmul.f32.gmra.mxu0 %v4356
      %v5275 = vpop.f32.mrf.mxu0
      %v5276 = vadd.f32 %v5067, %v5275
      %5277 = vmatmul.f32.gmra.mxu0 %v4372
      %v5278 = vpop.f32.mrf.mxu0
      %v5279 = vadd.f32 %v5070, %v5278
      %5280 = vmatmul.f32.gmra.mxu0 %v4388
      %v5281 = vpop.f32.mrf.mxu0
      %v5282 = vadd.f32 %v5073, %v5281
      %5283 = vmatmul.f32.gmra.mxu0 %v4404
      %v5284 = vpop.f32.mrf.mxu0
      %v5285 = vadd.f32 %v5076, %v5284
      %5286 = vmatmul.f32.gmra.mxu0 %v4420
      %v5287 = vpop.f32.mrf.mxu0
      %v5288 = vadd.f32 %v5079, %v5287
      %5289 = vmatmul.f32.gmra.mxu0 %v4436
      %v5290 = vpop.f32.mrf.mxu0
      %v5291 = vadd.f32 %v5082, %v5290
      %5292 = vmatmul.f32.gmra.mxu0 %v4452
      %v5293 = vpop.f32.mrf.mxu0
      %v5294 = vadd.f32 %v5085, %v5293
      %5295 = vmatmul.f32.gmra.mxu0 %v4468
      %v5296 = vpop.f32.mrf.mxu0
      %v5297 = vadd.f32 %v5088, %v5296
      %5298 = vmatmul.f32.gmra.mxu0 %v4484
      %v5299 = vpop.f32.mrf.mxu0
      %v5300 = vadd.f32 %v5091, %v5299
      %5301 = vmatmul.f32.gmra.mxu0 %v4500
      %v5302 = vpop.f32.mrf.mxu0
      %v5303 = vadd.f32 %v5094, %v5302
      %5304 = vmatmul.f32.gmra.mxu0 %v4516
      %v5305 = vpop.f32.mrf.mxu0
      %v5306 = vadd.f32 %v5097, %v5305
      %5307 = vmatmul.f32.gmra.mxu0 %v4532
      %v5308 = vpop.f32.mrf.mxu0
      %v5309 = vadd.f32 %v5100, %v5308
      %5310 = vmatmul.f32.gmra.mxu0 %v4548
      %v5311 = vpop.f32.mrf.mxu0
      %v5312 = vadd.f32 %v5103, %v5311
      %5313 = vmatmul.f32.gmra.mxu0 %v4564
      %v5314 = vpop.f32.mrf.mxu0
      %v5315 = vadd.f32 %v5106, %v5314
      %5316 = vmatmul.f32.gmra.mxu0 %v4580
      %v5317 = vpop.f32.mrf.mxu0
      %v5318 = vadd.f32 %v5109, %v5317
      %5319 = vmatmul.f32.gmra.mxu0 %v4596
      %v5320 = vpop.f32.mrf.mxu0
      %v5321 = vadd.f32 %v5112, %v5320
      %5322 = vmatmul.f32.gmra.mxu0 %v4612
      %v5323 = vpop.f32.mrf.mxu0
      %v5324 = vadd.f32 %v5115, %v5323
      %5325 = vmatmul.f32.gmra.mxu0 %v4628
      %v5326 = vpop.f32.mrf.mxu0
      %v5327 = vadd.f32 %v5118, %v5326
      %5328 = vmatmul.f32.gmra.mxu0 %v4644
      %v5329 = vpop.f32.mrf.mxu0
      %v5330 = vadd.f32 %v5121, %v5329
      %5331 = vmatmul.f32.gmra.mxu0 %v4660
      %v5332 = vpop.f32.mrf.mxu0
      %v5333 = vadd.f32 %v5124, %v5332
      %5334 = vmatmul.f32.gmra.mxu0 %v4676
      %v5335 = vpop.f32.mrf.mxu0
      %v5336 = vadd.f32 %v5127, %v5335
      %5337 = vmatmul.f32.gmra.mxu0 %v4692
      %v5338 = vpop.f32.mrf.mxu0
      %v5339 = vadd.f32 %v5130, %v5338
      %5340 = vmatmul.f32.gmra.mxu0 %v4708
      %v5341 = vpop.f32.mrf.mxu0
      %v5342 = vadd.f32 %v5133, %v5341
      %5343 = vmatmul.f32.gmra.mxu0 %v4724
      %v5344 = vpop.f32.mrf.mxu0
      %v5345 = vadd.f32 %v5136, %v5344
      %5346 = vdwg.mxu0
      %5347 = vmatpush.msra.mxu0 %v4848
      %5348 = vmatpush.msra.mxu0 %v4847
      %5349 = vmatpush.msra.mxu0 %v4846
      %5350 = vmatpush.msra.mxu0 %v4845
      %5351 = vmatpush.msra.mxu0 %v4844
      %5352 = vmatpush.msra.mxu0 %v4843
      %5353 = vmatpush.msra.mxu0 %v4842
      %5354 = vmatpush.msra.mxu0 %v4841
      %5355 = vmatpush.msra.mxu0 %v4840
      %5356 = vmatpush.msra.mxu0 %v4839
      %5357 = vmatpush.msra.mxu0 %v4838
      %5358 = vmatpush.msra.mxu0 %v4837
      %5359 = vmatpush.msra.mxu0 %v4836
      %5360 = vmatpush.msra.mxu0 %v4835
      %5361 = vmatpush.msra.mxu0 %v4834
      %5362 = vmatpush.msra.mxu0 %v4833
      %5363 = vmatmul.f32.gmra.mxu0 %v3718
      %v5364 = vpop.f32.mrf.mxu0
      %v5365 = vadd.f32 %v5156, %v5364
      %5366 = vmatmul.f32.gmra.mxu0 %v3734
      %v5367 = vpop.f32.mrf.mxu0
      %v5368 = vadd.f32 %v5159, %v5367
      %5369 = vmatmul.f32.gmra.mxu0 %v3750
      %v5370 = vpop.f32.mrf.mxu0
      %v5371 = vadd.f32 %v5162, %v5370
      %5372 = vmatmul.f32.gmra.mxu0 %v3766
      %v5373 = vpop.f32.mrf.mxu0
      %v5374 = vadd.f32 %v5165, %v5373
      %5375 = vmatmul.f32.gmra.mxu0 %v3782
      %v5376 = vpop.f32.mrf.mxu0
      %v5377 = vadd.f32 %v5168, %v5376
      %5378 = vmatmul.f32.gmra.mxu0 %v3798
      %v5379 = vpop.f32.mrf.mxu0
      %v5380 = vadd.f32 %v5171, %v5379
      %5381 = vmatmul.f32.gmra.mxu0 %v3814
      %v5382 = vpop.f32.mrf.mxu0
      %v5383 = vadd.f32 %v5174, %v5382
      %5384 = vmatmul.f32.gmra.mxu0 %v3830
      %v5385 = vpop.f32.mrf.mxu0
      %v5386 = vadd.f32 %v5177, %v5385
      %5387 = vmatmul.f32.gmra.mxu0 %v3846
      %v5388 = vpop.f32.mrf.mxu0
      %v5389 = vadd.f32 %v5180, %v5388
      %5390 = vmatmul.f32.gmra.mxu0 %v3862
      %v5391 = vpop.f32.mrf.mxu0
      %v5392 = vadd.f32 %v5183, %v5391
      %5393 = vmatmul.f32.gmra.mxu0 %v3878
      %v5394 = vpop.f32.mrf.mxu0
      %v5395 = vadd.f32 %v5186, %v5394
      %5396 = vmatmul.f32.gmra.mxu0 %v3894
      %v5397 = vpop.f32.mrf.mxu0
      %v5398 = vadd.f32 %v5189, %v5397
      %5399 = vmatmul.f32.gmra.mxu0 %v3910
      %v5400 = vpop.f32.mrf.mxu0
      %v5401 = vadd.f32 %v5192, %v5400
      %5402 = vmatmul.f32.gmra.mxu0 %v3926
      %v5403 = vpop.f32.mrf.mxu0
      %v5404 = vadd.f32 %v5195, %v5403
      %5405 = vmatmul.f32.gmra.mxu0 %v3942
      %v5406 = vpop.f32.mrf.mxu0
      %v5407 = vadd.f32 %v5198, %v5406
      %5408 = vmatmul.f32.gmra.mxu0 %v3958
      %v5409 = vpop.f32.mrf.mxu0
      %v5410 = vadd.f32 %v5201, %v5409
      %5411 = vmatmul.f32.gmra.mxu0 %v3974
      %v5412 = vpop.f32.mrf.mxu0
      %v5413 = vadd.f32 %v5204, %v5412
      %5414 = vmatmul.f32.gmra.mxu0 %v3990
      %v5415 = vpop.f32.mrf.mxu0
      %v5416 = vadd.f32 %v5207, %v5415
      %5417 = vmatmul.f32.gmra.mxu0 %v4006
      %v5418 = vpop.f32.mrf.mxu0
      %v5419 = vadd.f32 %v5210, %v5418
      %5420 = vmatmul.f32.gmra.mxu0 %v4022
      %v5421 = vpop.f32.mrf.mxu0
      %v5422 = vadd.f32 %v5213, %v5421
      %5423 = vmatmul.f32.gmra.mxu0 %v4038
      %v5424 = vpop.f32.mrf.mxu0
      %v5425 = vadd.f32 %v5216, %v5424
      %5426 = vmatmul.f32.gmra.mxu0 %v4054
      %v5427 = vpop.f32.mrf.mxu0
      %v5428 = vadd.f32 %v5219, %v5427
      %5429 = vmatmul.f32.gmra.mxu0 %v4070
      %v5430 = vpop.f32.mrf.mxu0
      %v5431 = vadd.f32 %v5222, %v5430
      %5432 = vmatmul.f32.gmra.mxu0 %v4086
      %v5433 = vpop.f32.mrf.mxu0
      %v5434 = vadd.f32 %v5225, %v5433
      %5435 = vmatmul.f32.gmra.mxu0 %v4102
      %v5436 = vpop.f32.mrf.mxu0
      %v5437 = vadd.f32 %v5228, %v5436
      %5438 = vmatmul.f32.gmra.mxu0 %v4118
      %v5439 = vpop.f32.mrf.mxu0
      %v5440 = vadd.f32 %v5231, %v5439
      %5441 = vmatmul.f32.gmra.mxu0 %v4134
      %v5442 = vpop.f32.mrf.mxu0
      %v5443 = vadd.f32 %v5234, %v5442
      %5444 = vmatmul.f32.gmra.mxu0 %v4150
      %v5445 = vpop.f32.mrf.mxu0
      %v5446 = vadd.f32 %v5237, %v5445
      %5447 = vmatmul.f32.gmra.mxu0 %v4166
      %v5448 = vpop.f32.mrf.mxu0
      %v5449 = vadd.f32 %v5240, %v5448
      %5450 = vmatmul.f32.gmra.mxu0 %v4182
      %v5451 = vpop.f32.mrf.mxu0
      %v5452 = vadd.f32 %v5243, %v5451
      %5453 = vmatmul.f32.gmra.mxu0 %v4198
      %v5454 = vpop.f32.mrf.mxu0
      %v5455 = vadd.f32 %v5246, %v5454
      %5456 = vmatmul.f32.gmra.mxu0 %v4214
      %v5457 = vpop.f32.mrf.mxu0
      %v5458 = vadd.f32 %v5249, %v5457
      %5459 = vmatmul.f32.gmra.mxu0 %v4230
      %v5460 = vpop.f32.mrf.mxu0
      %v5461 = vadd.f32 %v5252, %v5460
      %5462 = vmatmul.f32.gmra.mxu0 %v4246
      %v5463 = vpop.f32.mrf.mxu0
      %v5464 = vadd.f32 %v5255, %v5463
      %5465 = vmatmul.f32.gmra.mxu0 %v4262
      %v5466 = vpop.f32.mrf.mxu0
      %v5467 = vadd.f32 %v5258, %v5466
      %5468 = vmatmul.f32.gmra.mxu0 %v4278
      %v5469 = vpop.f32.mrf.mxu0
      %v5470 = vadd.f32 %v5261, %v5469
      %5471 = vmatmul.f32.gmra.mxu0 %v4294
      %v5472 = vpop.f32.mrf.mxu0
      %v5473 = vadd.f32 %v5264, %v5472
      %5474 = vmatmul.f32.gmra.mxu0 %v4310
      %v5475 = vpop.f32.mrf.mxu0
      %v5476 = vadd.f32 %v5267, %v5475
      %5477 = vmatmul.f32.gmra.mxu0 %v4326
      %v5478 = vpop.f32.mrf.mxu0
      %v5479 = vadd.f32 %v5270, %v5478
      %5480 = vmatmul.f32.gmra.mxu0 %v4342
      %v5481 = vpop.f32.mrf.mxu0
      %v5482 = vadd.f32 %v5273, %v5481
      %5483 = vmatmul.f32.gmra.mxu0 %v4358
      %v5484 = vpop.f32.mrf.mxu0
      %v5485 = vadd.f32 %v5276, %v5484
      %5486 = vmatmul.f32.gmra.mxu0 %v4374
      %v5487 = vpop.f32.mrf.mxu0
      %v5488 = vadd.f32 %v5279, %v5487
      %5489 = vmatmul.f32.gmra.mxu0 %v4390
      %v5490 = vpop.f32.mrf.mxu0
      %v5491 = vadd.f32 %v5282, %v5490
      %5492 = vmatmul.f32.gmra.mxu0 %v4406
      %v5493 = vpop.f32.mrf.mxu0
      %v5494 = vadd.f32 %v5285, %v5493
      %5495 = vmatmul.f32.gmra.mxu0 %v4422
      %v5496 = vpop.f32.mrf.mxu0
      %v5497 = vadd.f32 %v5288, %v5496
      %5498 = vmatmul.f32.gmra.mxu0 %v4438
      %v5499 = vpop.f32.mrf.mxu0
      %v5500 = vadd.f32 %v5291, %v5499
      %5501 = vmatmul.f32.gmra.mxu0 %v4454
      %v5502 = vpop.f32.mrf.mxu0
      %v5503 = vadd.f32 %v5294, %v5502
      %5504 = vmatmul.f32.gmra.mxu0 %v4470
      %v5505 = vpop.f32.mrf.mxu0
      %v5506 = vadd.f32 %v5297, %v5505
      %5507 = vmatmul.f32.gmra.mxu0 %v4486
      %v5508 = vpop.f32.mrf.mxu0
      %v5509 = vadd.f32 %v5300, %v5508
      %5510 = vmatmul.f32.gmra.mxu0 %v4502
      %v5511 = vpop.f32.mrf.mxu0
      %v5512 = vadd.f32 %v5303, %v5511
      %5513 = vmatmul.f32.gmra.mxu0 %v4518
      %v5514 = vpop.f32.mrf.mxu0
      %v5515 = vadd.f32 %v5306, %v5514
      %5516 = vmatmul.f32.gmra.mxu0 %v4534
      %v5517 = vpop.f32.mrf.mxu0
      %v5518 = vadd.f32 %v5309, %v5517
      %5519 = vmatmul.f32.gmra.mxu0 %v4550
      %v5520 = vpop.f32.mrf.mxu0
      %v5521 = vadd.f32 %v5312, %v5520
      %5522 = vmatmul.f32.gmra.mxu0 %v4566
      %v5523 = vpop.f32.mrf.mxu0
      %v5524 = vadd.f32 %v5315, %v5523
      %5525 = vmatmul.f32.gmra.mxu0 %v4582
      %v5526 = vpop.f32.mrf.mxu0
      %v5527 = vadd.f32 %v5318, %v5526
      %5528 = vmatmul.f32.gmra.mxu0 %v4598
      %v5529 = vpop.f32.mrf.mxu0
      %v5530 = vadd.f32 %v5321, %v5529
      %5531 = vmatmul.f32.gmra.mxu0 %v4614
      %v5532 = vpop.f32.mrf.mxu0
      %v5533 = vadd.f32 %v5324, %v5532
      %5534 = vmatmul.f32.gmra.mxu0 %v4630
      %v5535 = vpop.f32.mrf.mxu0
      %v5536 = vadd.f32 %v5327, %v5535
      %5537 = vmatmul.f32.gmra.mxu0 %v4646
      %v5538 = vpop.f32.mrf.mxu0
      %v5539 = vadd.f32 %v5330, %v5538
      %5540 = vmatmul.f32.gmra.mxu0 %v4662
      %v5541 = vpop.f32.mrf.mxu0
      %v5542 = vadd.f32 %v5333, %v5541
      %5543 = vmatmul.f32.gmra.mxu0 %v4678
      %v5544 = vpop.f32.mrf.mxu0
      %v5545 = vadd.f32 %v5336, %v5544
      %5546 = vmatmul.f32.gmra.mxu0 %v4694
      %v5547 = vpop.f32.mrf.mxu0
      %v5548 = vadd.f32 %v5339, %v5547
      %5549 = vmatmul.f32.gmra.mxu0 %v4710
      %v5550 = vpop.f32.mrf.mxu0
      %v5551 = vadd.f32 %v5342, %v5550
      %5552 = vmatmul.f32.gmra.mxu0 %v4726
      %v5553 = vpop.f32.mrf.mxu0
      %v5554 = vadd.f32 %v5345, %v5553
      %5555 = vdwg.mxu0
      %5556 = vmatpush.msra.mxu0 %v4864
      %5557 = vmatpush.msra.mxu0 %v4863
      %5558 = vmatpush.msra.mxu0 %v4862
      %5559 = vmatpush.msra.mxu0 %v4861
      %5560 = vmatpush.msra.mxu0 %v4860
      %5561 = vmatpush.msra.mxu0 %v4859
      %5562 = vmatpush.msra.mxu0 %v4858
      %5563 = vmatpush.msra.mxu0 %v4857
      %5564 = vmatpush.msra.mxu0 %v4856
      %5565 = vmatpush.msra.mxu0 %v4855
      %5566 = vmatpush.msra.mxu0 %v4854
      %5567 = vmatpush.msra.mxu0 %v4853
      %5568 = vmatpush.msra.mxu0 %v4852
      %5569 = vmatpush.msra.mxu0 %v4851
      %5570 = vmatpush.msra.mxu0 %v4850
      %5571 = vmatpush.msra.mxu0 %v4849
      %5572 = vmatmul.f32.gmra.mxu0 %v3720
      %v5573 = vpop.f32.mrf.mxu0
      %v5574 = vadd.f32 %v5365, %v5573
      %5575 = vmatmul.f32.gmra.mxu0 %v3736
      %v5576 = vpop.f32.mrf.mxu0
      %v5577 = vadd.f32 %v5368, %v5576
      %5578 = vmatmul.f32.gmra.mxu0 %v3752
      %v5579 = vpop.f32.mrf.mxu0
      %v5580 = vadd.f32 %v5371, %v5579
      %5581 = vmatmul.f32.gmra.mxu0 %v3768
      %v5582 = vpop.f32.mrf.mxu0
      %v5583 = vadd.f32 %v5374, %v5582
      %5584 = vmatmul.f32.gmra.mxu0 %v3784
      %v5585 = vpop.f32.mrf.mxu0
      %v5586 = vadd.f32 %v5377, %v5585
      %5587 = vmatmul.f32.gmra.mxu0 %v3800
      %v5588 = vpop.f32.mrf.mxu0
      %v5589 = vadd.f32 %v5380, %v5588
      %5590 = vmatmul.f32.gmra.mxu0 %v3816
      %v5591 = vpop.f32.mrf.mxu0
      %v5592 = vadd.f32 %v5383, %v5591
      %5593 = vmatmul.f32.gmra.mxu0 %v3832
      %v5594 = vpop.f32.mrf.mxu0
      %v5595 = vadd.f32 %v5386, %v5594
      %5596 = vmatmul.f32.gmra.mxu0 %v3848
      %v5597 = vpop.f32.mrf.mxu0
      %v5598 = vadd.f32 %v5389, %v5597
      %5599 = vmatmul.f32.gmra.mxu0 %v3864
      %v5600 = vpop.f32.mrf.mxu0
      %v5601 = vadd.f32 %v5392, %v5600
      %5602 = vmatmul.f32.gmra.mxu0 %v3880
      %v5603 = vpop.f32.mrf.mxu0
      %v5604 = vadd.f32 %v5395, %v5603
      %5605 = vmatmul.f32.gmra.mxu0 %v3896
      %v5606 = vpop.f32.mrf.mxu0
      %v5607 = vadd.f32 %v5398, %v5606
      %5608 = vmatmul.f32.gmra.mxu0 %v3912
      %v5609 = vpop.f32.mrf.mxu0
      %v5610 = vadd.f32 %v5401, %v5609
      %5611 = vmatmul.f32.gmra.mxu0 %v3928
      %v5612 = vpop.f32.mrf.mxu0
      %v5613 = vadd.f32 %v5404, %v5612
      %5614 = vmatmul.f32.gmra.mxu0 %v3944
      %v5615 = vpop.f32.mrf.mxu0
      %v5616 = vadd.f32 %v5407, %v5615
      %5617 = vmatmul.f32.gmra.mxu0 %v3960
      %v5618 = vpop.f32.mrf.mxu0
      %v5619 = vadd.f32 %v5410, %v5618
      %5620 = vmatmul.f32.gmra.mxu0 %v3976
      %v5621 = vpop.f32.mrf.mxu0
      %v5622 = vadd.f32 %v5413, %v5621
      %5623 = vmatmul.f32.gmra.mxu0 %v3992
      %v5624 = vpop.f32.mrf.mxu0
      %v5625 = vadd.f32 %v5416, %v5624
      %5626 = vmatmul.f32.gmra.mxu0 %v4008
      %v5627 = vpop.f32.mrf.mxu0
      %v5628 = vadd.f32 %v5419, %v5627
      %5629 = vmatmul.f32.gmra.mxu0 %v4024
      %v5630 = vpop.f32.mrf.mxu0
      %v5631 = vadd.f32 %v5422, %v5630
      %5632 = vmatmul.f32.gmra.mxu0 %v4040
      %v5633 = vpop.f32.mrf.mxu0
      %v5634 = vadd.f32 %v5425, %v5633
      %5635 = vmatmul.f32.gmra.mxu0 %v4056
      %v5636 = vpop.f32.mrf.mxu0
      %v5637 = vadd.f32 %v5428, %v5636
      %5638 = vmatmul.f32.gmra.mxu0 %v4072
      %v5639 = vpop.f32.mrf.mxu0
      %v5640 = vadd.f32 %v5431, %v5639
      %5641 = vmatmul.f32.gmra.mxu0 %v4088
      %v5642 = vpop.f32.mrf.mxu0
      %v5643 = vadd.f32 %v5434, %v5642
      %5644 = vmatmul.f32.gmra.mxu0 %v4104
      %v5645 = vpop.f32.mrf.mxu0
      %v5646 = vadd.f32 %v5437, %v5645
      %5647 = vmatmul.f32.gmra.mxu0 %v4120
      %v5648 = vpop.f32.mrf.mxu0
      %v5649 = vadd.f32 %v5440, %v5648
      %5650 = vmatmul.f32.gmra.mxu0 %v4136
      %v5651 = vpop.f32.mrf.mxu0
      %v5652 = vadd.f32 %v5443, %v5651
      %5653 = vmatmul.f32.gmra.mxu0 %v4152
      %v5654 = vpop.f32.mrf.mxu0
      %v5655 = vadd.f32 %v5446, %v5654
      %5656 = vmatmul.f32.gmra.mxu0 %v4168
      %v5657 = vpop.f32.mrf.mxu0
      %v5658 = vadd.f32 %v5449, %v5657
      %5659 = vmatmul.f32.gmra.mxu0 %v4184
      %v5660 = vpop.f32.mrf.mxu0
      %v5661 = vadd.f32 %v5452, %v5660
      %5662 = vmatmul.f32.gmra.mxu0 %v4200
      %v5663 = vpop.f32.mrf.mxu0
      %v5664 = vadd.f32 %v5455, %v5663
      %5665 = vmatmul.f32.gmra.mxu0 %v4216
      %v5666 = vpop.f32.mrf.mxu0
      %v5667 = vadd.f32 %v5458, %v5666
      %5668 = vmatmul.f32.gmra.mxu0 %v4232
      %v5669 = vpop.f32.mrf.mxu0
      %v5670 = vadd.f32 %v5461, %v5669
      %5671 = vmatmul.f32.gmra.mxu0 %v4248
      %v5672 = vpop.f32.mrf.mxu0
      %v5673 = vadd.f32 %v5464, %v5672
      %5674 = vmatmul.f32.gmra.mxu0 %v4264
      %v5675 = vpop.f32.mrf.mxu0
      %v5676 = vadd.f32 %v5467, %v5675
      %5677 = vmatmul.f32.gmra.mxu0 %v4280
      %v5678 = vpop.f32.mrf.mxu0
      %v5679 = vadd.f32 %v5470, %v5678
      %5680 = vmatmul.f32.gmra.mxu0 %v4296
      %v5681 = vpop.f32.mrf.mxu0
      %v5682 = vadd.f32 %v5473, %v5681
      %5683 = vmatmul.f32.gmra.mxu0 %v4312
      %v5684 = vpop.f32.mrf.mxu0
      %v5685 = vadd.f32 %v5476, %v5684
      %5686 = vmatmul.f32.gmra.mxu0 %v4328
      %v5687 = vpop.f32.mrf.mxu0
      %v5688 = vadd.f32 %v5479, %v5687
      %5689 = vmatmul.f32.gmra.mxu0 %v4344
      %v5690 = vpop.f32.mrf.mxu0
      %v5691 = vadd.f32 %v5482, %v5690
      %5692 = vmatmul.f32.gmra.mxu0 %v4360
      %v5693 = vpop.f32.mrf.mxu0
      %v5694 = vadd.f32 %v5485, %v5693
      %5695 = vmatmul.f32.gmra.mxu0 %v4376
      %v5696 = vpop.f32.mrf.mxu0
      %v5697 = vadd.f32 %v5488, %v5696
      %5698 = vmatmul.f32.gmra.mxu0 %v4392
      %v5699 = vpop.f32.mrf.mxu0
      %v5700 = vadd.f32 %v5491, %v5699
      %5701 = vmatmul.f32.gmra.mxu0 %v4408
      %v5702 = vpop.f32.mrf.mxu0
      %v5703 = vadd.f32 %v5494, %v5702
      %5704 = vmatmul.f32.gmra.mxu0 %v4424
      %v5705 = vpop.f32.mrf.mxu0
      %v5706 = vadd.f32 %v5497, %v5705
      %5707 = vmatmul.f32.gmra.mxu0 %v4440
      %v5708 = vpop.f32.mrf.mxu0
      %v5709 = vadd.f32 %v5500, %v5708
      %5710 = vmatmul.f32.gmra.mxu0 %v4456
      %v5711 = vpop.f32.mrf.mxu0
      %v5712 = vadd.f32 %v5503, %v5711
      %5713 = vmatmul.f32.gmra.mxu0 %v4472
      %v5714 = vpop.f32.mrf.mxu0
      %v5715 = vadd.f32 %v5506, %v5714
      %5716 = vmatmul.f32.gmra.mxu0 %v4488
      %v5717 = vpop.f32.mrf.mxu0
      %v5718 = vadd.f32 %v5509, %v5717
      %5719 = vmatmul.f32.gmra.mxu0 %v4504
      %v5720 = vpop.f32.mrf.mxu0
      %v5721 = vadd.f32 %v5512, %v5720
      %5722 = vmatmul.f32.gmra.mxu0 %v4520
      %v5723 = vpop.f32.mrf.mxu0
      %v5724 = vadd.f32 %v5515, %v5723
      %5725 = vmatmul.f32.gmra.mxu0 %v4536
      %v5726 = vpop.f32.mrf.mxu0
      %v5727 = vadd.f32 %v5518, %v5726
      %5728 = vmatmul.f32.gmra.mxu0 %v4552
      %v5729 = vpop.f32.mrf.mxu0
      %v5730 = vadd.f32 %v5521, %v5729
      %5731 = vmatmul.f32.gmra.mxu0 %v4568
      %v5732 = vpop.f32.mrf.mxu0
      %v5733 = vadd.f32 %v5524, %v5732
      %5734 = vmatmul.f32.gmra.mxu0 %v4584
      %v5735 = vpop.f32.mrf.mxu0
      %v5736 = vadd.f32 %v5527, %v5735
      %5737 = vmatmul.f32.gmra.mxu0 %v4600
      %v5738 = vpop.f32.mrf.mxu0
      %v5739 = vadd.f32 %v5530, %v5738
      %5740 = vmatmul.f32.gmra.mxu0 %v4616
      %v5741 = vpop.f32.mrf.mxu0
      %v5742 = vadd.f32 %v5533, %v5741
      %5743 = vmatmul.f32.gmra.mxu0 %v4632
      %v5744 = vpop.f32.mrf.mxu0
      %v5745 = vadd.f32 %v5536, %v5744
      %5746 = vmatmul.f32.gmra.mxu0 %v4648
      %v5747 = vpop.f32.mrf.mxu0
      %v5748 = vadd.f32 %v5539, %v5747
      %5749 = vmatmul.f32.gmra.mxu0 %v4664
      %v5750 = vpop.f32.mrf.mxu0
      %v5751 = vadd.f32 %v5542, %v5750
      %5752 = vmatmul.f32.gmra.mxu0 %v4680
      %v5753 = vpop.f32.mrf.mxu0
      %v5754 = vadd.f32 %v5545, %v5753
      %5755 = vmatmul.f32.gmra.mxu0 %v4696
      %v5756 = vpop.f32.mrf.mxu0
      %v5757 = vadd.f32 %v5548, %v5756
      %5758 = vmatmul.f32.gmra.mxu0 %v4712
      %v5759 = vpop.f32.mrf.mxu0
      %v5760 = vadd.f32 %v5551, %v5759
      %5761 = vmatmul.f32.gmra.mxu0 %v4728
      %v5762 = vpop.f32.mrf.mxu0
      %v5763 = vadd.f32 %v5554, %v5762
      %5764 = vdwg.mxu0
      %5765 = vmatpush.msra.mxu0 %v4880
      %5766 = vmatpush.msra.mxu0 %v4879
      %5767 = vmatpush.msra.mxu0 %v4878
      %5768 = vmatpush.msra.mxu0 %v4877
      %5769 = vmatpush.msra.mxu0 %v4876
      %5770 = vmatpush.msra.mxu0 %v4875
      %5771 = vmatpush.msra.mxu0 %v4874
      %5772 = vmatpush.msra.mxu0 %v4873
      %5773 = vmatpush.msra.mxu0 %v4872
      %5774 = vmatpush.msra.mxu0 %v4871
      %5775 = vmatpush.msra.mxu0 %v4870
      %5776 = vmatpush.msra.mxu0 %v4869
      %5777 = vmatpush.msra.mxu0 %v4868
      %5778 = vmatpush.msra.mxu0 %v4867
      %5779 = vmatpush.msra.mxu0 %v4866
      %5780 = vmatpush.msra.mxu0 %v4865
      %5781 = vmatmul.f32.gmra.mxu0 %v3722
      %v5782 = vpop.f32.mrf.mxu0
      %v5783 = vadd.f32 %v5574, %v5782
      %5784 = vmatmul.f32.gmra.mxu0 %v3738
      %v5785 = vpop.f32.mrf.mxu0
      %v5786 = vadd.f32 %v5577, %v5785
      %5787 = vmatmul.f32.gmra.mxu0 %v3754
      %v5788 = vpop.f32.mrf.mxu0
      %v5789 = vadd.f32 %v5580, %v5788
      %5790 = vmatmul.f32.gmra.mxu0 %v3770
      %v5791 = vpop.f32.mrf.mxu0
      %v5792 = vadd.f32 %v5583, %v5791
      %5793 = vmatmul.f32.gmra.mxu0 %v3786
      %v5794 = vpop.f32.mrf.mxu0
      %v5795 = vadd.f32 %v5586, %v5794
      %5796 = vmatmul.f32.gmra.mxu0 %v3802
      %v5797 = vpop.f32.mrf.mxu0
      %v5798 = vadd.f32 %v5589, %v5797
      %5799 = vmatmul.f32.gmra.mxu0 %v3818
      %v5800 = vpop.f32.mrf.mxu0
      %v5801 = vadd.f32 %v5592, %v5800
      %5802 = vmatmul.f32.gmra.mxu0 %v3834
      %v5803 = vpop.f32.mrf.mxu0
      %v5804 = vadd.f32 %v5595, %v5803
      %5805 = vmatmul.f32.gmra.mxu0 %v3850
      %v5806 = vpop.f32.mrf.mxu0
      %v5807 = vadd.f32 %v5598, %v5806
      %5808 = vmatmul.f32.gmra.mxu0 %v3866
      %v5809 = vpop.f32.mrf.mxu0
      %v5810 = vadd.f32 %v5601, %v5809
      %5811 = vmatmul.f32.gmra.mxu0 %v3882
      %v5812 = vpop.f32.mrf.mxu0
      %v5813 = vadd.f32 %v5604, %v5812
      %5814 = vmatmul.f32.gmra.mxu0 %v3898
      %v5815 = vpop.f32.mrf.mxu0
      %v5816 = vadd.f32 %v5607, %v5815
      %5817 = vmatmul.f32.gmra.mxu0 %v3914
      %v5818 = vpop.f32.mrf.mxu0
      %v5819 = vadd.f32 %v5610, %v5818
      %5820 = vmatmul.f32.gmra.mxu0 %v3930
      %v5821 = vpop.f32.mrf.mxu0
      %v5822 = vadd.f32 %v5613, %v5821
      %5823 = vmatmul.f32.gmra.mxu0 %v3946
      %v5824 = vpop.f32.mrf.mxu0
      %v5825 = vadd.f32 %v5616, %v5824
      %5826 = vmatmul.f32.gmra.mxu0 %v3962
      %v5827 = vpop.f32.mrf.mxu0
      %v5828 = vadd.f32 %v5619, %v5827
      %5829 = vmatmul.f32.gmra.mxu0 %v3978
      %v5830 = vpop.f32.mrf.mxu0
      %v5831 = vadd.f32 %v5622, %v5830
      %5832 = vmatmul.f32.gmra.mxu0 %v3994
      %v5833 = vpop.f32.mrf.mxu0
      %v5834 = vadd.f32 %v5625, %v5833
      %5835 = vmatmul.f32.gmra.mxu0 %v4010
      %v5836 = vpop.f32.mrf.mxu0
      %v5837 = vadd.f32 %v5628, %v5836
      %5838 = vmatmul.f32.gmra.mxu0 %v4026
      %v5839 = vpop.f32.mrf.mxu0
      %v5840 = vadd.f32 %v5631, %v5839
      %5841 = vmatmul.f32.gmra.mxu0 %v4042
      %v5842 = vpop.f32.mrf.mxu0
      %v5843 = vadd.f32 %v5634, %v5842
      %5844 = vmatmul.f32.gmra.mxu0 %v4058
      %v5845 = vpop.f32.mrf.mxu0
      %v5846 = vadd.f32 %v5637, %v5845
      %5847 = vmatmul.f32.gmra.mxu0 %v4074
      %v5848 = vpop.f32.mrf.mxu0
      %v5849 = vadd.f32 %v5640, %v5848
      %5850 = vmatmul.f32.gmra.mxu0 %v4090
      %v5851 = vpop.f32.mrf.mxu0
      %v5852 = vadd.f32 %v5643, %v5851
      %5853 = vmatmul.f32.gmra.mxu0 %v4106
      %v5854 = vpop.f32.mrf.mxu0
      %v5855 = vadd.f32 %v5646, %v5854
      %5856 = vmatmul.f32.gmra.mxu0 %v4122
      %v5857 = vpop.f32.mrf.mxu0
      %v5858 = vadd.f32 %v5649, %v5857
      %5859 = vmatmul.f32.gmra.mxu0 %v4138
      %v5860 = vpop.f32.mrf.mxu0
      %v5861 = vadd.f32 %v5652, %v5860
      %5862 = vmatmul.f32.gmra.mxu0 %v4154
      %v5863 = vpop.f32.mrf.mxu0
      %v5864 = vadd.f32 %v5655, %v5863
      %5865 = vmatmul.f32.gmra.mxu0 %v4170
      %v5866 = vpop.f32.mrf.mxu0
      %v5867 = vadd.f32 %v5658, %v5866
      %5868 = vmatmul.f32.gmra.mxu0 %v4186
      %v5869 = vpop.f32.mrf.mxu0
      %v5870 = vadd.f32 %v5661, %v5869
      %5871 = vmatmul.f32.gmra.mxu0 %v4202
      %v5872 = vpop.f32.mrf.mxu0
      %v5873 = vadd.f32 %v5664, %v5872
      %5874 = vmatmul.f32.gmra.mxu0 %v4218
      %v5875 = vpop.f32.mrf.mxu0
      %v5876 = vadd.f32 %v5667, %v5875
      %5877 = vmatmul.f32.gmra.mxu0 %v4234
      %v5878 = vpop.f32.mrf.mxu0
      %v5879 = vadd.f32 %v5670, %v5878
      %5880 = vmatmul.f32.gmra.mxu0 %v4250
      %v5881 = vpop.f32.mrf.mxu0
      %v5882 = vadd.f32 %v5673, %v5881
      %5883 = vmatmul.f32.gmra.mxu0 %v4266
      %v5884 = vpop.f32.mrf.mxu0
      %v5885 = vadd.f32 %v5676, %v5884
      %5886 = vmatmul.f32.gmra.mxu0 %v4282
      %v5887 = vpop.f32.mrf.mxu0
      %v5888 = vadd.f32 %v5679, %v5887
      %5889 = vmatmul.f32.gmra.mxu0 %v4298
      %v5890 = vpop.f32.mrf.mxu0
      %v5891 = vadd.f32 %v5682, %v5890
      %5892 = vmatmul.f32.gmra.mxu0 %v4314
      %v5893 = vpop.f32.mrf.mxu0
      %v5894 = vadd.f32 %v5685, %v5893
      %5895 = vmatmul.f32.gmra.mxu0 %v4330
      %v5896 = vpop.f32.mrf.mxu0
      %v5897 = vadd.f32 %v5688, %v5896
      %5898 = vmatmul.f32.gmra.mxu0 %v4346
      %v5899 = vpop.f32.mrf.mxu0
      %v5900 = vadd.f32 %v5691, %v5899
      %5901 = vmatmul.f32.gmra.mxu0 %v4362
      %v5902 = vpop.f32.mrf.mxu0
      %v5903 = vadd.f32 %v5694, %v5902
      %5904 = vmatmul.f32.gmra.mxu0 %v4378
      %v5905 = vpop.f32.mrf.mxu0
      %v5906 = vadd.f32 %v5697, %v5905
      %5907 = vmatmul.f32.gmra.mxu0 %v4394
      %v5908 = vpop.f32.mrf.mxu0
      %v5909 = vadd.f32 %v5700, %v5908
      %5910 = vmatmul.f32.gmra.mxu0 %v4410
      %v5911 = vpop.f32.mrf.mxu0
      %v5912 = vadd.f32 %v5703, %v5911
      %5913 = vmatmul.f32.gmra.mxu0 %v4426
      %v5914 = vpop.f32.mrf.mxu0
      %v5915 = vadd.f32 %v5706, %v5914
      %5916 = vmatmul.f32.gmra.mxu0 %v4442
      %v5917 = vpop.f32.mrf.mxu0
      %v5918 = vadd.f32 %v5709, %v5917
      %5919 = vmatmul.f32.gmra.mxu0 %v4458
      %v5920 = vpop.f32.mrf.mxu0
      %v5921 = vadd.f32 %v5712, %v5920
      %5922 = vmatmul.f32.gmra.mxu0 %v4474
      %v5923 = vpop.f32.mrf.mxu0
      %v5924 = vadd.f32 %v5715, %v5923
      %5925 = vmatmul.f32.gmra.mxu0 %v4490
      %v5926 = vpop.f32.mrf.mxu0
      %v5927 = vadd.f32 %v5718, %v5926
      %5928 = vmatmul.f32.gmra.mxu0 %v4506
      %v5929 = vpop.f32.mrf.mxu0
      %v5930 = vadd.f32 %v5721, %v5929
      %5931 = vmatmul.f32.gmra.mxu0 %v4522
      %v5932 = vpop.f32.mrf.mxu0
      %v5933 = vadd.f32 %v5724, %v5932
      %5934 = vmatmul.f32.gmra.mxu0 %v4538
      %v5935 = vpop.f32.mrf.mxu0
      %v5936 = vadd.f32 %v5727, %v5935
      %5937 = vmatmul.f32.gmra.mxu0 %v4554
      %v5938 = vpop.f32.mrf.mxu0
      %v5939 = vadd.f32 %v5730, %v5938
      %5940 = vmatmul.f32.gmra.mxu0 %v4570
      %v5941 = vpop.f32.mrf.mxu0
      %v5942 = vadd.f32 %v5733, %v5941
      %5943 = vmatmul.f32.gmra.mxu0 %v4586
      %v5944 = vpop.f32.mrf.mxu0
      %v5945 = vadd.f32 %v5736, %v5944
      %5946 = vmatmul.f32.gmra.mxu0 %v4602
      %v5947 = vpop.f32.mrf.mxu0
      %v5948 = vadd.f32 %v5739, %v5947
      %5949 = vmatmul.f32.gmra.mxu0 %v4618
      %v5950 = vpop.f32.mrf.mxu0
      %v5951 = vadd.f32 %v5742, %v5950
      %5952 = vmatmul.f32.gmra.mxu0 %v4634
      %v5953 = vpop.f32.mrf.mxu0
      %v5954 = vadd.f32 %v5745, %v5953
      %5955 = vmatmul.f32.gmra.mxu0 %v4650
      %v5956 = vpop.f32.mrf.mxu0
      %v5957 = vadd.f32 %v5748, %v5956
      %5958 = vmatmul.f32.gmra.mxu0 %v4666
      %v5959 = vpop.f32.mrf.mxu0
      %v5960 = vadd.f32 %v5751, %v5959
      %5961 = vmatmul.f32.gmra.mxu0 %v4682
      %v5962 = vpop.f32.mrf.mxu0
      %v5963 = vadd.f32 %v5754, %v5962
      %5964 = vmatmul.f32.gmra.mxu0 %v4698
      %v5965 = vpop.f32.mrf.mxu0
      %v5966 = vadd.f32 %v5757, %v5965
      %5967 = vmatmul.f32.gmra.mxu0 %v4714
      %v5968 = vpop.f32.mrf.mxu0
      %v5969 = vadd.f32 %v5760, %v5968
      %5970 = vmatmul.f32.gmra.mxu0 %v4730
      %v5971 = vpop.f32.mrf.mxu0
      %v5972 = vadd.f32 %v5763, %v5971
      %5973 = vdwg.mxu0
      %5974 = vmatpush.msra.mxu0 %v4896
      %5975 = vmatpush.msra.mxu0 %v4895
      %5976 = vmatpush.msra.mxu0 %v4894
      %5977 = vmatpush.msra.mxu0 %v4893
      %5978 = vmatpush.msra.mxu0 %v4892
      %5979 = vmatpush.msra.mxu0 %v4891
      %5980 = vmatpush.msra.mxu0 %v4890
      %5981 = vmatpush.msra.mxu0 %v4889
      %5982 = vmatpush.msra.mxu0 %v4888
      %5983 = vmatpush.msra.mxu0 %v4887
      %5984 = vmatpush.msra.mxu0 %v4886
      %5985 = vmatpush.msra.mxu0 %v4885
      %5986 = vmatpush.msra.mxu0 %v4884
      %5987 = vmatpush.msra.mxu0 %v4883
      %5988 = vmatpush.msra.mxu0 %v4882
      %5989 = vmatpush.msra.mxu0 %v4881
      %5990 = vmatmul.f32.gmra.mxu0 %v3724
      %v5991 = vpop.f32.mrf.mxu0
      %v5992 = vadd.f32 %v5783, %v5991
      %5993 = vmatmul.f32.gmra.mxu0 %v3740
      %v5994 = vpop.f32.mrf.mxu0
      %v5995 = vadd.f32 %v5786, %v5994
      %5996 = vmatmul.f32.gmra.mxu0 %v3756
      %v5997 = vpop.f32.mrf.mxu0
      %v5998 = vadd.f32 %v5789, %v5997
      %5999 = vmatmul.f32.gmra.mxu0 %v3772
      %v6000 = vpop.f32.mrf.mxu0
      %v6001 = vadd.f32 %v5792, %v6000
      %6002 = vmatmul.f32.gmra.mxu0 %v3788
      %v6003 = vpop.f32.mrf.mxu0
      %v6004 = vadd.f32 %v5795, %v6003
      %6005 = vmatmul.f32.gmra.mxu0 %v3804
      %v6006 = vpop.f32.mrf.mxu0
      %v6007 = vadd.f32 %v5798, %v6006
      %6008 = vmatmul.f32.gmra.mxu0 %v3820
      %v6009 = vpop.f32.mrf.mxu0
      %v6010 = vadd.f32 %v5801, %v6009
      %6011 = vmatmul.f32.gmra.mxu0 %v3836
      %v6012 = vpop.f32.mrf.mxu0
      %v6013 = vadd.f32 %v5804, %v6012
      %6014 = vmatmul.f32.gmra.mxu0 %v3852
      %v6015 = vpop.f32.mrf.mxu0
      %v6016 = vadd.f32 %v5807, %v6015
      %6017 = vmatmul.f32.gmra.mxu0 %v3868
      %v6018 = vpop.f32.mrf.mxu0
      %v6019 = vadd.f32 %v5810, %v6018
      %6020 = vmatmul.f32.gmra.mxu0 %v3884
      %v6021 = vpop.f32.mrf.mxu0
      %v6022 = vadd.f32 %v5813, %v6021
      %6023 = vmatmul.f32.gmra.mxu0 %v3900
      %v6024 = vpop.f32.mrf.mxu0
      %v6025 = vadd.f32 %v5816, %v6024
      %6026 = vmatmul.f32.gmra.mxu0 %v3916
      %v6027 = vpop.f32.mrf.mxu0
      %v6028 = vadd.f32 %v5819, %v6027
      %6029 = vmatmul.f32.gmra.mxu0 %v3932
      %v6030 = vpop.f32.mrf.mxu0
      %v6031 = vadd.f32 %v5822, %v6030
      %6032 = vmatmul.f32.gmra.mxu0 %v3948
      %v6033 = vpop.f32.mrf.mxu0
      %v6034 = vadd.f32 %v5825, %v6033
      %6035 = vmatmul.f32.gmra.mxu0 %v3964
      %v6036 = vpop.f32.mrf.mxu0
      %v6037 = vadd.f32 %v5828, %v6036
      %6038 = vmatmul.f32.gmra.mxu0 %v3980
      %v6039 = vpop.f32.mrf.mxu0
      %v6040 = vadd.f32 %v5831, %v6039
      %6041 = vmatmul.f32.gmra.mxu0 %v3996
      %v6042 = vpop.f32.mrf.mxu0
      %v6043 = vadd.f32 %v5834, %v6042
      %6044 = vmatmul.f32.gmra.mxu0 %v4012
      %v6045 = vpop.f32.mrf.mxu0
      %v6046 = vadd.f32 %v5837, %v6045
      %6047 = vmatmul.f32.gmra.mxu0 %v4028
      %v6048 = vpop.f32.mrf.mxu0
      %v6049 = vadd.f32 %v5840, %v6048
      %6050 = vmatmul.f32.gmra.mxu0 %v4044
      %v6051 = vpop.f32.mrf.mxu0
      %v6052 = vadd.f32 %v5843, %v6051
      %6053 = vmatmul.f32.gmra.mxu0 %v4060
      %v6054 = vpop.f32.mrf.mxu0
      %v6055 = vadd.f32 %v5846, %v6054
      %6056 = vmatmul.f32.gmra.mxu0 %v4076
      %v6057 = vpop.f32.mrf.mxu0
      %v6058 = vadd.f32 %v5849, %v6057
      %6059 = vmatmul.f32.gmra.mxu0 %v4092
      %v6060 = vpop.f32.mrf.mxu0
      %v6061 = vadd.f32 %v5852, %v6060
      %6062 = vmatmul.f32.gmra.mxu0 %v4108
      %v6063 = vpop.f32.mrf.mxu0
      %v6064 = vadd.f32 %v5855, %v6063
      %6065 = vmatmul.f32.gmra.mxu0 %v4124
      %v6066 = vpop.f32.mrf.mxu0
      %v6067 = vadd.f32 %v5858, %v6066
      %6068 = vmatmul.f32.gmra.mxu0 %v4140
      %v6069 = vpop.f32.mrf.mxu0
      %v6070 = vadd.f32 %v5861, %v6069
      %6071 = vmatmul.f32.gmra.mxu0 %v4156
      %v6072 = vpop.f32.mrf.mxu0
      %v6073 = vadd.f32 %v5864, %v6072
      %6074 = vmatmul.f32.gmra.mxu0 %v4172
      %v6075 = vpop.f32.mrf.mxu0
      %v6076 = vadd.f32 %v5867, %v6075
      %6077 = vmatmul.f32.gmra.mxu0 %v4188
      %v6078 = vpop.f32.mrf.mxu0
      %v6079 = vadd.f32 %v5870, %v6078
      %6080 = vmatmul.f32.gmra.mxu0 %v4204
      %v6081 = vpop.f32.mrf.mxu0
      %v6082 = vadd.f32 %v5873, %v6081
      %6083 = vmatmul.f32.gmra.mxu0 %v4220
      %v6084 = vpop.f32.mrf.mxu0
      %v6085 = vadd.f32 %v5876, %v6084
      %6086 = vmatmul.f32.gmra.mxu0 %v4236
      %v6087 = vpop.f32.mrf.mxu0
      %v6088 = vadd.f32 %v5879, %v6087
      %6089 = vmatmul.f32.gmra.mxu0 %v4252
      %v6090 = vpop.f32.mrf.mxu0
      %v6091 = vadd.f32 %v5882, %v6090
      %6092 = vmatmul.f32.gmra.mxu0 %v4268
      %v6093 = vpop.f32.mrf.mxu0
      %v6094 = vadd.f32 %v5885, %v6093
      %6095 = vmatmul.f32.gmra.mxu0 %v4284
      %v6096 = vpop.f32.mrf.mxu0
      %v6097 = vadd.f32 %v5888, %v6096
      %6098 = vmatmul.f32.gmra.mxu0 %v4300
      %v6099 = vpop.f32.mrf.mxu0
      %v6100 = vadd.f32 %v5891, %v6099
      %6101 = vmatmul.f32.gmra.mxu0 %v4316
      %v6102 = vpop.f32.mrf.mxu0
      %v6103 = vadd.f32 %v5894, %v6102
      %6104 = vmatmul.f32.gmra.mxu0 %v4332
      %v6105 = vpop.f32.mrf.mxu0
      %v6106 = vadd.f32 %v5897, %v6105
      %6107 = vmatmul.f32.gmra.mxu0 %v4348
      %v6108 = vpop.f32.mrf.mxu0
      %v6109 = vadd.f32 %v5900, %v6108
      %6110 = vmatmul.f32.gmra.mxu0 %v4364
      %v6111 = vpop.f32.mrf.mxu0
      %v6112 = vadd.f32 %v5903, %v6111
      %6113 = vmatmul.f32.gmra.mxu0 %v4380
      %v6114 = vpop.f32.mrf.mxu0
      %v6115 = vadd.f32 %v5906, %v6114
      %6116 = vmatmul.f32.gmra.mxu0 %v4396
      %v6117 = vpop.f32.mrf.mxu0
      %v6118 = vadd.f32 %v5909, %v6117
      %6119 = vmatmul.f32.gmra.mxu0 %v4412
      %v6120 = vpop.f32.mrf.mxu0
      %v6121 = vadd.f32 %v5912, %v6120
      %6122 = vmatmul.f32.gmra.mxu0 %v4428
      %v6123 = vpop.f32.mrf.mxu0
      %v6124 = vadd.f32 %v5915, %v6123
      %6125 = vmatmul.f32.gmra.mxu0 %v4444
      %v6126 = vpop.f32.mrf.mxu0
      %v6127 = vadd.f32 %v5918, %v6126
      %6128 = vmatmul.f32.gmra.mxu0 %v4460
      %v6129 = vpop.f32.mrf.mxu0
      %v6130 = vadd.f32 %v5921, %v6129
      %6131 = vmatmul.f32.gmra.mxu0 %v4476
      %v6132 = vpop.f32.mrf.mxu0
      %v6133 = vadd.f32 %v5924, %v6132
      %6134 = vmatmul.f32.gmra.mxu0 %v4492
      %v6135 = vpop.f32.mrf.mxu0
      %v6136 = vadd.f32 %v5927, %v6135
      %6137 = vmatmul.f32.gmra.mxu0 %v4508
      %v6138 = vpop.f32.mrf.mxu0
      %v6139 = vadd.f32 %v5930, %v6138
      %6140 = vmatmul.f32.gmra.mxu0 %v4524
      %v6141 = vpop.f32.mrf.mxu0
      %v6142 = vadd.f32 %v5933, %v6141
      %6143 = vmatmul.f32.gmra.mxu0 %v4540
      %v6144 = vpop.f32.mrf.mxu0
      %v6145 = vadd.f32 %v5936, %v6144
      %6146 = vmatmul.f32.gmra.mxu0 %v4556
      %v6147 = vpop.f32.mrf.mxu0
      %v6148 = vadd.f32 %v5939, %v6147
      %6149 = vmatmul.f32.gmra.mxu0 %v4572
      %v6150 = vpop.f32.mrf.mxu0
      %v6151 = vadd.f32 %v5942, %v6150
      %6152 = vmatmul.f32.gmra.mxu0 %v4588
      %v6153 = vpop.f32.mrf.mxu0
      %v6154 = vadd.f32 %v5945, %v6153
      %6155 = vmatmul.f32.gmra.mxu0 %v4604
      %v6156 = vpop.f32.mrf.mxu0
      %v6157 = vadd.f32 %v5948, %v6156
      %6158 = vmatmul.f32.gmra.mxu0 %v4620
      %v6159 = vpop.f32.mrf.mxu0
      %v6160 = vadd.f32 %v5951, %v6159
      %6161 = vmatmul.f32.gmra.mxu0 %v4636
      %v6162 = vpop.f32.mrf.mxu0
      %v6163 = vadd.f32 %v5954, %v6162
      %6164 = vmatmul.f32.gmra.mxu0 %v4652
      %v6165 = vpop.f32.mrf.mxu0
      %v6166 = vadd.f32 %v5957, %v6165
      %6167 = vmatmul.f32.gmra.mxu0 %v4668
      %v6168 = vpop.f32.mrf.mxu0
      %v6169 = vadd.f32 %v5960, %v6168
      %6170 = vmatmul.f32.gmra.mxu0 %v4684
      %v6171 = vpop.f32.mrf.mxu0
      %v6172 = vadd.f32 %v5963, %v6171
      %6173 = vmatmul.f32.gmra.mxu0 %v4700
      %v6174 = vpop.f32.mrf.mxu0
      %v6175 = vadd.f32 %v5966, %v6174
      %6176 = vmatmul.f32.gmra.mxu0 %v4716
      %v6177 = vpop.f32.mrf.mxu0
      %v6178 = vadd.f32 %v5969, %v6177
      %6179 = vmatmul.f32.gmra.mxu0 %v4732
      %v6180 = vpop.f32.mrf.mxu0
      %v6181 = vadd.f32 %v5972, %v6180
      %6182 = vdwg.mxu0
      %6183 = vmatpush.msra.mxu0 %v4912
      %6184 = vmatpush.msra.mxu0 %v4911
      %6185 = vmatpush.msra.mxu0 %v4910
      %6186 = vmatpush.msra.mxu0 %v4909
      %6187 = vmatpush.msra.mxu0 %v4908
      %6188 = vmatpush.msra.mxu0 %v4907
      %6189 = vmatpush.msra.mxu0 %v4906
      %6190 = vmatpush.msra.mxu0 %v4905
      %6191 = vmatpush.msra.mxu0 %v4904
      %6192 = vmatpush.msra.mxu0 %v4903
      %6193 = vmatpush.msra.mxu0 %v4902
      %6194 = vmatpush.msra.mxu0 %v4901
      %6195 = vmatpush.msra.mxu0 %v4900
      %6196 = vmatpush.msra.mxu0 %v4899
      %6197 = vmatpush.msra.mxu0 %v4898
      %6198 = vmatpush.msra.mxu0 %v4897
      %6199 = vmatmul.f32.gmra.mxu0 %v3726
      %v6200 = vpop.f32.mrf.mxu0
      %v6201 = vadd.f32 %v5992, %v6200
      %6202 = vmatmul.f32.gmra.mxu0 %v3742
      %v6203 = vpop.f32.mrf.mxu0
      %v6204 = vadd.f32 %v5995, %v6203
      %6205 = vmatmul.f32.gmra.mxu0 %v3758
      %v6206 = vpop.f32.mrf.mxu0
      %v6207 = vadd.f32 %v5998, %v6206
      %6208 = vmatmul.f32.gmra.mxu0 %v3774
      %v6209 = vpop.f32.mrf.mxu0
      %v6210 = vadd.f32 %v6001, %v6209
      %6211 = vmatmul.f32.gmra.mxu0 %v3790
      %v6212 = vpop.f32.mrf.mxu0
      %v6213 = vadd.f32 %v6004, %v6212
      %6214 = vmatmul.f32.gmra.mxu0 %v3806
      %v6215 = vpop.f32.mrf.mxu0
      %v6216 = vadd.f32 %v6007, %v6215
      %6217 = vmatmul.f32.gmra.mxu0 %v3822
      %v6218 = vpop.f32.mrf.mxu0
      %v6219 = vadd.f32 %v6010, %v6218
      %6220 = vmatmul.f32.gmra.mxu0 %v3838
      %v6221 = vpop.f32.mrf.mxu0
      %v6222 = vadd.f32 %v6013, %v6221
      %6223 = vmatmul.f32.gmra.mxu0 %v3854
      %v6224 = vpop.f32.mrf.mxu0
      %v6225 = vadd.f32 %v6016, %v6224
      %6226 = vmatmul.f32.gmra.mxu0 %v3870
      %v6227 = vpop.f32.mrf.mxu0
      %v6228 = vadd.f32 %v6019, %v6227
      %6229 = vmatmul.f32.gmra.mxu0 %v3886
      %v6230 = vpop.f32.mrf.mxu0
      %v6231 = vadd.f32 %v6022, %v6230
      %6232 = vmatmul.f32.gmra.mxu0 %v3902
      %v6233 = vpop.f32.mrf.mxu0
      %v6234 = vadd.f32 %v6025, %v6233
      %6235 = vmatmul.f32.gmra.mxu0 %v3918
      %v6236 = vpop.f32.mrf.mxu0
      %v6237 = vadd.f32 %v6028, %v6236
      %6238 = vmatmul.f32.gmra.mxu0 %v3934
      %v6239 = vpop.f32.mrf.mxu0
      %v6240 = vadd.f32 %v6031, %v6239
      %6241 = vmatmul.f32.gmra.mxu0 %v3950
      %v6242 = vpop.f32.mrf.mxu0
      %v6243 = vadd.f32 %v6034, %v6242
      %6244 = vmatmul.f32.gmra.mxu0 %v3966
      %v6245 = vpop.f32.mrf.mxu0
      %v6246 = vadd.f32 %v6037, %v6245
      %6247 = vmatmul.f32.gmra.mxu0 %v3982
      %v6248 = vpop.f32.mrf.mxu0
      %v6249 = vadd.f32 %v6040, %v6248
      %6250 = vmatmul.f32.gmra.mxu0 %v3998
      %v6251 = vpop.f32.mrf.mxu0
      %v6252 = vadd.f32 %v6043, %v6251
      %6253 = vmatmul.f32.gmra.mxu0 %v4014
      %v6254 = vpop.f32.mrf.mxu0
      %v6255 = vadd.f32 %v6046, %v6254
      %6256 = vmatmul.f32.gmra.mxu0 %v4030
      %v6257 = vpop.f32.mrf.mxu0
      %v6258 = vadd.f32 %v6049, %v6257
      %6259 = vmatmul.f32.gmra.mxu0 %v4046
      %v6260 = vpop.f32.mrf.mxu0
      %v6261 = vadd.f32 %v6052, %v6260
      %6262 = vmatmul.f32.gmra.mxu0 %v4062
      %v6263 = vpop.f32.mrf.mxu0
      %v6264 = vadd.f32 %v6055, %v6263
      %6265 = vmatmul.f32.gmra.mxu0 %v4078
      %v6266 = vpop.f32.mrf.mxu0
      %v6267 = vadd.f32 %v6058, %v6266
      %6268 = vmatmul.f32.gmra.mxu0 %v4094
      %v6269 = vpop.f32.mrf.mxu0
      %v6270 = vadd.f32 %v6061, %v6269
      %6271 = vmatmul.f32.gmra.mxu0 %v4110
      %v6272 = vpop.f32.mrf.mxu0
      %v6273 = vadd.f32 %v6064, %v6272
      %6274 = vmatmul.f32.gmra.mxu0 %v4126
      %v6275 = vpop.f32.mrf.mxu0
      %v6276 = vadd.f32 %v6067, %v6275
      %6277 = vmatmul.f32.gmra.mxu0 %v4142
      %v6278 = vpop.f32.mrf.mxu0
      %v6279 = vadd.f32 %v6070, %v6278
      %6280 = vmatmul.f32.gmra.mxu0 %v4158
      %v6281 = vpop.f32.mrf.mxu0
      %v6282 = vadd.f32 %v6073, %v6281
      %6283 = vmatmul.f32.gmra.mxu0 %v4174
      %v6284 = vpop.f32.mrf.mxu0
      %v6285 = vadd.f32 %v6076, %v6284
      %6286 = vmatmul.f32.gmra.mxu0 %v4190
      %v6287 = vpop.f32.mrf.mxu0
      %v6288 = vadd.f32 %v6079, %v6287
      %6289 = vmatmul.f32.gmra.mxu0 %v4206
      %v6290 = vpop.f32.mrf.mxu0
      %v6291 = vadd.f32 %v6082, %v6290
      %6292 = vmatmul.f32.gmra.mxu0 %v4222
      %v6293 = vpop.f32.mrf.mxu0
      %v6294 = vadd.f32 %v6085, %v6293
      %6295 = vmatmul.f32.gmra.mxu0 %v4238
      %v6296 = vpop.f32.mrf.mxu0
      %v6297 = vadd.f32 %v6088, %v6296
      %6298 = vmatmul.f32.gmra.mxu0 %v4254
      %v6299 = vpop.f32.mrf.mxu0
      %v6300 = vadd.f32 %v6091, %v6299
      %6301 = vmatmul.f32.gmra.mxu0 %v4270
      %v6302 = vpop.f32.mrf.mxu0
      %v6303 = vadd.f32 %v6094, %v6302
      %6304 = vmatmul.f32.gmra.mxu0 %v4286
      %v6305 = vpop.f32.mrf.mxu0
      %v6306 = vadd.f32 %v6097, %v6305
      %6307 = vmatmul.f32.gmra.mxu0 %v4302
      %v6308 = vpop.f32.mrf.mxu0
      %v6309 = vadd.f32 %v6100, %v6308
      %6310 = vmatmul.f32.gmra.mxu0 %v4318
      %v6311 = vpop.f32.mrf.mxu0
      %v6312 = vadd.f32 %v6103, %v6311
      %6313 = vmatmul.f32.gmra.mxu0 %v4334
      %v6314 = vpop.f32.mrf.mxu0
      %v6315 = vadd.f32 %v6106, %v6314
      %6316 = vmatmul.f32.gmra.mxu0 %v4350
      %v6317 = vpop.f32.mrf.mxu0
      %v6318 = vadd.f32 %v6109, %v6317
      %6319 = vmatmul.f32.gmra.mxu0 %v4366
      %v6320 = vpop.f32.mrf.mxu0
      %v6321 = vadd.f32 %v6112, %v6320
      %6322 = vmatmul.f32.gmra.mxu0 %v4382
      %v6323 = vpop.f32.mrf.mxu0
      %v6324 = vadd.f32 %v6115, %v6323
      %6325 = vmatmul.f32.gmra.mxu0 %v4398
      %v6326 = vpop.f32.mrf.mxu0
      %v6327 = vadd.f32 %v6118, %v6326
      %6328 = vmatmul.f32.gmra.mxu0 %v4414
      %v6329 = vpop.f32.mrf.mxu0
      %v6330 = vadd.f32 %v6121, %v6329
      %6331 = vmatmul.f32.gmra.mxu0 %v4430
      %v6332 = vpop.f32.mrf.mxu0
      %v6333 = vadd.f32 %v6124, %v6332
      %6334 = vmatmul.f32.gmra.mxu0 %v4446
      %v6335 = vpop.f32.mrf.mxu0
      %v6336 = vadd.f32 %v6127, %v6335
      %6337 = vmatmul.f32.gmra.mxu0 %v4462
      %v6338 = vpop.f32.mrf.mxu0
      %v6339 = vadd.f32 %v6130, %v6338
      %6340 = vmatmul.f32.gmra.mxu0 %v4478
      %v6341 = vpop.f32.mrf.mxu0
      %v6342 = vadd.f32 %v6133, %v6341
      %6343 = vmatmul.f32.gmra.mxu0 %v4494
      %v6344 = vpop.f32.mrf.mxu0
      %v6345 = vadd.f32 %v6136, %v6344
      %6346 = vmatmul.f32.gmra.mxu0 %v4510
      %v6347 = vpop.f32.mrf.mxu0
      %v6348 = vadd.f32 %v6139, %v6347
      %6349 = vmatmul.f32.gmra.mxu0 %v4526
      %v6350 = vpop.f32.mrf.mxu0
      %v6351 = vadd.f32 %v6142, %v6350
      %6352 = vmatmul.f32.gmra.mxu0 %v4542
      %v6353 = vpop.f32.mrf.mxu0
      %v6354 = vadd.f32 %v6145, %v6353
      %6355 = vmatmul.f32.gmra.mxu0 %v4558
      %v6356 = vpop.f32.mrf.mxu0
      %v6357 = vadd.f32 %v6148, %v6356
      %6358 = vmatmul.f32.gmra.mxu0 %v4574
      %v6359 = vpop.f32.mrf.mxu0
      %v6360 = vadd.f32 %v6151, %v6359
      %6361 = vmatmul.f32.gmra.mxu0 %v4590
      %v6362 = vpop.f32.mrf.mxu0
      %v6363 = vadd.f32 %v6154, %v6362
      %6364 = vmatmul.f32.gmra.mxu0 %v4606
      %v6365 = vpop.f32.mrf.mxu0
      %v6366 = vadd.f32 %v6157, %v6365
      %6367 = vmatmul.f32.gmra.mxu0 %v4622
      %v6368 = vpop.f32.mrf.mxu0
      %v6369 = vadd.f32 %v6160, %v6368
      %6370 = vmatmul.f32.gmra.mxu0 %v4638
      %v6371 = vpop.f32.mrf.mxu0
      %v6372 = vadd.f32 %v6163, %v6371
      %6373 = vmatmul.f32.gmra.mxu0 %v4654
      %v6374 = vpop.f32.mrf.mxu0
      %v6375 = vadd.f32 %v6166, %v6374
      %6376 = vmatmul.f32.gmra.mxu0 %v4670
      %v6377 = vpop.f32.mrf.mxu0
      %v6378 = vadd.f32 %v6169, %v6377
      %6379 = vmatmul.f32.gmra.mxu0 %v4686
      %v6380 = vpop.f32.mrf.mxu0
      %v6381 = vadd.f32 %v6172, %v6380
      %6382 = vmatmul.f32.gmra.mxu0 %v4702
      %v6383 = vpop.f32.mrf.mxu0
      %v6384 = vadd.f32 %v6175, %v6383
      %6385 = vmatmul.f32.gmra.mxu0 %v4718
      %v6386 = vpop.f32.mrf.mxu0
      %v6387 = vadd.f32 %v6178, %v6386
      %6388 = vmatmul.f32.gmra.mxu0 %v4734
      %v6389 = vpop.f32.mrf.mxu0
      %v6390 = vadd.f32 %v6181, %v6389
      %6391 = vdwg.mxu0
      %6392 = vmatpush.msra.mxu0 %v4928
      %6393 = vmatpush.msra.mxu0 %v4927
      %6394 = vmatpush.msra.mxu0 %v4926
      %6395 = vmatpush.msra.mxu0 %v4925
      %6396 = vmatpush.msra.mxu0 %v4924
      %6397 = vmatpush.msra.mxu0 %v4923
      %6398 = vmatpush.msra.mxu0 %v4922
      %6399 = vmatpush.msra.mxu0 %v4921
      %6400 = vmatpush.msra.mxu0 %v4920
      %6401 = vmatpush.msra.mxu0 %v4919
      %6402 = vmatpush.msra.mxu0 %v4918
      %6403 = vmatpush.msra.mxu0 %v4917
      %6404 = vmatpush.msra.mxu0 %v4916
      %6405 = vmatpush.msra.mxu0 %v4915
      %6406 = vmatpush.msra.mxu0 %v4914
      %6407 = vmatpush.msra.mxu0 %v4913
      %6408 = vmatmul.f32.gmra.mxu0 %v3728
      %v6409 = vpop.f32.mrf.mxu0
      %v6410 = vadd.f32 %v6201, %v6409
      %6411 = vmatmul.f32.gmra.mxu0 %v3744
      %v6412 = vpop.f32.mrf.mxu0
      %v6413 = vadd.f32 %v6204, %v6412
      %6414 = vmatmul.f32.gmra.mxu0 %v3760
      %v6415 = vpop.f32.mrf.mxu0
      %v6416 = vadd.f32 %v6207, %v6415
      %6417 = vmatmul.f32.gmra.mxu0 %v3776
      %v6418 = vpop.f32.mrf.mxu0
      %v6419 = vadd.f32 %v6210, %v6418
      %6420 = vmatmul.f32.gmra.mxu0 %v3792
      %v6421 = vpop.f32.mrf.mxu0
      %v6422 = vadd.f32 %v6213, %v6421
      %6423 = vmatmul.f32.gmra.mxu0 %v3808
      %v6424 = vpop.f32.mrf.mxu0
      %v6425 = vadd.f32 %v6216, %v6424
      %6426 = vmatmul.f32.gmra.mxu0 %v3824
      %v6427 = vpop.f32.mrf.mxu0
      %v6428 = vadd.f32 %v6219, %v6427
      %6429 = vmatmul.f32.gmra.mxu0 %v3840
      %v6430 = vpop.f32.mrf.mxu0
      %v6431 = vadd.f32 %v6222, %v6430
      %6432 = vmatmul.f32.gmra.mxu0 %v3856
      %v6433 = vpop.f32.mrf.mxu0
      %v6434 = vadd.f32 %v6225, %v6433
      %6435 = vmatmul.f32.gmra.mxu0 %v3872
      %v6436 = vpop.f32.mrf.mxu0
      %v6437 = vadd.f32 %v6228, %v6436
      %6438 = vmatmul.f32.gmra.mxu0 %v3888
      %v6439 = vpop.f32.mrf.mxu0
      %v6440 = vadd.f32 %v6231, %v6439
      %6441 = vmatmul.f32.gmra.mxu0 %v3904
      %v6442 = vpop.f32.mrf.mxu0
      %v6443 = vadd.f32 %v6234, %v6442
      %6444 = vmatmul.f32.gmra.mxu0 %v3920
      %v6445 = vpop.f32.mrf.mxu0
      %v6446 = vadd.f32 %v6237, %v6445
      %6447 = vmatmul.f32.gmra.mxu0 %v3936
      %v6448 = vpop.f32.mrf.mxu0
      %v6449 = vadd.f32 %v6240, %v6448
      %6450 = vmatmul.f32.gmra.mxu0 %v3952
      %v6451 = vpop.f32.mrf.mxu0
      %v6452 = vadd.f32 %v6243, %v6451
      %6453 = vmatmul.f32.gmra.mxu0 %v3968
      %v6454 = vpop.f32.mrf.mxu0
      %v6455 = vadd.f32 %v6246, %v6454
      %6456 = vmatmul.f32.gmra.mxu0 %v3984
      %v6457 = vpop.f32.mrf.mxu0
      %v6458 = vadd.f32 %v6249, %v6457
      %6459 = vmatmul.f32.gmra.mxu0 %v4000
      %v6460 = vpop.f32.mrf.mxu0
      %v6461 = vadd.f32 %v6252, %v6460
      %6462 = vmatmul.f32.gmra.mxu0 %v4016
      %v6463 = vpop.f32.mrf.mxu0
      %v6464 = vadd.f32 %v6255, %v6463
      %6465 = vmatmul.f32.gmra.mxu0 %v4032
      %v6466 = vpop.f32.mrf.mxu0
      %v6467 = vadd.f32 %v6258, %v6466
      %6468 = vmatmul.f32.gmra.mxu0 %v4048
      %v6469 = vpop.f32.mrf.mxu0
      %v6470 = vadd.f32 %v6261, %v6469
      %6471 = vmatmul.f32.gmra.mxu0 %v4064
      %v6472 = vpop.f32.mrf.mxu0
      %v6473 = vadd.f32 %v6264, %v6472
      %6474 = vmatmul.f32.gmra.mxu0 %v4080
      %v6475 = vpop.f32.mrf.mxu0
      %v6476 = vadd.f32 %v6267, %v6475
      %6477 = vmatmul.f32.gmra.mxu0 %v4096
      %v6478 = vpop.f32.mrf.mxu0
      %v6479 = vadd.f32 %v6270, %v6478
      %6480 = vmatmul.f32.gmra.mxu0 %v4112
      %v6481 = vpop.f32.mrf.mxu0
      %v6482 = vadd.f32 %v6273, %v6481
      %6483 = vmatmul.f32.gmra.mxu0 %v4128
      %v6484 = vpop.f32.mrf.mxu0
      %v6485 = vadd.f32 %v6276, %v6484
      %6486 = vmatmul.f32.gmra.mxu0 %v4144
      %v6487 = vpop.f32.mrf.mxu0
      %v6488 = vadd.f32 %v6279, %v6487
      %6489 = vmatmul.f32.gmra.mxu0 %v4160
      %v6490 = vpop.f32.mrf.mxu0
      %v6491 = vadd.f32 %v6282, %v6490
      %6492 = vmatmul.f32.gmra.mxu0 %v4176
      %v6493 = vpop.f32.mrf.mxu0
      %v6494 = vadd.f32 %v6285, %v6493
      %6495 = vmatmul.f32.gmra.mxu0 %v4192
      %v6496 = vpop.f32.mrf.mxu0
      %v6497 = vadd.f32 %v6288, %v6496
      %6498 = vmatmul.f32.gmra.mxu0 %v4208
      %v6499 = vpop.f32.mrf.mxu0
      %v6500 = vadd.f32 %v6291, %v6499
      %6501 = vmatmul.f32.gmra.mxu0 %v4224
      %v6502 = vpop.f32.mrf.mxu0
      %v6503 = vadd.f32 %v6294, %v6502
      %6504 = vmatmul.f32.gmra.mxu0 %v4240
      %v6505 = vpop.f32.mrf.mxu0
      %v6506 = vadd.f32 %v6297, %v6505
      %6507 = vmatmul.f32.gmra.mxu0 %v4256
      %v6508 = vpop.f32.mrf.mxu0
      %v6509 = vadd.f32 %v6300, %v6508
      %6510 = vmatmul.f32.gmra.mxu0 %v4272
      %v6511 = vpop.f32.mrf.mxu0
      %v6512 = vadd.f32 %v6303, %v6511
      %6513 = vmatmul.f32.gmra.mxu0 %v4288
      %v6514 = vpop.f32.mrf.mxu0
      %v6515 = vadd.f32 %v6306, %v6514
      %6516 = vmatmul.f32.gmra.mxu0 %v4304
      %v6517 = vpop.f32.mrf.mxu0
      %v6518 = vadd.f32 %v6309, %v6517
      %6519 = vmatmul.f32.gmra.mxu0 %v4320
      %v6520 = vpop.f32.mrf.mxu0
      %v6521 = vadd.f32 %v6312, %v6520
      %6522 = vmatmul.f32.gmra.mxu0 %v4336
      %v6523 = vpop.f32.mrf.mxu0
      %v6524 = vadd.f32 %v6315, %v6523
      %6525 = vmatmul.f32.gmra.mxu0 %v4352
      %v6526 = vpop.f32.mrf.mxu0
      %v6527 = vadd.f32 %v6318, %v6526
      %6528 = vmatmul.f32.gmra.mxu0 %v4368
      %v6529 = vpop.f32.mrf.mxu0
      %v6530 = vadd.f32 %v6321, %v6529
      %6531 = vmatmul.f32.gmra.mxu0 %v4384
      %v6532 = vpop.f32.mrf.mxu0
      %v6533 = vadd.f32 %v6324, %v6532
      %6534 = vmatmul.f32.gmra.mxu0 %v4400
      %v6535 = vpop.f32.mrf.mxu0
      %v6536 = vadd.f32 %v6327, %v6535
      %6537 = vmatmul.f32.gmra.mxu0 %v4416
      %v6538 = vpop.f32.mrf.mxu0
      %v6539 = vadd.f32 %v6330, %v6538
      %6540 = vmatmul.f32.gmra.mxu0 %v4432
      %v6541 = vpop.f32.mrf.mxu0
      %v6542 = vadd.f32 %v6333, %v6541
      %6543 = vmatmul.f32.gmra.mxu0 %v4448
      %v6544 = vpop.f32.mrf.mxu0
      %v6545 = vadd.f32 %v6336, %v6544
      %6546 = vmatmul.f32.gmra.mxu0 %v4464
      %v6547 = vpop.f32.mrf.mxu0
      %v6548 = vadd.f32 %v6339, %v6547
      %6549 = vmatmul.f32.gmra.mxu0 %v4480
      %v6550 = vpop.f32.mrf.mxu0
      %v6551 = vadd.f32 %v6342, %v6550
      %6552 = vmatmul.f32.gmra.mxu0 %v4496
      %v6553 = vpop.f32.mrf.mxu0
      %v6554 = vadd.f32 %v6345, %v6553
      %6555 = vmatmul.f32.gmra.mxu0 %v4512
      %v6556 = vpop.f32.mrf.mxu0
      %v6557 = vadd.f32 %v6348, %v6556
      %6558 = vmatmul.f32.gmra.mxu0 %v4528
      %v6559 = vpop.f32.mrf.mxu0
      %v6560 = vadd.f32 %v6351, %v6559
      %6561 = vmatmul.f32.gmra.mxu0 %v4544
      %v6562 = vpop.f32.mrf.mxu0
      %v6563 = vadd.f32 %v6354, %v6562
      %6564 = vmatmul.f32.gmra.mxu0 %v4560
      %v6565 = vpop.f32.mrf.mxu0
      %v6566 = vadd.f32 %v6357, %v6565
      %6567 = vmatmul.f32.gmra.mxu0 %v4576
      %v6568 = vpop.f32.mrf.mxu0
      %v6569 = vadd.f32 %v6360, %v6568
      %6570 = vmatmul.f32.gmra.mxu0 %v4592
      %v6571 = vpop.f32.mrf.mxu0
      %v6572 = vadd.f32 %v6363, %v6571
      %6573 = vmatmul.f32.gmra.mxu0 %v4608
      %v6574 = vpop.f32.mrf.mxu0
      %v6575 = vadd.f32 %v6366, %v6574
      %6576 = vmatmul.f32.gmra.mxu0 %v4624
      %v6577 = vpop.f32.mrf.mxu0
      %v6578 = vadd.f32 %v6369, %v6577
      %6579 = vmatmul.f32.gmra.mxu0 %v4640
      %v6580 = vpop.f32.mrf.mxu0
      %v6581 = vadd.f32 %v6372, %v6580
      %6582 = vmatmul.f32.gmra.mxu0 %v4656
      %v6583 = vpop.f32.mrf.mxu0
      %v6584 = vadd.f32 %v6375, %v6583
      %6585 = vmatmul.f32.gmra.mxu0 %v4672
      %v6586 = vpop.f32.mrf.mxu0
      %v6587 = vadd.f32 %v6378, %v6586
      %6588 = vmatmul.f32.gmra.mxu0 %v4688
      %v6589 = vpop.f32.mrf.mxu0
      %v6590 = vadd.f32 %v6381, %v6589
      %6591 = vmatmul.f32.gmra.mxu0 %v4704
      %v6592 = vpop.f32.mrf.mxu0
      %v6593 = vadd.f32 %v6384, %v6592
      %6594 = vmatmul.f32.gmra.mxu0 %v4720
      %v6595 = vpop.f32.mrf.mxu0
      %v6596 = vadd.f32 %v6387, %v6595
      %6597 = vmatmul.f32.gmra.mxu0 %v4736
      %v6598 = vpop.f32.mrf.mxu0
      %v6599 = vadd.f32 %v6390, %v6598
      %6600 = vdwg.mxu0
      %v6601 = vadd.f32 %v4737, %v6410
      %v6602 = vadd.f32 %v4738, %v6413
      %v6603 = vadd.f32 %v4739, %v6416
      %v6604 = vadd.f32 %v4740, %v6419
      %v6605 = vadd.f32 %v4741, %v6422
      %v6606 = vadd.f32 %v4742, %v6425
      %v6607 = vadd.f32 %v4743, %v6428
      %v6608 = vadd.f32 %v4744, %v6431
      %v6609 = vadd.f32 %v4745, %v6434
      %v6610 = vadd.f32 %v4746, %v6437
      %v6611 = vadd.f32 %v4747, %v6440
      %v6612 = vadd.f32 %v4748, %v6443
      %v6613 = vadd.f32 %v4749, %v6446
      %v6614 = vadd.f32 %v4750, %v6449
      %v6615 = vadd.f32 %v4751, %v6452
      %v6616 = vadd.f32 %v4752, %v6455
      %v6617 = vadd.f32 %v4753, %v6458
      %v6618 = vadd.f32 %v4754, %v6461
      %v6619 = vadd.f32 %v4755, %v6464
      %v6620 = vadd.f32 %v4756, %v6467
      %v6621 = vadd.f32 %v4757, %v6470
      %v6622 = vadd.f32 %v4758, %v6473
      %v6623 = vadd.f32 %v4759, %v6476
      %v6624 = vadd.f32 %v4760, %v6479
      %v6625 = vadd.f32 %v4761, %v6482
      %v6626 = vadd.f32 %v4762, %v6485
      %v6627 = vadd.f32 %v4763, %v6488
      %v6628 = vadd.f32 %v4764, %v6491
      %v6629 = vadd.f32 %v4765, %v6494
      %v6630 = vadd.f32 %v4766, %v6497
      %v6631 = vadd.f32 %v4767, %v6500
      %v6632 = vadd.f32 %v4768, %v6503
      %v6633 = vadd.f32 %v4769, %v6506
      %v6634 = vadd.f32 %v4770, %v6509
      %v6635 = vadd.f32 %v4771, %v6512
      %v6636 = vadd.f32 %v4772, %v6515
      %v6637 = vadd.f32 %v4773, %v6518
      %v6638 = vadd.f32 %v4774, %v6521
      %v6639 = vadd.f32 %v4775, %v6524
      %v6640 = vadd.f32 %v4776, %v6527
      %v6641 = vadd.f32 %v4777, %v6530
      %v6642 = vadd.f32 %v4778, %v6533
      %v6643 = vadd.f32 %v4779, %v6536
      %v6644 = vadd.f32 %v4780, %v6539
      %v6645 = vadd.f32 %v4781, %v6542
      %v6646 = vadd.f32 %v4782, %v6545
      %v6647 = vadd.f32 %v4783, %v6548
      %v6648 = vadd.f32 %v4784, %v6551
      %v6649 = vadd.f32 %v4785, %v6554
      %v6650 = vadd.f32 %v4786, %v6557
      %v6651 = vadd.f32 %v4787, %v6560
      %v6652 = vadd.f32 %v4788, %v6563
      %v6653 = vadd.f32 %v4789, %v6566
      %v6654 = vadd.f32 %v4790, %v6569
      %v6655 = vadd.f32 %v4791, %v6572
      %v6656 = vadd.f32 %v4792, %v6575
      %v6657 = vadd.f32 %v4793, %v6578
      %v6658 = vadd.f32 %v4794, %v6581
      %v6659 = vadd.f32 %v4795, %v6584
      %v6660 = vadd.f32 %v4796, %v6587
      %v6661 = vadd.f32 %v4797, %v6590
      %v6662 = vadd.f32 %v4798, %v6593
      %v6663 = vadd.f32 %v4799, %v6596
      %v6664 = vadd.f32 %v4800, %v6599
      %vm6665 = vcmask 7168
      %6666 = vst.msk [vmem:[%s305] sm:$0xff] %vm6665, %v6601
      %6667 = vst.msk [vmem:[%s305 + $0x8] sm:$0xff] %vm6665, %v6602
      %6668 = vst.msk [vmem:[%s305 + $0x10] sm:$0xff] %vm6665, %v6603
      %6669 = vst.msk [vmem:[%s305 + $0x18] sm:$0xff] %vm6665, %v6604
      %6670 = vst.msk [vmem:[%s305 + $0x20] sm:$0xff] %vm6665, %v6605
      %6671 = vst.msk [vmem:[%s305 + $0x28] sm:$0xff] %vm6665, %v6606
      %6672 = vst.msk [vmem:[%s305 + $0x30] sm:$0xff] %vm6665, %v6607
      %6673 = vst.msk [vmem:[%s305 + $0x38] sm:$0xff] %vm6665, %v6608
      %6674 = vst.msk [vmem:[%s305 + $0x40] sm:$0xff] %vm6665, %v6609
      %6675 = vst.msk [vmem:[%s305 + $0x48] sm:$0xff] %vm6665, %v6610
      %6676 = vst.msk [vmem:[%s305 + $0x50] sm:$0xff] %vm6665, %v6611
      %6677 = vst.msk [vmem:[%s305 + $0x58] sm:$0xff] %vm6665, %v6612
      %6678 = vst.msk [vmem:[%s305 + $0x60] sm:$0xff] %vm6665, %v6613
      %6679 = vst.msk [vmem:[%s305 + $0x68] sm:$0xff] %vm6665, %v6614
      %6680 = vst.msk [vmem:[%s305 + $0x70] sm:$0xff] %vm6665, %v6615
      %6681 = vst.msk [vmem:[%s305 + $0x78] sm:$0xff] %vm6665, %v6616
      %6682 = vst.msk [vmem:[%s305 + $0x80] sm:$0xff] %vm6665, %v6617
      %6683 = vst.msk [vmem:[%s305 + $0x88] sm:$0xff] %vm6665, %v6618
      %6684 = vst.msk [vmem:[%s305 + $0x90] sm:$0xff] %vm6665, %v6619
      %6685 = vst.msk [vmem:[%s305 + $0x98] sm:$0xff] %vm6665, %v6620
      %6686 = vst.msk [vmem:[%s305 + $0xa0] sm:$0xff] %vm6665, %v6621
      %6687 = vst.msk [vmem:[%s305 + $0xa8] sm:$0xff] %vm6665, %v6622
      %6688 = vst.msk [vmem:[%s305 + $0xb0] sm:$0xff] %vm6665, %v6623
      %6689 = vst.msk [vmem:[%s305 + $0xb8] sm:$0xff] %vm6665, %v6624
      %6690 = vst.msk [vmem:[%s305 + $0xc0] sm:$0xff] %vm6665, %v6625
      %6691 = vst.msk [vmem:[%s305 + $0xc8] sm:$0xff] %vm6665, %v6626
      %6692 = vst.msk [vmem:[%s305 + $0xd0] sm:$0xff] %vm6665, %v6627
      %6693 = vst.msk [vmem:[%s305 + $0xd8] sm:$0xff] %vm6665, %v6628
      %6694 = vst.msk [vmem:[%s305 + $0xe0] sm:$0xff] %vm6665, %v6629
      %6695 = vst.msk [vmem:[%s305 + $0xe8] sm:$0xff] %vm6665, %v6630
      %6696 = vst.msk [vmem:[%s305 + $0xf0] sm:$0xff] %vm6665, %v6631
      %6697 = vst.msk [vmem:[%s305 + $0xf8] sm:$0xff] %vm6665, %v6632
      %6698 = vst.msk [vmem:[%s305 + $0x100] sm:$0xff] %vm6665, %v6633
      %6699 = vst.msk [vmem:[%s305 + $0x108] sm:$0xff] %vm6665, %v6634
      %6700 = vst.msk [vmem:[%s305 + $0x110] sm:$0xff] %vm6665, %v6635
      %6701 = vst.msk [vmem:[%s305 + $0x118] sm:$0xff] %vm6665, %v6636
      %6702 = vst.msk [vmem:[%s305 + $0x120] sm:$0xff] %vm6665, %v6637
      %6703 = vst.msk [vmem:[%s305 + $0x128] sm:$0xff] %vm6665, %v6638
      %6704 = vst.msk [vmem:[%s305 + $0x130] sm:$0xff] %vm6665, %v6639
      %6705 = vst.msk [vmem:[%s305 + $0x138] sm:$0xff] %vm6665, %v6640
      %6706 = vst.msk [vmem:[%s305 + $0x140] sm:$0xff] %vm6665, %v6641
      %6707 = vst.msk [vmem:[%s305 + $0x148] sm:$0xff] %vm6665, %v6642
      %6708 = vst.msk [vmem:[%s305 + $0x150] sm:$0xff] %vm6665, %v6643
      %6709 = vst.msk [vmem:[%s305 + $0x158] sm:$0xff] %vm6665, %v6644
      %6710 = vst.msk [vmem:[%s305 + $0x160] sm:$0xff] %vm6665, %v6645
      %6711 = vst.msk [vmem:[%s305 + $0x168] sm:$0xff] %vm6665, %v6646
      %6712 = vst.msk [vmem:[%s305 + $0x170] sm:$0xff] %vm6665, %v6647
      %6713 = vst.msk [vmem:[%s305 + $0x178] sm:$0xff] %vm6665, %v6648
      %6714 = vst.msk [vmem:[%s305 + $0x180] sm:$0xff] %vm6665, %v6649
      %6715 = vst.msk [vmem:[%s305 + $0x188] sm:$0xff] %vm6665, %v6650
      %6716 = vst.msk [vmem:[%s305 + $0x190] sm:$0xff] %vm6665, %v6651
      %6717 = vst.msk [vmem:[%s305 + $0x198] sm:$0xff] %vm6665, %v6652
      %6718 = vst.msk [vmem:[%s305 + $0x1a0] sm:$0xff] %vm6665, %v6653
      %6719 = vst.msk [vmem:[%s305 + $0x1a8] sm:$0xff] %vm6665, %v6654
      %6720 = vst.msk [vmem:[%s305 + $0x1b0] sm:$0xff] %vm6665, %v6655
      %6721 = vst.msk [vmem:[%s305 + $0x1b8] sm:$0xff] %vm6665, %v6656
      %6722 = vst.msk [vmem:[%s305 + $0x1c0] sm:$0xff] %vm6665, %v6657
      %6723 = vst.msk [vmem:[%s305 + $0x1c8] sm:$0xff] %vm6665, %v6658
      %6724 = vst.msk [vmem:[%s305 + $0x1d0] sm:$0xff] %vm6665, %v6659
      %6725 = vst.msk [vmem:[%s305 + $0x1d8] sm:$0xff] %vm6665, %v6660
      %6726 = vst.msk [vmem:[%s305 + $0x1e0] sm:$0xff] %vm6665, %v6661
      %6727 = vst.msk [vmem:[%s305 + $0x1e8] sm:$0xff] %vm6665, %v6662
      %6728 = vst.msk [vmem:[%s305 + $0x1f0] sm:$0xff] %vm6665, %v6663
      %6729 = vst.msk [vmem:[%s305 + $0x1f8] sm:$0xff] %vm6665, %v6664
      // Predicated region
      $region45: #{tpu_custom_call.1} parent=39 // pred_check
        %p6730 = pneg %p307
      $region46: #{tpu_custom_call.1} parent=39 // pred_check_branch
        %6732 = sbr.rel (%p6730) target = $region48
      $region47: #{tpu_custom_call.1} parent=39 // pred_region
        %v6733 = vld [vmem:[%s305] sm:$0xff]
        %v6734 = vld [vmem:[%s305 + $0x8] sm:$0xff]
        %v6735 = vld [vmem:[%s305 + $0x10] sm:$0xff]
        %v6736 = vld [vmem:[%s305 + $0x18] sm:$0xff]
        %v6737 = vld [vmem:[%s305 + $0x20] sm:$0xff]
        %v6738 = vld [vmem:[%s305 + $0x28] sm:$0xff]
        %v6739 = vld [vmem:[%s305 + $0x30] sm:$0xff]
        %v6740 = vld [vmem:[%s305 + $0x38] sm:$0xff]
        %v6741 = vld [vmem:[%s305 + $0x40] sm:$0xff]
        %v6742 = vld [vmem:[%s305 + $0x48] sm:$0xff]
        %v6743 = vld [vmem:[%s305 + $0x50] sm:$0xff]
        %v6744 = vld [vmem:[%s305 + $0x58] sm:$0xff]
        %v6745 = vld [vmem:[%s305 + $0x60] sm:$0xff]
        %v6746 = vld [vmem:[%s305 + $0x68] sm:$0xff]
        %v6747 = vld [vmem:[%s305 + $0x70] sm:$0xff]
        %v6748 = vld [vmem:[%s305 + $0x78] sm:$0xff]
        %v6749 = vld [vmem:[%s305 + $0x80] sm:$0xff]
        %v6750 = vld [vmem:[%s305 + $0x88] sm:$0xff]
        %v6751 = vld [vmem:[%s305 + $0x90] sm:$0xff]
        %v6752 = vld [vmem:[%s305 + $0x98] sm:$0xff]
        %v6753 = vld [vmem:[%s305 + $0xa0] sm:$0xff]
        %v6754 = vld [vmem:[%s305 + $0xa8] sm:$0xff]
        %v6755 = vld [vmem:[%s305 + $0xb0] sm:$0xff]
        %v6756 = vld [vmem:[%s305 + $0xb8] sm:$0xff]
        %v6757 = vld [vmem:[%s305 + $0xc0] sm:$0xff]
        %v6758 = vld [vmem:[%s305 + $0xc8] sm:$0xff]
        %v6759 = vld [vmem:[%s305 + $0xd0] sm:$0xff]
        %v6760 = vld [vmem:[%s305 + $0xd8] sm:$0xff]
        %v6761 = vld [vmem:[%s305 + $0xe0] sm:$0xff]
        %v6762 = vld [vmem:[%s305 + $0xe8] sm:$0xff]
        %v6763 = vld [vmem:[%s305 + $0xf0] sm:$0xff]
        %v6764 = vld [vmem:[%s305 + $0xf8] sm:$0xff]
        %v6765 = vld [vmem:[%s305 + $0x100] sm:$0xff]
        %v6766 = vld [vmem:[%s305 + $0x108] sm:$0xff]
        %v6767 = vld [vmem:[%s305 + $0x110] sm:$0xff]
        %v6768 = vld [vmem:[%s305 + $0x118] sm:$0xff]
        %v6769 = vld [vmem:[%s305 + $0x120] sm:$0xff]
        %v6770 = vld [vmem:[%s305 + $0x128] sm:$0xff]
        %v6771 = vld [vmem:[%s305 + $0x130] sm:$0xff]
        %v6772 = vld [vmem:[%s305 + $0x138] sm:$0xff]
        %v6773 = vld [vmem:[%s305 + $0x140] sm:$0xff]
        %v6774 = vld [vmem:[%s305 + $0x148] sm:$0xff]
        %v6775 = vld [vmem:[%s305 + $0x150] sm:$0xff]
        %v6776 = vld [vmem:[%s305 + $0x158] sm:$0xff]
        %v6777 = vld [vmem:[%s305 + $0x160] sm:$0xff]
        %v6778 = vld [vmem:[%s305 + $0x168] sm:$0xff]
        %v6779 = vld [vmem:[%s305 + $0x170] sm:$0xff]
        %v6780 = vld [vmem:[%s305 + $0x178] sm:$0xff]
        %v6781 = vld [vmem:[%s305 + $0x180] sm:$0xff]
        %v6782 = vld [vmem:[%s305 + $0x188] sm:$0xff]
        %v6783 = vld [vmem:[%s305 + $0x190] sm:$0xff]
        %v6784 = vld [vmem:[%s305 + $0x198] sm:$0xff]
        %v6785 = vld [vmem:[%s305 + $0x1a0] sm:$0xff]
        %v6786 = vld [vmem:[%s305 + $0x1a8] sm:$0xff]
        %v6787 = vld [vmem:[%s305 + $0x1b0] sm:$0xff]
        %v6788 = vld [vmem:[%s305 + $0x1b8] sm:$0xff]
        %v6789 = vld [vmem:[%s305 + $0x1c0] sm:$0xff]
        %v6790 = vld [vmem:[%s305 + $0x1c8] sm:$0xff]
        %v6791 = vld [vmem:[%s305 + $0x1d0] sm:$0xff]
        %v6792 = vld [vmem:[%s305 + $0x1d8] sm:$0xff]
        %v6793 = vld [vmem:[%s305 + $0x1e0] sm:$0xff]
        %v6794 = vld [vmem:[%s305 + $0x1e8] sm:$0xff]
        %v6795 = vld [vmem:[%s305 + $0x1f0] sm:$0xff]
        %v6796 = vld [vmem:[%s305 + $0x1f8] sm:$0xff]
        %s6797 = sld [smem:[#allocation2]]
        %v6798 = vstv %s6797
        %v6799 = vadd.f32 %v6733, %v6798
        %v6800 = vadd.f32 %v6734, %v6798
        %v6801 = vadd.f32 %v6735, %v6798
        %v6802 = vadd.f32 %v6736, %v6798
        %v6803 = vadd.f32 %v6737, %v6798
        %v6804 = vadd.f32 %v6738, %v6798
        %v6805 = vadd.f32 %v6739, %v6798
        %v6806 = vadd.f32 %v6740, %v6798
        %v6807 = vadd.f32 %v6741, %v6798
        %v6808 = vadd.f32 %v6742, %v6798
        %v6809 = vadd.f32 %v6743, %v6798
        %v6810 = vadd.f32 %v6744, %v6798
        %v6811 = vadd.f32 %v6745, %v6798
        %v6812 = vadd.f32 %v6746, %v6798
        %v6813 = vadd.f32 %v6747, %v6798
        %v6814 = vadd.f32 %v6748, %v6798
        %v6815 = vadd.f32 %v6749, %v6798
        %v6816 = vadd.f32 %v6750, %v6798
        %v6817 = vadd.f32 %v6751, %v6798
        %v6818 = vadd.f32 %v6752, %v6798
        %v6819 = vadd.f32 %v6753, %v6798
        %v6820 = vadd.f32 %v6754, %v6798
        %v6821 = vadd.f32 %v6755, %v6798
        %v6822 = vadd.f32 %v6756, %v6798
        %v6823 = vadd.f32 %v6757, %v6798
        %v6824 = vadd.f32 %v6758, %v6798
        %v6825 = vadd.f32 %v6759, %v6798
        %v6826 = vadd.f32 %v6760, %v6798
        %v6827 = vadd.f32 %v6761, %v6798
        %v6828 = vadd.f32 %v6762, %v6798
        %v6829 = vadd.f32 %v6763, %v6798
        %v6830 = vadd.f32 %v6764, %v6798
        %v6831 = vadd.f32 %v6765, %v6798
        %v6832 = vadd.f32 %v6766, %v6798
        %v6833 = vadd.f32 %v6767, %v6798
        %v6834 = vadd.f32 %v6768, %v6798
        %v6835 = vadd.f32 %v6769, %v6798
        %v6836 = vadd.f32 %v6770, %v6798
        %v6837 = vadd.f32 %v6771, %v6798
        %v6838 = vadd.f32 %v6772, %v6798
        %v6839 = vadd.f32 %v6773, %v6798
        %v6840 = vadd.f32 %v6774, %v6798
        %v6841 = vadd.f32 %v6775, %v6798
        %v6842 = vadd.f32 %v6776, %v6798
        %v6843 = vadd.f32 %v6777, %v6798
        %v6844 = vadd.f32 %v6778, %v6798
        %v6845 = vadd.f32 %v6779, %v6798
        %v6846 = vadd.f32 %v6780, %v6798
        %v6847 = vadd.f32 %v6781, %v6798
        %v6848 = vadd.f32 %v6782, %v6798
        %v6849 = vadd.f32 %v6783, %v6798
        %v6850 = vadd.f32 %v6784, %v6798
        %v6851 = vadd.f32 %v6785, %v6798
        %v6852 = vadd.f32 %v6786, %v6798
        %v6853 = vadd.f32 %v6787, %v6798
        %v6854 = vadd.f32 %v6788, %v6798
        %v6855 = vadd.f32 %v6789, %v6798
        %v6856 = vadd.f32 %v6790, %v6798
        %v6857 = vadd.f32 %v6791, %v6798
        %v6858 = vadd.f32 %v6792, %v6798
        %v6859 = vadd.f32 %v6793, %v6798
        %v6860 = vadd.f32 %v6794, %v6798
        %v6861 = vadd.f32 %v6795, %v6798
        %v6862 = vadd.f32 %v6796, %v6798
        %6863 = vst.msk [vmem:[%s305] sm:$0xff] %vm6665, %v6799
        %6864 = vst.msk [vmem:[%s305 + $0x8] sm:$0xff] %vm6665, %v6800
        %6865 = vst.msk [vmem:[%s305 + $0x10] sm:$0xff] %vm6665, %v6801
        %6866 = vst.msk [vmem:[%s305 + $0x18] sm:$0xff] %vm6665, %v6802
        %6867 = vst.msk [vmem:[%s305 + $0x20] sm:$0xff] %vm6665, %v6803
        %6868 = vst.msk [vmem:[%s305 + $0x28] sm:$0xff] %vm6665, %v6804
        %6869 = vst.msk [vmem:[%s305 + $0x30] sm:$0xff] %vm6665, %v6805
        %6870 = vst.msk [vmem:[%s305 + $0x38] sm:$0xff] %vm6665, %v6806
        %6871 = vst.msk [vmem:[%s305 + $0x40] sm:$0xff] %vm6665, %v6807
        %6872 = vst.msk [vmem:[%s305 + $0x48] sm:$0xff] %vm6665, %v6808
        %6873 = vst.msk [vmem:[%s305 + $0x50] sm:$0xff] %vm6665, %v6809
        %6874 = vst.msk [vmem:[%s305 + $0x58] sm:$0xff] %vm6665, %v6810
        %6875 = vst.msk [vmem:[%s305 + $0x60] sm:$0xff] %vm6665, %v6811
        %6876 = vst.msk [vmem:[%s305 + $0x68] sm:$0xff] %vm6665, %v6812
        %6877 = vst.msk [vmem:[%s305 + $0x70] sm:$0xff] %vm6665, %v6813
        %6878 = vst.msk [vmem:[%s305 + $0x78] sm:$0xff] %vm6665, %v6814
        %6879 = vst.msk [vmem:[%s305 + $0x80] sm:$0xff] %vm6665, %v6815
        %6880 = vst.msk [vmem:[%s305 + $0x88] sm:$0xff] %vm6665, %v6816
        %6881 = vst.msk [vmem:[%s305 + $0x90] sm:$0xff] %vm6665, %v6817
        %6882 = vst.msk [vmem:[%s305 + $0x98] sm:$0xff] %vm6665, %v6818
        %6883 = vst.msk [vmem:[%s305 + $0xa0] sm:$0xff] %vm6665, %v6819
        %6884 = vst.msk [vmem:[%s305 + $0xa8] sm:$0xff] %vm6665, %v6820
        %6885 = vst.msk [vmem:[%s305 + $0xb0] sm:$0xff] %vm6665, %v6821
        %6886 = vst.msk [vmem:[%s305 + $0xb8] sm:$0xff] %vm6665, %v6822
        %6887 = vst.msk [vmem:[%s305 + $0xc0] sm:$0xff] %vm6665, %v6823
        %6888 = vst.msk [vmem:[%s305 + $0xc8] sm:$0xff] %vm6665, %v6824
        %6889 = vst.msk [vmem:[%s305 + $0xd0] sm:$0xff] %vm6665, %v6825
        %6890 = vst.msk [vmem:[%s305 + $0xd8] sm:$0xff] %vm6665, %v6826
        %6891 = vst.msk [vmem:[%s305 + $0xe0] sm:$0xff] %vm6665, %v6827
        %6892 = vst.msk [vmem:[%s305 + $0xe8] sm:$0xff] %vm6665, %v6828
        %6893 = vst.msk [vmem:[%s305 + $0xf0] sm:$0xff] %vm6665, %v6829
        %6894 = vst.msk [vmem:[%s305 + $0xf8] sm:$0xff] %vm6665, %v6830
        %6895 = vst.msk [vmem:[%s305 + $0x100] sm:$0xff] %vm6665, %v6831
        %6896 = vst.msk [vmem:[%s305 + $0x108] sm:$0xff] %vm6665, %v6832
        %6897 = vst.msk [vmem:[%s305 + $0x110] sm:$0xff] %vm6665, %v6833
        %6898 = vst.msk [vmem:[%s305 + $0x118] sm:$0xff] %vm6665, %v6834
        %6899 = vst.msk [vmem:[%s305 + $0x120] sm:$0xff] %vm6665, %v6835
        %6900 = vst.msk [vmem:[%s305 + $0x128] sm:$0xff] %vm6665, %v6836
        %6901 = vst.msk [vmem:[%s305 + $0x130] sm:$0xff] %vm6665, %v6837
        %6902 = vst.msk [vmem:[%s305 + $0x138] sm:$0xff] %vm6665, %v6838
        %6903 = vst.msk [vmem:[%s305 + $0x140] sm:$0xff] %vm6665, %v6839
        %6904 = vst.msk [vmem:[%s305 + $0x148] sm:$0xff] %vm6665, %v6840
        %6905 = vst.msk [vmem:[%s305 + $0x150] sm:$0xff] %vm6665, %v6841
        %6906 = vst.msk [vmem:[%s305 + $0x158] sm:$0xff] %vm6665, %v6842
        %6907 = vst.msk [vmem:[%s305 + $0x160] sm:$0xff] %vm6665, %v6843
        %6908 = vst.msk [vmem:[%s305 + $0x168] sm:$0xff] %vm6665, %v6844
        %6909 = vst.msk [vmem:[%s305 + $0x170] sm:$0xff] %vm6665, %v6845
        %6910 = vst.msk [vmem:[%s305 + $0x178] sm:$0xff] %vm6665, %v6846
        %6911 = vst.msk [vmem:[%s305 + $0x180] sm:$0xff] %vm6665, %v6847
        %6912 = vst.msk [vmem:[%s305 + $0x188] sm:$0xff] %vm6665, %v6848
        %6913 = vst.msk [vmem:[%s305 + $0x190] sm:$0xff] %vm6665, %v6849
        %6914 = vst.msk [vmem:[%s305 + $0x198] sm:$0xff] %vm6665, %v6850
        %6915 = vst.msk [vmem:[%s305 + $0x1a0] sm:$0xff] %vm6665, %v6851
        %6916 = vst.msk [vmem:[%s305 + $0x1a8] sm:$0xff] %vm6665, %v6852
        %6917 = vst.msk [vmem:[%s305 + $0x1b0] sm:$0xff] %vm6665, %v6853
        %6918 = vst.msk [vmem:[%s305 + $0x1b8] sm:$0xff] %vm6665, %v6854
        %6919 = vst.msk [vmem:[%s305 + $0x1c0] sm:$0xff] %vm6665, %v6855
        %6920 = vst.msk [vmem:[%s305 + $0x1c8] sm:$0xff] %vm6665, %v6856
        %6921 = vst.msk [vmem:[%s305 + $0x1d0] sm:$0xff] %vm6665, %v6857
        %6922 = vst.msk [vmem:[%s305 + $0x1d8] sm:$0xff] %vm6665, %v6858
        %6923 = vst.msk [vmem:[%s305 + $0x1e0] sm:$0xff] %vm6665, %v6859
        %6924 = vst.msk [vmem:[%s305 + $0x1e8] sm:$0xff] %vm6665, %v6860
        %6925 = vst.msk [vmem:[%s305 + $0x1f0] sm:$0xff] %vm6665, %v6861
        %6926 = vst.msk [vmem:[%s305 + $0x1f8] sm:$0xff] %vm6665, %v6862
      $region48: #{tpu_custom_call.1} parent=39 // pred_fallthru
        _
      %s6927 = smul.u32 64, %s21
      %p6928 = scmp.lt.s32.totalorder %s6927, 127
      %s6929 = scalar_select %p6928, %s6927, 127
      %s6930 = smul.addr %s6929, 8
      %s6931 = scalar_lea.vmem %s5, %s6930
      // Predicated region
      $region49: #{tpu_custom_call.1} parent=39 // pred_check
        %p6932 = pneg %p172
      $region50: #{tpu_custom_call.1} parent=39 // pred_check_branch
        %6934 = sbr.rel (%p6932) target = $region52
      $region51: #{tpu_custom_call.1} parent=39 // pred_region
        %s6935 = smul.u32 64, %s21
      $region52: #{tpu_custom_call.1} parent=39 // pred_fallthru
        _
    $region40: #{tpu_custom_call.1} parent=5 // pred_fallthru
      _
    %p6936 = scmp.le.s32.totalorder 2, %s12
    // Predicated region
    $region53: #{tpu_custom_call.1} parent=5 // pred_check
      %p6937 = pneg %p6936
    $region54: #{tpu_custom_call.1} parent=5 // pred_check_branch
      %6939 = sbr.rel (%p6937) target = $region56
    $region55: #{tpu_custom_call.1} parent=5 // pred_region
      %s6940 = ssub.s32 %s12, 2
      // Predicated region
      $region57: #{tpu_custom_call.1} parent=55 // pred_check
        %p6941 = pneg %p178
      $region58: #{tpu_custom_call.1} parent=55 // pred_check_branch
        %6943 = sbr.rel (%p6941) target = $region60
      $region59: #{tpu_custom_call.1} parent=55 // pred_region
        %s6944 = smul.u32 64, %s23
        %p6945 = scmp.lt.s32.totalorder %s6944, 127
        %s6946 = scalar_select %p6945, %s6944, 127
        %s6947 = smul.addr %s6946, 8
        %s6948 = scalar_lea.vmem %s5, %s6947
      $region60: #{tpu_custom_call.1} parent=55 // pred_fallthru
        _
    $region56: #{tpu_custom_call.1} parent=5 // pred_fallthru
      _
  $region6: #{tpu_custom_call.1} parent=0 // loop_footer
    %s16 = sadd.s32 1, %s12
  $region7: #{tpu_custom_call.1} parent=0 // loop_footer_branch
    %11 = sbr.rel target = $region3
  $region8: #{tpu_custom_call.1} parent=0 // loop_exit
    _

</llo_original>
